<compile_context>
chip_gen: v7x
topology: tpu7x:2x2x1
jax: 0.10.0
libtpu: 0.0.40
codegen_flags: <defaults>
</compile_context>

<pallas_src>
import jax
import jax.numpy as jnp
from jax.experimental import pallas as pl
from jax.experimental.pallas import tpu as pltpu

# ----- config (mT5-small-like, matches the 6144 = n_layer*2*n_head*64 constraint) ---
PRESEQLEN = 5       # num_token
D_MODEL   = 512     # n_embd / embedding_size
MID_DIM   = 512     # hidden_dim of control_trans
OUT_DIM   = 6144    # control_trans output
N_LAYER   = 8       # match_n_layer
N_HEAD    = 6       # match_n_head
HEAD_DIM  = 64      # match_n_embd
BATCH     = 2
M_PAD     = 8       # PRESEQLEN padded to a sublane-friendly row count

assert N_LAYER * 2 * N_HEAD * HEAD_DIM == OUT_DIM


# ---------------------------------------------------------------------------
# Fused kernel:  out = tanh(x @ W1 + b1) @ W2[:, tile] + b2[tile]
# Stage 1 is grid-invariant and recomputed per step (negligible); stage 2 is
# the HBM-bound hot path streaming bf16 W2 lane tiles.
# ---------------------------------------------------------------------------
def _fused_kernel(x_ref, w1_ref, b1_ref, w2_ref, b2_ref, o_ref):
    h = jnp.tanh(
        jnp.dot(x_ref[...], w1_ref[...], preferred_element_type=jnp.float32)
        + b1_ref[...]
    ).astype(jnp.bfloat16)
    o_ref[...] = (
        jnp.dot(h, w2_ref[...], preferred_element_type=jnp.float32)
        + b2_ref[...]
    )


def _default_tn():
    """Lane tile: split W2 across v7x's 2 TensorCores; one big DMA elsewhere."""
    try:
        kind = jax.devices()[0].device_kind.lower()
    except Exception:
        kind = ""
    return 3072 if ("v7" in kind or "7x" in kind) else 6144


def prefix_mlp_pallas(x_pad, w1, b1, w2, b2, *, tn=None):
    """x_pad: (M_PAD, D) bf16 -> (M_PAD, OUT_DIM) f32 via Linear->Tanh->Linear."""
    M, D = x_pad.shape
    K = w1.shape[1]
    N = w2.shape[1]
    if tn is None:
        tn = _default_tn()
    assert N % tn == 0
    grid = (N // tn,)
    return pl.pallas_call(
        _fused_kernel,
        out_shape=jax.ShapeDtypeStruct((M, N), jnp.float32),
        grid_spec=pltpu.PrefetchScalarGridSpec(
            num_scalar_prefetch=0,
            grid=grid,
            in_specs=[
                pl.BlockSpec((M, D), lambda j: (0, 0)),    # x   (grid-invariant, bf16)
                pl.BlockSpec((D, K), lambda j: (0, 0)),    # W1  (grid-invariant, bf16)
                pl.BlockSpec((1, K), lambda j: (0, 0)),    # b1  (grid-invariant, f32)
                pl.BlockSpec((K, tn), lambda j: (0, j)),   # W2  lane tile (bf16)
                pl.BlockSpec((1, tn), lambda j: (0, j)),   # b2  lane tile (f32)
            ],
            out_specs=pl.BlockSpec((M, tn), lambda j: (0, j)),
        ),
        compiler_params=pltpu.CompilerParams(
            dimension_semantics=("parallel",),
            vmem_limit_bytes=20 << 20,
        ),
        cost_estimate=pl.CostEstimate(
            flops=2 * M * D * K * grid[0] + 2 * M * K * N,
            transcendentals=M * K * grid[0],
            bytes_accessed=(M * D + D * K) * 2 + K * 4      # x, W1 (bf16), b1 (f32)
                           + K * N * 2 + N * 4              # W2 (bf16), b2 (f32)
                           + M * N * 4,                     # output (f32)
        ),
    )(x_pad, w1, b1, w2, b2)


def prefix_tuning_forward(params, batch_size):
    """Reproduces PrefixTuning.forward(batch_size) -> pvs (list with one tuple)."""
    wte, w1, b1, w2, b2 = (
        params["wte"], params["w1"], params["b1"], params["w2"], params["b2"]
    )
    # input_tokens = arange(num_token).expand(B, -1): every batch row is the
    # identical arange prefix, and wte(arange(S)) == wte itself -> no gather,
    # no batch duplication.  Pad S=5 rows to 8 for full-width sublane access.
    x = jnp.zeros((M_PAD, D_MODEL), jnp.bfloat16).at[:PRESEQLEN].set(wte)

    pkv_flat = prefix_mlp_pallas(x, w1, b1, w2, b2)[:PRESEQLEN]   # (S, 6144) f32

    # view -> (S, 2*n_layer, n_head, head_dim); dropout(p=0.0) is identity.
    pkv = pkv_flat.reshape(PRESEQLEN, N_LAYER * 2, N_HEAD, HEAD_DIM)
    # permute([2,0,3,1,4]) of (B,S,2L,H,D) == (2L,B,H,S,D); batch rows are
    # identical, so transpose once and broadcast the batch axis.
    pkv = jnp.transpose(pkv, (1, 2, 0, 3))                        # (2L, H, S, D)
    pkv = jnp.broadcast_to(
        pkv[:, None],
        (N_LAYER * 2, batch_size, N_HEAD, PRESEQLEN, HEAD_DIM),
    )
    # .split(2) along dim 0 -> tuple of n_layer arrays (2, B, n_head, S, head_dim)
    pkv = pkv.reshape(N_LAYER, 2, batch_size, N_HEAD, PRESEQLEN, HEAD_DIM)
    split_pkv = tuple(pkv[i] for i in range(N_LAYER))
    return [split_pkv]


def init_params(key):
    k_wte, k_w1, k_b1, k_w2, k_b2 = jax.random.split(key, 5)
    # Deterministic synthetic init (nn.Embedding ~ N(0,1); Linear ~ small uniform).
    # Weights / embeddings are stored bf16 (halves every weight DMA on the
    # bandwidth-bound path); biases stay f32 on the accumulator.
    wte = jax.random.normal(k_wte, (PRESEQLEN, D_MODEL), jnp.float32)
    w1 = jax.random.uniform(k_w1, (D_MODEL, MID_DIM), jnp.float32, -0.04, 0.04)
    b1 = jax.random.uniform(k_b1, (1, MID_DIM), jnp.float32, -0.04, 0.04)
    w2 = jax.random.uniform(k_w2, (MID_DIM, OUT_DIM), jnp.float32, -0.04, 0.04)
    b2 = jax.random.uniform(k_b2, (1, OUT_DIM), jnp.float32, -0.04, 0.04)
    return {
        "wte": wte.astype(jnp.bfloat16),
        "w1": w1.astype(jnp.bfloat16),
        "b1": b1,
        "w2": w2.astype(jnp.bfloat16),
        "b2": b2,
    }


if __name__ == "__main__":
    key = jax.random.PRNGKey(0)
    params = init_params(key)

    pvs = prefix_tuning_forward(params, batch_size=BATCH)
    pvs = jax.block_until_ready(pvs)

    # sanity: pvs = [tuple of n_layer arrays, each (2, B, n_head, S, head_dim)]
    assert len(pvs) == 1 and len(pvs[0]) == N_LAYER
    assert pvs[0][0].shape == (2, BATCH, N_HEAD, PRESEQLEN, HEAD_DIM)

    # reference check against plain-JAX computation using the same bf16 casts
    x_ref = params["wte"]                                           # (S, 512) bf16
    h_ref = jnp.tanh(
        jnp.dot(x_ref, params["w1"], preferred_element_type=jnp.float32)
        + params["b1"]
    ).astype(jnp.bfloat16)
    out_ref = (
        jnp.dot(h_ref, params["w2"], preferred_element_type=jnp.float32)
        + params["b2"]
    )                                                               # (S, 6144) f32
    ref = jnp.broadcast_to(
        out_ref[None], (BATCH, PRESEQLEN, OUT_DIM)
    ).reshape(BATCH, PRESEQLEN, N_LAYER * 2, N_HEAD, HEAD_DIM)
    ref = jnp.transpose(ref, (2, 0, 3, 1, 4))                       # (2L, B, H, S, D)
    got = jnp.concatenate([p for p in pvs[0]], axis=0)
    assert jnp.allclose(got, ref, atol=2e-2, rtol=2e-2)

    print("KERNEL_OK")
</pallas_src>

<mosaic_0001>
module attributes {stable_mosaic.version = 11 : i64} {
  func.func @_fused_kernel(%arg0: i32, %arg1: memref<8x512xbf16, #tpu.memory_space<vmem>>, %arg2: memref<512x512xbf16, #tpu.memory_space<vmem>>, %arg3: memref<1x512xf32, #tpu.memory_space<vmem>>, %arg4: memref<512x6144xbf16, #tpu.memory_space<vmem>>, %arg5: memref<1x6144xf32, #tpu.memory_space<vmem>>, %arg6: memref<8x6144xf32, #tpu.memory_space<vmem>>) attributes {dimension_semantics = [#tpu.dimension_semantics<parallel>], iteration_bounds = array<i64: 1>, scalar_prefetch = 0 : i64, scratch_operands = 0 : i64, tpu.core_type = #tpu.core_type<tc>, window_params = [{pipeline_mode = #tpu.pipeline_mode<synchronous>, transform_indices = @transform_0, window_bounds = array<i64: 8, 512>}, {pipeline_mode = #tpu.pipeline_mode<synchronous>, transform_indices = @transform_1, window_bounds = array<i64: 512, 512>}, {pipeline_mode = #tpu.pipeline_mode<synchronous>, transform_indices = @transform_2, window_bounds = array<i64: 1, 512>}, {transform_indices = @transform_3, window_bounds = array<i64: 512, 6144>}, {transform_indices = @transform_4, window_bounds = array<i64: 1, 6144>}, {transform_indices = @transform_5, window_bounds = array<i64: 8, 6144>}]} {
    %c0 = arith.constant 0 : index
    %c0_0 = arith.constant 0 : index
    %0 = vector.load %arg1[%c0, %c0_0] : memref<8x512xbf16, #tpu.memory_space<vmem>>, vector<8x512xbf16>
    %c0_1 = arith.constant 0 : index
    %c0_2 = arith.constant 0 : index
    %1 = vector.load %arg2[%c0_1, %c0_2] : memref<512x512xbf16, #tpu.memory_space<vmem>>, vector<512x512xbf16>
    %cst = arith.constant dense<0.000000e+00> : vector<8x512xf32>
    %2 = tpu.matmul %0, %1, %cst {dimension_numbers = #tpu.dot_dimension_numbers<[1], [0], [0], [1], [0, 0, 1, 1], [], []>} : vector<8x512xbf16>, vector<512x512xbf16>, vector<8x512xf32> -> vector<8x512xf32>
    %c0_3 = arith.constant 0 : index
    %c0_4 = arith.constant 0 : index
    %3 = vector.load %arg3[%c0_3, %c0_4] : memref<1x512xf32, #tpu.memory_space<vmem>>, vector<1x512xf32>
    %4 = vector.broadcast %3 : vector<1x512xf32> to vector<8x512xf32>
    %5 = arith.addf %2, %4 : vector<8x512xf32>
    %6 = math.tanh %5 : vector<8x512xf32>
    %7 = arith.truncf %6 : vector<8x512xf32> to vector<8x512xbf16>
    %c0_5 = arith.constant 0 : index
    %c0_6 = arith.constant 0 : index
    %8 = vector.load %arg4[%c0_5, %c0_6] : memref<512x6144xbf16, #tpu.memory_space<vmem>>, vector<512x6144xbf16>
    %cst_7 = arith.constant dense<0.000000e+00> : vector<8x6144xf32>
    %9 = tpu.matmul %7, %8, %cst_7 {dimension_numbers = #tpu.dot_dimension_numbers<[1], [0], [0], [1], [0, 0, 1, 1], [], []>} : vector<8x512xbf16>, vector<512x6144xbf16>, vector<8x6144xf32> -> vector<8x6144xf32>
    %c0_8 = arith.constant 0 : index
    %c0_9 = arith.constant 0 : index
    %10 = vector.load %arg5[%c0_8, %c0_9] : memref<1x6144xf32, #tpu.memory_space<vmem>>, vector<1x6144xf32>
    %11 = vector.broadcast %10 : vector<1x6144xf32> to vector<8x6144xf32>
    %12 = arith.addf %9, %11 : vector<8x6144xf32>
    %c0_10 = arith.constant 0 : index
    %c0_11 = arith.constant 0 : index
    %13 = vector.load %arg6[%c0_10, %c0_11] : memref<8x6144xf32, #tpu.memory_space<vmem>>, vector<8x6144xf32>
    tpu.vector_store %arg6[%c0_10, %c0_11], %12 {strides = array<i32>} : memref<8x6144xf32, #tpu.memory_space<vmem>>, vector<8x6144xf32>,
    return
  }
  func.func @transform_0(%arg0: i32) -> (i32, i32) {
    %c0_i32 = arith.constant 0 : i32
    %c0_i32_0 = arith.constant 0 : i32
    %c0_i32_1 = arith.constant 0 : i32
    return %c0_i32, %c0_i32_0 : i32, i32
  }
  func.func @transform_1(%arg0: i32) -> (i32, i32) {
    %c0_i32 = arith.constant 0 : i32
    %c0_i32_0 = arith.constant 0 : i32
    %c0_i32_1 = arith.constant 0 : i32
    return %c0_i32, %c0_i32_0 : i32, i32
  }
  func.func @transform_2(%arg0: i32) -> (i32, i32) {
    %c0_i32 = arith.constant 0 : i32
    %c0_i32_0 = arith.constant 0 : i32
    %c0_i32_1 = arith.constant 0 : i32
    return %c0_i32, %c0_i32_0 : i32, i32
  }
  func.func @transform_3(%arg0: i32) -> (i32, i32) {
    %c0_i32 = arith.constant 0 : i32
    %c0_i32_0 = arith.constant 0 : i32
    return %c0_i32, %arg0 : i32, i32
  }
  func.func @transform_4(%arg0: i32) -> (i32, i32) {
    %c0_i32 = arith.constant 0 : i32
    %c0_i32_0 = arith.constant 0 : i32
    return %c0_i32, %arg0 : i32, i32
  }
  func.func @transform_5(%arg0: i32) -> (i32, i32) {
    %c0_i32 = arith.constant 0 : i32
    %c0_i32_0 = arith.constant 0 : i32
    return %c0_i32, %arg0 : i32, i32
  }
}

</mosaic_0001>

<llo_original>
// kernel: tpu_custom_call.1
$region0: #{tpu_custom_call.1}
  #allocation0 [shape = 'u32[]', space=smem, size = 0x4, offset = 0x4, fixed_abs, tag = 'smem constant byte address 0x4 - core index']
  #allocation1 [shape = 'u32[144,128]{1,0:T(1,128)}', space=vmem, size = 0x12000, scoped, tag = 'internal scratch']
  %s0 = inlined_call_operand.hbm [shape: bf16[8,512], index: 0, kind: input, shape index: {}]
  %s1 = inlined_call_operand.hbm [shape: bf16[512,512], index: 1, kind: input, shape index: {}]
  %s2 = inlined_call_operand.hbm [shape: f32[1,512], index: 2, kind: input, shape index: {}]
  %s3 = inlined_call_operand.hbm [shape: bf16[512,6144], index: 3, kind: input, shape index: {}]
  %s4 = inlined_call_operand.hbm [shape: f32[1,6144], index: 4, kind: input, shape index: {}]
  %s5 = inlined_call_operand.hbm [shape: f32[8,6144], index: 5, kind: output, shape index: {}]
  %s6 = sld [smem:[#allocation0]]
  $region50: #{tpu_custom_call.1} parent=0
    _
  %s8 = ssub.s32 1, %s6
  %s9 = scalar_select 0, %s8, %s6
  $region1: #{tpu_custom_call.1} parent=0
    #allocation2 [shape = 'u8[8192]{0}', space=vmem, size = 0x2000, scoped, tag = 'input window, operand 0, single buffered']
    #allocation3 [shape = 's32[1]{0}', space=sflag, size = 0x4, scoped, tag = 'scoped memory for tpu_custom_call.1']
    #allocation4 [shape = 's32[1]{0}', space=sflag, size = 0x4, scoped, tag = 'scoped memory for tpu_custom_call.1']
    #allocation5 [shape = 'u8[524288]{0}', space=vmem, size = 0x80000, scoped, tag = 'input window, operand 1, single buffered']
    #allocation6 [shape = 's32[1]{0}', space=sflag, size = 0x4, scoped, tag = 'scoped memory for tpu_custom_call.1']
    #allocation7 [shape = 'u8[2048]{0}', space=vmem, size = 0x800, scoped, tag = 'input window, operand 2, single buffered']
    #allocation8 [shape = 'u8[6291456]{0}', space=vmem, size = 0x600000, scoped, tag = 'input window, operand 3, single buffered']
    #allocation9 [shape = 's32[1]{0}', space=sflag, size = 0x4, scoped, tag = 'scoped memory for tpu_custom_call.1']
    #allocation10 [shape = 'u8[24576]{0}', space=vmem, size = 0x6000, scoped, tag = 'input window, operand 4, single buffered']
    #allocation11 [shape = 'u8[196608]{0}', space=vmem, size = 0x30000, scoped, tag = 'output window, operand 0, single buffered']
    %10 = vsyncpa [#allocation3], 0
    %11 = vsyncpa [#allocation6], 0
    %12 = vsyncpa [#allocation9], 0
    %13 = vsyncpa [#allocation4], 0
    // Predicated region
    $region2: #{tpu_custom_call.1} parent=1 // pred_check
      _
    $region3: #{tpu_custom_call.1} parent=1 // pred_check_branch
      %15 = sbr.rel (0) target = $region5
    $region4: #{tpu_custom_call.1} parent=1 // pred_region
      %s17 = ssub.s32 256, 256
      %18 = vsyncadd [#allocation3], %s17
      %s20 = sshll.u32 [#allocation2], 4
      %s21 = int_to_ptr.vmem [resolvable:$true] %s20
      %23 = dma.hbm_to_vmem [thread:$0]  %s0, 256, %s21, [#allocation3]
    $region5: #{tpu_custom_call.1} parent=1 // pred_fallthru
      _
    // Predicated region
    $region6: #{tpu_custom_call.1} parent=1 // pred_check
      _
    $region7: #{tpu_custom_call.1} parent=1 // pred_check_branch
      %25 = sbr.rel (0) target = $region9
    $region8: #{tpu_custom_call.1} parent=1 // pred_region
      %s27 = ssub.s32 16384, 16384
      %28 = vsyncadd [#allocation6], %s27
      %s29 = sshll.u32 [#allocation5], 4
      %s30 = int_to_ptr.vmem [resolvable:$true] %s29
      %35 = dma.hbm_to_vmem [thread:$0]  %s1, 16384, %s30, [#allocation6], 256, 256, 16
    $region9: #{tpu_custom_call.1} parent=1 // pred_fallthru
      _
    // Predicated region
    $region10: #{tpu_custom_call.1} parent=1 // pred_check
      _
    $region11: #{tpu_custom_call.1} parent=1 // pred_check_branch
      %37 = sbr.rel (0) target = $region13
    $region12: #{tpu_custom_call.1} parent=1 // pred_region
      %s39 = ssub.s32 64, 64
      %40 = vsyncadd [#allocation6], %s39
      %s42 = sshll.u32 [#allocation7], 4
      %s43 = int_to_ptr.vmem [resolvable:$true] %s42
      %45 = dma.hbm_to_vmem [thread:$0]  %s2, 64, %s43, [#allocation6]
    $region13: #{tpu_custom_call.1} parent=1 // pred_fallthru
      _
    // Predicated region
    $region14: #{tpu_custom_call.1} parent=1 // pred_check
      _
    $region15: #{tpu_custom_call.1} parent=1 // pred_check_branch
      %47 = sbr.rel (0) target = $region17
    $region16: #{tpu_custom_call.1} parent=1 // pred_region
      %s49 = ssub.s32 196608, 196608
      %50 = vsyncadd [#allocation9], %s49
      %s51 = sshll.u32 [#allocation8], 4
      %s52 = int_to_ptr.vmem [resolvable:$true] %s51
      %57 = dma.hbm_to_vmem [thread:$0]  %s3, 196608, %s52, [#allocation9], 3072, 3072, 192
    $region17: #{tpu_custom_call.1} parent=1 // pred_fallthru
      _
    // Predicated region
    $region18: #{tpu_custom_call.1} parent=1 // pred_check
      _
    $region19: #{tpu_custom_call.1} parent=1 // pred_check_branch
      %59 = sbr.rel (0) target = $region21
    $region20: #{tpu_custom_call.1} parent=1 // pred_region
      %s61 = ssub.s32 768, 768
      %62 = vsyncadd [#allocation9], %s61
      %s64 = sshll.u32 [#allocation10], 4
      %s65 = int_to_ptr.vmem [resolvable:$true] %s64
      %67 = dma.hbm_to_vmem [thread:$0]  %s4, 768, %s65, [#allocation9]
    $region21: #{tpu_custom_call.1} parent=1 // pred_fallthru
      _
    // Predicated region
    $region22: #{tpu_custom_call.1} parent=1 // pred_check
      _
    $region23: #{tpu_custom_call.1} parent=1 // pred_check_branch
      %69 = sbr.rel (0) target = $region25
    $region24: #{tpu_custom_call.1} parent=1 // pred_region
      %70 = dma.done [#allocation3], 256
    $region25: #{tpu_custom_call.1} parent=1 // pred_fallthru
      _
    // Predicated region
    $region26: #{tpu_custom_call.1} parent=1 // pred_check
      _
    $region27: #{tpu_custom_call.1} parent=1 // pred_check_branch
      %72 = sbr.rel (0) target = $region29
    $region28: #{tpu_custom_call.1} parent=1 // pred_region
      %73 = dma.done [#allocation6], 16384
    $region29: #{tpu_custom_call.1} parent=1 // pred_fallthru
      _
    // Predicated region
    $region30: #{tpu_custom_call.1} parent=1 // pred_check
      _
    $region31: #{tpu_custom_call.1} parent=1 // pred_check_branch
      %75 = sbr.rel (0) target = $region33
    $region32: #{tpu_custom_call.1} parent=1 // pred_region
      %76 = dma.done [#allocation6], 64
    $region33: #{tpu_custom_call.1} parent=1 // pred_fallthru
      _
    // Predicated region
    $region34: #{tpu_custom_call.1} parent=1 // pred_check
      _
    $region35: #{tpu_custom_call.1} parent=1 // pred_check_branch
      %78 = sbr.rel (0) target = $region37
    $region36: #{tpu_custom_call.1} parent=1 // pred_region
      %79 = dma.done [#allocation9], 196608
    $region37: #{tpu_custom_call.1} parent=1 // pred_fallthru
      _
    // Predicated region
    $region38: #{tpu_custom_call.1} parent=1 // pred_check
      _
    $region39: #{tpu_custom_call.1} parent=1 // pred_check_branch
      %81 = sbr.rel (0) target = $region41
    $region40: #{tpu_custom_call.1} parent=1 // pred_region
      %82 = dma.done [#allocation9], 768
    $region41: #{tpu_custom_call.1} parent=1 // pred_fallthru
      _
    %v83 = vld [vmem:[#allocation2] sm:$0xff]
    %v84 = vld [vmem:[#allocation2 + $0x8] sm:$0xff]
    %v85 = vld [vmem:[#allocation5] sm:$0xff]
    %v86 = vld [vmem:[#allocation5 + $0x8] sm:$0xff]
    %v87 = vld [vmem:[#allocation5 + $0x10] sm:$0xff]
    %v88 = vld [vmem:[#allocation5 + $0x18] sm:$0xff]
    %v89 = vld [vmem:[#allocation5 + $0x20] sm:$0xff]
    %v90 = vld [vmem:[#allocation5 + $0x28] sm:$0xff]
    %v91 = vld [vmem:[#allocation5 + $0x30] sm:$0xff]
    %v92 = vld [vmem:[#allocation5 + $0x38] sm:$0xff]
    %v93 = vld [vmem:[#allocation5 + $0x40] sm:$0xff]
    %v94 = vld [vmem:[#allocation5 + $0x48] sm:$0xff]
    %v95 = vld [vmem:[#allocation5 + $0x50] sm:$0xff]
    %v96 = vld [vmem:[#allocation5 + $0x58] sm:$0xff]
    %v97 = vld [vmem:[#allocation5 + $0x60] sm:$0xff]
    %v98 = vld [vmem:[#allocation5 + $0x68] sm:$0xff]
    %v99 = vld [vmem:[#allocation5 + $0x70] sm:$0xff]
    %v100 = vld [vmem:[#allocation5 + $0x78] sm:$0xff]
    %v101 = vld [vmem:[#allocation5 + $0x80] sm:$0xff]
    %v102 = vld [vmem:[#allocation5 + $0x88] sm:$0xff]
    %v103 = vld [vmem:[#allocation5 + $0x90] sm:$0xff]
    %v104 = vld [vmem:[#allocation5 + $0x98] sm:$0xff]
    %v105 = vld [vmem:[#allocation5 + $0xa0] sm:$0xff]
    %v106 = vld [vmem:[#allocation5 + $0xa8] sm:$0xff]
    %v107 = vld [vmem:[#allocation5 + $0xb0] sm:$0xff]
    %v108 = vld [vmem:[#allocation5 + $0xb8] sm:$0xff]
    %v109 = vld [vmem:[#allocation5 + $0xc0] sm:$0xff]
    %v110 = vld [vmem:[#allocation5 + $0xc8] sm:$0xff]
    %v111 = vld [vmem:[#allocation5 + $0xd0] sm:$0xff]
    %v112 = vld [vmem:[#allocation5 + $0xd8] sm:$0xff]
    %v113 = vld [vmem:[#allocation5 + $0xe0] sm:$0xff]
    %v114 = vld [vmem:[#allocation5 + $0xe8] sm:$0xff]
    %v115 = vld [vmem:[#allocation5 + $0xf0] sm:$0xff]
    %v116 = vld [vmem:[#allocation5 + $0xf8] sm:$0xff]
    %v117 = vld [vmem:[#allocation5 + $0x100] sm:$0xff]
    %v118 = vld [vmem:[#allocation5 + $0x108] sm:$0xff]
    %v119 = vld [vmem:[#allocation5 + $0x110] sm:$0xff]
    %v120 = vld [vmem:[#allocation5 + $0x118] sm:$0xff]
    %v121 = vld [vmem:[#allocation5 + $0x120] sm:$0xff]
    %v122 = vld [vmem:[#allocation5 + $0x128] sm:$0xff]
    %v123 = vld [vmem:[#allocation5 + $0x130] sm:$0xff]
    %v124 = vld [vmem:[#allocation5 + $0x138] sm:$0xff]
    %v125 = vld [vmem:[#allocation5 + $0x140] sm:$0xff]
    %v126 = vld [vmem:[#allocation5 + $0x148] sm:$0xff]
    %v127 = vld [vmem:[#allocation5 + $0x150] sm:$0xff]
    %v128 = vld [vmem:[#allocation5 + $0x158] sm:$0xff]
    %v129 = vld [vmem:[#allocation5 + $0x160] sm:$0xff]
    %v130 = vld [vmem:[#allocation5 + $0x168] sm:$0xff]
    %v131 = vld [vmem:[#allocation5 + $0x170] sm:$0xff]
    %v132 = vld [vmem:[#allocation5 + $0x178] sm:$0xff]
    %v133 = vld [vmem:[#allocation5 + $0x180] sm:$0xff]
    %v134 = vld [vmem:[#allocation5 + $0x188] sm:$0xff]
    %v135 = vld [vmem:[#allocation5 + $0x190] sm:$0xff]
    %v136 = vld [vmem:[#allocation5 + $0x198] sm:$0xff]
    %v137 = vld [vmem:[#allocation5 + $0x1a0] sm:$0xff]
    %v138 = vld [vmem:[#allocation5 + $0x1a8] sm:$0xff]
    %v139 = vld [vmem:[#allocation5 + $0x1b0] sm:$0xff]
    %v140 = vld [vmem:[#allocation5 + $0x1b8] sm:$0xff]
    %v141 = vld [vmem:[#allocation5 + $0x1c0] sm:$0xff]
    %v142 = vld [vmem:[#allocation5 + $0x1c8] sm:$0xff]
    %v143 = vld [vmem:[#allocation5 + $0x1d0] sm:$0xff]
    %v144 = vld [vmem:[#allocation5 + $0x1d8] sm:$0xff]
    %v145 = vld [vmem:[#allocation5 + $0x1e0] sm:$0xff]
    %v146 = vld [vmem:[#allocation5 + $0x1e8] sm:$0xff]
    %v147 = vld [vmem:[#allocation5 + $0x1f0] sm:$0xff]
    %v148 = vld [vmem:[#allocation5 + $0x1f8] sm:$0xff]
    %v149 = vld [vmem:[#allocation5 + $0x200] sm:$0xff]
    %v150 = vld [vmem:[#allocation5 + $0x208] sm:$0xff]
    %v151 = vld [vmem:[#allocation5 + $0x210] sm:$0xff]
    %v152 = vld [vmem:[#allocation5 + $0x218] sm:$0xff]
    %v153 = vld [vmem:[#allocation5 + $0x220] sm:$0xff]
    %v154 = vld [vmem:[#allocation5 + $0x228] sm:$0xff]
    %v155 = vld [vmem:[#allocation5 + $0x230] sm:$0xff]
    %v156 = vld [vmem:[#allocation5 + $0x238] sm:$0xff]
    %v157 = vld [vmem:[#allocation5 + $0x240] sm:$0xff]
    %v158 = vld [vmem:[#allocation5 + $0x248] sm:$0xff]
    %v159 = vld [vmem:[#allocation5 + $0x250] sm:$0xff]
    %v160 = vld [vmem:[#allocation5 + $0x258] sm:$0xff]
    %v161 = vld [vmem:[#allocation5 + $0x260] sm:$0xff]
    %v162 = vld [vmem:[#allocation5 + $0x268] sm:$0xff]
    %v163 = vld [vmem:[#allocation5 + $0x270] sm:$0xff]
    %v164 = vld [vmem:[#allocation5 + $0x278] sm:$0xff]
    %v165 = vld [vmem:[#allocation5 + $0x280] sm:$0xff]
    %v166 = vld [vmem:[#allocation5 + $0x288] sm:$0xff]
    %v167 = vld [vmem:[#allocation5 + $0x290] sm:$0xff]
    %v168 = vld [vmem:[#allocation5 + $0x298] sm:$0xff]
    %v169 = vld [vmem:[#allocation5 + $0x2a0] sm:$0xff]
    %v170 = vld [vmem:[#allocation5 + $0x2a8] sm:$0xff]
    %v171 = vld [vmem:[#allocation5 + $0x2b0] sm:$0xff]
    %v172 = vld [vmem:[#allocation5 + $0x2b8] sm:$0xff]
    %v173 = vld [vmem:[#allocation5 + $0x2c0] sm:$0xff]
    %v174 = vld [vmem:[#allocation5 + $0x2c8] sm:$0xff]
    %v175 = vld [vmem:[#allocation5 + $0x2d0] sm:$0xff]
    %v176 = vld [vmem:[#allocation5 + $0x2d8] sm:$0xff]
    %v177 = vld [vmem:[#allocation5 + $0x2e0] sm:$0xff]
    %v178 = vld [vmem:[#allocation5 + $0x2e8] sm:$0xff]
    %v179 = vld [vmem:[#allocation5 + $0x2f0] sm:$0xff]
    %v180 = vld [vmem:[#allocation5 + $0x2f8] sm:$0xff]
    %v181 = vld [vmem:[#allocation5 + $0x300] sm:$0xff]
    %v182 = vld [vmem:[#allocation5 + $0x308] sm:$0xff]
    %v183 = vld [vmem:[#allocation5 + $0x310] sm:$0xff]
    %v184 = vld [vmem:[#allocation5 + $0x318] sm:$0xff]
    %v185 = vld [vmem:[#allocation5 + $0x320] sm:$0xff]
    %v186 = vld [vmem:[#allocation5 + $0x328] sm:$0xff]
    %v187 = vld [vmem:[#allocation5 + $0x330] sm:$0xff]
    %v188 = vld [vmem:[#allocation5 + $0x338] sm:$0xff]
    %v189 = vld [vmem:[#allocation5 + $0x340] sm:$0xff]
    %v190 = vld [vmem:[#allocation5 + $0x348] sm:$0xff]
    %v191 = vld [vmem:[#allocation5 + $0x350] sm:$0xff]
    %v192 = vld [vmem:[#allocation5 + $0x358] sm:$0xff]
    %v193 = vld [vmem:[#allocation5 + $0x360] sm:$0xff]
    %v194 = vld [vmem:[#allocation5 + $0x368] sm:$0xff]
    %v195 = vld [vmem:[#allocation5 + $0x370] sm:$0xff]
    %v196 = vld [vmem:[#allocation5 + $0x378] sm:$0xff]
    %v197 = vld [vmem:[#allocation5 + $0x380] sm:$0xff]
    %v198 = vld [vmem:[#allocation5 + $0x388] sm:$0xff]
    %v199 = vld [vmem:[#allocation5 + $0x390] sm:$0xff]
    %v200 = vld [vmem:[#allocation5 + $0x398] sm:$0xff]
    %v201 = vld [vmem:[#allocation5 + $0x3a0] sm:$0xff]
    %v202 = vld [vmem:[#allocation5 + $0x3a8] sm:$0xff]
    %v203 = vld [vmem:[#allocation5 + $0x3b0] sm:$0xff]
    %v204 = vld [vmem:[#allocation5 + $0x3b8] sm:$0xff]
    %v205 = vld [vmem:[#allocation5 + $0x3c0] sm:$0xff]
    %v206 = vld [vmem:[#allocation5 + $0x3c8] sm:$0xff]
    %v207 = vld [vmem:[#allocation5 + $0x3d0] sm:$0xff]
    %v208 = vld [vmem:[#allocation5 + $0x3d8] sm:$0xff]
    %v209 = vld [vmem:[#allocation5 + $0x3e0] sm:$0xff]
    %v210 = vld [vmem:[#allocation5 + $0x3e8] sm:$0xff]
    %v211 = vld [vmem:[#allocation5 + $0x3f0] sm:$0xff]
    %v212 = vld [vmem:[#allocation5 + $0x3f8] sm:$0xff]
    %v213 = vld [vmem:[#allocation7] sm:$0xf]
    %v215 = vlaneseq
    %v216 = vshrl.u32 %v215, 7
    %v217 = vsub.s32 0, %v216
    %v218 = vrot.slane %v213, %v217
    %v219 = vlaneseq
    %v220 = vshrl.u32 %v219, 7
    %v221 = vsub.s32 1, %v220
    %v222 = vrot.slane %v213, %v221
    %v223 = vlaneseq
    %v224 = vshrl.u32 %v223, 7
    %v225 = vsub.s32 2, %v224
    %v226 = vrot.slane %v213, %v225
    %v227 = vlaneseq
    %v228 = vshrl.u32 %v227, 7
    %v229 = vsub.s32 3, %v228
    %v230 = vrot.slane %v213, %v229
    %v237 = vunpack.c.l.b16 %v83
    %v238 = vunpack.c.h.b16 %v83
    %v239 = vunpack.c.l.b16 %v84
    %v240 = vunpack.c.h.b16 %v84
    %v241 = vpack.c.b16 %v237, %v237
    %v242 = vpack.c.b16 %v238, %v238
    %v243 = vpack.c.b16 %v239, %v239
    %v244 = vpack.c.b16 %v240, %v240
    %v377 = vunpack.c.l.b16 %v85
    %v378 = vunpack.c.h.b16 %v85
    %v379 = vunpack.c.l.b16 %v86
    %v380 = vunpack.c.h.b16 %v86
    %v381 = vunpack.c.l.b16 %v87
    %v382 = vunpack.c.h.b16 %v87
    %v383 = vunpack.c.l.b16 %v88
    %v384 = vunpack.c.h.b16 %v88
    %v385 = vunpack.c.l.b16 %v89
    %v386 = vunpack.c.h.b16 %v89
    %v387 = vunpack.c.l.b16 %v90
    %v388 = vunpack.c.h.b16 %v90
    %v389 = vunpack.c.l.b16 %v91
    %v390 = vunpack.c.h.b16 %v91
    %v391 = vunpack.c.l.b16 %v92
    %v392 = vunpack.c.h.b16 %v92
    %v393 = vunpack.c.l.b16 %v93
    %v394 = vunpack.c.h.b16 %v93
    %v395 = vunpack.c.l.b16 %v94
    %v396 = vunpack.c.h.b16 %v94
    %v397 = vunpack.c.l.b16 %v95
    %v398 = vunpack.c.h.b16 %v95
    %v399 = vunpack.c.l.b16 %v96
    %v400 = vunpack.c.h.b16 %v96
    %v401 = vunpack.c.l.b16 %v97
    %v402 = vunpack.c.h.b16 %v97
    %v403 = vunpack.c.l.b16 %v98
    %v404 = vunpack.c.h.b16 %v98
    %v405 = vunpack.c.l.b16 %v99
    %v406 = vunpack.c.h.b16 %v99
    %v407 = vunpack.c.l.b16 %v100
    %v408 = vunpack.c.h.b16 %v100
    %v409 = vunpack.c.l.b16 %v101
    %v410 = vunpack.c.h.b16 %v101
    %v411 = vunpack.c.l.b16 %v102
    %v412 = vunpack.c.h.b16 %v102
    %v413 = vunpack.c.l.b16 %v103
    %v414 = vunpack.c.h.b16 %v103
    %v415 = vunpack.c.l.b16 %v104
    %v416 = vunpack.c.h.b16 %v104
    %v417 = vunpack.c.l.b16 %v105
    %v418 = vunpack.c.h.b16 %v105
    %v419 = vunpack.c.l.b16 %v106
    %v420 = vunpack.c.h.b16 %v106
    %v421 = vunpack.c.l.b16 %v107
    %v422 = vunpack.c.h.b16 %v107
    %v423 = vunpack.c.l.b16 %v108
    %v424 = vunpack.c.h.b16 %v108
    %v425 = vunpack.c.l.b16 %v109
    %v426 = vunpack.c.h.b16 %v109
    %v427 = vunpack.c.l.b16 %v110
    %v428 = vunpack.c.h.b16 %v110
    %v429 = vunpack.c.l.b16 %v111
    %v430 = vunpack.c.h.b16 %v111
    %v431 = vunpack.c.l.b16 %v112
    %v432 = vunpack.c.h.b16 %v112
    %v433 = vunpack.c.l.b16 %v113
    %v434 = vunpack.c.h.b16 %v113
    %v435 = vunpack.c.l.b16 %v114
    %v436 = vunpack.c.h.b16 %v114
    %v437 = vunpack.c.l.b16 %v115
    %v438 = vunpack.c.h.b16 %v115
    %v439 = vunpack.c.l.b16 %v116
    %v440 = vunpack.c.h.b16 %v116
    %v441 = vunpack.c.l.b16 %v117
    %v442 = vunpack.c.h.b16 %v117
    %v443 = vunpack.c.l.b16 %v118
    %v444 = vunpack.c.h.b16 %v118
    %v445 = vunpack.c.l.b16 %v119
    %v446 = vunpack.c.h.b16 %v119
    %v447 = vunpack.c.l.b16 %v120
    %v448 = vunpack.c.h.b16 %v120
    %v449 = vunpack.c.l.b16 %v121
    %v450 = vunpack.c.h.b16 %v121
    %v451 = vunpack.c.l.b16 %v122
    %v452 = vunpack.c.h.b16 %v122
    %v453 = vunpack.c.l.b16 %v123
    %v454 = vunpack.c.h.b16 %v123
    %v455 = vunpack.c.l.b16 %v124
    %v456 = vunpack.c.h.b16 %v124
    %v457 = vunpack.c.l.b16 %v125
    %v458 = vunpack.c.h.b16 %v125
    %v459 = vunpack.c.l.b16 %v126
    %v460 = vunpack.c.h.b16 %v126
    %v461 = vunpack.c.l.b16 %v127
    %v462 = vunpack.c.h.b16 %v127
    %v463 = vunpack.c.l.b16 %v128
    %v464 = vunpack.c.h.b16 %v128
    %v465 = vunpack.c.l.b16 %v129
    %v466 = vunpack.c.h.b16 %v129
    %v467 = vunpack.c.l.b16 %v130
    %v468 = vunpack.c.h.b16 %v130
    %v469 = vunpack.c.l.b16 %v131
    %v470 = vunpack.c.h.b16 %v131
    %v471 = vunpack.c.l.b16 %v132
    %v472 = vunpack.c.h.b16 %v132
    %v473 = vunpack.c.l.b16 %v133
    %v474 = vunpack.c.h.b16 %v133
    %v475 = vunpack.c.l.b16 %v134
    %v476 = vunpack.c.h.b16 %v134
    %v477 = vunpack.c.l.b16 %v135
    %v478 = vunpack.c.h.b16 %v135
    %v479 = vunpack.c.l.b16 %v136
    %v480 = vunpack.c.h.b16 %v136
    %v481 = vunpack.c.l.b16 %v137
    %v482 = vunpack.c.h.b16 %v137
    %v483 = vunpack.c.l.b16 %v138
    %v484 = vunpack.c.h.b16 %v138
    %v485 = vunpack.c.l.b16 %v139
    %v486 = vunpack.c.h.b16 %v139
    %v487 = vunpack.c.l.b16 %v140
    %v488 = vunpack.c.h.b16 %v140
    %v489 = vunpack.c.l.b16 %v141
    %v490 = vunpack.c.h.b16 %v141
    %v491 = vunpack.c.l.b16 %v142
    %v492 = vunpack.c.h.b16 %v142
    %v493 = vunpack.c.l.b16 %v143
    %v494 = vunpack.c.h.b16 %v143
    %v495 = vunpack.c.l.b16 %v144
    %v496 = vunpack.c.h.b16 %v144
    %v497 = vunpack.c.l.b16 %v145
    %v498 = vunpack.c.h.b16 %v145
    %v499 = vunpack.c.l.b16 %v146
    %v500 = vunpack.c.h.b16 %v146
    %v501 = vunpack.c.l.b16 %v147
    %v502 = vunpack.c.h.b16 %v147
    %v503 = vunpack.c.l.b16 %v148
    %v504 = vunpack.c.h.b16 %v148
    %v505 = vunpack.c.l.b16 %v149
    %v506 = vunpack.c.h.b16 %v149
    %v507 = vunpack.c.l.b16 %v150
    %v508 = vunpack.c.h.b16 %v150
    %v509 = vunpack.c.l.b16 %v151
    %v510 = vunpack.c.h.b16 %v151
    %v511 = vunpack.c.l.b16 %v152
    %v512 = vunpack.c.h.b16 %v152
    %v513 = vunpack.c.l.b16 %v153
    %v514 = vunpack.c.h.b16 %v153
    %v515 = vunpack.c.l.b16 %v154
    %v516 = vunpack.c.h.b16 %v154
    %v517 = vunpack.c.l.b16 %v155
    %v518 = vunpack.c.h.b16 %v155
    %v519 = vunpack.c.l.b16 %v156
    %v520 = vunpack.c.h.b16 %v156
    %v521 = vunpack.c.l.b16 %v157
    %v522 = vunpack.c.h.b16 %v157
    %v523 = vunpack.c.l.b16 %v158
    %v524 = vunpack.c.h.b16 %v158
    %v525 = vunpack.c.l.b16 %v159
    %v526 = vunpack.c.h.b16 %v159
    %v527 = vunpack.c.l.b16 %v160
    %v528 = vunpack.c.h.b16 %v160
    %v529 = vunpack.c.l.b16 %v161
    %v530 = vunpack.c.h.b16 %v161
    %v531 = vunpack.c.l.b16 %v162
    %v532 = vunpack.c.h.b16 %v162
    %v533 = vunpack.c.l.b16 %v163
    %v534 = vunpack.c.h.b16 %v163
    %v535 = vunpack.c.l.b16 %v164
    %v536 = vunpack.c.h.b16 %v164
    %v537 = vunpack.c.l.b16 %v165
    %v538 = vunpack.c.h.b16 %v165
    %v539 = vunpack.c.l.b16 %v166
    %v540 = vunpack.c.h.b16 %v166
    %v541 = vunpack.c.l.b16 %v167
    %v542 = vunpack.c.h.b16 %v167
    %v543 = vunpack.c.l.b16 %v168
    %v544 = vunpack.c.h.b16 %v168
    %v545 = vunpack.c.l.b16 %v169
    %v546 = vunpack.c.h.b16 %v169
    %v547 = vunpack.c.l.b16 %v170
    %v548 = vunpack.c.h.b16 %v170
    %v549 = vunpack.c.l.b16 %v171
    %v550 = vunpack.c.h.b16 %v171
    %v551 = vunpack.c.l.b16 %v172
    %v552 = vunpack.c.h.b16 %v172
    %v553 = vunpack.c.l.b16 %v173
    %v554 = vunpack.c.h.b16 %v173
    %v555 = vunpack.c.l.b16 %v174
    %v556 = vunpack.c.h.b16 %v174
    %v557 = vunpack.c.l.b16 %v175
    %v558 = vunpack.c.h.b16 %v175
    %v559 = vunpack.c.l.b16 %v176
    %v560 = vunpack.c.h.b16 %v176
    %v561 = vunpack.c.l.b16 %v177
    %v562 = vunpack.c.h.b16 %v177
    %v563 = vunpack.c.l.b16 %v178
    %v564 = vunpack.c.h.b16 %v178
    %v565 = vunpack.c.l.b16 %v179
    %v566 = vunpack.c.h.b16 %v179
    %v567 = vunpack.c.l.b16 %v180
    %v568 = vunpack.c.h.b16 %v180
    %v569 = vunpack.c.l.b16 %v181
    %v570 = vunpack.c.h.b16 %v181
    %v571 = vunpack.c.l.b16 %v182
    %v572 = vunpack.c.h.b16 %v182
    %v573 = vunpack.c.l.b16 %v183
    %v574 = vunpack.c.h.b16 %v183
    %v575 = vunpack.c.l.b16 %v184
    %v576 = vunpack.c.h.b16 %v184
    %v577 = vunpack.c.l.b16 %v185
    %v578 = vunpack.c.h.b16 %v185
    %v579 = vunpack.c.l.b16 %v186
    %v580 = vunpack.c.h.b16 %v186
    %v581 = vunpack.c.l.b16 %v187
    %v582 = vunpack.c.h.b16 %v187
    %v583 = vunpack.c.l.b16 %v188
    %v584 = vunpack.c.h.b16 %v188
    %v585 = vunpack.c.l.b16 %v189
    %v586 = vunpack.c.h.b16 %v189
    %v587 = vunpack.c.l.b16 %v190
    %v588 = vunpack.c.h.b16 %v190
    %v589 = vunpack.c.l.b16 %v191
    %v590 = vunpack.c.h.b16 %v191
    %v591 = vunpack.c.l.b16 %v192
    %v592 = vunpack.c.h.b16 %v192
    %v593 = vunpack.c.l.b16 %v193
    %v594 = vunpack.c.h.b16 %v193
    %v595 = vunpack.c.l.b16 %v194
    %v596 = vunpack.c.h.b16 %v194
    %v597 = vunpack.c.l.b16 %v195
    %v598 = vunpack.c.h.b16 %v195
    %v599 = vunpack.c.l.b16 %v196
    %v600 = vunpack.c.h.b16 %v196
    %v601 = vunpack.c.l.b16 %v197
    %v602 = vunpack.c.h.b16 %v197
    %v603 = vunpack.c.l.b16 %v198
    %v604 = vunpack.c.h.b16 %v198
    %v605 = vunpack.c.l.b16 %v199
    %v606 = vunpack.c.h.b16 %v199
    %v607 = vunpack.c.l.b16 %v200
    %v608 = vunpack.c.h.b16 %v200
    %v609 = vunpack.c.l.b16 %v201
    %v610 = vunpack.c.h.b16 %v201
    %v611 = vunpack.c.l.b16 %v202
    %v612 = vunpack.c.h.b16 %v202
    %v613 = vunpack.c.l.b16 %v203
    %v614 = vunpack.c.h.b16 %v203
    %v615 = vunpack.c.l.b16 %v204
    %v616 = vunpack.c.h.b16 %v204
    %v617 = vunpack.c.l.b16 %v205
    %v618 = vunpack.c.h.b16 %v205
    %v619 = vunpack.c.l.b16 %v206
    %v620 = vunpack.c.h.b16 %v206
    %v621 = vunpack.c.l.b16 %v207
    %v622 = vunpack.c.h.b16 %v207
    %v623 = vunpack.c.l.b16 %v208
    %v624 = vunpack.c.h.b16 %v208
    %v625 = vunpack.c.l.b16 %v209
    %v626 = vunpack.c.h.b16 %v209
    %v627 = vunpack.c.l.b16 %v210
    %v628 = vunpack.c.h.b16 %v210
    %v629 = vunpack.c.l.b16 %v211
    %v630 = vunpack.c.h.b16 %v211
    %v631 = vunpack.c.l.b16 %v212
    %v632 = vunpack.c.h.b16 %v212
    %v633 = vpack.c.b16 %v381, %v377
    %v634 = vpack.c.b16 %v382, %v378
    %v635 = vpack.c.b16 %v383, %v379
    %v636 = vpack.c.b16 %v384, %v380
    %v637 = vpack.c.b16 %v389, %v385
    %v638 = vpack.c.b16 %v390, %v386
    %v639 = vpack.c.b16 %v391, %v387
    %v640 = vpack.c.b16 %v392, %v388
    %v641 = vpack.c.b16 %v397, %v393
    %v642 = vpack.c.b16 %v398, %v394
    %v643 = vpack.c.b16 %v399, %v395
    %v644 = vpack.c.b16 %v400, %v396
    %v645 = vpack.c.b16 %v405, %v401
    %v646 = vpack.c.b16 %v406, %v402
    %v647 = vpack.c.b16 %v407, %v403
    %v648 = vpack.c.b16 %v408, %v404
    %v649 = vpack.c.b16 %v413, %v409
    %v650 = vpack.c.b16 %v414, %v410
    %v651 = vpack.c.b16 %v415, %v411
    %v652 = vpack.c.b16 %v416, %v412
    %v653 = vpack.c.b16 %v421, %v417
    %v654 = vpack.c.b16 %v422, %v418
    %v655 = vpack.c.b16 %v423, %v419
    %v656 = vpack.c.b16 %v424, %v420
    %v657 = vpack.c.b16 %v429, %v425
    %v658 = vpack.c.b16 %v430, %v426
    %v659 = vpack.c.b16 %v431, %v427
    %v660 = vpack.c.b16 %v432, %v428
    %v661 = vpack.c.b16 %v437, %v433
    %v662 = vpack.c.b16 %v438, %v434
    %v663 = vpack.c.b16 %v439, %v435
    %v664 = vpack.c.b16 %v440, %v436
    %v665 = vpack.c.b16 %v445, %v441
    %v666 = vpack.c.b16 %v446, %v442
    %v667 = vpack.c.b16 %v447, %v443
    %v668 = vpack.c.b16 %v448, %v444
    %v669 = vpack.c.b16 %v453, %v449
    %v670 = vpack.c.b16 %v454, %v450
    %v671 = vpack.c.b16 %v455, %v451
    %v672 = vpack.c.b16 %v456, %v452
    %v673 = vpack.c.b16 %v461, %v457
    %v674 = vpack.c.b16 %v462, %v458
    %v675 = vpack.c.b16 %v463, %v459
    %v676 = vpack.c.b16 %v464, %v460
    %v677 = vpack.c.b16 %v469, %v465
    %v678 = vpack.c.b16 %v470, %v466
    %v679 = vpack.c.b16 %v471, %v467
    %v680 = vpack.c.b16 %v472, %v468
    %v681 = vpack.c.b16 %v477, %v473
    %v682 = vpack.c.b16 %v478, %v474
    %v683 = vpack.c.b16 %v479, %v475
    %v684 = vpack.c.b16 %v480, %v476
    %v685 = vpack.c.b16 %v485, %v481
    %v686 = vpack.c.b16 %v486, %v482
    %v687 = vpack.c.b16 %v487, %v483
    %v688 = vpack.c.b16 %v488, %v484
    %v689 = vpack.c.b16 %v493, %v489
    %v690 = vpack.c.b16 %v494, %v490
    %v691 = vpack.c.b16 %v495, %v491
    %v692 = vpack.c.b16 %v496, %v492
    %v693 = vpack.c.b16 %v501, %v497
    %v694 = vpack.c.b16 %v502, %v498
    %v695 = vpack.c.b16 %v503, %v499
    %v696 = vpack.c.b16 %v504, %v500
    %v697 = vpack.c.b16 %v509, %v505
    %v698 = vpack.c.b16 %v510, %v506
    %v699 = vpack.c.b16 %v511, %v507
    %v700 = vpack.c.b16 %v512, %v508
    %v701 = vpack.c.b16 %v517, %v513
    %v702 = vpack.c.b16 %v518, %v514
    %v703 = vpack.c.b16 %v519, %v515
    %v704 = vpack.c.b16 %v520, %v516
    %v705 = vpack.c.b16 %v525, %v521
    %v706 = vpack.c.b16 %v526, %v522
    %v707 = vpack.c.b16 %v527, %v523
    %v708 = vpack.c.b16 %v528, %v524
    %v709 = vpack.c.b16 %v533, %v529
    %v710 = vpack.c.b16 %v534, %v530
    %v711 = vpack.c.b16 %v535, %v531
    %v712 = vpack.c.b16 %v536, %v532
    %v713 = vpack.c.b16 %v541, %v537
    %v714 = vpack.c.b16 %v542, %v538
    %v715 = vpack.c.b16 %v543, %v539
    %v716 = vpack.c.b16 %v544, %v540
    %v717 = vpack.c.b16 %v549, %v545
    %v718 = vpack.c.b16 %v550, %v546
    %v719 = vpack.c.b16 %v551, %v547
    %v720 = vpack.c.b16 %v552, %v548
    %v721 = vpack.c.b16 %v557, %v553
    %v722 = vpack.c.b16 %v558, %v554
    %v723 = vpack.c.b16 %v559, %v555
    %v724 = vpack.c.b16 %v560, %v556
    %v725 = vpack.c.b16 %v565, %v561
    %v726 = vpack.c.b16 %v566, %v562
    %v727 = vpack.c.b16 %v567, %v563
    %v728 = vpack.c.b16 %v568, %v564
    %v729 = vpack.c.b16 %v573, %v569
    %v730 = vpack.c.b16 %v574, %v570
    %v731 = vpack.c.b16 %v575, %v571
    %v732 = vpack.c.b16 %v576, %v572
    %v733 = vpack.c.b16 %v581, %v577
    %v734 = vpack.c.b16 %v582, %v578
    %v735 = vpack.c.b16 %v583, %v579
    %v736 = vpack.c.b16 %v584, %v580
    %v737 = vpack.c.b16 %v589, %v585
    %v738 = vpack.c.b16 %v590, %v586
    %v739 = vpack.c.b16 %v591, %v587
    %v740 = vpack.c.b16 %v592, %v588
    %v741 = vpack.c.b16 %v597, %v593
    %v742 = vpack.c.b16 %v598, %v594
    %v743 = vpack.c.b16 %v599, %v595
    %v744 = vpack.c.b16 %v600, %v596
    %v745 = vpack.c.b16 %v605, %v601
    %v746 = vpack.c.b16 %v606, %v602
    %v747 = vpack.c.b16 %v607, %v603
    %v748 = vpack.c.b16 %v608, %v604
    %v749 = vpack.c.b16 %v613, %v609
    %v750 = vpack.c.b16 %v614, %v610
    %v751 = vpack.c.b16 %v615, %v611
    %v752 = vpack.c.b16 %v616, %v612
    %v753 = vpack.c.b16 %v621, %v617
    %v754 = vpack.c.b16 %v622, %v618
    %v755 = vpack.c.b16 %v623, %v619
    %v756 = vpack.c.b16 %v624, %v620
    %v757 = vpack.c.b16 %v629, %v625
    %v758 = vpack.c.b16 %v630, %v626
    %v759 = vpack.c.b16 %v631, %v627
    %v760 = vpack.c.b16 %v632, %v628
    %889 = vmatprep.subr.bf16.mxu0 %v634
    %890 = vmatpush1.bf16.msra.mxu0 %v633
    %891 = vmatprep.subr.bf16.mxu0 %v638
    %892 = vmatpush1.bf16.msra.mxu0 %v637
    %893 = vmatprep.subr.bf16.mxu0 %v642
    %894 = vmatpush1.bf16.msra.mxu0 %v641
    %895 = vmatprep.subr.bf16.mxu0 %v646
    %896 = vmatpush1.bf16.msra.mxu0 %v645
    %897 = vmatprep.subr.bf16.mxu0 %v650
    %898 = vmatpush1.bf16.msra.mxu0 %v649
    %899 = vmatprep.subr.bf16.mxu0 %v654
    %900 = vmatpush1.bf16.msra.mxu0 %v653
    %901 = vmatprep.subr.bf16.mxu0 %v658
    %902 = vmatpush1.bf16.msra.mxu0 %v657
    %903 = vmatprep.subr.bf16.mxu0 %v662
    %904 = vmatpush1.bf16.msra.mxu0 %v661
    %905 = vmatprep.subr.bf16.mxu0 %v666
    %906 = vmatpush1.bf16.msra.mxu0 %v665
    %907 = vmatprep.subr.bf16.mxu0 %v670
    %908 = vmatpush1.bf16.msra.mxu0 %v669
    %909 = vmatprep.subr.bf16.mxu0 %v674
    %910 = vmatpush1.bf16.msra.mxu0 %v673
    %911 = vmatprep.subr.bf16.mxu0 %v678
    %912 = vmatpush1.bf16.msra.mxu0 %v677
    %913 = vmatprep.subr.bf16.mxu0 %v682
    %914 = vmatpush1.bf16.msra.mxu0 %v681
    %915 = vmatprep.subr.bf16.mxu0 %v686
    %916 = vmatpush1.bf16.msra.mxu0 %v685
    %917 = vmatprep.subr.bf16.mxu0 %v690
    %918 = vmatpush1.bf16.msra.mxu0 %v689
    %919 = vmatprep.subr.bf16.mxu0 %v694
    %920 = vmatpush1.bf16.msra.mxu0 %v693
    %921 = vmatprep.mubr.bf16.mxu0 %v242
    %922 = vmatmul.mubr.bf16.gmra.mrb[0].mxu0 %v241
    %v923 = vpop.f32.mrb[0].mxu0
    %v924 = vadd.f32 %v218, %v923
    %v925 = vpop.f32.mrb[0].mxu0
    %v926 = vadd.f32 %v222, %v925
    %v927 = vpop.f32.mrb[0].mxu0
    %v928 = vpop.f32.mrb[0].mxu0
    %929 = vdwg.mxu0
    %930 = vmatprep.subr.bf16.mxu0 %v698
    %931 = vmatpush1.bf16.msra.mxu0 %v697
    %932 = vmatprep.subr.bf16.mxu0 %v702
    %933 = vmatpush1.bf16.msra.mxu0 %v701
    %934 = vmatprep.subr.bf16.mxu0 %v706
    %935 = vmatpush1.bf16.msra.mxu0 %v705
    %936 = vmatprep.subr.bf16.mxu0 %v710
    %937 = vmatpush1.bf16.msra.mxu0 %v709
    %938 = vmatprep.subr.bf16.mxu0 %v714
    %939 = vmatpush1.bf16.msra.mxu0 %v713
    %940 = vmatprep.subr.bf16.mxu0 %v718
    %941 = vmatpush1.bf16.msra.mxu0 %v717
    %942 = vmatprep.subr.bf16.mxu0 %v722
    %943 = vmatpush1.bf16.msra.mxu0 %v721
    %944 = vmatprep.subr.bf16.mxu0 %v726
    %945 = vmatpush1.bf16.msra.mxu0 %v725
    %946 = vmatprep.subr.bf16.mxu0 %v730
    %947 = vmatpush1.bf16.msra.mxu0 %v729
    %948 = vmatprep.subr.bf16.mxu0 %v734
    %949 = vmatpush1.bf16.msra.mxu0 %v733
    %950 = vmatprep.subr.bf16.mxu0 %v738
    %951 = vmatpush1.bf16.msra.mxu0 %v737
    %952 = vmatprep.subr.bf16.mxu0 %v742
    %953 = vmatpush1.bf16.msra.mxu0 %v741
    %954 = vmatprep.subr.bf16.mxu0 %v746
    %955 = vmatpush1.bf16.msra.mxu0 %v745
    %956 = vmatprep.subr.bf16.mxu0 %v750
    %957 = vmatpush1.bf16.msra.mxu0 %v749
    %958 = vmatprep.subr.bf16.mxu0 %v754
    %959 = vmatpush1.bf16.msra.mxu0 %v753
    %960 = vmatprep.subr.bf16.mxu0 %v758
    %961 = vmatpush1.bf16.msra.mxu0 %v757
    %962 = vmatprep.mubr.bf16.mxu0 %v244
    %963 = vmatmul.mubr.bf16.gmra.mrb[0].mxu0 %v243
    %v964 = vpop.f32.mrb[0].mxu0
    %v965 = vadd.f32 %v924, %v964
    %v966 = vpop.f32.mrb[0].mxu0
    %v967 = vadd.f32 %v926, %v966
    %v968 = vpop.f32.mrb[0].mxu0
    %v969 = vpop.f32.mrb[0].mxu0
    %970 = vdwg.mxu0
    %971 = vmatprep.subr.bf16.mxu0 %v636
    %972 = vmatpush1.bf16.msra.mxu0 %v635
    %973 = vmatprep.subr.bf16.mxu0 %v640
    %974 = vmatpush1.bf16.msra.mxu0 %v639
    %975 = vmatprep.subr.bf16.mxu0 %v644
    %976 = vmatpush1.bf16.msra.mxu0 %v643
    %977 = vmatprep.subr.bf16.mxu0 %v648
    %978 = vmatpush1.bf16.msra.mxu0 %v647
    %979 = vmatprep.subr.bf16.mxu0 %v652
    %980 = vmatpush1.bf16.msra.mxu0 %v651
    %981 = vmatprep.subr.bf16.mxu0 %v656
    %982 = vmatpush1.bf16.msra.mxu0 %v655
    %983 = vmatprep.subr.bf16.mxu0 %v660
    %984 = vmatpush1.bf16.msra.mxu0 %v659
    %985 = vmatprep.subr.bf16.mxu0 %v664
    %986 = vmatpush1.bf16.msra.mxu0 %v663
    %987 = vmatprep.subr.bf16.mxu0 %v668
    %988 = vmatpush1.bf16.msra.mxu0 %v667
    %989 = vmatprep.subr.bf16.mxu0 %v672
    %990 = vmatpush1.bf16.msra.mxu0 %v671
    %991 = vmatprep.subr.bf16.mxu0 %v676
    %992 = vmatpush1.bf16.msra.mxu0 %v675
    %993 = vmatprep.subr.bf16.mxu0 %v680
    %994 = vmatpush1.bf16.msra.mxu0 %v679
    %995 = vmatprep.subr.bf16.mxu0 %v684
    %996 = vmatpush1.bf16.msra.mxu0 %v683
    %997 = vmatprep.subr.bf16.mxu0 %v688
    %998 = vmatpush1.bf16.msra.mxu0 %v687
    %999 = vmatprep.subr.bf16.mxu0 %v692
    %1000 = vmatpush1.bf16.msra.mxu0 %v691
    %1001 = vmatprep.subr.bf16.mxu0 %v696
    %1002 = vmatpush1.bf16.msra.mxu0 %v695
    %1003 = vmatprep.mubr.bf16.mxu0 %v242
    %1004 = vmatmul.mubr.bf16.gmra.mrb[0].mxu0 %v241
    %v1005 = vpop.f32.mrb[0].mxu0
    %v1006 = vadd.f32 %v226, %v1005
    %v1007 = vpop.f32.mrb[0].mxu0
    %v1008 = vadd.f32 %v230, %v1007
    %v1009 = vpop.f32.mrb[0].mxu0
    %v1010 = vpop.f32.mrb[0].mxu0
    %1011 = vdwg.mxu0
    %1012 = vmatprep.subr.bf16.mxu0 %v700
    %1013 = vmatpush1.bf16.msra.mxu0 %v699
    %1014 = vmatprep.subr.bf16.mxu0 %v704
    %1015 = vmatpush1.bf16.msra.mxu0 %v703
    %1016 = vmatprep.subr.bf16.mxu0 %v708
    %1017 = vmatpush1.bf16.msra.mxu0 %v707
    %1018 = vmatprep.subr.bf16.mxu0 %v712
    %1019 = vmatpush1.bf16.msra.mxu0 %v711
    %1020 = vmatprep.subr.bf16.mxu0 %v716
    %1021 = vmatpush1.bf16.msra.mxu0 %v715
    %1022 = vmatprep.subr.bf16.mxu0 %v720
    %1023 = vmatpush1.bf16.msra.mxu0 %v719
    %1024 = vmatprep.subr.bf16.mxu0 %v724
    %1025 = vmatpush1.bf16.msra.mxu0 %v723
    %1026 = vmatprep.subr.bf16.mxu0 %v728
    %1027 = vmatpush1.bf16.msra.mxu0 %v727
    %1028 = vmatprep.subr.bf16.mxu0 %v732
    %1029 = vmatpush1.bf16.msra.mxu0 %v731
    %1030 = vmatprep.subr.bf16.mxu0 %v736
    %1031 = vmatpush1.bf16.msra.mxu0 %v735
    %1032 = vmatprep.subr.bf16.mxu0 %v740
    %1033 = vmatpush1.bf16.msra.mxu0 %v739
    %1034 = vmatprep.subr.bf16.mxu0 %v744
    %1035 = vmatpush1.bf16.msra.mxu0 %v743
    %1036 = vmatprep.subr.bf16.mxu0 %v748
    %1037 = vmatpush1.bf16.msra.mxu0 %v747
    %1038 = vmatprep.subr.bf16.mxu0 %v752
    %1039 = vmatpush1.bf16.msra.mxu0 %v751
    %1040 = vmatprep.subr.bf16.mxu0 %v756
    %1041 = vmatpush1.bf16.msra.mxu0 %v755
    %1042 = vmatprep.subr.bf16.mxu0 %v760
    %1043 = vmatpush1.bf16.msra.mxu0 %v759
    %1044 = vmatprep.mubr.bf16.mxu0 %v244
    %1045 = vmatmul.mubr.bf16.gmra.mrb[0].mxu0 %v243
    %v1046 = vpop.f32.mrb[0].mxu0
    %v1047 = vadd.f32 %v1006, %v1046
    %v1048 = vpop.f32.mrb[0].mxu0
    %v1049 = vadd.f32 %v1008, %v1048
    %v1050 = vpop.f32.mrb[0].mxu0
    %v1051 = vpop.f32.mrb[0].mxu0
    %1052 = vdwg.mxu0
    %v1053 = vtanh.pop %v965
    %v1054 = vtanh.pop %v967
    %v1055 = vtanh.pop %v1047
    %v1056 = vtanh.pop %v1049
    %v1057 = vpack.c.bf16 %v1053, %v1053
    %v1058 = vpack.c.bf16 %v1054, %v1054
    %v1059 = vpack.c.bf16 %v1055, %v1055
    %v1060 = vpack.c.bf16 %v1056, %v1056
    %v1061 = vld [vmem:[#allocation8] sm:$0xff]
    %v1062 = vld [vmem:[#allocation8 + $0x8] sm:$0xff]
    %v1063 = vld [vmem:[#allocation8 + $0x10] sm:$0xff]
    %v1064 = vld [vmem:[#allocation8 + $0x18] sm:$0xff]
    %v1065 = vld [vmem:[#allocation8 + $0x20] sm:$0xff]
    %v1066 = vld [vmem:[#allocation8 + $0x28] sm:$0xff]
    %v1067 = vld [vmem:[#allocation8 + $0x30] sm:$0xff]
    %v1068 = vld [vmem:[#allocation8 + $0x38] sm:$0xff]
    %v1069 = vld [vmem:[#allocation8 + $0x40] sm:$0xff]
    %v1070 = vld [vmem:[#allocation8 + $0x48] sm:$0xff]
    %v1071 = vld [vmem:[#allocation8 + $0x50] sm:$0xff]
    %v1072 = vld [vmem:[#allocation8 + $0x58] sm:$0xff]
    %v1073 = vld [vmem:[#allocation8 + $0x60] sm:$0xff]
    %v1074 = vld [vmem:[#allocation8 + $0x68] sm:$0xff]
    %v1075 = vld [vmem:[#allocation8 + $0x70] sm:$0xff]
    %v1076 = vld [vmem:[#allocation8 + $0x78] sm:$0xff]
    %v1077 = vld [vmem:[#allocation8 + $0x80] sm:$0xff]
    %v1078 = vld [vmem:[#allocation8 + $0x88] sm:$0xff]
    %v1079 = vld [vmem:[#allocation8 + $0x90] sm:$0xff]
    %v1080 = vld [vmem:[#allocation8 + $0x98] sm:$0xff]
    %v1081 = vld [vmem:[#allocation8 + $0xa0] sm:$0xff]
    %v1082 = vld [vmem:[#allocation8 + $0xa8] sm:$0xff]
    %v1083 = vld [vmem:[#allocation8 + $0xb0] sm:$0xff]
    %v1084 = vld [vmem:[#allocation8 + $0xb8] sm:$0xff]
    %v1085 = vld [vmem:[#allocation8 + $0xc0] sm:$0xff]
    %v1086 = vld [vmem:[#allocation8 + $0xc8] sm:$0xff]
    %v1087 = vld [vmem:[#allocation8 + $0xd0] sm:$0xff]
    %v1088 = vld [vmem:[#allocation8 + $0xd8] sm:$0xff]
    %v1089 = vld [vmem:[#allocation8 + $0xe0] sm:$0xff]
    %v1090 = vld [vmem:[#allocation8 + $0xe8] sm:$0xff]
    %v1091 = vld [vmem:[#allocation8 + $0xf0] sm:$0xff]
    %v1092 = vld [vmem:[#allocation8 + $0xf8] sm:$0xff]
    %v1093 = vld [vmem:[#allocation8 + $0x100] sm:$0xff]
    %v1094 = vld [vmem:[#allocation8 + $0x108] sm:$0xff]
    %v1095 = vld [vmem:[#allocation8 + $0x110] sm:$0xff]
    %v1096 = vld [vmem:[#allocation8 + $0x118] sm:$0xff]
    %v1097 = vld [vmem:[#allocation8 + $0x120] sm:$0xff]
    %v1098 = vld [vmem:[#allocation8 + $0x128] sm:$0xff]
    %v1099 = vld [vmem:[#allocation8 + $0x130] sm:$0xff]
    %v1100 = vld [vmem:[#allocation8 + $0x138] sm:$0xff]
    %v1101 = vld [vmem:[#allocation8 + $0x140] sm:$0xff]
    %v1102 = vld [vmem:[#allocation8 + $0x148] sm:$0xff]
    %v1103 = vld [vmem:[#allocation8 + $0x150] sm:$0xff]
    %v1104 = vld [vmem:[#allocation8 + $0x158] sm:$0xff]
    %v1105 = vld [vmem:[#allocation8 + $0x160] sm:$0xff]
    %v1106 = vld [vmem:[#allocation8 + $0x168] sm:$0xff]
    %v1107 = vld [vmem:[#allocation8 + $0x170] sm:$0xff]
    %v1108 = vld [vmem:[#allocation8 + $0x178] sm:$0xff]
    %v1109 = vld [vmem:[#allocation8 + $0x180] sm:$0xff]
    %v1110 = vld [vmem:[#allocation8 + $0x188] sm:$0xff]
    %v1111 = vld [vmem:[#allocation8 + $0x190] sm:$0xff]
    %v1112 = vld [vmem:[#allocation8 + $0x198] sm:$0xff]
    %v1113 = vld [vmem:[#allocation8 + $0x1a0] sm:$0xff]
    %v1114 = vld [vmem:[#allocation8 + $0x1a8] sm:$0xff]
    %v1115 = vld [vmem:[#allocation8 + $0x1b0] sm:$0xff]
    %v1116 = vld [vmem:[#allocation8 + $0x1b8] sm:$0xff]
    %v1117 = vld [vmem:[#allocation8 + $0x1c0] sm:$0xff]
    %v1118 = vld [vmem:[#allocation8 + $0x1c8] sm:$0xff]
    %v1119 = vld [vmem:[#allocation8 + $0x1d0] sm:$0xff]
    %v1120 = vld [vmem:[#allocation8 + $0x1d8] sm:$0xff]
    %v1121 = vld [vmem:[#allocation8 + $0x1e0] sm:$0xff]
    %v1122 = vld [vmem:[#allocation8 + $0x1e8] sm:$0xff]
    %v1123 = vld [vmem:[#allocation8 + $0x1f0] sm:$0xff]
    %v1124 = vld [vmem:[#allocation8 + $0x1f8] sm:$0xff]
    %v1125 = vld [vmem:[#allocation8 + $0x200] sm:$0xff]
    %v1126 = vld [vmem:[#allocation8 + $0x208] sm:$0xff]
    %v1127 = vld [vmem:[#allocation8 + $0x210] sm:$0xff]
    %v1128 = vld [vmem:[#allocation8 + $0x218] sm:$0xff]
    %v1129 = vld [vmem:[#allocation8 + $0x220] sm:$0xff]
    %v1130 = vld [vmem:[#allocation8 + $0x228] sm:$0xff]
    %v1131 = vld [vmem:[#allocation8 + $0x230] sm:$0xff]
    %v1132 = vld [vmem:[#allocation8 + $0x238] sm:$0xff]
    %v1133 = vld [vmem:[#allocation8 + $0x240] sm:$0xff]
    %v1134 = vld [vmem:[#allocation8 + $0x248] sm:$0xff]
    %v1135 = vld [vmem:[#allocation8 + $0x250] sm:$0xff]
    %v1136 = vld [vmem:[#allocation8 + $0x258] sm:$0xff]
    %v1137 = vld [vmem:[#allocation8 + $0x260] sm:$0xff]
    %v1138 = vld [vmem:[#allocation8 + $0x268] sm:$0xff]
    %v1139 = vld [vmem:[#allocation8 + $0x270] sm:$0xff]
    %v1140 = vld [vmem:[#allocation8 + $0x278] sm:$0xff]
    %v1141 = vld [vmem:[#allocation8 + $0x280] sm:$0xff]
    %v1142 = vld [vmem:[#allocation8 + $0x288] sm:$0xff]
    %v1143 = vld [vmem:[#allocation8 + $0x290] sm:$0xff]
    %v1144 = vld [vmem:[#allocation8 + $0x298] sm:$0xff]
    %v1145 = vld [vmem:[#allocation8 + $0x2a0] sm:$0xff]
    %v1146 = vld [vmem:[#allocation8 + $0x2a8] sm:$0xff]
    %v1147 = vld [vmem:[#allocation8 + $0x2b0] sm:$0xff]
    %v1148 = vld [vmem:[#allocation8 + $0x2b8] sm:$0xff]
    %v1149 = vld [vmem:[#allocation8 + $0x2c0] sm:$0xff]
    %v1150 = vld [vmem:[#allocation8 + $0x2c8] sm:$0xff]
    %v1151 = vld [vmem:[#allocation8 + $0x2d0] sm:$0xff]
    %v1152 = vld [vmem:[#allocation8 + $0x2d8] sm:$0xff]
    %v1153 = vld [vmem:[#allocation8 + $0x2e0] sm:$0xff]
    %v1154 = vld [vmem:[#allocation8 + $0x2e8] sm:$0xff]
    %v1155 = vld [vmem:[#allocation8 + $0x2f0] sm:$0xff]
    %v1156 = vld [vmem:[#allocation8 + $0x2f8] sm:$0xff]
    %v1157 = vld [vmem:[#allocation8 + $0x300] sm:$0xff]
    %v1158 = vld [vmem:[#allocation8 + $0x308] sm:$0xff]
    %v1159 = vld [vmem:[#allocation8 + $0x310] sm:$0xff]
    %v1160 = vld [vmem:[#allocation8 + $0x318] sm:$0xff]
    %v1161 = vld [vmem:[#allocation8 + $0x320] sm:$0xff]
    %v1162 = vld [vmem:[#allocation8 + $0x328] sm:$0xff]
    %v1163 = vld [vmem:[#allocation8 + $0x330] sm:$0xff]
    %v1164 = vld [vmem:[#allocation8 + $0x338] sm:$0xff]
    %v1165 = vld [vmem:[#allocation8 + $0x340] sm:$0xff]
    %v1166 = vld [vmem:[#allocation8 + $0x348] sm:$0xff]
    %v1167 = vld [vmem:[#allocation8 + $0x350] sm:$0xff]
    %v1168 = vld [vmem:[#allocation8 + $0x358] sm:$0xff]
    %v1169 = vld [vmem:[#allocation8 + $0x360] sm:$0xff]
    %v1170 = vld [vmem:[#allocation8 + $0x368] sm:$0xff]
    %v1171 = vld [vmem:[#allocation8 + $0x370] sm:$0xff]
    %v1172 = vld [vmem:[#allocation8 + $0x378] sm:$0xff]
    %v1173 = vld [vmem:[#allocation8 + $0x380] sm:$0xff]
    %v1174 = vld [vmem:[#allocation8 + $0x388] sm:$0xff]
    %v1175 = vld [vmem:[#allocation8 + $0x390] sm:$0xff]
    %v1176 = vld [vmem:[#allocation8 + $0x398] sm:$0xff]
    %v1177 = vld [vmem:[#allocation8 + $0x3a0] sm:$0xff]
    %v1178 = vld [vmem:[#allocation8 + $0x3a8] sm:$0xff]
    %v1179 = vld [vmem:[#allocation8 + $0x3b0] sm:$0xff]
    %v1180 = vld [vmem:[#allocation8 + $0x3b8] sm:$0xff]
    %v1181 = vld [vmem:[#allocation8 + $0x3c0] sm:$0xff]
    %v1182 = vld [vmem:[#allocation8 + $0x3c8] sm:$0xff]
    %v1183 = vld [vmem:[#allocation8 + $0x3d0] sm:$0xff]
    %v1184 = vld [vmem:[#allocation8 + $0x3d8] sm:$0xff]
    %v1185 = vld [vmem:[#allocation8 + $0x3e0] sm:$0xff]
    %v1186 = vld [vmem:[#allocation8 + $0x3e8] sm:$0xff]
    %v1187 = vld [vmem:[#allocation8 + $0x3f0] sm:$0xff]
    %v1188 = vld [vmem:[#allocation8 + $0x3f8] sm:$0xff]
    %v1189 = vld [vmem:[#allocation8 + $0x400] sm:$0xff]
    %v1190 = vld [vmem:[#allocation8 + $0x408] sm:$0xff]
    %v1191 = vld [vmem:[#allocation8 + $0x410] sm:$0xff]
    %v1192 = vld [vmem:[#allocation8 + $0x418] sm:$0xff]
    %v1193 = vld [vmem:[#allocation8 + $0x420] sm:$0xff]
    %v1194 = vld [vmem:[#allocation8 + $0x428] sm:$0xff]
    %v1195 = vld [vmem:[#allocation8 + $0x430] sm:$0xff]
    %v1196 = vld [vmem:[#allocation8 + $0x438] sm:$0xff]
    %v1197 = vld [vmem:[#allocation8 + $0x440] sm:$0xff]
    %v1198 = vld [vmem:[#allocation8 + $0x448] sm:$0xff]
    %v1199 = vld [vmem:[#allocation8 + $0x450] sm:$0xff]
    %v1200 = vld [vmem:[#allocation8 + $0x458] sm:$0xff]
    %v1201 = vld [vmem:[#allocation8 + $0x460] sm:$0xff]
    %v1202 = vld [vmem:[#allocation8 + $0x468] sm:$0xff]
    %v1203 = vld [vmem:[#allocation8 + $0x470] sm:$0xff]
    %v1204 = vld [vmem:[#allocation8 + $0x478] sm:$0xff]
    %v1205 = vld [vmem:[#allocation8 + $0x480] sm:$0xff]
    %v1206 = vld [vmem:[#allocation8 + $0x488] sm:$0xff]
    %v1207 = vld [vmem:[#allocation8 + $0x490] sm:$0xff]
    %v1208 = vld [vmem:[#allocation8 + $0x498] sm:$0xff]
    %v1209 = vld [vmem:[#allocation8 + $0x4a0] sm:$0xff]
    %v1210 = vld [vmem:[#allocation8 + $0x4a8] sm:$0xff]
    %v1211 = vld [vmem:[#allocation8 + $0x4b0] sm:$0xff]
    %v1212 = vld [vmem:[#allocation8 + $0x4b8] sm:$0xff]
    %v1213 = vld [vmem:[#allocation8 + $0x4c0] sm:$0xff]
    %v1214 = vld [vmem:[#allocation8 + $0x4c8] sm:$0xff]
    %v1215 = vld [vmem:[#allocation8 + $0x4d0] sm:$0xff]
    %v1216 = vld [vmem:[#allocation8 + $0x4d8] sm:$0xff]
    %v1217 = vld [vmem:[#allocation8 + $0x4e0] sm:$0xff]
    %v1218 = vld [vmem:[#allocation8 + $0x4e8] sm:$0xff]
    %v1219 = vld [vmem:[#allocation8 + $0x4f0] sm:$0xff]
    %v1220 = vld [vmem:[#allocation8 + $0x4f8] sm:$0xff]
    %v1221 = vld [vmem:[#allocation8 + $0x500] sm:$0xff]
    %v1222 = vld [vmem:[#allocation8 + $0x508] sm:$0xff]
    %v1223 = vld [vmem:[#allocation8 + $0x510] sm:$0xff]
    %v1224 = vld [vmem:[#allocation8 + $0x518] sm:$0xff]
    %v1225 = vld [vmem:[#allocation8 + $0x520] sm:$0xff]
    %v1226 = vld [vmem:[#allocation8 + $0x528] sm:$0xff]
    %v1227 = vld [vmem:[#allocation8 + $0x530] sm:$0xff]
    %v1228 = vld [vmem:[#allocation8 + $0x538] sm:$0xff]
    %v1229 = vld [vmem:[#allocation8 + $0x540] sm:$0xff]
    %v1230 = vld [vmem:[#allocation8 + $0x548] sm:$0xff]
    %v1231 = vld [vmem:[#allocation8 + $0x550] sm:$0xff]
    %v1232 = vld [vmem:[#allocation8 + $0x558] sm:$0xff]
    %v1233 = vld [vmem:[#allocation8 + $0x560] sm:$0xff]
    %v1234 = vld [vmem:[#allocation8 + $0x568] sm:$0xff]
    %v1235 = vld [vmem:[#allocation8 + $0x570] sm:$0xff]
    %v1236 = vld [vmem:[#allocation8 + $0x578] sm:$0xff]
    %v1237 = vld [vmem:[#allocation8 + $0x580] sm:$0xff]
    %v1238 = vld [vmem:[#allocation8 + $0x588] sm:$0xff]
    %v1239 = vld [vmem:[#allocation8 + $0x590] sm:$0xff]
    %v1240 = vld [vmem:[#allocation8 + $0x598] sm:$0xff]
    %v1241 = vld [vmem:[#allocation8 + $0x5a0] sm:$0xff]
    %v1242 = vld [vmem:[#allocation8 + $0x5a8] sm:$0xff]
    %v1243 = vld [vmem:[#allocation8 + $0x5b0] sm:$0xff]
    %v1244 = vld [vmem:[#allocation8 + $0x5b8] sm:$0xff]
    %v1245 = vld [vmem:[#allocation8 + $0x5c0] sm:$0xff]
    %v1246 = vld [vmem:[#allocation8 + $0x5c8] sm:$0xff]
    %v1247 = vld [vmem:[#allocation8 + $0x5d0] sm:$0xff]
    %v1248 = vld [vmem:[#allocation8 + $0x5d8] sm:$0xff]
    %v1249 = vld [vmem:[#allocation8 + $0x5e0] sm:$0xff]
    %v1250 = vld [vmem:[#allocation8 + $0x5e8] sm:$0xff]
    %v1251 = vld [vmem:[#allocation8 + $0x5f0] sm:$0xff]
    %v1252 = vld [vmem:[#allocation8 + $0x5f8] sm:$0xff]
    %v1253 = vld [vmem:[#allocation8 + $0x600] sm:$0xff]
    %v1254 = vld [vmem:[#allocation8 + $0x608] sm:$0xff]
    %v1255 = vld [vmem:[#allocation8 + $0x610] sm:$0xff]
    %v1256 = vld [vmem:[#allocation8 + $0x618] sm:$0xff]
    %v1257 = vld [vmem:[#allocation8 + $0x620] sm:$0xff]
    %v1258 = vld [vmem:[#allocation8 + $0x628] sm:$0xff]
    %v1259 = vld [vmem:[#allocation8 + $0x630] sm:$0xff]
    %v1260 = vld [vmem:[#allocation8 + $0x638] sm:$0xff]
    %v1261 = vld [vmem:[#allocation8 + $0x640] sm:$0xff]
    %v1262 = vld [vmem:[#allocation8 + $0x648] sm:$0xff]
    %v1263 = vld [vmem:[#allocation8 + $0x650] sm:$0xff]
    %v1264 = vld [vmem:[#allocation8 + $0x658] sm:$0xff]
    %v1265 = vld [vmem:[#allocation8 + $0x660] sm:$0xff]
    %v1266 = vld [vmem:[#allocation8 + $0x668] sm:$0xff]
    %v1267 = vld [vmem:[#allocation8 + $0x670] sm:$0xff]
    %v1268 = vld [vmem:[#allocation8 + $0x678] sm:$0xff]
    %v1269 = vld [vmem:[#allocation8 + $0x680] sm:$0xff]
    %v1270 = vld [vmem:[#allocation8 + $0x688] sm:$0xff]
    %v1271 = vld [vmem:[#allocation8 + $0x690] sm:$0xff]
    %v1272 = vld [vmem:[#allocation8 + $0x698] sm:$0xff]
    %v1273 = vld [vmem:[#allocation8 + $0x6a0] sm:$0xff]
    %v1274 = vld [vmem:[#allocation8 + $0x6a8] sm:$0xff]
    %v1275 = vld [vmem:[#allocation8 + $0x6b0] sm:$0xff]
    %v1276 = vld [vmem:[#allocation8 + $0x6b8] sm:$0xff]
    %v1277 = vld [vmem:[#allocation8 + $0x6c0] sm:$0xff]
    %v1278 = vld [vmem:[#allocation8 + $0x6c8] sm:$0xff]
    %v1279 = vld [vmem:[#allocation8 + $0x6d0] sm:$0xff]
    %v1280 = vld [vmem:[#allocation8 + $0x6d8] sm:$0xff]
    %v1281 = vld [vmem:[#allocation8 + $0x6e0] sm:$0xff]
    %v1282 = vld [vmem:[#allocation8 + $0x6e8] sm:$0xff]
    %v1283 = vld [vmem:[#allocation8 + $0x6f0] sm:$0xff]
    %v1284 = vld [vmem:[#allocation8 + $0x6f8] sm:$0xff]
    %v1285 = vld [vmem:[#allocation8 + $0x700] sm:$0xff]
    %v1286 = vld [vmem:[#allocation8 + $0x708] sm:$0xff]
    %v1287 = vld [vmem:[#allocation8 + $0x710] sm:$0xff]
    %v1288 = vld [vmem:[#allocation8 + $0x718] sm:$0xff]
    %v1289 = vld [vmem:[#allocation8 + $0x720] sm:$0xff]
    %v1290 = vld [vmem:[#allocation8 + $0x728] sm:$0xff]
    %v1291 = vld [vmem:[#allocation8 + $0x730] sm:$0xff]
    %v1292 = vld [vmem:[#allocation8 + $0x738] sm:$0xff]
    %v1293 = vld [vmem:[#allocation8 + $0x740] sm:$0xff]
    %v1294 = vld [vmem:[#allocation8 + $0x748] sm:$0xff]
    %v1295 = vld [vmem:[#allocation8 + $0x750] sm:$0xff]
    %v1296 = vld [vmem:[#allocation8 + $0x758] sm:$0xff]
    %v1297 = vld [vmem:[#allocation8 + $0x760] sm:$0xff]
    %v1298 = vld [vmem:[#allocation8 + $0x768] sm:$0xff]
    %v1299 = vld [vmem:[#allocation8 + $0x770] sm:$0xff]
    %v1300 = vld [vmem:[#allocation8 + $0x778] sm:$0xff]
    %v1301 = vld [vmem:[#allocation8 + $0x780] sm:$0xff]
    %v1302 = vld [vmem:[#allocation8 + $0x788] sm:$0xff]
    %v1303 = vld [vmem:[#allocation8 + $0x790] sm:$0xff]
    %v1304 = vld [vmem:[#allocation8 + $0x798] sm:$0xff]
    %v1305 = vld [vmem:[#allocation8 + $0x7a0] sm:$0xff]
    %v1306 = vld [vmem:[#allocation8 + $0x7a8] sm:$0xff]
    %v1307 = vld [vmem:[#allocation8 + $0x7b0] sm:$0xff]
    %v1308 = vld [vmem:[#allocation8 + $0x7b8] sm:$0xff]
    %v1309 = vld [vmem:[#allocation8 + $0x7c0] sm:$0xff]
    %v1310 = vld [vmem:[#allocation8 + $0x7c8] sm:$0xff]
    %v1311 = vld [vmem:[#allocation8 + $0x7d0] sm:$0xff]
    %v1312 = vld [vmem:[#allocation8 + $0x7d8] sm:$0xff]
    %v1313 = vld [vmem:[#allocation8 + $0x7e0] sm:$0xff]
    %v1314 = vld [vmem:[#allocation8 + $0x7e8] sm:$0xff]
    %v1315 = vld [vmem:[#allocation8 + $0x7f0] sm:$0xff]
    %v1316 = vld [vmem:[#allocation8 + $0x7f8] sm:$0xff]
    %v1317 = vld [vmem:[#allocation8 + $0x800] sm:$0xff]
    %v1318 = vld [vmem:[#allocation8 + $0x808] sm:$0xff]
    %v1319 = vld [vmem:[#allocation8 + $0x810] sm:$0xff]
    %v1320 = vld [vmem:[#allocation8 + $0x818] sm:$0xff]
    %v1321 = vld [vmem:[#allocation8 + $0x820] sm:$0xff]
    %v1322 = vld [vmem:[#allocation8 + $0x828] sm:$0xff]
    %v1323 = vld [vmem:[#allocation8 + $0x830] sm:$0xff]
    %v1324 = vld [vmem:[#allocation8 + $0x838] sm:$0xff]
    %v1325 = vld [vmem:[#allocation8 + $0x840] sm:$0xff]
    %v1326 = vld [vmem:[#allocation8 + $0x848] sm:$0xff]
    %v1327 = vld [vmem:[#allocation8 + $0x850] sm:$0xff]
    %v1328 = vld [vmem:[#allocation8 + $0x858] sm:$0xff]
    %v1329 = vld [vmem:[#allocation8 + $0x860] sm:$0xff]
    %v1330 = vld [vmem:[#allocation8 + $0x868] sm:$0xff]
    %v1331 = vld [vmem:[#allocation8 + $0x870] sm:$0xff]
    %v1332 = vld [vmem:[#allocation8 + $0x878] sm:$0xff]
    %v1333 = vld [vmem:[#allocation8 + $0x880] sm:$0xff]
    %v1334 = vld [vmem:[#allocation8 + $0x888] sm:$0xff]
    %v1335 = vld [vmem:[#allocation8 + $0x890] sm:$0xff]
    %v1336 = vld [vmem:[#allocation8 + $0x898] sm:$0xff]
    %v1337 = vld [vmem:[#allocation8 + $0x8a0] sm:$0xff]
    %v1338 = vld [vmem:[#allocation8 + $0x8a8] sm:$0xff]
    %v1339 = vld [vmem:[#allocation8 + $0x8b0] sm:$0xff]
    %v1340 = vld [vmem:[#allocation8 + $0x8b8] sm:$0xff]
    %v1341 = vld [vmem:[#allocation8 + $0x8c0] sm:$0xff]
    %v1342 = vld [vmem:[#allocation8 + $0x8c8] sm:$0xff]
    %v1343 = vld [vmem:[#allocation8 + $0x8d0] sm:$0xff]
    %v1344 = vld [vmem:[#allocation8 + $0x8d8] sm:$0xff]
    %v1345 = vld [vmem:[#allocation8 + $0x8e0] sm:$0xff]
    %v1346 = vld [vmem:[#allocation8 + $0x8e8] sm:$0xff]
    %v1347 = vld [vmem:[#allocation8 + $0x8f0] sm:$0xff]
    %v1348 = vld [vmem:[#allocation8 + $0x8f8] sm:$0xff]
    %v1349 = vld [vmem:[#allocation8 + $0x900] sm:$0xff]
    %v1350 = vld [vmem:[#allocation8 + $0x908] sm:$0xff]
    %v1351 = vld [vmem:[#allocation8 + $0x910] sm:$0xff]
    %v1352 = vld [vmem:[#allocation8 + $0x918] sm:$0xff]
    %v1353 = vld [vmem:[#allocation8 + $0x920] sm:$0xff]
    %v1354 = vld [vmem:[#allocation8 + $0x928] sm:$0xff]
    %v1355 = vld [vmem:[#allocation8 + $0x930] sm:$0xff]
    %v1356 = vld [vmem:[#allocation8 + $0x938] sm:$0xff]
    %v1357 = vld [vmem:[#allocation8 + $0x940] sm:$0xff]
    %v1358 = vld [vmem:[#allocation8 + $0x948] sm:$0xff]
    %v1359 = vld [vmem:[#allocation8 + $0x950] sm:$0xff]
    %v1360 = vld [vmem:[#allocation8 + $0x958] sm:$0xff]
    %v1361 = vld [vmem:[#allocation8 + $0x960] sm:$0xff]
    %v1362 = vld [vmem:[#allocation8 + $0x968] sm:$0xff]
    %v1363 = vld [vmem:[#allocation8 + $0x970] sm:$0xff]
    %v1364 = vld [vmem:[#allocation8 + $0x978] sm:$0xff]
    %v1365 = vld [vmem:[#allocation8 + $0x980] sm:$0xff]
    %v1366 = vld [vmem:[#allocation8 + $0x988] sm:$0xff]
    %v1367 = vld [vmem:[#allocation8 + $0x990] sm:$0xff]
    %v1368 = vld [vmem:[#allocation8 + $0x998] sm:$0xff]
    %v1369 = vld [vmem:[#allocation8 + $0x9a0] sm:$0xff]
    %v1370 = vld [vmem:[#allocation8 + $0x9a8] sm:$0xff]
    %v1371 = vld [vmem:[#allocation8 + $0x9b0] sm:$0xff]
    %v1372 = vld [vmem:[#allocation8 + $0x9b8] sm:$0xff]
    %v1373 = vld [vmem:[#allocation8 + $0x9c0] sm:$0xff]
    %v1374 = vld [vmem:[#allocation8 + $0x9c8] sm:$0xff]
    %v1375 = vld [vmem:[#allocation8 + $0x9d0] sm:$0xff]
    %v1376 = vld [vmem:[#allocation8 + $0x9d8] sm:$0xff]
    %v1377 = vld [vmem:[#allocation8 + $0x9e0] sm:$0xff]
    %v1378 = vld [vmem:[#allocation8 + $0x9e8] sm:$0xff]
    %v1379 = vld [vmem:[#allocation8 + $0x9f0] sm:$0xff]
    %v1380 = vld [vmem:[#allocation8 + $0x9f8] sm:$0xff]
    %v1381 = vld [vmem:[#allocation8 + $0xa00] sm:$0xff]
    %v1382 = vld [vmem:[#allocation8 + $0xa08] sm:$0xff]
    %v1383 = vld [vmem:[#allocation8 + $0xa10] sm:$0xff]
    %v1384 = vld [vmem:[#allocation8 + $0xa18] sm:$0xff]
    %v1385 = vld [vmem:[#allocation8 + $0xa20] sm:$0xff]
    %v1386 = vld [vmem:[#allocation8 + $0xa28] sm:$0xff]
    %v1387 = vld [vmem:[#allocation8 + $0xa30] sm:$0xff]
    %v1388 = vld [vmem:[#allocation8 + $0xa38] sm:$0xff]
    %v1389 = vld [vmem:[#allocation8 + $0xa40] sm:$0xff]
    %v1390 = vld [vmem:[#allocation8 + $0xa48] sm:$0xff]
    %v1391 = vld [vmem:[#allocation8 + $0xa50] sm:$0xff]
    %v1392 = vld [vmem:[#allocation8 + $0xa58] sm:$0xff]
    %v1393 = vld [vmem:[#allocation8 + $0xa60] sm:$0xff]
    %v1394 = vld [vmem:[#allocation8 + $0xa68] sm:$0xff]
    %v1395 = vld [vmem:[#allocation8 + $0xa70] sm:$0xff]
    %v1396 = vld [vmem:[#allocation8 + $0xa78] sm:$0xff]
    %v1397 = vld [vmem:[#allocation8 + $0xa80] sm:$0xff]
    %v1398 = vld [vmem:[#allocation8 + $0xa88] sm:$0xff]
    %v1399 = vld [vmem:[#allocation8 + $0xa90] sm:$0xff]
    %v1400 = vld [vmem:[#allocation8 + $0xa98] sm:$0xff]
    %v1401 = vld [vmem:[#allocation8 + $0xaa0] sm:$0xff]
    %v1402 = vld [vmem:[#allocation8 + $0xaa8] sm:$0xff]
    %v1403 = vld [vmem:[#allocation8 + $0xab0] sm:$0xff]
    %v1404 = vld [vmem:[#allocation8 + $0xab8] sm:$0xff]
    %v1405 = vld [vmem:[#allocation8 + $0xac0] sm:$0xff]
    %v1406 = vld [vmem:[#allocation8 + $0xac8] sm:$0xff]
    %v1407 = vld [vmem:[#allocation8 + $0xad0] sm:$0xff]
    %v1408 = vld [vmem:[#allocation8 + $0xad8] sm:$0xff]
    %v1409 = vld [vmem:[#allocation8 + $0xae0] sm:$0xff]
    %v1410 = vld [vmem:[#allocation8 + $0xae8] sm:$0xff]
    %v1411 = vld [vmem:[#allocation8 + $0xaf0] sm:$0xff]
    %v1412 = vld [vmem:[#allocation8 + $0xaf8] sm:$0xff]
    %v1413 = vld [vmem:[#allocation8 + $0xb00] sm:$0xff]
    %v1414 = vld [vmem:[#allocation8 + $0xb08] sm:$0xff]
    %v1415 = vld [vmem:[#allocation8 + $0xb10] sm:$0xff]
    %v1416 = vld [vmem:[#allocation8 + $0xb18] sm:$0xff]
    %v1417 = vld [vmem:[#allocation8 + $0xb20] sm:$0xff]
    %v1418 = vld [vmem:[#allocation8 + $0xb28] sm:$0xff]
    %v1419 = vld [vmem:[#allocation8 + $0xb30] sm:$0xff]
    %v1420 = vld [vmem:[#allocation8 + $0xb38] sm:$0xff]
    %v1421 = vld [vmem:[#allocation8 + $0xb40] sm:$0xff]
    %v1422 = vld [vmem:[#allocation8 + $0xb48] sm:$0xff]
    %v1423 = vld [vmem:[#allocation8 + $0xb50] sm:$0xff]
    %v1424 = vld [vmem:[#allocation8 + $0xb58] sm:$0xff]
    %v1425 = vld [vmem:[#allocation8 + $0xb60] sm:$0xff]
    %v1426 = vld [vmem:[#allocation8 + $0xb68] sm:$0xff]
    %v1427 = vld [vmem:[#allocation8 + $0xb70] sm:$0xff]
    %v1428 = vld [vmem:[#allocation8 + $0xb78] sm:$0xff]
    %v1429 = vld [vmem:[#allocation8 + $0xb80] sm:$0xff]
    %v1430 = vld [vmem:[#allocation8 + $0xb88] sm:$0xff]
    %v1431 = vld [vmem:[#allocation8 + $0xb90] sm:$0xff]
    %v1432 = vld [vmem:[#allocation8 + $0xb98] sm:$0xff]
    %v1433 = vld [vmem:[#allocation8 + $0xba0] sm:$0xff]
    %v1434 = vld [vmem:[#allocation8 + $0xba8] sm:$0xff]
    %v1435 = vld [vmem:[#allocation8 + $0xbb0] sm:$0xff]
    %v1436 = vld [vmem:[#allocation8 + $0xbb8] sm:$0xff]
    %v1437 = vld [vmem:[#allocation8 + $0xbc0] sm:$0xff]
    %v1438 = vld [vmem:[#allocation8 + $0xbc8] sm:$0xff]
    %v1439 = vld [vmem:[#allocation8 + $0xbd0] sm:$0xff]
    %v1440 = vld [vmem:[#allocation8 + $0xbd8] sm:$0xff]
    %v1441 = vld [vmem:[#allocation8 + $0xbe0] sm:$0xff]
    %v1442 = vld [vmem:[#allocation8 + $0xbe8] sm:$0xff]
    %v1443 = vld [vmem:[#allocation8 + $0xbf0] sm:$0xff]
    %v1444 = vld [vmem:[#allocation8 + $0xbf8] sm:$0xff]
    %v1445 = vld [vmem:[#allocation8 + $0xc00] sm:$0xff]
    %v1446 = vld [vmem:[#allocation8 + $0xc08] sm:$0xff]
    %v1447 = vld [vmem:[#allocation8 + $0xc10] sm:$0xff]
    %v1448 = vld [vmem:[#allocation8 + $0xc18] sm:$0xff]
    %v1449 = vld [vmem:[#allocation8 + $0xc20] sm:$0xff]
    %v1450 = vld [vmem:[#allocation8 + $0xc28] sm:$0xff]
    %v1451 = vld [vmem:[#allocation8 + $0xc30] sm:$0xff]
    %v1452 = vld [vmem:[#allocation8 + $0xc38] sm:$0xff]
    %v1453 = vld [vmem:[#allocation8 + $0xc40] sm:$0xff]
    %v1454 = vld [vmem:[#allocation8 + $0xc48] sm:$0xff]
    %v1455 = vld [vmem:[#allocation8 + $0xc50] sm:$0xff]
    %v1456 = vld [vmem:[#allocation8 + $0xc58] sm:$0xff]
    %v1457 = vld [vmem:[#allocation8 + $0xc60] sm:$0xff]
    %v1458 = vld [vmem:[#allocation8 + $0xc68] sm:$0xff]
    %v1459 = vld [vmem:[#allocation8 + $0xc70] sm:$0xff]
    %v1460 = vld [vmem:[#allocation8 + $0xc78] sm:$0xff]
    %v1461 = vld [vmem:[#allocation8 + $0xc80] sm:$0xff]
    %v1462 = vld [vmem:[#allocation8 + $0xc88] sm:$0xff]
    %v1463 = vld [vmem:[#allocation8 + $0xc90] sm:$0xff]
    %v1464 = vld [vmem:[#allocation8 + $0xc98] sm:$0xff]
    %v1465 = vld [vmem:[#allocation8 + $0xca0] sm:$0xff]
    %v1466 = vld [vmem:[#allocation8 + $0xca8] sm:$0xff]
    %v1467 = vld [vmem:[#allocation8 + $0xcb0] sm:$0xff]
    %v1468 = vld [vmem:[#allocation8 + $0xcb8] sm:$0xff]
    %v1469 = vld [vmem:[#allocation8 + $0xcc0] sm:$0xff]
    %v1470 = vld [vmem:[#allocation8 + $0xcc8] sm:$0xff]
    %v1471 = vld [vmem:[#allocation8 + $0xcd0] sm:$0xff]
    %v1472 = vld [vmem:[#allocation8 + $0xcd8] sm:$0xff]
    %v1473 = vld [vmem:[#allocation8 + $0xce0] sm:$0xff]
    %v1474 = vld [vmem:[#allocation8 + $0xce8] sm:$0xff]
    %v1475 = vld [vmem:[#allocation8 + $0xcf0] sm:$0xff]
    %v1476 = vld [vmem:[#allocation8 + $0xcf8] sm:$0xff]
    %v1477 = vld [vmem:[#allocation8 + $0xd00] sm:$0xff]
    %v1478 = vld [vmem:[#allocation8 + $0xd08] sm:$0xff]
    %v1479 = vld [vmem:[#allocation8 + $0xd10] sm:$0xff]
    %v1480 = vld [vmem:[#allocation8 + $0xd18] sm:$0xff]
    %v1481 = vld [vmem:[#allocation8 + $0xd20] sm:$0xff]
    %v1482 = vld [vmem:[#allocation8 + $0xd28] sm:$0xff]
    %v1483 = vld [vmem:[#allocation8 + $0xd30] sm:$0xff]
    %v1484 = vld [vmem:[#allocation8 + $0xd38] sm:$0xff]
    %v1485 = vld [vmem:[#allocation8 + $0xd40] sm:$0xff]
    %v1486 = vld [vmem:[#allocation8 + $0xd48] sm:$0xff]
    %v1487 = vld [vmem:[#allocation8 + $0xd50] sm:$0xff]
    %v1488 = vld [vmem:[#allocation8 + $0xd58] sm:$0xff]
    %v1489 = vld [vmem:[#allocation8 + $0xd60] sm:$0xff]
    %v1490 = vld [vmem:[#allocation8 + $0xd68] sm:$0xff]
    %v1491 = vld [vmem:[#allocation8 + $0xd70] sm:$0xff]
    %v1492 = vld [vmem:[#allocation8 + $0xd78] sm:$0xff]
    %v1493 = vld [vmem:[#allocation8 + $0xd80] sm:$0xff]
    %v1494 = vld [vmem:[#allocation8 + $0xd88] sm:$0xff]
    %v1495 = vld [vmem:[#allocation8 + $0xd90] sm:$0xff]
    %v1496 = vld [vmem:[#allocation8 + $0xd98] sm:$0xff]
    %v1497 = vld [vmem:[#allocation8 + $0xda0] sm:$0xff]
    %v1498 = vld [vmem:[#allocation8 + $0xda8] sm:$0xff]
    %v1499 = vld [vmem:[#allocation8 + $0xdb0] sm:$0xff]
    %v1500 = vld [vmem:[#allocation8 + $0xdb8] sm:$0xff]
    %v1501 = vld [vmem:[#allocation8 + $0xdc0] sm:$0xff]
    %v1502 = vld [vmem:[#allocation8 + $0xdc8] sm:$0xff]
    %v1503 = vld [vmem:[#allocation8 + $0xdd0] sm:$0xff]
    %v1504 = vld [vmem:[#allocation8 + $0xdd8] sm:$0xff]
    %v1505 = vld [vmem:[#allocation8 + $0xde0] sm:$0xff]
    %v1506 = vld [vmem:[#allocation8 + $0xde8] sm:$0xff]
    %v1507 = vld [vmem:[#allocation8 + $0xdf0] sm:$0xff]
    %v1508 = vld [vmem:[#allocation8 + $0xdf8] sm:$0xff]
    %v1509 = vld [vmem:[#allocation8 + $0xe00] sm:$0xff]
    %v1510 = vld [vmem:[#allocation8 + $0xe08] sm:$0xff]
    %v1511 = vld [vmem:[#allocation8 + $0xe10] sm:$0xff]
    %v1512 = vld [vmem:[#allocation8 + $0xe18] sm:$0xff]
    %v1513 = vld [vmem:[#allocation8 + $0xe20] sm:$0xff]
    %v1514 = vld [vmem:[#allocation8 + $0xe28] sm:$0xff]
    %v1515 = vld [vmem:[#allocation8 + $0xe30] sm:$0xff]
    %v1516 = vld [vmem:[#allocation8 + $0xe38] sm:$0xff]
    %v1517 = vld [vmem:[#allocation8 + $0xe40] sm:$0xff]
    %v1518 = vld [vmem:[#allocation8 + $0xe48] sm:$0xff]
    %v1519 = vld [vmem:[#allocation8 + $0xe50] sm:$0xff]
    %v1520 = vld [vmem:[#allocation8 + $0xe58] sm:$0xff]
    %v1521 = vld [vmem:[#allocation8 + $0xe60] sm:$0xff]
    %v1522 = vld [vmem:[#allocation8 + $0xe68] sm:$0xff]
    %v1523 = vld [vmem:[#allocation8 + $0xe70] sm:$0xff]
    %v1524 = vld [vmem:[#allocation8 + $0xe78] sm:$0xff]
    %v1525 = vld [vmem:[#allocation8 + $0xe80] sm:$0xff]
    %v1526 = vld [vmem:[#allocation8 + $0xe88] sm:$0xff]
    %v1527 = vld [vmem:[#allocation8 + $0xe90] sm:$0xff]
    %v1528 = vld [vmem:[#allocation8 + $0xe98] sm:$0xff]
    %v1529 = vld [vmem:[#allocation8 + $0xea0] sm:$0xff]
    %v1530 = vld [vmem:[#allocation8 + $0xea8] sm:$0xff]
    %v1531 = vld [vmem:[#allocation8 + $0xeb0] sm:$0xff]
    %v1532 = vld [vmem:[#allocation8 + $0xeb8] sm:$0xff]
    %v1533 = vld [vmem:[#allocation8 + $0xec0] sm:$0xff]
    %v1534 = vld [vmem:[#allocation8 + $0xec8] sm:$0xff]
    %v1535 = vld [vmem:[#allocation8 + $0xed0] sm:$0xff]
    %v1536 = vld [vmem:[#allocation8 + $0xed8] sm:$0xff]
    %v1537 = vld [vmem:[#allocation8 + $0xee0] sm:$0xff]
    %v1538 = vld [vmem:[#allocation8 + $0xee8] sm:$0xff]
    %v1539 = vld [vmem:[#allocation8 + $0xef0] sm:$0xff]
    %v1540 = vld [vmem:[#allocation8 + $0xef8] sm:$0xff]
    %v1541 = vld [vmem:[#allocation8 + $0xf00] sm:$0xff]
    %v1542 = vld [vmem:[#allocation8 + $0xf08] sm:$0xff]
    %v1543 = vld [vmem:[#allocation8 + $0xf10] sm:$0xff]
    %v1544 = vld [vmem:[#allocation8 + $0xf18] sm:$0xff]
    %v1545 = vld [vmem:[#allocation8 + $0xf20] sm:$0xff]
    %v1546 = vld [vmem:[#allocation8 + $0xf28] sm:$0xff]
    %v1547 = vld [vmem:[#allocation8 + $0xf30] sm:$0xff]
    %v1548 = vld [vmem:[#allocation8 + $0xf38] sm:$0xff]
    %v1549 = vld [vmem:[#allocation8 + $0xf40] sm:$0xff]
    %v1550 = vld [vmem:[#allocation8 + $0xf48] sm:$0xff]
    %v1551 = vld [vmem:[#allocation8 + $0xf50] sm:$0xff]
    %v1552 = vld [vmem:[#allocation8 + $0xf58] sm:$0xff]
    %v1553 = vld [vmem:[#allocation8 + $0xf60] sm:$0xff]
    %v1554 = vld [vmem:[#allocation8 + $0xf68] sm:$0xff]
    %v1555 = vld [vmem:[#allocation8 + $0xf70] sm:$0xff]
    %v1556 = vld [vmem:[#allocation8 + $0xf78] sm:$0xff]
    %v1557 = vld [vmem:[#allocation8 + $0xf80] sm:$0xff]
    %v1558 = vld [vmem:[#allocation8 + $0xf88] sm:$0xff]
    %v1559 = vld [vmem:[#allocation8 + $0xf90] sm:$0xff]
    %v1560 = vld [vmem:[#allocation8 + $0xf98] sm:$0xff]
    %v1561 = vld [vmem:[#allocation8 + $0xfa0] sm:$0xff]
    %v1562 = vld [vmem:[#allocation8 + $0xfa8] sm:$0xff]
    %v1563 = vld [vmem:[#allocation8 + $0xfb0] sm:$0xff]
    %v1564 = vld [vmem:[#allocation8 + $0xfb8] sm:$0xff]
    %v1565 = vld [vmem:[#allocation8 + $0xfc0] sm:$0xff]
    %v1566 = vld [vmem:[#allocation8 + $0xfc8] sm:$0xff]
    %v1567 = vld [vmem:[#allocation8 + $0xfd0] sm:$0xff]
    %v1568 = vld [vmem:[#allocation8 + $0xfd8] sm:$0xff]
    %v1569 = vld [vmem:[#allocation8 + $0xfe0] sm:$0xff]
    %v1570 = vld [vmem:[#allocation8 + $0xfe8] sm:$0xff]
    %v1571 = vld [vmem:[#allocation8 + $0xff0] sm:$0xff]
    %v1572 = vld [vmem:[#allocation8 + $0xff8] sm:$0xff]
    %v1573 = vld [vmem:[#allocation8 + $0x1000] sm:$0xff]
    %v1574 = vld [vmem:[#allocation8 + $0x1008] sm:$0xff]
    %v1575 = vld [vmem:[#allocation8 + $0x1010] sm:$0xff]
    %v1576 = vld [vmem:[#allocation8 + $0x1018] sm:$0xff]
    %v1577 = vld [vmem:[#allocation8 + $0x1020] sm:$0xff]
    %v1578 = vld [vmem:[#allocation8 + $0x1028] sm:$0xff]
    %v1579 = vld [vmem:[#allocation8 + $0x1030] sm:$0xff]
    %v1580 = vld [vmem:[#allocation8 + $0x1038] sm:$0xff]
    %v1581 = vld [vmem:[#allocation8 + $0x1040] sm:$0xff]
    %v1582 = vld [vmem:[#allocation8 + $0x1048] sm:$0xff]
    %v1583 = vld [vmem:[#allocation8 + $0x1050] sm:$0xff]
    %v1584 = vld [vmem:[#allocation8 + $0x1058] sm:$0xff]
    %v1585 = vld [vmem:[#allocation8 + $0x1060] sm:$0xff]
    %v1586 = vld [vmem:[#allocation8 + $0x1068] sm:$0xff]
    %v1587 = vld [vmem:[#allocation8 + $0x1070] sm:$0xff]
    %v1588 = vld [vmem:[#allocation8 + $0x1078] sm:$0xff]
    %v1589 = vld [vmem:[#allocation8 + $0x1080] sm:$0xff]
    %v1590 = vld [vmem:[#allocation8 + $0x1088] sm:$0xff]
    %v1591 = vld [vmem:[#allocation8 + $0x1090] sm:$0xff]
    %v1592 = vld [vmem:[#allocation8 + $0x1098] sm:$0xff]
    %v1593 = vld [vmem:[#allocation8 + $0x10a0] sm:$0xff]
    %v1594 = vld [vmem:[#allocation8 + $0x10a8] sm:$0xff]
    %v1595 = vld [vmem:[#allocation8 + $0x10b0] sm:$0xff]
    %v1596 = vld [vmem:[#allocation8 + $0x10b8] sm:$0xff]
    %v1597 = vld [vmem:[#allocation8 + $0x10c0] sm:$0xff]
    %v1598 = vld [vmem:[#allocation8 + $0x10c8] sm:$0xff]
    %v1599 = vld [vmem:[#allocation8 + $0x10d0] sm:$0xff]
    %v1600 = vld [vmem:[#allocation8 + $0x10d8] sm:$0xff]
    %v1601 = vld [vmem:[#allocation8 + $0x10e0] sm:$0xff]
    %v1602 = vld [vmem:[#allocation8 + $0x10e8] sm:$0xff]
    %v1603 = vld [vmem:[#allocation8 + $0x10f0] sm:$0xff]
    %v1604 = vld [vmem:[#allocation8 + $0x10f8] sm:$0xff]
    %v1605 = vld [vmem:[#allocation8 + $0x1100] sm:$0xff]
    %v1606 = vld [vmem:[#allocation8 + $0x1108] sm:$0xff]
    %v1607 = vld [vmem:[#allocation8 + $0x1110] sm:$0xff]
    %v1608 = vld [vmem:[#allocation8 + $0x1118] sm:$0xff]
    %v1609 = vld [vmem:[#allocation8 + $0x1120] sm:$0xff]
    %v1610 = vld [vmem:[#allocation8 + $0x1128] sm:$0xff]
    %v1611 = vld [vmem:[#allocation8 + $0x1130] sm:$0xff]
    %v1612 = vld [vmem:[#allocation8 + $0x1138] sm:$0xff]
    %v1613 = vld [vmem:[#allocation8 + $0x1140] sm:$0xff]
    %v1614 = vld [vmem:[#allocation8 + $0x1148] sm:$0xff]
    %v1615 = vld [vmem:[#allocation8 + $0x1150] sm:$0xff]
    %v1616 = vld [vmem:[#allocation8 + $0x1158] sm:$0xff]
    %v1617 = vld [vmem:[#allocation8 + $0x1160] sm:$0xff]
    %v1618 = vld [vmem:[#allocation8 + $0x1168] sm:$0xff]
    %v1619 = vld [vmem:[#allocation8 + $0x1170] sm:$0xff]
    %v1620 = vld [vmem:[#allocation8 + $0x1178] sm:$0xff]
    %v1621 = vld [vmem:[#allocation8 + $0x1180] sm:$0xff]
    %v1622 = vld [vmem:[#allocation8 + $0x1188] sm:$0xff]
    %v1623 = vld [vmem:[#allocation8 + $0x1190] sm:$0xff]
    %v1624 = vld [vmem:[#allocation8 + $0x1198] sm:$0xff]
    %v1625 = vld [vmem:[#allocation8 + $0x11a0] sm:$0xff]
    %v1626 = vld [vmem:[#allocation8 + $0x11a8] sm:$0xff]
    %v1627 = vld [vmem:[#allocation8 + $0x11b0] sm:$0xff]
    %v1628 = vld [vmem:[#allocation8 + $0x11b8] sm:$0xff]
    %v1629 = vld [vmem:[#allocation8 + $0x11c0] sm:$0xff]
    %v1630 = vld [vmem:[#allocation8 + $0x11c8] sm:$0xff]
    %v1631 = vld [vmem:[#allocation8 + $0x11d0] sm:$0xff]
    %v1632 = vld [vmem:[#allocation8 + $0x11d8] sm:$0xff]
    %v1633 = vld [vmem:[#allocation8 + $0x11e0] sm:$0xff]
    %v1634 = vld [vmem:[#allocation8 + $0x11e8] sm:$0xff]
    %v1635 = vld [vmem:[#allocation8 + $0x11f0] sm:$0xff]
    %v1636 = vld [vmem:[#allocation8 + $0x11f8] sm:$0xff]
    %v1637 = vld [vmem:[#allocation8 + $0x1200] sm:$0xff]
    %v1638 = vld [vmem:[#allocation8 + $0x1208] sm:$0xff]
    %v1639 = vld [vmem:[#allocation8 + $0x1210] sm:$0xff]
    %v1640 = vld [vmem:[#allocation8 + $0x1218] sm:$0xff]
    %v1641 = vld [vmem:[#allocation8 + $0x1220] sm:$0xff]
    %v1642 = vld [vmem:[#allocation8 + $0x1228] sm:$0xff]
    %v1643 = vld [vmem:[#allocation8 + $0x1230] sm:$0xff]
    %v1644 = vld [vmem:[#allocation8 + $0x1238] sm:$0xff]
    %v1645 = vld [vmem:[#allocation8 + $0x1240] sm:$0xff]
    %v1646 = vld [vmem:[#allocation8 + $0x1248] sm:$0xff]
    %v1647 = vld [vmem:[#allocation8 + $0x1250] sm:$0xff]
    %v1648 = vld [vmem:[#allocation8 + $0x1258] sm:$0xff]
    %v1649 = vld [vmem:[#allocation8 + $0x1260] sm:$0xff]
    %v1650 = vld [vmem:[#allocation8 + $0x1268] sm:$0xff]
    %v1651 = vld [vmem:[#allocation8 + $0x1270] sm:$0xff]
    %v1652 = vld [vmem:[#allocation8 + $0x1278] sm:$0xff]
    %v1653 = vld [vmem:[#allocation8 + $0x1280] sm:$0xff]
    %v1654 = vld [vmem:[#allocation8 + $0x1288] sm:$0xff]
    %v1655 = vld [vmem:[#allocation8 + $0x1290] sm:$0xff]
    %v1656 = vld [vmem:[#allocation8 + $0x1298] sm:$0xff]
    %v1657 = vld [vmem:[#allocation8 + $0x12a0] sm:$0xff]
    %v1658 = vld [vmem:[#allocation8 + $0x12a8] sm:$0xff]
    %v1659 = vld [vmem:[#allocation8 + $0x12b0] sm:$0xff]
    %v1660 = vld [vmem:[#allocation8 + $0x12b8] sm:$0xff]
    %v1661 = vld [vmem:[#allocation8 + $0x12c0] sm:$0xff]
    %v1662 = vld [vmem:[#allocation8 + $0x12c8] sm:$0xff]
    %v1663 = vld [vmem:[#allocation8 + $0x12d0] sm:$0xff]
    %v1664 = vld [vmem:[#allocation8 + $0x12d8] sm:$0xff]
    %v1665 = vld [vmem:[#allocation8 + $0x12e0] sm:$0xff]
    %v1666 = vld [vmem:[#allocation8 + $0x12e8] sm:$0xff]
    %v1667 = vld [vmem:[#allocation8 + $0x12f0] sm:$0xff]
    %v1668 = vld [vmem:[#allocation8 + $0x12f8] sm:$0xff]
    %v1669 = vld [vmem:[#allocation8 + $0x1300] sm:$0xff]
    %v1670 = vld [vmem:[#allocation8 + $0x1308] sm:$0xff]
    %v1671 = vld [vmem:[#allocation8 + $0x1310] sm:$0xff]
    %v1672 = vld [vmem:[#allocation8 + $0x1318] sm:$0xff]
    %v1673 = vld [vmem:[#allocation8 + $0x1320] sm:$0xff]
    %v1674 = vld [vmem:[#allocation8 + $0x1328] sm:$0xff]
    %v1675 = vld [vmem:[#allocation8 + $0x1330] sm:$0xff]
    %v1676 = vld [vmem:[#allocation8 + $0x1338] sm:$0xff]
    %v1677 = vld [vmem:[#allocation8 + $0x1340] sm:$0xff]
    %v1678 = vld [vmem:[#allocation8 + $0x1348] sm:$0xff]
    %v1679 = vld [vmem:[#allocation8 + $0x1350] sm:$0xff]
    %v1680 = vld [vmem:[#allocation8 + $0x1358] sm:$0xff]
    %v1681 = vld [vmem:[#allocation8 + $0x1360] sm:$0xff]
    %v1682 = vld [vmem:[#allocation8 + $0x1368] sm:$0xff]
    %v1683 = vld [vmem:[#allocation8 + $0x1370] sm:$0xff]
    %v1684 = vld [vmem:[#allocation8 + $0x1378] sm:$0xff]
    %v1685 = vld [vmem:[#allocation8 + $0x1380] sm:$0xff]
    %v1686 = vld [vmem:[#allocation8 + $0x1388] sm:$0xff]
    %v1687 = vld [vmem:[#allocation8 + $0x1390] sm:$0xff]
    %v1688 = vld [vmem:[#allocation8 + $0x1398] sm:$0xff]
    %v1689 = vld [vmem:[#allocation8 + $0x13a0] sm:$0xff]
    %v1690 = vld [vmem:[#allocation8 + $0x13a8] sm:$0xff]
    %v1691 = vld [vmem:[#allocation8 + $0x13b0] sm:$0xff]
    %v1692 = vld [vmem:[#allocation8 + $0x13b8] sm:$0xff]
    %v1693 = vld [vmem:[#allocation8 + $0x13c0] sm:$0xff]
    %v1694 = vld [vmem:[#allocation8 + $0x13c8] sm:$0xff]
    %v1695 = vld [vmem:[#allocation8 + $0x13d0] sm:$0xff]
    %v1696 = vld [vmem:[#allocation8 + $0x13d8] sm:$0xff]
    %v1697 = vld [vmem:[#allocation8 + $0x13e0] sm:$0xff]
    %v1698 = vld [vmem:[#allocation8 + $0x13e8] sm:$0xff]
    %v1699 = vld [vmem:[#allocation8 + $0x13f0] sm:$0xff]
    %v1700 = vld [vmem:[#allocation8 + $0x13f8] sm:$0xff]
    %v1701 = vld [vmem:[#allocation8 + $0x1400] sm:$0xff]
    %v1702 = vld [vmem:[#allocation8 + $0x1408] sm:$0xff]
    %v1703 = vld [vmem:[#allocation8 + $0x1410] sm:$0xff]
    %v1704 = vld [vmem:[#allocation8 + $0x1418] sm:$0xff]
    %v1705 = vld [vmem:[#allocation8 + $0x1420] sm:$0xff]
    %v1706 = vld [vmem:[#allocation8 + $0x1428] sm:$0xff]
    %v1707 = vld [vmem:[#allocation8 + $0x1430] sm:$0xff]
    %v1708 = vld [vmem:[#allocation8 + $0x1438] sm:$0xff]
    %v1709 = vld [vmem:[#allocation8 + $0x1440] sm:$0xff]
    %v1710 = vld [vmem:[#allocation8 + $0x1448] sm:$0xff]
    %v1711 = vld [vmem:[#allocation8 + $0x1450] sm:$0xff]
    %v1712 = vld [vmem:[#allocation8 + $0x1458] sm:$0xff]
    %v1713 = vld [vmem:[#allocation8 + $0x1460] sm:$0xff]
    %v1714 = vld [vmem:[#allocation8 + $0x1468] sm:$0xff]
    %v1715 = vld [vmem:[#allocation8 + $0x1470] sm:$0xff]
    %v1716 = vld [vmem:[#allocation8 + $0x1478] sm:$0xff]
    %v1717 = vld [vmem:[#allocation8 + $0x1480] sm:$0xff]
    %v1718 = vld [vmem:[#allocation8 + $0x1488] sm:$0xff]
    %v1719 = vld [vmem:[#allocation8 + $0x1490] sm:$0xff]
    %v1720 = vld [vmem:[#allocation8 + $0x1498] sm:$0xff]
    %v1721 = vld [vmem:[#allocation8 + $0x14a0] sm:$0xff]
    %v1722 = vld [vmem:[#allocation8 + $0x14a8] sm:$0xff]
    %v1723 = vld [vmem:[#allocation8 + $0x14b0] sm:$0xff]
    %v1724 = vld [vmem:[#allocation8 + $0x14b8] sm:$0xff]
    %v1725 = vld [vmem:[#allocation8 + $0x14c0] sm:$0xff]
    %v1726 = vld [vmem:[#allocation8 + $0x14c8] sm:$0xff]
    %v1727 = vld [vmem:[#allocation8 + $0x14d0] sm:$0xff]
    %v1728 = vld [vmem:[#allocation8 + $0x14d8] sm:$0xff]
    %v1729 = vld [vmem:[#allocation8 + $0x14e0] sm:$0xff]
    %v1730 = vld [vmem:[#allocation8 + $0x14e8] sm:$0xff]
    %v1731 = vld [vmem:[#allocation8 + $0x14f0] sm:$0xff]
    %v1732 = vld [vmem:[#allocation8 + $0x14f8] sm:$0xff]
    %v1733 = vld [vmem:[#allocation8 + $0x1500] sm:$0xff]
    %v1734 = vld [vmem:[#allocation8 + $0x1508] sm:$0xff]
    %v1735 = vld [vmem:[#allocation8 + $0x1510] sm:$0xff]
    %v1736 = vld [vmem:[#allocation8 + $0x1518] sm:$0xff]
    %v1737 = vld [vmem:[#allocation8 + $0x1520] sm:$0xff]
    %v1738 = vld [vmem:[#allocation8 + $0x1528] sm:$0xff]
    %v1739 = vld [vmem:[#allocation8 + $0x1530] sm:$0xff]
    %v1740 = vld [vmem:[#allocation8 + $0x1538] sm:$0xff]
    %v1741 = vld [vmem:[#allocation8 + $0x1540] sm:$0xff]
    %v1742 = vld [vmem:[#allocation8 + $0x1548] sm:$0xff]
    %v1743 = vld [vmem:[#allocation8 + $0x1550] sm:$0xff]
    %v1744 = vld [vmem:[#allocation8 + $0x1558] sm:$0xff]
    %v1745 = vld [vmem:[#allocation8 + $0x1560] sm:$0xff]
    %v1746 = vld [vmem:[#allocation8 + $0x1568] sm:$0xff]
    %v1747 = vld [vmem:[#allocation8 + $0x1570] sm:$0xff]
    %v1748 = vld [vmem:[#allocation8 + $0x1578] sm:$0xff]
    %v1749 = vld [vmem:[#allocation8 + $0x1580] sm:$0xff]
    %v1750 = vld [vmem:[#allocation8 + $0x1588] sm:$0xff]
    %v1751 = vld [vmem:[#allocation8 + $0x1590] sm:$0xff]
    %v1752 = vld [vmem:[#allocation8 + $0x1598] sm:$0xff]
    %v1753 = vld [vmem:[#allocation8 + $0x15a0] sm:$0xff]
    %v1754 = vld [vmem:[#allocation8 + $0x15a8] sm:$0xff]
    %v1755 = vld [vmem:[#allocation8 + $0x15b0] sm:$0xff]
    %v1756 = vld [vmem:[#allocation8 + $0x15b8] sm:$0xff]
    %v1757 = vld [vmem:[#allocation8 + $0x15c0] sm:$0xff]
    %v1758 = vld [vmem:[#allocation8 + $0x15c8] sm:$0xff]
    %v1759 = vld [vmem:[#allocation8 + $0x15d0] sm:$0xff]
    %v1760 = vld [vmem:[#allocation8 + $0x15d8] sm:$0xff]
    %v1761 = vld [vmem:[#allocation8 + $0x15e0] sm:$0xff]
    %v1762 = vld [vmem:[#allocation8 + $0x15e8] sm:$0xff]
    %v1763 = vld [vmem:[#allocation8 + $0x15f0] sm:$0xff]
    %v1764 = vld [vmem:[#allocation8 + $0x15f8] sm:$0xff]
    %v1765 = vld [vmem:[#allocation8 + $0x1600] sm:$0xff]
    %v1766 = vld [vmem:[#allocation8 + $0x1608] sm:$0xff]
    %v1767 = vld [vmem:[#allocation8 + $0x1610] sm:$0xff]
    %v1768 = vld [vmem:[#allocation8 + $0x1618] sm:$0xff]
    %v1769 = vld [vmem:[#allocation8 + $0x1620] sm:$0xff]
    %v1770 = vld [vmem:[#allocation8 + $0x1628] sm:$0xff]
    %v1771 = vld [vmem:[#allocation8 + $0x1630] sm:$0xff]
    %v1772 = vld [vmem:[#allocation8 + $0x1638] sm:$0xff]
    %v1773 = vld [vmem:[#allocation8 + $0x1640] sm:$0xff]
    %v1774 = vld [vmem:[#allocation8 + $0x1648] sm:$0xff]
    %v1775 = vld [vmem:[#allocation8 + $0x1650] sm:$0xff]
    %v1776 = vld [vmem:[#allocation8 + $0x1658] sm:$0xff]
    %v1777 = vld [vmem:[#allocation8 + $0x1660] sm:$0xff]
    %v1778 = vld [vmem:[#allocation8 + $0x1668] sm:$0xff]
    %v1779 = vld [vmem:[#allocation8 + $0x1670] sm:$0xff]
    %v1780 = vld [vmem:[#allocation8 + $0x1678] sm:$0xff]
    %v1781 = vld [vmem:[#allocation8 + $0x1680] sm:$0xff]
    %v1782 = vld [vmem:[#allocation8 + $0x1688] sm:$0xff]
    %v1783 = vld [vmem:[#allocation8 + $0x1690] sm:$0xff]
    %v1784 = vld [vmem:[#allocation8 + $0x1698] sm:$0xff]
    %v1785 = vld [vmem:[#allocation8 + $0x16a0] sm:$0xff]
    %v1786 = vld [vmem:[#allocation8 + $0x16a8] sm:$0xff]
    %v1787 = vld [vmem:[#allocation8 + $0x16b0] sm:$0xff]
    %v1788 = vld [vmem:[#allocation8 + $0x16b8] sm:$0xff]
    %v1789 = vld [vmem:[#allocation8 + $0x16c0] sm:$0xff]
    %v1790 = vld [vmem:[#allocation8 + $0x16c8] sm:$0xff]
    %v1791 = vld [vmem:[#allocation8 + $0x16d0] sm:$0xff]
    %v1792 = vld [vmem:[#allocation8 + $0x16d8] sm:$0xff]
    %v1793 = vld [vmem:[#allocation8 + $0x16e0] sm:$0xff]
    %v1794 = vld [vmem:[#allocation8 + $0x16e8] sm:$0xff]
    %v1795 = vld [vmem:[#allocation8 + $0x16f0] sm:$0xff]
    %v1796 = vld [vmem:[#allocation8 + $0x16f8] sm:$0xff]
    %v1797 = vld [vmem:[#allocation8 + $0x1700] sm:$0xff]
    %v1798 = vld [vmem:[#allocation8 + $0x1708] sm:$0xff]
    %v1799 = vld [vmem:[#allocation8 + $0x1710] sm:$0xff]
    %v1800 = vld [vmem:[#allocation8 + $0x1718] sm:$0xff]
    %v1801 = vld [vmem:[#allocation8 + $0x1720] sm:$0xff]
    %v1802 = vld [vmem:[#allocation8 + $0x1728] sm:$0xff]
    %v1803 = vld [vmem:[#allocation8 + $0x1730] sm:$0xff]
    %v1804 = vld [vmem:[#allocation8 + $0x1738] sm:$0xff]
    %v1805 = vld [vmem:[#allocation8 + $0x1740] sm:$0xff]
    %v1806 = vld [vmem:[#allocation8 + $0x1748] sm:$0xff]
    %v1807 = vld [vmem:[#allocation8 + $0x1750] sm:$0xff]
    %v1808 = vld [vmem:[#allocation8 + $0x1758] sm:$0xff]
    %v1809 = vld [vmem:[#allocation8 + $0x1760] sm:$0xff]
    %v1810 = vld [vmem:[#allocation8 + $0x1768] sm:$0xff]
    %v1811 = vld [vmem:[#allocation8 + $0x1770] sm:$0xff]
    %v1812 = vld [vmem:[#allocation8 + $0x1778] sm:$0xff]
    %v1813 = vld [vmem:[#allocation8 + $0x1780] sm:$0xff]
    %v1814 = vld [vmem:[#allocation8 + $0x1788] sm:$0xff]
    %v1815 = vld [vmem:[#allocation8 + $0x1790] sm:$0xff]
    %v1816 = vld [vmem:[#allocation8 + $0x1798] sm:$0xff]
    %v1817 = vld [vmem:[#allocation8 + $0x17a0] sm:$0xff]
    %v1818 = vld [vmem:[#allocation8 + $0x17a8] sm:$0xff]
    %v1819 = vld [vmem:[#allocation8 + $0x17b0] sm:$0xff]
    %v1820 = vld [vmem:[#allocation8 + $0x17b8] sm:$0xff]
    %v1821 = vld [vmem:[#allocation8 + $0x17c0] sm:$0xff]
    %v1822 = vld [vmem:[#allocation8 + $0x17c8] sm:$0xff]
    %v1823 = vld [vmem:[#allocation8 + $0x17d0] sm:$0xff]
    %v1824 = vld [vmem:[#allocation8 + $0x17d8] sm:$0xff]
    %v1825 = vld [vmem:[#allocation8 + $0x17e0] sm:$0xff]
    %v1826 = vld [vmem:[#allocation8 + $0x17e8] sm:$0xff]
    %v1827 = vld [vmem:[#allocation8 + $0x17f0] sm:$0xff]
    %v1828 = vld [vmem:[#allocation8 + $0x17f8] sm:$0xff]
    %v1829 = vld [vmem:[#allocation8 + $0x1800] sm:$0xff]
    %v1830 = vld [vmem:[#allocation8 + $0x1808] sm:$0xff]
    %v1831 = vld [vmem:[#allocation8 + $0x1810] sm:$0xff]
    %v1832 = vld [vmem:[#allocation8 + $0x1818] sm:$0xff]
    %v1833 = vld [vmem:[#allocation8 + $0x1820] sm:$0xff]
    %v1834 = vld [vmem:[#allocation8 + $0x1828] sm:$0xff]
    %v1835 = vld [vmem:[#allocation8 + $0x1830] sm:$0xff]
    %v1836 = vld [vmem:[#allocation8 + $0x1838] sm:$0xff]
    %v1837 = vld [vmem:[#allocation8 + $0x1840] sm:$0xff]
    %v1838 = vld [vmem:[#allocation8 + $0x1848] sm:$0xff]
    %v1839 = vld [vmem:[#allocation8 + $0x1850] sm:$0xff]
    %v1840 = vld [vmem:[#allocation8 + $0x1858] sm:$0xff]
    %v1841 = vld [vmem:[#allocation8 + $0x1860] sm:$0xff]
    %v1842 = vld [vmem:[#allocation8 + $0x1868] sm:$0xff]
    %v1843 = vld [vmem:[#allocation8 + $0x1870] sm:$0xff]
    %v1844 = vld [vmem:[#allocation8 + $0x1878] sm:$0xff]
    %v1845 = vld [vmem:[#allocation8 + $0x1880] sm:$0xff]
    %v1846 = vld [vmem:[#allocation8 + $0x1888] sm:$0xff]
    %v1847 = vld [vmem:[#allocation8 + $0x1890] sm:$0xff]
    %v1848 = vld [vmem:[#allocation8 + $0x1898] sm:$0xff]
    %v1849 = vld [vmem:[#allocation8 + $0x18a0] sm:$0xff]
    %v1850 = vld [vmem:[#allocation8 + $0x18a8] sm:$0xff]
    %v1851 = vld [vmem:[#allocation8 + $0x18b0] sm:$0xff]
    %v1852 = vld [vmem:[#allocation8 + $0x18b8] sm:$0xff]
    %v1853 = vld [vmem:[#allocation8 + $0x18c0] sm:$0xff]
    %v1854 = vld [vmem:[#allocation8 + $0x18c8] sm:$0xff]
    %v1855 = vld [vmem:[#allocation8 + $0x18d0] sm:$0xff]
    %v1856 = vld [vmem:[#allocation8 + $0x18d8] sm:$0xff]
    %v1857 = vld [vmem:[#allocation8 + $0x18e0] sm:$0xff]
    %v1858 = vld [vmem:[#allocation8 + $0x18e8] sm:$0xff]
    %v1859 = vld [vmem:[#allocation8 + $0x18f0] sm:$0xff]
    %v1860 = vld [vmem:[#allocation8 + $0x18f8] sm:$0xff]
    %v1861 = vld [vmem:[#allocation8 + $0x1900] sm:$0xff]
    %v1862 = vld [vmem:[#allocation8 + $0x1908] sm:$0xff]
    %v1863 = vld [vmem:[#allocation8 + $0x1910] sm:$0xff]
    %v1864 = vld [vmem:[#allocation8 + $0x1918] sm:$0xff]
    %v1865 = vld [vmem:[#allocation8 + $0x1920] sm:$0xff]
    %v1866 = vld [vmem:[#allocation8 + $0x1928] sm:$0xff]
    %v1867 = vld [vmem:[#allocation8 + $0x1930] sm:$0xff]
    %v1868 = vld [vmem:[#allocation8 + $0x1938] sm:$0xff]
    %v1869 = vld [vmem:[#allocation8 + $0x1940] sm:$0xff]
    %v1870 = vld [vmem:[#allocation8 + $0x1948] sm:$0xff]
    %v1871 = vld [vmem:[#allocation8 + $0x1950] sm:$0xff]
    %v1872 = vld [vmem:[#allocation8 + $0x1958] sm:$0xff]
    %v1873 = vld [vmem:[#allocation8 + $0x1960] sm:$0xff]
    %v1874 = vld [vmem:[#allocation8 + $0x1968] sm:$0xff]
    %v1875 = vld [vmem:[#allocation8 + $0x1970] sm:$0xff]
    %v1876 = vld [vmem:[#allocation8 + $0x1978] sm:$0xff]
    %v1877 = vld [vmem:[#allocation8 + $0x1980] sm:$0xff]
    %v1878 = vld [vmem:[#allocation8 + $0x1988] sm:$0xff]
    %v1879 = vld [vmem:[#allocation8 + $0x1990] sm:$0xff]
    %v1880 = vld [vmem:[#allocation8 + $0x1998] sm:$0xff]
    %v1881 = vld [vmem:[#allocation8 + $0x19a0] sm:$0xff]
    %v1882 = vld [vmem:[#allocation8 + $0x19a8] sm:$0xff]
    %v1883 = vld [vmem:[#allocation8 + $0x19b0] sm:$0xff]
    %v1884 = vld [vmem:[#allocation8 + $0x19b8] sm:$0xff]
    %v1885 = vld [vmem:[#allocation8 + $0x19c0] sm:$0xff]
    %v1886 = vld [vmem:[#allocation8 + $0x19c8] sm:$0xff]
    %v1887 = vld [vmem:[#allocation8 + $0x19d0] sm:$0xff]
    %v1888 = vld [vmem:[#allocation8 + $0x19d8] sm:$0xff]
    %v1889 = vld [vmem:[#allocation8 + $0x19e0] sm:$0xff]
    %v1890 = vld [vmem:[#allocation8 + $0x19e8] sm:$0xff]
    %v1891 = vld [vmem:[#allocation8 + $0x19f0] sm:$0xff]
    %v1892 = vld [vmem:[#allocation8 + $0x19f8] sm:$0xff]
    %v1893 = vld [vmem:[#allocation8 + $0x1a00] sm:$0xff]
    %v1894 = vld [vmem:[#allocation8 + $0x1a08] sm:$0xff]
    %v1895 = vld [vmem:[#allocation8 + $0x1a10] sm:$0xff]
    %v1896 = vld [vmem:[#allocation8 + $0x1a18] sm:$0xff]
    %v1897 = vld [vmem:[#allocation8 + $0x1a20] sm:$0xff]
    %v1898 = vld [vmem:[#allocation8 + $0x1a28] sm:$0xff]
    %v1899 = vld [vmem:[#allocation8 + $0x1a30] sm:$0xff]
    %v1900 = vld [vmem:[#allocation8 + $0x1a38] sm:$0xff]
    %v1901 = vld [vmem:[#allocation8 + $0x1a40] sm:$0xff]
    %v1902 = vld [vmem:[#allocation8 + $0x1a48] sm:$0xff]
    %v1903 = vld [vmem:[#allocation8 + $0x1a50] sm:$0xff]
    %v1904 = vld [vmem:[#allocation8 + $0x1a58] sm:$0xff]
    %v1905 = vld [vmem:[#allocation8 + $0x1a60] sm:$0xff]
    %v1906 = vld [vmem:[#allocation8 + $0x1a68] sm:$0xff]
    %v1907 = vld [vmem:[#allocation8 + $0x1a70] sm:$0xff]
    %v1908 = vld [vmem:[#allocation8 + $0x1a78] sm:$0xff]
    %v1909 = vld [vmem:[#allocation8 + $0x1a80] sm:$0xff]
    %v1910 = vld [vmem:[#allocation8 + $0x1a88] sm:$0xff]
    %v1911 = vld [vmem:[#allocation8 + $0x1a90] sm:$0xff]
    %v1912 = vld [vmem:[#allocation8 + $0x1a98] sm:$0xff]
    %v1913 = vld [vmem:[#allocation8 + $0x1aa0] sm:$0xff]
    %v1914 = vld [vmem:[#allocation8 + $0x1aa8] sm:$0xff]
    %v1915 = vld [vmem:[#allocation8 + $0x1ab0] sm:$0xff]
    %v1916 = vld [vmem:[#allocation8 + $0x1ab8] sm:$0xff]
    %v1917 = vld [vmem:[#allocation8 + $0x1ac0] sm:$0xff]
    %v1918 = vld [vmem:[#allocation8 + $0x1ac8] sm:$0xff]
    %v1919 = vld [vmem:[#allocation8 + $0x1ad0] sm:$0xff]
    %v1920 = vld [vmem:[#allocation8 + $0x1ad8] sm:$0xff]
    %v1921 = vld [vmem:[#allocation8 + $0x1ae0] sm:$0xff]
    %v1922 = vld [vmem:[#allocation8 + $0x1ae8] sm:$0xff]
    %v1923 = vld [vmem:[#allocation8 + $0x1af0] sm:$0xff]
    %v1924 = vld [vmem:[#allocation8 + $0x1af8] sm:$0xff]
    %v1925 = vld [vmem:[#allocation8 + $0x1b00] sm:$0xff]
    %v1926 = vld [vmem:[#allocation8 + $0x1b08] sm:$0xff]
    %v1927 = vld [vmem:[#allocation8 + $0x1b10] sm:$0xff]
    %v1928 = vld [vmem:[#allocation8 + $0x1b18] sm:$0xff]
    %v1929 = vld [vmem:[#allocation8 + $0x1b20] sm:$0xff]
    %v1930 = vld [vmem:[#allocation8 + $0x1b28] sm:$0xff]
    %v1931 = vld [vmem:[#allocation8 + $0x1b30] sm:$0xff]
    %v1932 = vld [vmem:[#allocation8 + $0x1b38] sm:$0xff]
    %v1933 = vld [vmem:[#allocation8 + $0x1b40] sm:$0xff]
    %v1934 = vld [vmem:[#allocation8 + $0x1b48] sm:$0xff]
    %v1935 = vld [vmem:[#allocation8 + $0x1b50] sm:$0xff]
    %v1936 = vld [vmem:[#allocation8 + $0x1b58] sm:$0xff]
    %v1937 = vld [vmem:[#allocation8 + $0x1b60] sm:$0xff]
    %v1938 = vld [vmem:[#allocation8 + $0x1b68] sm:$0xff]
    %v1939 = vld [vmem:[#allocation8 + $0x1b70] sm:$0xff]
    %v1940 = vld [vmem:[#allocation8 + $0x1b78] sm:$0xff]
    %v1941 = vld [vmem:[#allocation8 + $0x1b80] sm:$0xff]
    %v1942 = vld [vmem:[#allocation8 + $0x1b88] sm:$0xff]
    %v1943 = vld [vmem:[#allocation8 + $0x1b90] sm:$0xff]
    %v1944 = vld [vmem:[#allocation8 + $0x1b98] sm:$0xff]
    %v1945 = vld [vmem:[#allocation8 + $0x1ba0] sm:$0xff]
    %v1946 = vld [vmem:[#allocation8 + $0x1ba8] sm:$0xff]
    %v1947 = vld [vmem:[#allocation8 + $0x1bb0] sm:$0xff]
    %v1948 = vld [vmem:[#allocation8 + $0x1bb8] sm:$0xff]
    %v1949 = vld [vmem:[#allocation8 + $0x1bc0] sm:$0xff]
    %v1950 = vld [vmem:[#allocation8 + $0x1bc8] sm:$0xff]
    %v1951 = vld [vmem:[#allocation8 + $0x1bd0] sm:$0xff]
    %v1952 = vld [vmem:[#allocation8 + $0x1bd8] sm:$0xff]
    %v1953 = vld [vmem:[#allocation8 + $0x1be0] sm:$0xff]
    %v1954 = vld [vmem:[#allocation8 + $0x1be8] sm:$0xff]
    %v1955 = vld [vmem:[#allocation8 + $0x1bf0] sm:$0xff]
    %v1956 = vld [vmem:[#allocation8 + $0x1bf8] sm:$0xff]
    %v1957 = vld [vmem:[#allocation8 + $0x1c00] sm:$0xff]
    %v1958 = vld [vmem:[#allocation8 + $0x1c08] sm:$0xff]
    %v1959 = vld [vmem:[#allocation8 + $0x1c10] sm:$0xff]
    %v1960 = vld [vmem:[#allocation8 + $0x1c18] sm:$0xff]
    %v1961 = vld [vmem:[#allocation8 + $0x1c20] sm:$0xff]
    %v1962 = vld [vmem:[#allocation8 + $0x1c28] sm:$0xff]
    %v1963 = vld [vmem:[#allocation8 + $0x1c30] sm:$0xff]
    %v1964 = vld [vmem:[#allocation8 + $0x1c38] sm:$0xff]
    %v1965 = vld [vmem:[#allocation8 + $0x1c40] sm:$0xff]
    %v1966 = vld [vmem:[#allocation8 + $0x1c48] sm:$0xff]
    %v1967 = vld [vmem:[#allocation8 + $0x1c50] sm:$0xff]
    %v1968 = vld [vmem:[#allocation8 + $0x1c58] sm:$0xff]
    %v1969 = vld [vmem:[#allocation8 + $0x1c60] sm:$0xff]
    %v1970 = vld [vmem:[#allocation8 + $0x1c68] sm:$0xff]
    %v1971 = vld [vmem:[#allocation8 + $0x1c70] sm:$0xff]
    %v1972 = vld [vmem:[#allocation8 + $0x1c78] sm:$0xff]
    %v1973 = vld [vmem:[#allocation8 + $0x1c80] sm:$0xff]
    %v1974 = vld [vmem:[#allocation8 + $0x1c88] sm:$0xff]
    %v1975 = vld [vmem:[#allocation8 + $0x1c90] sm:$0xff]
    %v1976 = vld [vmem:[#allocation8 + $0x1c98] sm:$0xff]
    %v1977 = vld [vmem:[#allocation8 + $0x1ca0] sm:$0xff]
    %v1978 = vld [vmem:[#allocation8 + $0x1ca8] sm:$0xff]
    %v1979 = vld [vmem:[#allocation8 + $0x1cb0] sm:$0xff]
    %v1980 = vld [vmem:[#allocation8 + $0x1cb8] sm:$0xff]
    %v1981 = vld [vmem:[#allocation8 + $0x1cc0] sm:$0xff]
    %v1982 = vld [vmem:[#allocation8 + $0x1cc8] sm:$0xff]
    %v1983 = vld [vmem:[#allocation8 + $0x1cd0] sm:$0xff]
    %v1984 = vld [vmem:[#allocation8 + $0x1cd8] sm:$0xff]
    %v1985 = vld [vmem:[#allocation8 + $0x1ce0] sm:$0xff]
    %v1986 = vld [vmem:[#allocation8 + $0x1ce8] sm:$0xff]
    %v1987 = vld [vmem:[#allocation8 + $0x1cf0] sm:$0xff]
    %v1988 = vld [vmem:[#allocation8 + $0x1cf8] sm:$0xff]
    %v1989 = vld [vmem:[#allocation8 + $0x1d00] sm:$0xff]
    %v1990 = vld [vmem:[#allocation8 + $0x1d08] sm:$0xff]
    %v1991 = vld [vmem:[#allocation8 + $0x1d10] sm:$0xff]
    %v1992 = vld [vmem:[#allocation8 + $0x1d18] sm:$0xff]
    %v1993 = vld [vmem:[#allocation8 + $0x1d20] sm:$0xff]
    %v1994 = vld [vmem:[#allocation8 + $0x1d28] sm:$0xff]
    %v1995 = vld [vmem:[#allocation8 + $0x1d30] sm:$0xff]
    %v1996 = vld [vmem:[#allocation8 + $0x1d38] sm:$0xff]
    %v1997 = vld [vmem:[#allocation8 + $0x1d40] sm:$0xff]
    %v1998 = vld [vmem:[#allocation8 + $0x1d48] sm:$0xff]
    %v1999 = vld [vmem:[#allocation8 + $0x1d50] sm:$0xff]
    %v2000 = vld [vmem:[#allocation8 + $0x1d58] sm:$0xff]
    %v2001 = vld [vmem:[#allocation8 + $0x1d60] sm:$0xff]
    %v2002 = vld [vmem:[#allocation8 + $0x1d68] sm:$0xff]
    %v2003 = vld [vmem:[#allocation8 + $0x1d70] sm:$0xff]
    %v2004 = vld [vmem:[#allocation8 + $0x1d78] sm:$0xff]
    %v2005 = vld [vmem:[#allocation8 + $0x1d80] sm:$0xff]
    %v2006 = vld [vmem:[#allocation8 + $0x1d88] sm:$0xff]
    %v2007 = vld [vmem:[#allocation8 + $0x1d90] sm:$0xff]
    %v2008 = vld [vmem:[#allocation8 + $0x1d98] sm:$0xff]
    %v2009 = vld [vmem:[#allocation8 + $0x1da0] sm:$0xff]
    %v2010 = vld [vmem:[#allocation8 + $0x1da8] sm:$0xff]
    %v2011 = vld [vmem:[#allocation8 + $0x1db0] sm:$0xff]
    %v2012 = vld [vmem:[#allocation8 + $0x1db8] sm:$0xff]
    %v2013 = vld [vmem:[#allocation8 + $0x1dc0] sm:$0xff]
    %v2014 = vld [vmem:[#allocation8 + $0x1dc8] sm:$0xff]
    %v2015 = vld [vmem:[#allocation8 + $0x1dd0] sm:$0xff]
    %v2016 = vld [vmem:[#allocation8 + $0x1dd8] sm:$0xff]
    %v2017 = vld [vmem:[#allocation8 + $0x1de0] sm:$0xff]
    %v2018 = vld [vmem:[#allocation8 + $0x1de8] sm:$0xff]
    %v2019 = vld [vmem:[#allocation8 + $0x1df0] sm:$0xff]
    %v2020 = vld [vmem:[#allocation8 + $0x1df8] sm:$0xff]
    %v2021 = vld [vmem:[#allocation8 + $0x1e00] sm:$0xff]
    %v2022 = vld [vmem:[#allocation8 + $0x1e08] sm:$0xff]
    %v2023 = vld [vmem:[#allocation8 + $0x1e10] sm:$0xff]
    %v2024 = vld [vmem:[#allocation8 + $0x1e18] sm:$0xff]
    %v2025 = vld [vmem:[#allocation8 + $0x1e20] sm:$0xff]
    %v2026 = vld [vmem:[#allocation8 + $0x1e28] sm:$0xff]
    %v2027 = vld [vmem:[#allocation8 + $0x1e30] sm:$0xff]
    %v2028 = vld [vmem:[#allocation8 + $0x1e38] sm:$0xff]
    %v2029 = vld [vmem:[#allocation8 + $0x1e40] sm:$0xff]
    %v2030 = vld [vmem:[#allocation8 + $0x1e48] sm:$0xff]
    %v2031 = vld [vmem:[#allocation8 + $0x1e50] sm:$0xff]
    %v2032 = vld [vmem:[#allocation8 + $0x1e58] sm:$0xff]
    %v2033 = vld [vmem:[#allocation8 + $0x1e60] sm:$0xff]
    %v2034 = vld [vmem:[#allocation8 + $0x1e68] sm:$0xff]
    %v2035 = vld [vmem:[#allocation8 + $0x1e70] sm:$0xff]
    %v2036 = vld [vmem:[#allocation8 + $0x1e78] sm:$0xff]
    %v2037 = vld [vmem:[#allocation8 + $0x1e80] sm:$0xff]
    %v2038 = vld [vmem:[#allocation8 + $0x1e88] sm:$0xff]
    %v2039 = vld [vmem:[#allocation8 + $0x1e90] sm:$0xff]
    %v2040 = vld [vmem:[#allocation8 + $0x1e98] sm:$0xff]
    %v2041 = vld [vmem:[#allocation8 + $0x1ea0] sm:$0xff]
    %v2042 = vld [vmem:[#allocation8 + $0x1ea8] sm:$0xff]
    %v2043 = vld [vmem:[#allocation8 + $0x1eb0] sm:$0xff]
    %v2044 = vld [vmem:[#allocation8 + $0x1eb8] sm:$0xff]
    %v2045 = vld [vmem:[#allocation8 + $0x1ec0] sm:$0xff]
    %v2046 = vld [vmem:[#allocation8 + $0x1ec8] sm:$0xff]
    %v2047 = vld [vmem:[#allocation8 + $0x1ed0] sm:$0xff]
    %v2048 = vld [vmem:[#allocation8 + $0x1ed8] sm:$0xff]
    %v2049 = vld [vmem:[#allocation8 + $0x1ee0] sm:$0xff]
    %v2050 = vld [vmem:[#allocation8 + $0x1ee8] sm:$0xff]
    %v2051 = vld [vmem:[#allocation8 + $0x1ef0] sm:$0xff]
    %v2052 = vld [vmem:[#allocation8 + $0x1ef8] sm:$0xff]
    %v2053 = vld [vmem:[#allocation8 + $0x1f00] sm:$0xff]
    %v2054 = vld [vmem:[#allocation8 + $0x1f08] sm:$0xff]
    %v2055 = vld [vmem:[#allocation8 + $0x1f10] sm:$0xff]
    %v2056 = vld [vmem:[#allocation8 + $0x1f18] sm:$0xff]
    %v2057 = vld [vmem:[#allocation8 + $0x1f20] sm:$0xff]
    %v2058 = vld [vmem:[#allocation8 + $0x1f28] sm:$0xff]
    %v2059 = vld [vmem:[#allocation8 + $0x1f30] sm:$0xff]
    %v2060 = vld [vmem:[#allocation8 + $0x1f38] sm:$0xff]
    %v2061 = vld [vmem:[#allocation8 + $0x1f40] sm:$0xff]
    %v2062 = vld [vmem:[#allocation8 + $0x1f48] sm:$0xff]
    %v2063 = vld [vmem:[#allocation8 + $0x1f50] sm:$0xff]
    %v2064 = vld [vmem:[#allocation8 + $0x1f58] sm:$0xff]
    %v2065 = vld [vmem:[#allocation8 + $0x1f60] sm:$0xff]
    %v2066 = vld [vmem:[#allocation8 + $0x1f68] sm:$0xff]
    %v2067 = vld [vmem:[#allocation8 + $0x1f70] sm:$0xff]
    %v2068 = vld [vmem:[#allocation8 + $0x1f78] sm:$0xff]
    %v2069 = vld [vmem:[#allocation8 + $0x1f80] sm:$0xff]
    %v2070 = vld [vmem:[#allocation8 + $0x1f88] sm:$0xff]
    %v2071 = vld [vmem:[#allocation8 + $0x1f90] sm:$0xff]
    %v2072 = vld [vmem:[#allocation8 + $0x1f98] sm:$0xff]
    %v2073 = vld [vmem:[#allocation8 + $0x1fa0] sm:$0xff]
    %v2074 = vld [vmem:[#allocation8 + $0x1fa8] sm:$0xff]
    %v2075 = vld [vmem:[#allocation8 + $0x1fb0] sm:$0xff]
    %v2076 = vld [vmem:[#allocation8 + $0x1fb8] sm:$0xff]
    %v2077 = vld [vmem:[#allocation8 + $0x1fc0] sm:$0xff]
    %v2078 = vld [vmem:[#allocation8 + $0x1fc8] sm:$0xff]
    %v2079 = vld [vmem:[#allocation8 + $0x1fd0] sm:$0xff]
    %v2080 = vld [vmem:[#allocation8 + $0x1fd8] sm:$0xff]
    %v2081 = vld [vmem:[#allocation8 + $0x1fe0] sm:$0xff]
    %v2082 = vld [vmem:[#allocation8 + $0x1fe8] sm:$0xff]
    %v2083 = vld [vmem:[#allocation8 + $0x1ff0] sm:$0xff]
    %v2084 = vld [vmem:[#allocation8 + $0x1ff8] sm:$0xff]
    %v2085 = vld [vmem:[#allocation8 + $0x2000] sm:$0xff]
    %v2086 = vld [vmem:[#allocation8 + $0x2008] sm:$0xff]
    %v2087 = vld [vmem:[#allocation8 + $0x2010] sm:$0xff]
    %v2088 = vld [vmem:[#allocation8 + $0x2018] sm:$0xff]
    %v2089 = vld [vmem:[#allocation8 + $0x2020] sm:$0xff]
    %v2090 = vld [vmem:[#allocation8 + $0x2028] sm:$0xff]
    %v2091 = vld [vmem:[#allocation8 + $0x2030] sm:$0xff]
    %v2092 = vld [vmem:[#allocation8 + $0x2038] sm:$0xff]
    %v2093 = vld [vmem:[#allocation8 + $0x2040] sm:$0xff]
    %v2094 = vld [vmem:[#allocation8 + $0x2048] sm:$0xff]
    %v2095 = vld [vmem:[#allocation8 + $0x2050] sm:$0xff]
    %v2096 = vld [vmem:[#allocation8 + $0x2058] sm:$0xff]
    %v2097 = vld [vmem:[#allocation8 + $0x2060] sm:$0xff]
    %v2098 = vld [vmem:[#allocation8 + $0x2068] sm:$0xff]
    %v2099 = vld [vmem:[#allocation8 + $0x2070] sm:$0xff]
    %v2100 = vld [vmem:[#allocation8 + $0x2078] sm:$0xff]
    %v2101 = vld [vmem:[#allocation8 + $0x2080] sm:$0xff]
    %v2102 = vld [vmem:[#allocation8 + $0x2088] sm:$0xff]
    %v2103 = vld [vmem:[#allocation8 + $0x2090] sm:$0xff]
    %v2104 = vld [vmem:[#allocation8 + $0x2098] sm:$0xff]
    %v2105 = vld [vmem:[#allocation8 + $0x20a0] sm:$0xff]
    %v2106 = vld [vmem:[#allocation8 + $0x20a8] sm:$0xff]
    %v2107 = vld [vmem:[#allocation8 + $0x20b0] sm:$0xff]
    %v2108 = vld [vmem:[#allocation8 + $0x20b8] sm:$0xff]
    %v2109 = vld [vmem:[#allocation8 + $0x20c0] sm:$0xff]
    %v2110 = vld [vmem:[#allocation8 + $0x20c8] sm:$0xff]
    %v2111 = vld [vmem:[#allocation8 + $0x20d0] sm:$0xff]
    %v2112 = vld [vmem:[#allocation8 + $0x20d8] sm:$0xff]
    %v2113 = vld [vmem:[#allocation8 + $0x20e0] sm:$0xff]
    %v2114 = vld [vmem:[#allocation8 + $0x20e8] sm:$0xff]
    %v2115 = vld [vmem:[#allocation8 + $0x20f0] sm:$0xff]
    %v2116 = vld [vmem:[#allocation8 + $0x20f8] sm:$0xff]
    %v2117 = vld [vmem:[#allocation8 + $0x2100] sm:$0xff]
    %v2118 = vld [vmem:[#allocation8 + $0x2108] sm:$0xff]
    %v2119 = vld [vmem:[#allocation8 + $0x2110] sm:$0xff]
    %v2120 = vld [vmem:[#allocation8 + $0x2118] sm:$0xff]
    %v2121 = vld [vmem:[#allocation8 + $0x2120] sm:$0xff]
    %v2122 = vld [vmem:[#allocation8 + $0x2128] sm:$0xff]
    %v2123 = vld [vmem:[#allocation8 + $0x2130] sm:$0xff]
    %v2124 = vld [vmem:[#allocation8 + $0x2138] sm:$0xff]
    %v2125 = vld [vmem:[#allocation8 + $0x2140] sm:$0xff]
    %v2126 = vld [vmem:[#allocation8 + $0x2148] sm:$0xff]
    %v2127 = vld [vmem:[#allocation8 + $0x2150] sm:$0xff]
    %v2128 = vld [vmem:[#allocation8 + $0x2158] sm:$0xff]
    %v2129 = vld [vmem:[#allocation8 + $0x2160] sm:$0xff]
    %v2130 = vld [vmem:[#allocation8 + $0x2168] sm:$0xff]
    %v2131 = vld [vmem:[#allocation8 + $0x2170] sm:$0xff]
    %v2132 = vld [vmem:[#allocation8 + $0x2178] sm:$0xff]
    %v2133 = vld [vmem:[#allocation8 + $0x2180] sm:$0xff]
    %v2134 = vld [vmem:[#allocation8 + $0x2188] sm:$0xff]
    %v2135 = vld [vmem:[#allocation8 + $0x2190] sm:$0xff]
    %v2136 = vld [vmem:[#allocation8 + $0x2198] sm:$0xff]
    %v2137 = vld [vmem:[#allocation8 + $0x21a0] sm:$0xff]
    %v2138 = vld [vmem:[#allocation8 + $0x21a8] sm:$0xff]
    %v2139 = vld [vmem:[#allocation8 + $0x21b0] sm:$0xff]
    %v2140 = vld [vmem:[#allocation8 + $0x21b8] sm:$0xff]
    %v2141 = vld [vmem:[#allocation8 + $0x21c0] sm:$0xff]
    %v2142 = vld [vmem:[#allocation8 + $0x21c8] sm:$0xff]
    %v2143 = vld [vmem:[#allocation8 + $0x21d0] sm:$0xff]
    %v2144 = vld [vmem:[#allocation8 + $0x21d8] sm:$0xff]
    %v2145 = vld [vmem:[#allocation8 + $0x21e0] sm:$0xff]
    %v2146 = vld [vmem:[#allocation8 + $0x21e8] sm:$0xff]
    %v2147 = vld [vmem:[#allocation8 + $0x21f0] sm:$0xff]
    %v2148 = vld [vmem:[#allocation8 + $0x21f8] sm:$0xff]
    %v2149 = vld [vmem:[#allocation8 + $0x2200] sm:$0xff]
    %v2150 = vld [vmem:[#allocation8 + $0x2208] sm:$0xff]
    %v2151 = vld [vmem:[#allocation8 + $0x2210] sm:$0xff]
    %v2152 = vld [vmem:[#allocation8 + $0x2218] sm:$0xff]
    %v2153 = vld [vmem:[#allocation8 + $0x2220] sm:$0xff]
    %v2154 = vld [vmem:[#allocation8 + $0x2228] sm:$0xff]
    %v2155 = vld [vmem:[#allocation8 + $0x2230] sm:$0xff]
    %v2156 = vld [vmem:[#allocation8 + $0x2238] sm:$0xff]
    %v2157 = vld [vmem:[#allocation8 + $0x2240] sm:$0xff]
    %v2158 = vld [vmem:[#allocation8 + $0x2248] sm:$0xff]
    %v2159 = vld [vmem:[#allocation8 + $0x2250] sm:$0xff]
    %v2160 = vld [vmem:[#allocation8 + $0x2258] sm:$0xff]
    %v2161 = vld [vmem:[#allocation8 + $0x2260] sm:$0xff]
    %v2162 = vld [vmem:[#allocation8 + $0x2268] sm:$0xff]
    %v2163 = vld [vmem:[#allocation8 + $0x2270] sm:$0xff]
    %v2164 = vld [vmem:[#allocation8 + $0x2278] sm:$0xff]
    %v2165 = vld [vmem:[#allocation8 + $0x2280] sm:$0xff]
    %v2166 = vld [vmem:[#allocation8 + $0x2288] sm:$0xff]
    %v2167 = vld [vmem:[#allocation8 + $0x2290] sm:$0xff]
    %v2168 = vld [vmem:[#allocation8 + $0x2298] sm:$0xff]
    %v2169 = vld [vmem:[#allocation8 + $0x22a0] sm:$0xff]
    %v2170 = vld [vmem:[#allocation8 + $0x22a8] sm:$0xff]
    %v2171 = vld [vmem:[#allocation8 + $0x22b0] sm:$0xff]
    %v2172 = vld [vmem:[#allocation8 + $0x22b8] sm:$0xff]
    %v2173 = vld [vmem:[#allocation8 + $0x22c0] sm:$0xff]
    %v2174 = vld [vmem:[#allocation8 + $0x22c8] sm:$0xff]
    %v2175 = vld [vmem:[#allocation8 + $0x22d0] sm:$0xff]
    %v2176 = vld [vmem:[#allocation8 + $0x22d8] sm:$0xff]
    %v2177 = vld [vmem:[#allocation8 + $0x22e0] sm:$0xff]
    %v2178 = vld [vmem:[#allocation8 + $0x22e8] sm:$0xff]
    %v2179 = vld [vmem:[#allocation8 + $0x22f0] sm:$0xff]
    %v2180 = vld [vmem:[#allocation8 + $0x22f8] sm:$0xff]
    %v2181 = vld [vmem:[#allocation8 + $0x2300] sm:$0xff]
    %v2182 = vld [vmem:[#allocation8 + $0x2308] sm:$0xff]
    %v2183 = vld [vmem:[#allocation8 + $0x2310] sm:$0xff]
    %v2184 = vld [vmem:[#allocation8 + $0x2318] sm:$0xff]
    %v2185 = vld [vmem:[#allocation8 + $0x2320] sm:$0xff]
    %v2186 = vld [vmem:[#allocation8 + $0x2328] sm:$0xff]
    %v2187 = vld [vmem:[#allocation8 + $0x2330] sm:$0xff]
    %v2188 = vld [vmem:[#allocation8 + $0x2338] sm:$0xff]
    %v2189 = vld [vmem:[#allocation8 + $0x2340] sm:$0xff]
    %v2190 = vld [vmem:[#allocation8 + $0x2348] sm:$0xff]
    %v2191 = vld [vmem:[#allocation8 + $0x2350] sm:$0xff]
    %v2192 = vld [vmem:[#allocation8 + $0x2358] sm:$0xff]
    %v2193 = vld [vmem:[#allocation8 + $0x2360] sm:$0xff]
    %v2194 = vld [vmem:[#allocation8 + $0x2368] sm:$0xff]
    %v2195 = vld [vmem:[#allocation8 + $0x2370] sm:$0xff]
    %v2196 = vld [vmem:[#allocation8 + $0x2378] sm:$0xff]
    %v2197 = vld [vmem:[#allocation8 + $0x2380] sm:$0xff]
    %v2198 = vld [vmem:[#allocation8 + $0x2388] sm:$0xff]
    %v2199 = vld [vmem:[#allocation8 + $0x2390] sm:$0xff]
    %v2200 = vld [vmem:[#allocation8 + $0x2398] sm:$0xff]
    %v2201 = vld [vmem:[#allocation8 + $0x23a0] sm:$0xff]
    %v2202 = vld [vmem:[#allocation8 + $0x23a8] sm:$0xff]
    %v2203 = vld [vmem:[#allocation8 + $0x23b0] sm:$0xff]
    %v2204 = vld [vmem:[#allocation8 + $0x23b8] sm:$0xff]
    %v2205 = vld [vmem:[#allocation8 + $0x23c0] sm:$0xff]
    %v2206 = vld [vmem:[#allocation8 + $0x23c8] sm:$0xff]
    %v2207 = vld [vmem:[#allocation8 + $0x23d0] sm:$0xff]
    %v2208 = vld [vmem:[#allocation8 + $0x23d8] sm:$0xff]
    %v2209 = vld [vmem:[#allocation8 + $0x23e0] sm:$0xff]
    %v2210 = vld [vmem:[#allocation8 + $0x23e8] sm:$0xff]
    %v2211 = vld [vmem:[#allocation8 + $0x23f0] sm:$0xff]
    %v2212 = vld [vmem:[#allocation8 + $0x23f8] sm:$0xff]
    %v2213 = vld [vmem:[#allocation8 + $0x2400] sm:$0xff]
    %v2214 = vld [vmem:[#allocation8 + $0x2408] sm:$0xff]
    %v2215 = vld [vmem:[#allocation8 + $0x2410] sm:$0xff]
    %v2216 = vld [vmem:[#allocation8 + $0x2418] sm:$0xff]
    %v2217 = vld [vmem:[#allocation8 + $0x2420] sm:$0xff]
    %v2218 = vld [vmem:[#allocation8 + $0x2428] sm:$0xff]
    %v2219 = vld [vmem:[#allocation8 + $0x2430] sm:$0xff]
    %v2220 = vld [vmem:[#allocation8 + $0x2438] sm:$0xff]
    %v2221 = vld [vmem:[#allocation8 + $0x2440] sm:$0xff]
    %v2222 = vld [vmem:[#allocation8 + $0x2448] sm:$0xff]
    %v2223 = vld [vmem:[#allocation8 + $0x2450] sm:$0xff]
    %v2224 = vld [vmem:[#allocation8 + $0x2458] sm:$0xff]
    %v2225 = vld [vmem:[#allocation8 + $0x2460] sm:$0xff]
    %v2226 = vld [vmem:[#allocation8 + $0x2468] sm:$0xff]
    %v2227 = vld [vmem:[#allocation8 + $0x2470] sm:$0xff]
    %v2228 = vld [vmem:[#allocation8 + $0x2478] sm:$0xff]
    %v2229 = vld [vmem:[#allocation8 + $0x2480] sm:$0xff]
    %v2230 = vld [vmem:[#allocation8 + $0x2488] sm:$0xff]
    %v2231 = vld [vmem:[#allocation8 + $0x2490] sm:$0xff]
    %v2232 = vld [vmem:[#allocation8 + $0x2498] sm:$0xff]
    %v2233 = vld [vmem:[#allocation8 + $0x24a0] sm:$0xff]
    %v2234 = vld [vmem:[#allocation8 + $0x24a8] sm:$0xff]
    %v2235 = vld [vmem:[#allocation8 + $0x24b0] sm:$0xff]
    %v2236 = vld [vmem:[#allocation8 + $0x24b8] sm:$0xff]
    %v2237 = vld [vmem:[#allocation8 + $0x24c0] sm:$0xff]
    %v2238 = vld [vmem:[#allocation8 + $0x24c8] sm:$0xff]
    %v2239 = vld [vmem:[#allocation8 + $0x24d0] sm:$0xff]
    %v2240 = vld [vmem:[#allocation8 + $0x24d8] sm:$0xff]
    %v2241 = vld [vmem:[#allocation8 + $0x24e0] sm:$0xff]
    %v2242 = vld [vmem:[#allocation8 + $0x24e8] sm:$0xff]
    %v2243 = vld [vmem:[#allocation8 + $0x24f0] sm:$0xff]
    %v2244 = vld [vmem:[#allocation8 + $0x24f8] sm:$0xff]
    %v2245 = vld [vmem:[#allocation8 + $0x2500] sm:$0xff]
    %v2246 = vld [vmem:[#allocation8 + $0x2508] sm:$0xff]
    %v2247 = vld [vmem:[#allocation8 + $0x2510] sm:$0xff]
    %v2248 = vld [vmem:[#allocation8 + $0x2518] sm:$0xff]
    %v2249 = vld [vmem:[#allocation8 + $0x2520] sm:$0xff]
    %v2250 = vld [vmem:[#allocation8 + $0x2528] sm:$0xff]
    %v2251 = vld [vmem:[#allocation8 + $0x2530] sm:$0xff]
    %v2252 = vld [vmem:[#allocation8 + $0x2538] sm:$0xff]
    %v2253 = vld [vmem:[#allocation8 + $0x2540] sm:$0xff]
    %v2254 = vld [vmem:[#allocation8 + $0x2548] sm:$0xff]
    %v2255 = vld [vmem:[#allocation8 + $0x2550] sm:$0xff]
    %v2256 = vld [vmem:[#allocation8 + $0x2558] sm:$0xff]
    %v2257 = vld [vmem:[#allocation8 + $0x2560] sm:$0xff]
    %v2258 = vld [vmem:[#allocation8 + $0x2568] sm:$0xff]
    %v2259 = vld [vmem:[#allocation8 + $0x2570] sm:$0xff]
    %v2260 = vld [vmem:[#allocation8 + $0x2578] sm:$0xff]
    %v2261 = vld [vmem:[#allocation8 + $0x2580] sm:$0xff]
    %v2262 = vld [vmem:[#allocation8 + $0x2588] sm:$0xff]
    %v2263 = vld [vmem:[#allocation8 + $0x2590] sm:$0xff]
    %v2264 = vld [vmem:[#allocation8 + $0x2598] sm:$0xff]
    %v2265 = vld [vmem:[#allocation8 + $0x25a0] sm:$0xff]
    %v2266 = vld [vmem:[#allocation8 + $0x25a8] sm:$0xff]
    %v2267 = vld [vmem:[#allocation8 + $0x25b0] sm:$0xff]
    %v2268 = vld [vmem:[#allocation8 + $0x25b8] sm:$0xff]
    %v2269 = vld [vmem:[#allocation8 + $0x25c0] sm:$0xff]
    %v2270 = vld [vmem:[#allocation8 + $0x25c8] sm:$0xff]
    %v2271 = vld [vmem:[#allocation8 + $0x25d0] sm:$0xff]
    %v2272 = vld [vmem:[#allocation8 + $0x25d8] sm:$0xff]
    %v2273 = vld [vmem:[#allocation8 + $0x25e0] sm:$0xff]
    %v2274 = vld [vmem:[#allocation8 + $0x25e8] sm:$0xff]
    %v2275 = vld [vmem:[#allocation8 + $0x25f0] sm:$0xff]
    %v2276 = vld [vmem:[#allocation8 + $0x25f8] sm:$0xff]
    %v2277 = vld [vmem:[#allocation8 + $0x2600] sm:$0xff]
    %v2278 = vld [vmem:[#allocation8 + $0x2608] sm:$0xff]
    %v2279 = vld [vmem:[#allocation8 + $0x2610] sm:$0xff]
    %v2280 = vld [vmem:[#allocation8 + $0x2618] sm:$0xff]
    %v2281 = vld [vmem:[#allocation8 + $0x2620] sm:$0xff]
    %v2282 = vld [vmem:[#allocation8 + $0x2628] sm:$0xff]
    %v2283 = vld [vmem:[#allocation8 + $0x2630] sm:$0xff]
    %v2284 = vld [vmem:[#allocation8 + $0x2638] sm:$0xff]
    %v2285 = vld [vmem:[#allocation8 + $0x2640] sm:$0xff]
    %v2286 = vld [vmem:[#allocation8 + $0x2648] sm:$0xff]
    %v2287 = vld [vmem:[#allocation8 + $0x2650] sm:$0xff]
    %v2288 = vld [vmem:[#allocation8 + $0x2658] sm:$0xff]
    %v2289 = vld [vmem:[#allocation8 + $0x2660] sm:$0xff]
    %v2290 = vld [vmem:[#allocation8 + $0x2668] sm:$0xff]
    %v2291 = vld [vmem:[#allocation8 + $0x2670] sm:$0xff]
    %v2292 = vld [vmem:[#allocation8 + $0x2678] sm:$0xff]
    %v2293 = vld [vmem:[#allocation8 + $0x2680] sm:$0xff]
    %v2294 = vld [vmem:[#allocation8 + $0x2688] sm:$0xff]
    %v2295 = vld [vmem:[#allocation8 + $0x2690] sm:$0xff]
    %v2296 = vld [vmem:[#allocation8 + $0x2698] sm:$0xff]
    %v2297 = vld [vmem:[#allocation8 + $0x26a0] sm:$0xff]
    %v2298 = vld [vmem:[#allocation8 + $0x26a8] sm:$0xff]
    %v2299 = vld [vmem:[#allocation8 + $0x26b0] sm:$0xff]
    %v2300 = vld [vmem:[#allocation8 + $0x26b8] sm:$0xff]
    %v2301 = vld [vmem:[#allocation8 + $0x26c0] sm:$0xff]
    %v2302 = vld [vmem:[#allocation8 + $0x26c8] sm:$0xff]
    %v2303 = vld [vmem:[#allocation8 + $0x26d0] sm:$0xff]
    %v2304 = vld [vmem:[#allocation8 + $0x26d8] sm:$0xff]
    %v2305 = vld [vmem:[#allocation8 + $0x26e0] sm:$0xff]
    %v2306 = vld [vmem:[#allocation8 + $0x26e8] sm:$0xff]
    %v2307 = vld [vmem:[#allocation8 + $0x26f0] sm:$0xff]
    %v2308 = vld [vmem:[#allocation8 + $0x26f8] sm:$0xff]
    %v2309 = vld [vmem:[#allocation8 + $0x2700] sm:$0xff]
    %v2310 = vld [vmem:[#allocation8 + $0x2708] sm:$0xff]
    %v2311 = vld [vmem:[#allocation8 + $0x2710] sm:$0xff]
    %v2312 = vld [vmem:[#allocation8 + $0x2718] sm:$0xff]
    %v2313 = vld [vmem:[#allocation8 + $0x2720] sm:$0xff]
    %v2314 = vld [vmem:[#allocation8 + $0x2728] sm:$0xff]
    %v2315 = vld [vmem:[#allocation8 + $0x2730] sm:$0xff]
    %v2316 = vld [vmem:[#allocation8 + $0x2738] sm:$0xff]
    %v2317 = vld [vmem:[#allocation8 + $0x2740] sm:$0xff]
    %v2318 = vld [vmem:[#allocation8 + $0x2748] sm:$0xff]
    %v2319 = vld [vmem:[#allocation8 + $0x2750] sm:$0xff]
    %v2320 = vld [vmem:[#allocation8 + $0x2758] sm:$0xff]
    %v2321 = vld [vmem:[#allocation8 + $0x2760] sm:$0xff]
    %v2322 = vld [vmem:[#allocation8 + $0x2768] sm:$0xff]
    %v2323 = vld [vmem:[#allocation8 + $0x2770] sm:$0xff]
    %v2324 = vld [vmem:[#allocation8 + $0x2778] sm:$0xff]
    %v2325 = vld [vmem:[#allocation8 + $0x2780] sm:$0xff]
    %v2326 = vld [vmem:[#allocation8 + $0x2788] sm:$0xff]
    %v2327 = vld [vmem:[#allocation8 + $0x2790] sm:$0xff]
    %v2328 = vld [vmem:[#allocation8 + $0x2798] sm:$0xff]
    %v2329 = vld [vmem:[#allocation8 + $0x27a0] sm:$0xff]
    %v2330 = vld [vmem:[#allocation8 + $0x27a8] sm:$0xff]
    %v2331 = vld [vmem:[#allocation8 + $0x27b0] sm:$0xff]
    %v2332 = vld [vmem:[#allocation8 + $0x27b8] sm:$0xff]
    %v2333 = vld [vmem:[#allocation8 + $0x27c0] sm:$0xff]
    %v2334 = vld [vmem:[#allocation8 + $0x27c8] sm:$0xff]
    %v2335 = vld [vmem:[#allocation8 + $0x27d0] sm:$0xff]
    %v2336 = vld [vmem:[#allocation8 + $0x27d8] sm:$0xff]
    %v2337 = vld [vmem:[#allocation8 + $0x27e0] sm:$0xff]
    %v2338 = vld [vmem:[#allocation8 + $0x27e8] sm:$0xff]
    %v2339 = vld [vmem:[#allocation8 + $0x27f0] sm:$0xff]
    %v2340 = vld [vmem:[#allocation8 + $0x27f8] sm:$0xff]
    %v2341 = vld [vmem:[#allocation8 + $0x2800] sm:$0xff]
    %v2342 = vld [vmem:[#allocation8 + $0x2808] sm:$0xff]
    %v2343 = vld [vmem:[#allocation8 + $0x2810] sm:$0xff]
    %v2344 = vld [vmem:[#allocation8 + $0x2818] sm:$0xff]
    %v2345 = vld [vmem:[#allocation8 + $0x2820] sm:$0xff]
    %v2346 = vld [vmem:[#allocation8 + $0x2828] sm:$0xff]
    %v2347 = vld [vmem:[#allocation8 + $0x2830] sm:$0xff]
    %v2348 = vld [vmem:[#allocation8 + $0x2838] sm:$0xff]
    %v2349 = vld [vmem:[#allocation8 + $0x2840] sm:$0xff]
    %v2350 = vld [vmem:[#allocation8 + $0x2848] sm:$0xff]
    %v2351 = vld [vmem:[#allocation8 + $0x2850] sm:$0xff]
    %v2352 = vld [vmem:[#allocation8 + $0x2858] sm:$0xff]
    %v2353 = vld [vmem:[#allocation8 + $0x2860] sm:$0xff]
    %v2354 = vld [vmem:[#allocation8 + $0x2868] sm:$0xff]
    %v2355 = vld [vmem:[#allocation8 + $0x2870] sm:$0xff]
    %v2356 = vld [vmem:[#allocation8 + $0x2878] sm:$0xff]
    %v2357 = vld [vmem:[#allocation8 + $0x2880] sm:$0xff]
    %v2358 = vld [vmem:[#allocation8 + $0x2888] sm:$0xff]
    %v2359 = vld [vmem:[#allocation8 + $0x2890] sm:$0xff]
    %v2360 = vld [vmem:[#allocation8 + $0x2898] sm:$0xff]
    %v2361 = vld [vmem:[#allocation8 + $0x28a0] sm:$0xff]
    %v2362 = vld [vmem:[#allocation8 + $0x28a8] sm:$0xff]
    %v2363 = vld [vmem:[#allocation8 + $0x28b0] sm:$0xff]
    %v2364 = vld [vmem:[#allocation8 + $0x28b8] sm:$0xff]
    %v2365 = vld [vmem:[#allocation8 + $0x28c0] sm:$0xff]
    %v2366 = vld [vmem:[#allocation8 + $0x28c8] sm:$0xff]
    %v2367 = vld [vmem:[#allocation8 + $0x28d0] sm:$0xff]
    %v2368 = vld [vmem:[#allocation8 + $0x28d8] sm:$0xff]
    %v2369 = vld [vmem:[#allocation8 + $0x28e0] sm:$0xff]
    %v2370 = vld [vmem:[#allocation8 + $0x28e8] sm:$0xff]
    %v2371 = vld [vmem:[#allocation8 + $0x28f0] sm:$0xff]
    %v2372 = vld [vmem:[#allocation8 + $0x28f8] sm:$0xff]
    %v2373 = vld [vmem:[#allocation8 + $0x2900] sm:$0xff]
    %v2374 = vld [vmem:[#allocation8 + $0x2908] sm:$0xff]
    %v2375 = vld [vmem:[#allocation8 + $0x2910] sm:$0xff]
    %v2376 = vld [vmem:[#allocation8 + $0x2918] sm:$0xff]
    %v2377 = vld [vmem:[#allocation8 + $0x2920] sm:$0xff]
    %v2378 = vld [vmem:[#allocation8 + $0x2928] sm:$0xff]
    %v2379 = vld [vmem:[#allocation8 + $0x2930] sm:$0xff]
    %v2380 = vld [vmem:[#allocation8 + $0x2938] sm:$0xff]
    %v2381 = vld [vmem:[#allocation8 + $0x2940] sm:$0xff]
    %v2382 = vld [vmem:[#allocation8 + $0x2948] sm:$0xff]
    %v2383 = vld [vmem:[#allocation8 + $0x2950] sm:$0xff]
    %v2384 = vld [vmem:[#allocation8 + $0x2958] sm:$0xff]
    %v2385 = vld [vmem:[#allocation8 + $0x2960] sm:$0xff]
    %v2386 = vld [vmem:[#allocation8 + $0x2968] sm:$0xff]
    %v2387 = vld [vmem:[#allocation8 + $0x2970] sm:$0xff]
    %v2388 = vld [vmem:[#allocation8 + $0x2978] sm:$0xff]
    %v2389 = vld [vmem:[#allocation8 + $0x2980] sm:$0xff]
    %v2390 = vld [vmem:[#allocation8 + $0x2988] sm:$0xff]
    %v2391 = vld [vmem:[#allocation8 + $0x2990] sm:$0xff]
    %v2392 = vld [vmem:[#allocation8 + $0x2998] sm:$0xff]
    %v2393 = vld [vmem:[#allocation8 + $0x29a0] sm:$0xff]
    %v2394 = vld [vmem:[#allocation8 + $0x29a8] sm:$0xff]
    %v2395 = vld [vmem:[#allocation8 + $0x29b0] sm:$0xff]
    %v2396 = vld [vmem:[#allocation8 + $0x29b8] sm:$0xff]
    %v2397 = vld [vmem:[#allocation8 + $0x29c0] sm:$0xff]
    %v2398 = vld [vmem:[#allocation8 + $0x29c8] sm:$0xff]
    %v2399 = vld [vmem:[#allocation8 + $0x29d0] sm:$0xff]
    %v2400 = vld [vmem:[#allocation8 + $0x29d8] sm:$0xff]
    %v2401 = vld [vmem:[#allocation8 + $0x29e0] sm:$0xff]
    %v2402 = vld [vmem:[#allocation8 + $0x29e8] sm:$0xff]
    %v2403 = vld [vmem:[#allocation8 + $0x29f0] sm:$0xff]
    %v2404 = vld [vmem:[#allocation8 + $0x29f8] sm:$0xff]
    %v2405 = vld [vmem:[#allocation8 + $0x2a00] sm:$0xff]
    %v2406 = vld [vmem:[#allocation8 + $0x2a08] sm:$0xff]
    %v2407 = vld [vmem:[#allocation8 + $0x2a10] sm:$0xff]
    %v2408 = vld [vmem:[#allocation8 + $0x2a18] sm:$0xff]
    %v2409 = vld [vmem:[#allocation8 + $0x2a20] sm:$0xff]
    %v2410 = vld [vmem:[#allocation8 + $0x2a28] sm:$0xff]
    %v2411 = vld [vmem:[#allocation8 + $0x2a30] sm:$0xff]
    %v2412 = vld [vmem:[#allocation8 + $0x2a38] sm:$0xff]
    %v2413 = vld [vmem:[#allocation8 + $0x2a40] sm:$0xff]
    %v2414 = vld [vmem:[#allocation8 + $0x2a48] sm:$0xff]
    %v2415 = vld [vmem:[#allocation8 + $0x2a50] sm:$0xff]
    %v2416 = vld [vmem:[#allocation8 + $0x2a58] sm:$0xff]
    %v2417 = vld [vmem:[#allocation8 + $0x2a60] sm:$0xff]
    %v2418 = vld [vmem:[#allocation8 + $0x2a68] sm:$0xff]
    %v2419 = vld [vmem:[#allocation8 + $0x2a70] sm:$0xff]
    %v2420 = vld [vmem:[#allocation8 + $0x2a78] sm:$0xff]
    %v2421 = vld [vmem:[#allocation8 + $0x2a80] sm:$0xff]
    %v2422 = vld [vmem:[#allocation8 + $0x2a88] sm:$0xff]
    %v2423 = vld [vmem:[#allocation8 + $0x2a90] sm:$0xff]
    %v2424 = vld [vmem:[#allocation8 + $0x2a98] sm:$0xff]
    %v2425 = vld [vmem:[#allocation8 + $0x2aa0] sm:$0xff]
    %v2426 = vld [vmem:[#allocation8 + $0x2aa8] sm:$0xff]
    %v2427 = vld [vmem:[#allocation8 + $0x2ab0] sm:$0xff]
    %v2428 = vld [vmem:[#allocation8 + $0x2ab8] sm:$0xff]
    %v2429 = vld [vmem:[#allocation8 + $0x2ac0] sm:$0xff]
    %v2430 = vld [vmem:[#allocation8 + $0x2ac8] sm:$0xff]
    %v2431 = vld [vmem:[#allocation8 + $0x2ad0] sm:$0xff]
    %v2432 = vld [vmem:[#allocation8 + $0x2ad8] sm:$0xff]
    %v2433 = vld [vmem:[#allocation8 + $0x2ae0] sm:$0xff]
    %v2434 = vld [vmem:[#allocation8 + $0x2ae8] sm:$0xff]
    %v2435 = vld [vmem:[#allocation8 + $0x2af0] sm:$0xff]
    %v2436 = vld [vmem:[#allocation8 + $0x2af8] sm:$0xff]
    %v2437 = vld [vmem:[#allocation8 + $0x2b00] sm:$0xff]
    %v2438 = vld [vmem:[#allocation8 + $0x2b08] sm:$0xff]
    %v2439 = vld [vmem:[#allocation8 + $0x2b10] sm:$0xff]
    %v2440 = vld [vmem:[#allocation8 + $0x2b18] sm:$0xff]
    %v2441 = vld [vmem:[#allocation8 + $0x2b20] sm:$0xff]
    %v2442 = vld [vmem:[#allocation8 + $0x2b28] sm:$0xff]
    %v2443 = vld [vmem:[#allocation8 + $0x2b30] sm:$0xff]
    %v2444 = vld [vmem:[#allocation8 + $0x2b38] sm:$0xff]
    %v2445 = vld [vmem:[#allocation8 + $0x2b40] sm:$0xff]
    %v2446 = vld [vmem:[#allocation8 + $0x2b48] sm:$0xff]
    %v2447 = vld [vmem:[#allocation8 + $0x2b50] sm:$0xff]
    %v2448 = vld [vmem:[#allocation8 + $0x2b58] sm:$0xff]
    %v2449 = vld [vmem:[#allocation8 + $0x2b60] sm:$0xff]
    %v2450 = vld [vmem:[#allocation8 + $0x2b68] sm:$0xff]
    %v2451 = vld [vmem:[#allocation8 + $0x2b70] sm:$0xff]
    %v2452 = vld [vmem:[#allocation8 + $0x2b78] sm:$0xff]
    %v2453 = vld [vmem:[#allocation8 + $0x2b80] sm:$0xff]
    %v2454 = vld [vmem:[#allocation8 + $0x2b88] sm:$0xff]
    %v2455 = vld [vmem:[#allocation8 + $0x2b90] sm:$0xff]
    %v2456 = vld [vmem:[#allocation8 + $0x2b98] sm:$0xff]
    %v2457 = vld [vmem:[#allocation8 + $0x2ba0] sm:$0xff]
    %v2458 = vld [vmem:[#allocation8 + $0x2ba8] sm:$0xff]
    %v2459 = vld [vmem:[#allocation8 + $0x2bb0] sm:$0xff]
    %v2460 = vld [vmem:[#allocation8 + $0x2bb8] sm:$0xff]
    %v2461 = vld [vmem:[#allocation8 + $0x2bc0] sm:$0xff]
    %v2462 = vld [vmem:[#allocation8 + $0x2bc8] sm:$0xff]
    %v2463 = vld [vmem:[#allocation8 + $0x2bd0] sm:$0xff]
    %v2464 = vld [vmem:[#allocation8 + $0x2bd8] sm:$0xff]
    %v2465 = vld [vmem:[#allocation8 + $0x2be0] sm:$0xff]
    %v2466 = vld [vmem:[#allocation8 + $0x2be8] sm:$0xff]
    %v2467 = vld [vmem:[#allocation8 + $0x2bf0] sm:$0xff]
    %v2468 = vld [vmem:[#allocation8 + $0x2bf8] sm:$0xff]
    %v2469 = vld [vmem:[#allocation8 + $0x2c00] sm:$0xff]
    %v2470 = vld [vmem:[#allocation8 + $0x2c08] sm:$0xff]
    %v2471 = vld [vmem:[#allocation8 + $0x2c10] sm:$0xff]
    %v2472 = vld [vmem:[#allocation8 + $0x2c18] sm:$0xff]
    %v2473 = vld [vmem:[#allocation8 + $0x2c20] sm:$0xff]
    %v2474 = vld [vmem:[#allocation8 + $0x2c28] sm:$0xff]
    %v2475 = vld [vmem:[#allocation8 + $0x2c30] sm:$0xff]
    %v2476 = vld [vmem:[#allocation8 + $0x2c38] sm:$0xff]
    %v2477 = vld [vmem:[#allocation8 + $0x2c40] sm:$0xff]
    %v2478 = vld [vmem:[#allocation8 + $0x2c48] sm:$0xff]
    %v2479 = vld [vmem:[#allocation8 + $0x2c50] sm:$0xff]
    %v2480 = vld [vmem:[#allocation8 + $0x2c58] sm:$0xff]
    %v2481 = vld [vmem:[#allocation8 + $0x2c60] sm:$0xff]
    %v2482 = vld [vmem:[#allocation8 + $0x2c68] sm:$0xff]
    %v2483 = vld [vmem:[#allocation8 + $0x2c70] sm:$0xff]
    %v2484 = vld [vmem:[#allocation8 + $0x2c78] sm:$0xff]
    %v2485 = vld [vmem:[#allocation8 + $0x2c80] sm:$0xff]
    %v2486 = vld [vmem:[#allocation8 + $0x2c88] sm:$0xff]
    %v2487 = vld [vmem:[#allocation8 + $0x2c90] sm:$0xff]
    %v2488 = vld [vmem:[#allocation8 + $0x2c98] sm:$0xff]
    %v2489 = vld [vmem:[#allocation8 + $0x2ca0] sm:$0xff]
    %v2490 = vld [vmem:[#allocation8 + $0x2ca8] sm:$0xff]
    %v2491 = vld [vmem:[#allocation8 + $0x2cb0] sm:$0xff]
    %v2492 = vld [vmem:[#allocation8 + $0x2cb8] sm:$0xff]
    %v2493 = vld [vmem:[#allocation8 + $0x2cc0] sm:$0xff]
    %v2494 = vld [vmem:[#allocation8 + $0x2cc8] sm:$0xff]
    %v2495 = vld [vmem:[#allocation8 + $0x2cd0] sm:$0xff]
    %v2496 = vld [vmem:[#allocation8 + $0x2cd8] sm:$0xff]
    %v2497 = vld [vmem:[#allocation8 + $0x2ce0] sm:$0xff]
    %v2498 = vld [vmem:[#allocation8 + $0x2ce8] sm:$0xff]
    %v2499 = vld [vmem:[#allocation8 + $0x2cf0] sm:$0xff]
    %v2500 = vld [vmem:[#allocation8 + $0x2cf8] sm:$0xff]
    %v2501 = vld [vmem:[#allocation8 + $0x2d00] sm:$0xff]
    %v2502 = vld [vmem:[#allocation8 + $0x2d08] sm:$0xff]
    %v2503 = vld [vmem:[#allocation8 + $0x2d10] sm:$0xff]
    %v2504 = vld [vmem:[#allocation8 + $0x2d18] sm:$0xff]
    %v2505 = vld [vmem:[#allocation8 + $0x2d20] sm:$0xff]
    %v2506 = vld [vmem:[#allocation8 + $0x2d28] sm:$0xff]
    %v2507 = vld [vmem:[#allocation8 + $0x2d30] sm:$0xff]
    %v2508 = vld [vmem:[#allocation8 + $0x2d38] sm:$0xff]
    %v2509 = vld [vmem:[#allocation8 + $0x2d40] sm:$0xff]
    %v2510 = vld [vmem:[#allocation8 + $0x2d48] sm:$0xff]
    %v2511 = vld [vmem:[#allocation8 + $0x2d50] sm:$0xff]
    %v2512 = vld [vmem:[#allocation8 + $0x2d58] sm:$0xff]
    %v2513 = vld [vmem:[#allocation8 + $0x2d60] sm:$0xff]
    %v2514 = vld [vmem:[#allocation8 + $0x2d68] sm:$0xff]
    %v2515 = vld [vmem:[#allocation8 + $0x2d70] sm:$0xff]
    %v2516 = vld [vmem:[#allocation8 + $0x2d78] sm:$0xff]
    %v2517 = vld [vmem:[#allocation8 + $0x2d80] sm:$0xff]
    %v2518 = vld [vmem:[#allocation8 + $0x2d88] sm:$0xff]
    %v2519 = vld [vmem:[#allocation8 + $0x2d90] sm:$0xff]
    %v2520 = vld [vmem:[#allocation8 + $0x2d98] sm:$0xff]
    %v2521 = vld [vmem:[#allocation8 + $0x2da0] sm:$0xff]
    %v2522 = vld [vmem:[#allocation8 + $0x2da8] sm:$0xff]
    %v2523 = vld [vmem:[#allocation8 + $0x2db0] sm:$0xff]
    %v2524 = vld [vmem:[#allocation8 + $0x2db8] sm:$0xff]
    %v2525 = vld [vmem:[#allocation8 + $0x2dc0] sm:$0xff]
    %v2526 = vld [vmem:[#allocation8 + $0x2dc8] sm:$0xff]
    %v2527 = vld [vmem:[#allocation8 + $0x2dd0] sm:$0xff]
    %v2528 = vld [vmem:[#allocation8 + $0x2dd8] sm:$0xff]
    %v2529 = vld [vmem:[#allocation8 + $0x2de0] sm:$0xff]
    %v2530 = vld [vmem:[#allocation8 + $0x2de8] sm:$0xff]
    %v2531 = vld [vmem:[#allocation8 + $0x2df0] sm:$0xff]
    %v2532 = vld [vmem:[#allocation8 + $0x2df8] sm:$0xff]
    %v2533 = vld [vmem:[#allocation8 + $0x2e00] sm:$0xff]
    %v2534 = vld [vmem:[#allocation8 + $0x2e08] sm:$0xff]
    %v2535 = vld [vmem:[#allocation8 + $0x2e10] sm:$0xff]
    %v2536 = vld [vmem:[#allocation8 + $0x2e18] sm:$0xff]
    %v2537 = vld [vmem:[#allocation8 + $0x2e20] sm:$0xff]
    %v2538 = vld [vmem:[#allocation8 + $0x2e28] sm:$0xff]
    %v2539 = vld [vmem:[#allocation8 + $0x2e30] sm:$0xff]
    %v2540 = vld [vmem:[#allocation8 + $0x2e38] sm:$0xff]
    %v2541 = vld [vmem:[#allocation8 + $0x2e40] sm:$0xff]
    %v2542 = vld [vmem:[#allocation8 + $0x2e48] sm:$0xff]
    %v2543 = vld [vmem:[#allocation8 + $0x2e50] sm:$0xff]
    %v2544 = vld [vmem:[#allocation8 + $0x2e58] sm:$0xff]
    %v2545 = vld [vmem:[#allocation8 + $0x2e60] sm:$0xff]
    %v2546 = vld [vmem:[#allocation8 + $0x2e68] sm:$0xff]
    %v2547 = vld [vmem:[#allocation8 + $0x2e70] sm:$0xff]
    %v2548 = vld [vmem:[#allocation8 + $0x2e78] sm:$0xff]
    %v2549 = vld [vmem:[#allocation8 + $0x2e80] sm:$0xff]
    %v2550 = vld [vmem:[#allocation8 + $0x2e88] sm:$0xff]
    %v2551 = vld [vmem:[#allocation8 + $0x2e90] sm:$0xff]
    %v2552 = vld [vmem:[#allocation8 + $0x2e98] sm:$0xff]
    %v2553 = vld [vmem:[#allocation8 + $0x2ea0] sm:$0xff]
    %v2554 = vld [vmem:[#allocation8 + $0x2ea8] sm:$0xff]
    %v2555 = vld [vmem:[#allocation8 + $0x2eb0] sm:$0xff]
    %v2556 = vld [vmem:[#allocation8 + $0x2eb8] sm:$0xff]
    %v2557 = vld [vmem:[#allocation8 + $0x2ec0] sm:$0xff]
    %v2558 = vld [vmem:[#allocation8 + $0x2ec8] sm:$0xff]
    %v2559 = vld [vmem:[#allocation8 + $0x2ed0] sm:$0xff]
    %v2560 = vld [vmem:[#allocation8 + $0x2ed8] sm:$0xff]
    %v2561 = vld [vmem:[#allocation8 + $0x2ee0] sm:$0xff]
    %v2562 = vld [vmem:[#allocation8 + $0x2ee8] sm:$0xff]
    %v2563 = vld [vmem:[#allocation8 + $0x2ef0] sm:$0xff]
    %v2564 = vld [vmem:[#allocation8 + $0x2ef8] sm:$0xff]
    %v2565 = vld [vmem:[#allocation8 + $0x2f00] sm:$0xff]
    %v2566 = vld [vmem:[#allocation8 + $0x2f08] sm:$0xff]
    %v2567 = vld [vmem:[#allocation8 + $0x2f10] sm:$0xff]
    %v2568 = vld [vmem:[#allocation8 + $0x2f18] sm:$0xff]
    %v2569 = vld [vmem:[#allocation8 + $0x2f20] sm:$0xff]
    %v2570 = vld [vmem:[#allocation8 + $0x2f28] sm:$0xff]
    %v2571 = vld [vmem:[#allocation8 + $0x2f30] sm:$0xff]
    %v2572 = vld [vmem:[#allocation8 + $0x2f38] sm:$0xff]
    %v2573 = vld [vmem:[#allocation8 + $0x2f40] sm:$0xff]
    %v2574 = vld [vmem:[#allocation8 + $0x2f48] sm:$0xff]
    %v2575 = vld [vmem:[#allocation8 + $0x2f50] sm:$0xff]
    %v2576 = vld [vmem:[#allocation8 + $0x2f58] sm:$0xff]
    %v2577 = vld [vmem:[#allocation8 + $0x2f60] sm:$0xff]
    %v2578 = vld [vmem:[#allocation8 + $0x2f68] sm:$0xff]
    %v2579 = vld [vmem:[#allocation8 + $0x2f70] sm:$0xff]
    %v2580 = vld [vmem:[#allocation8 + $0x2f78] sm:$0xff]
    %v2581 = vld [vmem:[#allocation8 + $0x2f80] sm:$0xff]
    %v2582 = vld [vmem:[#allocation8 + $0x2f88] sm:$0xff]
    %v2583 = vld [vmem:[#allocation8 + $0x2f90] sm:$0xff]
    %v2584 = vld [vmem:[#allocation8 + $0x2f98] sm:$0xff]
    %v2585 = vld [vmem:[#allocation8 + $0x2fa0] sm:$0xff]
    %v2586 = vld [vmem:[#allocation8 + $0x2fa8] sm:$0xff]
    %v2587 = vld [vmem:[#allocation8 + $0x2fb0] sm:$0xff]
    %v2588 = vld [vmem:[#allocation8 + $0x2fb8] sm:$0xff]
    %v2589 = vld [vmem:[#allocation8 + $0x2fc0] sm:$0xff]
    %v2590 = vld [vmem:[#allocation8 + $0x2fc8] sm:$0xff]
    %v2591 = vld [vmem:[#allocation8 + $0x2fd0] sm:$0xff]
    %v2592 = vld [vmem:[#allocation8 + $0x2fd8] sm:$0xff]
    %v2593 = vld [vmem:[#allocation8 + $0x2fe0] sm:$0xff]
    %v2594 = vld [vmem:[#allocation8 + $0x2fe8] sm:$0xff]
    %v2595 = vld [vmem:[#allocation8 + $0x2ff0] sm:$0xff]
    %v2596 = vld [vmem:[#allocation8 + $0x2ff8] sm:$0xff]
    %v2597 = vld [vmem:[#allocation10] sm:$0xff]
    %v2598 = vld [vmem:[#allocation10 + $0x8] sm:$0xff]
    %v2599 = vld [vmem:[#allocation10 + $0x10] sm:$0xff]
    %v2600 = vld [vmem:[#allocation10 + $0x18] sm:$0xff]
    %v2601 = vld [vmem:[#allocation10 + $0x20] sm:$0xff]
    %v2602 = vld [vmem:[#allocation10 + $0x28] sm:$0xff]
    %v2609 = vlaneseq
    %v2610 = vshrl.u32 %v2609, 7
    %v2611 = vsub.s32 0, %v2610
    %v2612 = vrot.slane %v2597, %v2611
    %v2613 = vlaneseq
    %v2614 = vshrl.u32 %v2613, 7
    %v2615 = vsub.s32 1, %v2614
    %v2616 = vrot.slane %v2597, %v2615
    %v2617 = vlaneseq
    %v2618 = vshrl.u32 %v2617, 7
    %v2619 = vsub.s32 2, %v2618
    %v2620 = vrot.slane %v2597, %v2619
    %v2621 = vlaneseq
    %v2622 = vshrl.u32 %v2621, 7
    %v2623 = vsub.s32 3, %v2622
    %v2624 = vrot.slane %v2597, %v2623
    %v2625 = vlaneseq
    %v2626 = vshrl.u32 %v2625, 7
    %v2627 = vsub.s32 4, %v2626
    %v2628 = vrot.slane %v2597, %v2627
    %v2629 = vlaneseq
    %v2630 = vshrl.u32 %v2629, 7
    %v2631 = vsub.s32 5, %v2630
    %v2632 = vrot.slane %v2597, %v2631
    %v2633 = vlaneseq
    %v2634 = vshrl.u32 %v2633, 7
    %v2635 = vsub.s32 6, %v2634
    %v2636 = vrot.slane %v2597, %v2635
    %v2637 = vlaneseq
    %v2638 = vshrl.u32 %v2637, 7
    %v2639 = vsub.s32 7, %v2638
    %v2640 = vrot.slane %v2597, %v2639
    %v2641 = vlaneseq
    %v2642 = vshrl.u32 %v2641, 7
    %v2643 = vsub.s32 0, %v2642
    %v2644 = vrot.slane %v2598, %v2643
    %v2645 = vlaneseq
    %v2646 = vshrl.u32 %v2645, 7
    %v2647 = vsub.s32 1, %v2646
    %v2648 = vrot.slane %v2598, %v2647
    %v2649 = vlaneseq
    %v2650 = vshrl.u32 %v2649, 7
    %v2651 = vsub.s32 2, %v2650
    %v2652 = vrot.slane %v2598, %v2651
    %v2653 = vlaneseq
    %v2654 = vshrl.u32 %v2653, 7
    %v2655 = vsub.s32 3, %v2654
    %v2656 = vrot.slane %v2598, %v2655
    %v2657 = vlaneseq
    %v2658 = vshrl.u32 %v2657, 7
    %v2659 = vsub.s32 4, %v2658
    %v2660 = vrot.slane %v2598, %v2659
    %v2661 = vlaneseq
    %v2662 = vshrl.u32 %v2661, 7
    %v2663 = vsub.s32 5, %v2662
    %v2664 = vrot.slane %v2598, %v2663
    %v2665 = vlaneseq
    %v2666 = vshrl.u32 %v2665, 7
    %v2667 = vsub.s32 6, %v2666
    %v2668 = vrot.slane %v2598, %v2667
    %v2669 = vlaneseq
    %v2670 = vshrl.u32 %v2669, 7
    %v2671 = vsub.s32 7, %v2670
    %v2672 = vrot.slane %v2598, %v2671
    %v2673 = vlaneseq
    %v2674 = vshrl.u32 %v2673, 7
    %v2675 = vsub.s32 0, %v2674
    %v2676 = vrot.slane %v2599, %v2675
    %v2677 = vlaneseq
    %v2678 = vshrl.u32 %v2677, 7
    %v2679 = vsub.s32 1, %v2678
    %v2680 = vrot.slane %v2599, %v2679
    %v2681 = vlaneseq
    %v2682 = vshrl.u32 %v2681, 7
    %v2683 = vsub.s32 2, %v2682
    %v2684 = vrot.slane %v2599, %v2683
    %v2685 = vlaneseq
    %v2686 = vshrl.u32 %v2685, 7
    %v2687 = vsub.s32 3, %v2686
    %v2688 = vrot.slane %v2599, %v2687
    %v2689 = vlaneseq
    %v2690 = vshrl.u32 %v2689, 7
    %v2691 = vsub.s32 4, %v2690
    %v2692 = vrot.slane %v2599, %v2691
    %v2693 = vlaneseq
    %v2694 = vshrl.u32 %v2693, 7
    %v2695 = vsub.s32 5, %v2694
    %v2696 = vrot.slane %v2599, %v2695
    %v2697 = vlaneseq
    %v2698 = vshrl.u32 %v2697, 7
    %v2699 = vsub.s32 6, %v2698
    %v2700 = vrot.slane %v2599, %v2699
    %v2701 = vlaneseq
    %v2702 = vshrl.u32 %v2701, 7
    %v2703 = vsub.s32 7, %v2702
    %v2704 = vrot.slane %v2599, %v2703
    %v2705 = vlaneseq
    %v2706 = vshrl.u32 %v2705, 7
    %v2707 = vsub.s32 0, %v2706
    %v2708 = vrot.slane %v2600, %v2707
    %v2709 = vlaneseq
    %v2710 = vshrl.u32 %v2709, 7
    %v2711 = vsub.s32 1, %v2710
    %v2712 = vrot.slane %v2600, %v2711
    %v2713 = vlaneseq
    %v2714 = vshrl.u32 %v2713, 7
    %v2715 = vsub.s32 2, %v2714
    %v2716 = vrot.slane %v2600, %v2715
    %v2717 = vlaneseq
    %v2718 = vshrl.u32 %v2717, 7
    %v2719 = vsub.s32 3, %v2718
    %v2720 = vrot.slane %v2600, %v2719
    %v2721 = vlaneseq
    %v2722 = vshrl.u32 %v2721, 7
    %v2723 = vsub.s32 4, %v2722
    %v2724 = vrot.slane %v2600, %v2723
    %v2725 = vlaneseq
    %v2726 = vshrl.u32 %v2725, 7
    %v2727 = vsub.s32 5, %v2726
    %v2728 = vrot.slane %v2600, %v2727
    %v2729 = vlaneseq
    %v2730 = vshrl.u32 %v2729, 7
    %v2731 = vsub.s32 6, %v2730
    %v2732 = vrot.slane %v2600, %v2731
    %v2733 = vlaneseq
    %v2734 = vshrl.u32 %v2733, 7
    %v2735 = vsub.s32 7, %v2734
    %v2736 = vrot.slane %v2600, %v2735
    %v2737 = vlaneseq
    %v2738 = vshrl.u32 %v2737, 7
    %v2739 = vsub.s32 0, %v2738
    %v2740 = vrot.slane %v2601, %v2739
    %v2741 = vlaneseq
    %v2742 = vshrl.u32 %v2741, 7
    %v2743 = vsub.s32 1, %v2742
    %v2744 = vrot.slane %v2601, %v2743
    %v2745 = vlaneseq
    %v2746 = vshrl.u32 %v2745, 7
    %v2747 = vsub.s32 2, %v2746
    %v2748 = vrot.slane %v2601, %v2747
    %v2749 = vlaneseq
    %v2750 = vshrl.u32 %v2749, 7
    %v2751 = vsub.s32 3, %v2750
    %v2752 = vrot.slane %v2601, %v2751
    %v2753 = vlaneseq
    %v2754 = vshrl.u32 %v2753, 7
    %v2755 = vsub.s32 4, %v2754
    %v2756 = vrot.slane %v2601, %v2755
    %v2757 = vlaneseq
    %v2758 = vshrl.u32 %v2757, 7
    %v2759 = vsub.s32 5, %v2758
    %v2760 = vrot.slane %v2601, %v2759
    %v2761 = vlaneseq
    %v2762 = vshrl.u32 %v2761, 7
    %v2763 = vsub.s32 6, %v2762
    %v2764 = vrot.slane %v2601, %v2763
    %v2765 = vlaneseq
    %v2766 = vshrl.u32 %v2765, 7
    %v2767 = vsub.s32 7, %v2766
    %v2768 = vrot.slane %v2601, %v2767
    %v2769 = vlaneseq
    %v2770 = vshrl.u32 %v2769, 7
    %v2771 = vsub.s32 0, %v2770
    %v2772 = vrot.slane %v2602, %v2771
    %v2773 = vlaneseq
    %v2774 = vshrl.u32 %v2773, 7
    %v2775 = vsub.s32 1, %v2774
    %v2776 = vrot.slane %v2602, %v2775
    %v2777 = vlaneseq
    %v2778 = vshrl.u32 %v2777, 7
    %v2779 = vsub.s32 2, %v2778
    %v2780 = vrot.slane %v2602, %v2779
    %v2781 = vlaneseq
    %v2782 = vshrl.u32 %v2781, 7
    %v2783 = vsub.s32 3, %v2782
    %v2784 = vrot.slane %v2602, %v2783
    %v2785 = vlaneseq
    %v2786 = vshrl.u32 %v2785, 7
    %v2787 = vsub.s32 4, %v2786
    %v2788 = vrot.slane %v2602, %v2787
    %v2789 = vlaneseq
    %v2790 = vshrl.u32 %v2789, 7
    %v2791 = vsub.s32 5, %v2790
    %v2792 = vrot.slane %v2602, %v2791
    %v2793 = vlaneseq
    %v2794 = vshrl.u32 %v2793, 7
    %v2795 = vsub.s32 6, %v2794
    %v2796 = vrot.slane %v2602, %v2795
    %v2797 = vlaneseq
    %v2798 = vshrl.u32 %v2797, 7
    %v2799 = vsub.s32 7, %v2798
    %v2800 = vrot.slane %v2602, %v2799
    %v4385 = vunpack.c.l.b16 %v1061
    %v4386 = vunpack.c.h.b16 %v1061
    %v4387 = vunpack.c.l.b16 %v1062
    %v4388 = vunpack.c.h.b16 %v1062
    %v4389 = vunpack.c.l.b16 %v1063
    %v4390 = vunpack.c.h.b16 %v1063
    %v4391 = vunpack.c.l.b16 %v1064
    %v4392 = vunpack.c.h.b16 %v1064
    %v4393 = vunpack.c.l.b16 %v1065
    %v4394 = vunpack.c.h.b16 %v1065
    %v4395 = vunpack.c.l.b16 %v1066
    %v4396 = vunpack.c.h.b16 %v1066
    %v4397 = vunpack.c.l.b16 %v1067
    %v4398 = vunpack.c.h.b16 %v1067
    %v4399 = vunpack.c.l.b16 %v1068
    %v4400 = vunpack.c.h.b16 %v1068
    %v4401 = vunpack.c.l.b16 %v1069
    %v4402 = vunpack.c.h.b16 %v1069
    %v4403 = vunpack.c.l.b16 %v1070
    %v4404 = vunpack.c.h.b16 %v1070
    %v4405 = vunpack.c.l.b16 %v1071
    %v4406 = vunpack.c.h.b16 %v1071
    %v4407 = vunpack.c.l.b16 %v1072
    %v4408 = vunpack.c.h.b16 %v1072
    %v4409 = vunpack.c.l.b16 %v1073
    %v4410 = vunpack.c.h.b16 %v1073
    %v4411 = vunpack.c.l.b16 %v1074
    %v4412 = vunpack.c.h.b16 %v1074
    %v4413 = vunpack.c.l.b16 %v1075
    %v4414 = vunpack.c.h.b16 %v1075
    %v4415 = vunpack.c.l.b16 %v1076
    %v4416 = vunpack.c.h.b16 %v1076
    %v4417 = vunpack.c.l.b16 %v1077
    %v4418 = vunpack.c.h.b16 %v1077
    %v4419 = vunpack.c.l.b16 %v1078
    %v4420 = vunpack.c.h.b16 %v1078
    %v4421 = vunpack.c.l.b16 %v1079
    %v4422 = vunpack.c.h.b16 %v1079
    %v4423 = vunpack.c.l.b16 %v1080
    %v4424 = vunpack.c.h.b16 %v1080
    %v4425 = vunpack.c.l.b16 %v1081
    %v4426 = vunpack.c.h.b16 %v1081
    %v4427 = vunpack.c.l.b16 %v1082
    %v4428 = vunpack.c.h.b16 %v1082
    %v4429 = vunpack.c.l.b16 %v1083
    %v4430 = vunpack.c.h.b16 %v1083
    %v4431 = vunpack.c.l.b16 %v1084
    %v4432 = vunpack.c.h.b16 %v1084
    %v4433 = vunpack.c.l.b16 %v1085
    %v4434 = vunpack.c.h.b16 %v1085
    %v4435 = vunpack.c.l.b16 %v1086
    %v4436 = vunpack.c.h.b16 %v1086
    %v4437 = vunpack.c.l.b16 %v1087
    %v4438 = vunpack.c.h.b16 %v1087
    %v4439 = vunpack.c.l.b16 %v1088
    %v4440 = vunpack.c.h.b16 %v1088
    %v4441 = vunpack.c.l.b16 %v1089
    %v4442 = vunpack.c.h.b16 %v1089
    %v4443 = vunpack.c.l.b16 %v1090
    %v4444 = vunpack.c.h.b16 %v1090
    %v4445 = vunpack.c.l.b16 %v1091
    %v4446 = vunpack.c.h.b16 %v1091
    %v4447 = vunpack.c.l.b16 %v1092
    %v4448 = vunpack.c.h.b16 %v1092
    %v4449 = vunpack.c.l.b16 %v1093
    %v4450 = vunpack.c.h.b16 %v1093
    %v4451 = vunpack.c.l.b16 %v1094
    %v4452 = vunpack.c.h.b16 %v1094
    %v4453 = vunpack.c.l.b16 %v1095
    %v4454 = vunpack.c.h.b16 %v1095
    %v4455 = vunpack.c.l.b16 %v1096
    %v4456 = vunpack.c.h.b16 %v1096
    %v4457 = vunpack.c.l.b16 %v1097
    %v4458 = vunpack.c.h.b16 %v1097
    %v4459 = vunpack.c.l.b16 %v1098
    %v4460 = vunpack.c.h.b16 %v1098
    %v4461 = vunpack.c.l.b16 %v1099
    %v4462 = vunpack.c.h.b16 %v1099
    %v4463 = vunpack.c.l.b16 %v1100
    %v4464 = vunpack.c.h.b16 %v1100
    %v4465 = vunpack.c.l.b16 %v1101
    %v4466 = vunpack.c.h.b16 %v1101
    %v4467 = vunpack.c.l.b16 %v1102
    %v4468 = vunpack.c.h.b16 %v1102
    %v4469 = vunpack.c.l.b16 %v1103
    %v4470 = vunpack.c.h.b16 %v1103
    %v4471 = vunpack.c.l.b16 %v1104
    %v4472 = vunpack.c.h.b16 %v1104
    %v4473 = vunpack.c.l.b16 %v1105
    %v4474 = vunpack.c.h.b16 %v1105
    %v4475 = vunpack.c.l.b16 %v1106
    %v4476 = vunpack.c.h.b16 %v1106
    %v4477 = vunpack.c.l.b16 %v1107
    %v4478 = vunpack.c.h.b16 %v1107
    %v4479 = vunpack.c.l.b16 %v1108
    %v4480 = vunpack.c.h.b16 %v1108
    %v4481 = vunpack.c.l.b16 %v1109
    %v4482 = vunpack.c.h.b16 %v1109
    %v4483 = vunpack.c.l.b16 %v1110
    %v4484 = vunpack.c.h.b16 %v1110
    %v4485 = vunpack.c.l.b16 %v1111
    %v4486 = vunpack.c.h.b16 %v1111
    %v4487 = vunpack.c.l.b16 %v1112
    %v4488 = vunpack.c.h.b16 %v1112
    %v4489 = vunpack.c.l.b16 %v1113
    %v4490 = vunpack.c.h.b16 %v1113
    %v4491 = vunpack.c.l.b16 %v1114
    %v4492 = vunpack.c.h.b16 %v1114
    %v4493 = vunpack.c.l.b16 %v1115
    %v4494 = vunpack.c.h.b16 %v1115
    %v4495 = vunpack.c.l.b16 %v1116
    %v4496 = vunpack.c.h.b16 %v1116
    %v4497 = vunpack.c.l.b16 %v1117
    %v4498 = vunpack.c.h.b16 %v1117
    %v4499 = vunpack.c.l.b16 %v1118
    %v4500 = vunpack.c.h.b16 %v1118
    %v4501 = vunpack.c.l.b16 %v1119
    %v4502 = vunpack.c.h.b16 %v1119
    %v4503 = vunpack.c.l.b16 %v1120
    %v4504 = vunpack.c.h.b16 %v1120
    %v4505 = vunpack.c.l.b16 %v1121
    %v4506 = vunpack.c.h.b16 %v1121
    %v4507 = vunpack.c.l.b16 %v1122
    %v4508 = vunpack.c.h.b16 %v1122
    %v4509 = vunpack.c.l.b16 %v1123
    %v4510 = vunpack.c.h.b16 %v1123
    %v4511 = vunpack.c.l.b16 %v1124
    %v4512 = vunpack.c.h.b16 %v1124
    %v4513 = vunpack.c.l.b16 %v1125
    %v4514 = vunpack.c.h.b16 %v1125
    %v4515 = vunpack.c.l.b16 %v1126
    %v4516 = vunpack.c.h.b16 %v1126
    %v4517 = vunpack.c.l.b16 %v1127
    %v4518 = vunpack.c.h.b16 %v1127
    %v4519 = vunpack.c.l.b16 %v1128
    %v4520 = vunpack.c.h.b16 %v1128
    %v4521 = vunpack.c.l.b16 %v1129
    %v4522 = vunpack.c.h.b16 %v1129
    %v4523 = vunpack.c.l.b16 %v1130
    %v4524 = vunpack.c.h.b16 %v1130
    %v4525 = vunpack.c.l.b16 %v1131
    %v4526 = vunpack.c.h.b16 %v1131
    %v4527 = vunpack.c.l.b16 %v1132
    %v4528 = vunpack.c.h.b16 %v1132
    %v4529 = vunpack.c.l.b16 %v1133
    %v4530 = vunpack.c.h.b16 %v1133
    %v4531 = vunpack.c.l.b16 %v1134
    %v4532 = vunpack.c.h.b16 %v1134
    %v4533 = vunpack.c.l.b16 %v1135
    %v4534 = vunpack.c.h.b16 %v1135
    %v4535 = vunpack.c.l.b16 %v1136
    %v4536 = vunpack.c.h.b16 %v1136
    %v4537 = vunpack.c.l.b16 %v1137
    %v4538 = vunpack.c.h.b16 %v1137
    %v4539 = vunpack.c.l.b16 %v1138
    %v4540 = vunpack.c.h.b16 %v1138
    %v4541 = vunpack.c.l.b16 %v1139
    %v4542 = vunpack.c.h.b16 %v1139
    %v4543 = vunpack.c.l.b16 %v1140
    %v4544 = vunpack.c.h.b16 %v1140
    %v4545 = vunpack.c.l.b16 %v1141
    %v4546 = vunpack.c.h.b16 %v1141
    %v4547 = vunpack.c.l.b16 %v1142
    %v4548 = vunpack.c.h.b16 %v1142
    %v4549 = vunpack.c.l.b16 %v1143
    %v4550 = vunpack.c.h.b16 %v1143
    %v4551 = vunpack.c.l.b16 %v1144
    %v4552 = vunpack.c.h.b16 %v1144
    %v4553 = vunpack.c.l.b16 %v1145
    %v4554 = vunpack.c.h.b16 %v1145
    %v4555 = vunpack.c.l.b16 %v1146
    %v4556 = vunpack.c.h.b16 %v1146
    %v4557 = vunpack.c.l.b16 %v1147
    %v4558 = vunpack.c.h.b16 %v1147
    %v4559 = vunpack.c.l.b16 %v1148
    %v4560 = vunpack.c.h.b16 %v1148
    %v4561 = vunpack.c.l.b16 %v1149
    %v4562 = vunpack.c.h.b16 %v1149
    %v4563 = vunpack.c.l.b16 %v1150
    %v4564 = vunpack.c.h.b16 %v1150
    %v4565 = vunpack.c.l.b16 %v1151
    %v4566 = vunpack.c.h.b16 %v1151
    %v4567 = vunpack.c.l.b16 %v1152
    %v4568 = vunpack.c.h.b16 %v1152
    %v4569 = vunpack.c.l.b16 %v1153
    %v4570 = vunpack.c.h.b16 %v1153
    %v4571 = vunpack.c.l.b16 %v1154
    %v4572 = vunpack.c.h.b16 %v1154
    %v4573 = vunpack.c.l.b16 %v1155
    %v4574 = vunpack.c.h.b16 %v1155
    %v4575 = vunpack.c.l.b16 %v1156
    %v4576 = vunpack.c.h.b16 %v1156
    %v4577 = vunpack.c.l.b16 %v1157
    %v4578 = vunpack.c.h.b16 %v1157
    %v4579 = vunpack.c.l.b16 %v1158
    %v4580 = vunpack.c.h.b16 %v1158
    %v4581 = vunpack.c.l.b16 %v1159
    %v4582 = vunpack.c.h.b16 %v1159
    %v4583 = vunpack.c.l.b16 %v1160
    %v4584 = vunpack.c.h.b16 %v1160
    %v4585 = vunpack.c.l.b16 %v1161
    %v4586 = vunpack.c.h.b16 %v1161
    %v4587 = vunpack.c.l.b16 %v1162
    %v4588 = vunpack.c.h.b16 %v1162
    %v4589 = vunpack.c.l.b16 %v1163
    %v4590 = vunpack.c.h.b16 %v1163
    %v4591 = vunpack.c.l.b16 %v1164
    %v4592 = vunpack.c.h.b16 %v1164
    %v4593 = vunpack.c.l.b16 %v1165
    %v4594 = vunpack.c.h.b16 %v1165
    %v4595 = vunpack.c.l.b16 %v1166
    %v4596 = vunpack.c.h.b16 %v1166
    %v4597 = vunpack.c.l.b16 %v1167
    %v4598 = vunpack.c.h.b16 %v1167
    %v4599 = vunpack.c.l.b16 %v1168
    %v4600 = vunpack.c.h.b16 %v1168
    %v4601 = vunpack.c.l.b16 %v1169
    %v4602 = vunpack.c.h.b16 %v1169
    %v4603 = vunpack.c.l.b16 %v1170
    %v4604 = vunpack.c.h.b16 %v1170
    %v4605 = vunpack.c.l.b16 %v1171
    %v4606 = vunpack.c.h.b16 %v1171
    %v4607 = vunpack.c.l.b16 %v1172
    %v4608 = vunpack.c.h.b16 %v1172
    %v4609 = vunpack.c.l.b16 %v1173
    %v4610 = vunpack.c.h.b16 %v1173
    %v4611 = vunpack.c.l.b16 %v1174
    %v4612 = vunpack.c.h.b16 %v1174
    %v4613 = vunpack.c.l.b16 %v1175
    %v4614 = vunpack.c.h.b16 %v1175
    %v4615 = vunpack.c.l.b16 %v1176
    %v4616 = vunpack.c.h.b16 %v1176
    %v4617 = vunpack.c.l.b16 %v1177
    %v4618 = vunpack.c.h.b16 %v1177
    %v4619 = vunpack.c.l.b16 %v1178
    %v4620 = vunpack.c.h.b16 %v1178
    %v4621 = vunpack.c.l.b16 %v1179
    %v4622 = vunpack.c.h.b16 %v1179
    %v4623 = vunpack.c.l.b16 %v1180
    %v4624 = vunpack.c.h.b16 %v1180
    %v4625 = vunpack.c.l.b16 %v1181
    %v4626 = vunpack.c.h.b16 %v1181
    %v4627 = vunpack.c.l.b16 %v1182
    %v4628 = vunpack.c.h.b16 %v1182
    %v4629 = vunpack.c.l.b16 %v1183
    %v4630 = vunpack.c.h.b16 %v1183
    %v4631 = vunpack.c.l.b16 %v1184
    %v4632 = vunpack.c.h.b16 %v1184
    %v4633 = vunpack.c.l.b16 %v1185
    %v4634 = vunpack.c.h.b16 %v1185
    %v4635 = vunpack.c.l.b16 %v1186
    %v4636 = vunpack.c.h.b16 %v1186
    %v4637 = vunpack.c.l.b16 %v1187
    %v4638 = vunpack.c.h.b16 %v1187
    %v4639 = vunpack.c.l.b16 %v1188
    %v4640 = vunpack.c.h.b16 %v1188
    %v4641 = vunpack.c.l.b16 %v1189
    %v4642 = vunpack.c.h.b16 %v1189
    %v4643 = vunpack.c.l.b16 %v1190
    %v4644 = vunpack.c.h.b16 %v1190
    %v4645 = vunpack.c.l.b16 %v1191
    %v4646 = vunpack.c.h.b16 %v1191
    %v4647 = vunpack.c.l.b16 %v1192
    %v4648 = vunpack.c.h.b16 %v1192
    %v4649 = vunpack.c.l.b16 %v1193
    %v4650 = vunpack.c.h.b16 %v1193
    %v4651 = vunpack.c.l.b16 %v1194
    %v4652 = vunpack.c.h.b16 %v1194
    %v4653 = vunpack.c.l.b16 %v1195
    %v4654 = vunpack.c.h.b16 %v1195
    %v4655 = vunpack.c.l.b16 %v1196
    %v4656 = vunpack.c.h.b16 %v1196
    %v4657 = vunpack.c.l.b16 %v1197
    %v4658 = vunpack.c.h.b16 %v1197
    %v4659 = vunpack.c.l.b16 %v1198
    %v4660 = vunpack.c.h.b16 %v1198
    %v4661 = vunpack.c.l.b16 %v1199
    %v4662 = vunpack.c.h.b16 %v1199
    %v4663 = vunpack.c.l.b16 %v1200
    %v4664 = vunpack.c.h.b16 %v1200
    %v4665 = vunpack.c.l.b16 %v1201
    %v4666 = vunpack.c.h.b16 %v1201
    %v4667 = vunpack.c.l.b16 %v1202
    %v4668 = vunpack.c.h.b16 %v1202
    %v4669 = vunpack.c.l.b16 %v1203
    %v4670 = vunpack.c.h.b16 %v1203
    %v4671 = vunpack.c.l.b16 %v1204
    %v4672 = vunpack.c.h.b16 %v1204
    %v4673 = vunpack.c.l.b16 %v1205
    %v4674 = vunpack.c.h.b16 %v1205
    %v4675 = vunpack.c.l.b16 %v1206
    %v4676 = vunpack.c.h.b16 %v1206
    %v4677 = vunpack.c.l.b16 %v1207
    %v4678 = vunpack.c.h.b16 %v1207
    %v4679 = vunpack.c.l.b16 %v1208
    %v4680 = vunpack.c.h.b16 %v1208
    %v4681 = vunpack.c.l.b16 %v1209
    %v4682 = vunpack.c.h.b16 %v1209
    %v4683 = vunpack.c.l.b16 %v1210
    %v4684 = vunpack.c.h.b16 %v1210
    %v4685 = vunpack.c.l.b16 %v1211
    %v4686 = vunpack.c.h.b16 %v1211
    %v4687 = vunpack.c.l.b16 %v1212
    %v4688 = vunpack.c.h.b16 %v1212
    %v4689 = vunpack.c.l.b16 %v1213
    %v4690 = vunpack.c.h.b16 %v1213
    %v4691 = vunpack.c.l.b16 %v1214
    %v4692 = vunpack.c.h.b16 %v1214
    %v4693 = vunpack.c.l.b16 %v1215
    %v4694 = vunpack.c.h.b16 %v1215
    %v4695 = vunpack.c.l.b16 %v1216
    %v4696 = vunpack.c.h.b16 %v1216
    %v4697 = vunpack.c.l.b16 %v1217
    %v4698 = vunpack.c.h.b16 %v1217
    %v4699 = vunpack.c.l.b16 %v1218
    %v4700 = vunpack.c.h.b16 %v1218
    %v4701 = vunpack.c.l.b16 %v1219
    %v4702 = vunpack.c.h.b16 %v1219
    %v4703 = vunpack.c.l.b16 %v1220
    %v4704 = vunpack.c.h.b16 %v1220
    %v4705 = vunpack.c.l.b16 %v1221
    %v4706 = vunpack.c.h.b16 %v1221
    %v4707 = vunpack.c.l.b16 %v1222
    %v4708 = vunpack.c.h.b16 %v1222
    %v4709 = vunpack.c.l.b16 %v1223
    %v4710 = vunpack.c.h.b16 %v1223
    %v4711 = vunpack.c.l.b16 %v1224
    %v4712 = vunpack.c.h.b16 %v1224
    %v4713 = vunpack.c.l.b16 %v1225
    %v4714 = vunpack.c.h.b16 %v1225
    %v4715 = vunpack.c.l.b16 %v1226
    %v4716 = vunpack.c.h.b16 %v1226
    %v4717 = vunpack.c.l.b16 %v1227
    %v4718 = vunpack.c.h.b16 %v1227
    %v4719 = vunpack.c.l.b16 %v1228
    %v4720 = vunpack.c.h.b16 %v1228
    %v4721 = vunpack.c.l.b16 %v1229
    %v4722 = vunpack.c.h.b16 %v1229
    %v4723 = vunpack.c.l.b16 %v1230
    %v4724 = vunpack.c.h.b16 %v1230
    %v4725 = vunpack.c.l.b16 %v1231
    %v4726 = vunpack.c.h.b16 %v1231
    %v4727 = vunpack.c.l.b16 %v1232
    %v4728 = vunpack.c.h.b16 %v1232
    %v4729 = vunpack.c.l.b16 %v1233
    %v4730 = vunpack.c.h.b16 %v1233
    %v4731 = vunpack.c.l.b16 %v1234
    %v4732 = vunpack.c.h.b16 %v1234
    %v4733 = vunpack.c.l.b16 %v1235
    %v4734 = vunpack.c.h.b16 %v1235
    %v4735 = vunpack.c.l.b16 %v1236
    %v4736 = vunpack.c.h.b16 %v1236
    %v4737 = vunpack.c.l.b16 %v1237
    %v4738 = vunpack.c.h.b16 %v1237
    %v4739 = vunpack.c.l.b16 %v1238
    %v4740 = vunpack.c.h.b16 %v1238
    %v4741 = vunpack.c.l.b16 %v1239
    %v4742 = vunpack.c.h.b16 %v1239
    %v4743 = vunpack.c.l.b16 %v1240
    %v4744 = vunpack.c.h.b16 %v1240
    %v4745 = vunpack.c.l.b16 %v1241
    %v4746 = vunpack.c.h.b16 %v1241
    %v4747 = vunpack.c.l.b16 %v1242
    %v4748 = vunpack.c.h.b16 %v1242
    %v4749 = vunpack.c.l.b16 %v1243
    %v4750 = vunpack.c.h.b16 %v1243
    %v4751 = vunpack.c.l.b16 %v1244
    %v4752 = vunpack.c.h.b16 %v1244
    %v4753 = vunpack.c.l.b16 %v1245
    %v4754 = vunpack.c.h.b16 %v1245
    %v4755 = vunpack.c.l.b16 %v1246
    %v4756 = vunpack.c.h.b16 %v1246
    %v4757 = vunpack.c.l.b16 %v1247
    %v4758 = vunpack.c.h.b16 %v1247
    %v4759 = vunpack.c.l.b16 %v1248
    %v4760 = vunpack.c.h.b16 %v1248
    %v4761 = vunpack.c.l.b16 %v1249
    %v4762 = vunpack.c.h.b16 %v1249
    %v4763 = vunpack.c.l.b16 %v1250
    %v4764 = vunpack.c.h.b16 %v1250
    %v4765 = vunpack.c.l.b16 %v1251
    %v4766 = vunpack.c.h.b16 %v1251
    %v4767 = vunpack.c.l.b16 %v1252
    %v4768 = vunpack.c.h.b16 %v1252
    %v4769 = vunpack.c.l.b16 %v1253
    %v4770 = vunpack.c.h.b16 %v1253
    %v4771 = vunpack.c.l.b16 %v1254
    %v4772 = vunpack.c.h.b16 %v1254
    %v4773 = vunpack.c.l.b16 %v1255
    %v4774 = vunpack.c.h.b16 %v1255
    %v4775 = vunpack.c.l.b16 %v1256
    %v4776 = vunpack.c.h.b16 %v1256
    %v4777 = vunpack.c.l.b16 %v1257
    %v4778 = vunpack.c.h.b16 %v1257
    %v4779 = vunpack.c.l.b16 %v1258
    %v4780 = vunpack.c.h.b16 %v1258
    %v4781 = vunpack.c.l.b16 %v1259
    %v4782 = vunpack.c.h.b16 %v1259
    %v4783 = vunpack.c.l.b16 %v1260
    %v4784 = vunpack.c.h.b16 %v1260
    %v4785 = vunpack.c.l.b16 %v1261
    %v4786 = vunpack.c.h.b16 %v1261
    %v4787 = vunpack.c.l.b16 %v1262
    %v4788 = vunpack.c.h.b16 %v1262
    %v4789 = vunpack.c.l.b16 %v1263
    %v4790 = vunpack.c.h.b16 %v1263
    %v4791 = vunpack.c.l.b16 %v1264
    %v4792 = vunpack.c.h.b16 %v1264
    %v4793 = vunpack.c.l.b16 %v1265
    %v4794 = vunpack.c.h.b16 %v1265
    %v4795 = vunpack.c.l.b16 %v1266
    %v4796 = vunpack.c.h.b16 %v1266
    %v4797 = vunpack.c.l.b16 %v1267
    %v4798 = vunpack.c.h.b16 %v1267
    %v4799 = vunpack.c.l.b16 %v1268
    %v4800 = vunpack.c.h.b16 %v1268
    %v4801 = vunpack.c.l.b16 %v1269
    %v4802 = vunpack.c.h.b16 %v1269
    %v4803 = vunpack.c.l.b16 %v1270
    %v4804 = vunpack.c.h.b16 %v1270
    %v4805 = vunpack.c.l.b16 %v1271
    %v4806 = vunpack.c.h.b16 %v1271
    %v4807 = vunpack.c.l.b16 %v1272
    %v4808 = vunpack.c.h.b16 %v1272
    %v4809 = vunpack.c.l.b16 %v1273
    %v4810 = vunpack.c.h.b16 %v1273
    %v4811 = vunpack.c.l.b16 %v1274
    %v4812 = vunpack.c.h.b16 %v1274
    %v4813 = vunpack.c.l.b16 %v1275
    %v4814 = vunpack.c.h.b16 %v1275
    %v4815 = vunpack.c.l.b16 %v1276
    %v4816 = vunpack.c.h.b16 %v1276
    %v4817 = vunpack.c.l.b16 %v1277
    %v4818 = vunpack.c.h.b16 %v1277
    %v4819 = vunpack.c.l.b16 %v1278
    %v4820 = vunpack.c.h.b16 %v1278
    %v4821 = vunpack.c.l.b16 %v1279
    %v4822 = vunpack.c.h.b16 %v1279
    %v4823 = vunpack.c.l.b16 %v1280
    %v4824 = vunpack.c.h.b16 %v1280
    %v4825 = vunpack.c.l.b16 %v1281
    %v4826 = vunpack.c.h.b16 %v1281
    %v4827 = vunpack.c.l.b16 %v1282
    %v4828 = vunpack.c.h.b16 %v1282
    %v4829 = vunpack.c.l.b16 %v1283
    %v4830 = vunpack.c.h.b16 %v1283
    %v4831 = vunpack.c.l.b16 %v1284
    %v4832 = vunpack.c.h.b16 %v1284
    %v4833 = vunpack.c.l.b16 %v1285
    %v4834 = vunpack.c.h.b16 %v1285
    %v4835 = vunpack.c.l.b16 %v1286
    %v4836 = vunpack.c.h.b16 %v1286
    %v4837 = vunpack.c.l.b16 %v1287
    %v4838 = vunpack.c.h.b16 %v1287
    %v4839 = vunpack.c.l.b16 %v1288
    %v4840 = vunpack.c.h.b16 %v1288
    %v4841 = vunpack.c.l.b16 %v1289
    %v4842 = vunpack.c.h.b16 %v1289
    %v4843 = vunpack.c.l.b16 %v1290
    %v4844 = vunpack.c.h.b16 %v1290
    %v4845 = vunpack.c.l.b16 %v1291
    %v4846 = vunpack.c.h.b16 %v1291
    %v4847 = vunpack.c.l.b16 %v1292
    %v4848 = vunpack.c.h.b16 %v1292
    %v4849 = vunpack.c.l.b16 %v1293
    %v4850 = vunpack.c.h.b16 %v1293
    %v4851 = vunpack.c.l.b16 %v1294
    %v4852 = vunpack.c.h.b16 %v1294
    %v4853 = vunpack.c.l.b16 %v1295
    %v4854 = vunpack.c.h.b16 %v1295
    %v4855 = vunpack.c.l.b16 %v1296
    %v4856 = vunpack.c.h.b16 %v1296
    %v4857 = vunpack.c.l.b16 %v1297
    %v4858 = vunpack.c.h.b16 %v1297
    %v4859 = vunpack.c.l.b16 %v1298
    %v4860 = vunpack.c.h.b16 %v1298
    %v4861 = vunpack.c.l.b16 %v1299
    %v4862 = vunpack.c.h.b16 %v1299
    %v4863 = vunpack.c.l.b16 %v1300
    %v4864 = vunpack.c.h.b16 %v1300
    %v4865 = vunpack.c.l.b16 %v1301
    %v4866 = vunpack.c.h.b16 %v1301
    %v4867 = vunpack.c.l.b16 %v1302
    %v4868 = vunpack.c.h.b16 %v1302
    %v4869 = vunpack.c.l.b16 %v1303
    %v4870 = vunpack.c.h.b16 %v1303
    %v4871 = vunpack.c.l.b16 %v1304
    %v4872 = vunpack.c.h.b16 %v1304
    %v4873 = vunpack.c.l.b16 %v1305
    %v4874 = vunpack.c.h.b16 %v1305
    %v4875 = vunpack.c.l.b16 %v1306
    %v4876 = vunpack.c.h.b16 %v1306
    %v4877 = vunpack.c.l.b16 %v1307
    %v4878 = vunpack.c.h.b16 %v1307
    %v4879 = vunpack.c.l.b16 %v1308
    %v4880 = vunpack.c.h.b16 %v1308
    %v4881 = vunpack.c.l.b16 %v1309
    %v4882 = vunpack.c.h.b16 %v1309
    %v4883 = vunpack.c.l.b16 %v1310
    %v4884 = vunpack.c.h.b16 %v1310
    %v4885 = vunpack.c.l.b16 %v1311
    %v4886 = vunpack.c.h.b16 %v1311
    %v4887 = vunpack.c.l.b16 %v1312
    %v4888 = vunpack.c.h.b16 %v1312
    %v4889 = vunpack.c.l.b16 %v1313
    %v4890 = vunpack.c.h.b16 %v1313
    %v4891 = vunpack.c.l.b16 %v1314
    %v4892 = vunpack.c.h.b16 %v1314
    %v4893 = vunpack.c.l.b16 %v1315
    %v4894 = vunpack.c.h.b16 %v1315
    %v4895 = vunpack.c.l.b16 %v1316
    %v4896 = vunpack.c.h.b16 %v1316
    %v4897 = vunpack.c.l.b16 %v1317
    %v4898 = vunpack.c.h.b16 %v1317
    %v4899 = vunpack.c.l.b16 %v1318
    %v4900 = vunpack.c.h.b16 %v1318
    %v4901 = vunpack.c.l.b16 %v1319
    %v4902 = vunpack.c.h.b16 %v1319
    %v4903 = vunpack.c.l.b16 %v1320
    %v4904 = vunpack.c.h.b16 %v1320
    %v4905 = vunpack.c.l.b16 %v1321
    %v4906 = vunpack.c.h.b16 %v1321
    %v4907 = vunpack.c.l.b16 %v1322
    %v4908 = vunpack.c.h.b16 %v1322
    %v4909 = vunpack.c.l.b16 %v1323
    %v4910 = vunpack.c.h.b16 %v1323
    %v4911 = vunpack.c.l.b16 %v1324
    %v4912 = vunpack.c.h.b16 %v1324
    %v4913 = vunpack.c.l.b16 %v1325
    %v4914 = vunpack.c.h.b16 %v1325
    %v4915 = vunpack.c.l.b16 %v1326
    %v4916 = vunpack.c.h.b16 %v1326
    %v4917 = vunpack.c.l.b16 %v1327
    %v4918 = vunpack.c.h.b16 %v1327
    %v4919 = vunpack.c.l.b16 %v1328
    %v4920 = vunpack.c.h.b16 %v1328
    %v4921 = vunpack.c.l.b16 %v1329
    %v4922 = vunpack.c.h.b16 %v1329
    %v4923 = vunpack.c.l.b16 %v1330
    %v4924 = vunpack.c.h.b16 %v1330
    %v4925 = vunpack.c.l.b16 %v1331
    %v4926 = vunpack.c.h.b16 %v1331
    %v4927 = vunpack.c.l.b16 %v1332
    %v4928 = vunpack.c.h.b16 %v1332
    %v4929 = vunpack.c.l.b16 %v1333
    %v4930 = vunpack.c.h.b16 %v1333
    %v4931 = vunpack.c.l.b16 %v1334
    %v4932 = vunpack.c.h.b16 %v1334
    %v4933 = vunpack.c.l.b16 %v1335
    %v4934 = vunpack.c.h.b16 %v1335
    %v4935 = vunpack.c.l.b16 %v1336
    %v4936 = vunpack.c.h.b16 %v1336
    %v4937 = vunpack.c.l.b16 %v1337
    %v4938 = vunpack.c.h.b16 %v1337
    %v4939 = vunpack.c.l.b16 %v1338
    %v4940 = vunpack.c.h.b16 %v1338
    %v4941 = vunpack.c.l.b16 %v1339
    %v4942 = vunpack.c.h.b16 %v1339
    %v4943 = vunpack.c.l.b16 %v1340
    %v4944 = vunpack.c.h.b16 %v1340
    %v4945 = vunpack.c.l.b16 %v1341
    %v4946 = vunpack.c.h.b16 %v1341
    %v4947 = vunpack.c.l.b16 %v1342
    %v4948 = vunpack.c.h.b16 %v1342
    %v4949 = vunpack.c.l.b16 %v1343
    %v4950 = vunpack.c.h.b16 %v1343
    %v4951 = vunpack.c.l.b16 %v1344
    %v4952 = vunpack.c.h.b16 %v1344
    %v4953 = vunpack.c.l.b16 %v1345
    %v4954 = vunpack.c.h.b16 %v1345
    %v4955 = vunpack.c.l.b16 %v1346
    %v4956 = vunpack.c.h.b16 %v1346
    %v4957 = vunpack.c.l.b16 %v1347
    %v4958 = vunpack.c.h.b16 %v1347
    %v4959 = vunpack.c.l.b16 %v1348
    %v4960 = vunpack.c.h.b16 %v1348
    %v4961 = vunpack.c.l.b16 %v1349
    %v4962 = vunpack.c.h.b16 %v1349
    %v4963 = vunpack.c.l.b16 %v1350
    %v4964 = vunpack.c.h.b16 %v1350
    %v4965 = vunpack.c.l.b16 %v1351
    %v4966 = vunpack.c.h.b16 %v1351
    %v4967 = vunpack.c.l.b16 %v1352
    %v4968 = vunpack.c.h.b16 %v1352
    %v4969 = vunpack.c.l.b16 %v1353
    %v4970 = vunpack.c.h.b16 %v1353
    %v4971 = vunpack.c.l.b16 %v1354
    %v4972 = vunpack.c.h.b16 %v1354
    %v4973 = vunpack.c.l.b16 %v1355
    %v4974 = vunpack.c.h.b16 %v1355
    %v4975 = vunpack.c.l.b16 %v1356
    %v4976 = vunpack.c.h.b16 %v1356
    %v4977 = vunpack.c.l.b16 %v1357
    %v4978 = vunpack.c.h.b16 %v1357
    %v4979 = vunpack.c.l.b16 %v1358
    %v4980 = vunpack.c.h.b16 %v1358
    %v4981 = vunpack.c.l.b16 %v1359
    %v4982 = vunpack.c.h.b16 %v1359
    %v4983 = vunpack.c.l.b16 %v1360
    %v4984 = vunpack.c.h.b16 %v1360
    %v4985 = vunpack.c.l.b16 %v1361
    %v4986 = vunpack.c.h.b16 %v1361
    %v4987 = vunpack.c.l.b16 %v1362
    %v4988 = vunpack.c.h.b16 %v1362
    %v4989 = vunpack.c.l.b16 %v1363
    %v4990 = vunpack.c.h.b16 %v1363
    %v4991 = vunpack.c.l.b16 %v1364
    %v4992 = vunpack.c.h.b16 %v1364
    %v4993 = vunpack.c.l.b16 %v1365
    %v4994 = vunpack.c.h.b16 %v1365
    %v4995 = vunpack.c.l.b16 %v1366
    %v4996 = vunpack.c.h.b16 %v1366
    %v4997 = vunpack.c.l.b16 %v1367
    %v4998 = vunpack.c.h.b16 %v1367
    %v4999 = vunpack.c.l.b16 %v1368
    %v5000 = vunpack.c.h.b16 %v1368
    %v5001 = vunpack.c.l.b16 %v1369
    %v5002 = vunpack.c.h.b16 %v1369
    %v5003 = vunpack.c.l.b16 %v1370
    %v5004 = vunpack.c.h.b16 %v1370
    %v5005 = vunpack.c.l.b16 %v1371
    %v5006 = vunpack.c.h.b16 %v1371
    %v5007 = vunpack.c.l.b16 %v1372
    %v5008 = vunpack.c.h.b16 %v1372
    %v5009 = vunpack.c.l.b16 %v1373
    %v5010 = vunpack.c.h.b16 %v1373
    %v5011 = vunpack.c.l.b16 %v1374
    %v5012 = vunpack.c.h.b16 %v1374
    %v5013 = vunpack.c.l.b16 %v1375
    %v5014 = vunpack.c.h.b16 %v1375
    %v5015 = vunpack.c.l.b16 %v1376
    %v5016 = vunpack.c.h.b16 %v1376
    %v5017 = vunpack.c.l.b16 %v1377
    %v5018 = vunpack.c.h.b16 %v1377
    %v5019 = vunpack.c.l.b16 %v1378
    %v5020 = vunpack.c.h.b16 %v1378
    %v5021 = vunpack.c.l.b16 %v1379
    %v5022 = vunpack.c.h.b16 %v1379
    %v5023 = vunpack.c.l.b16 %v1380
    %v5024 = vunpack.c.h.b16 %v1380
    %v5025 = vunpack.c.l.b16 %v1381
    %v5026 = vunpack.c.h.b16 %v1381
    %v5027 = vunpack.c.l.b16 %v1382
    %v5028 = vunpack.c.h.b16 %v1382
    %v5029 = vunpack.c.l.b16 %v1383
    %v5030 = vunpack.c.h.b16 %v1383
    %v5031 = vunpack.c.l.b16 %v1384
    %v5032 = vunpack.c.h.b16 %v1384
    %v5033 = vunpack.c.l.b16 %v1385
    %v5034 = vunpack.c.h.b16 %v1385
    %v5035 = vunpack.c.l.b16 %v1386
    %v5036 = vunpack.c.h.b16 %v1386
    %v5037 = vunpack.c.l.b16 %v1387
    %v5038 = vunpack.c.h.b16 %v1387
    %v5039 = vunpack.c.l.b16 %v1388
    %v5040 = vunpack.c.h.b16 %v1388
    %v5041 = vunpack.c.l.b16 %v1389
    %v5042 = vunpack.c.h.b16 %v1389
    %v5043 = vunpack.c.l.b16 %v1390
    %v5044 = vunpack.c.h.b16 %v1390
    %v5045 = vunpack.c.l.b16 %v1391
    %v5046 = vunpack.c.h.b16 %v1391
    %v5047 = vunpack.c.l.b16 %v1392
    %v5048 = vunpack.c.h.b16 %v1392
    %v5049 = vunpack.c.l.b16 %v1393
    %v5050 = vunpack.c.h.b16 %v1393
    %v5051 = vunpack.c.l.b16 %v1394
    %v5052 = vunpack.c.h.b16 %v1394
    %v5053 = vunpack.c.l.b16 %v1395
    %v5054 = vunpack.c.h.b16 %v1395
    %v5055 = vunpack.c.l.b16 %v1396
    %v5056 = vunpack.c.h.b16 %v1396
    %v5057 = vunpack.c.l.b16 %v1397
    %v5058 = vunpack.c.h.b16 %v1397
    %v5059 = vunpack.c.l.b16 %v1398
    %v5060 = vunpack.c.h.b16 %v1398
    %v5061 = vunpack.c.l.b16 %v1399
    %v5062 = vunpack.c.h.b16 %v1399
    %v5063 = vunpack.c.l.b16 %v1400
    %v5064 = vunpack.c.h.b16 %v1400
    %v5065 = vunpack.c.l.b16 %v1401
    %v5066 = vunpack.c.h.b16 %v1401
    %v5067 = vunpack.c.l.b16 %v1402
    %v5068 = vunpack.c.h.b16 %v1402
    %v5069 = vunpack.c.l.b16 %v1403
    %v5070 = vunpack.c.h.b16 %v1403
    %v5071 = vunpack.c.l.b16 %v1404
    %v5072 = vunpack.c.h.b16 %v1404
    %v5073 = vunpack.c.l.b16 %v1405
    %v5074 = vunpack.c.h.b16 %v1405
    %v5075 = vunpack.c.l.b16 %v1406
    %v5076 = vunpack.c.h.b16 %v1406
    %v5077 = vunpack.c.l.b16 %v1407
    %v5078 = vunpack.c.h.b16 %v1407
    %v5079 = vunpack.c.l.b16 %v1408
    %v5080 = vunpack.c.h.b16 %v1408
    %v5081 = vunpack.c.l.b16 %v1409
    %v5082 = vunpack.c.h.b16 %v1409
    %v5083 = vunpack.c.l.b16 %v1410
    %v5084 = vunpack.c.h.b16 %v1410
    %v5085 = vunpack.c.l.b16 %v1411
    %v5086 = vunpack.c.h.b16 %v1411
    %v5087 = vunpack.c.l.b16 %v1412
    %v5088 = vunpack.c.h.b16 %v1412
    %v5089 = vunpack.c.l.b16 %v1413
    %v5090 = vunpack.c.h.b16 %v1413
    %v5091 = vunpack.c.l.b16 %v1414
    %v5092 = vunpack.c.h.b16 %v1414
    %v5093 = vunpack.c.l.b16 %v1415
    %v5094 = vunpack.c.h.b16 %v1415
    %v5095 = vunpack.c.l.b16 %v1416
    %v5096 = vunpack.c.h.b16 %v1416
    %v5097 = vunpack.c.l.b16 %v1417
    %v5098 = vunpack.c.h.b16 %v1417
    %v5099 = vunpack.c.l.b16 %v1418
    %v5100 = vunpack.c.h.b16 %v1418
    %v5101 = vunpack.c.l.b16 %v1419
    %v5102 = vunpack.c.h.b16 %v1419
    %v5103 = vunpack.c.l.b16 %v1420
    %v5104 = vunpack.c.h.b16 %v1420
    %v5105 = vunpack.c.l.b16 %v1421
    %v5106 = vunpack.c.h.b16 %v1421
    %v5107 = vunpack.c.l.b16 %v1422
    %v5108 = vunpack.c.h.b16 %v1422
    %v5109 = vunpack.c.l.b16 %v1423
    %v5110 = vunpack.c.h.b16 %v1423
    %v5111 = vunpack.c.l.b16 %v1424
    %v5112 = vunpack.c.h.b16 %v1424
    %v5113 = vunpack.c.l.b16 %v1425
    %v5114 = vunpack.c.h.b16 %v1425
    %v5115 = vunpack.c.l.b16 %v1426
    %v5116 = vunpack.c.h.b16 %v1426
    %v5117 = vunpack.c.l.b16 %v1427
    %v5118 = vunpack.c.h.b16 %v1427
    %v5119 = vunpack.c.l.b16 %v1428
    %v5120 = vunpack.c.h.b16 %v1428
    %v5121 = vunpack.c.l.b16 %v1429
    %v5122 = vunpack.c.h.b16 %v1429
    %v5123 = vunpack.c.l.b16 %v1430
    %v5124 = vunpack.c.h.b16 %v1430
    %v5125 = vunpack.c.l.b16 %v1431
    %v5126 = vunpack.c.h.b16 %v1431
    %v5127 = vunpack.c.l.b16 %v1432
    %v5128 = vunpack.c.h.b16 %v1432
    %v5129 = vunpack.c.l.b16 %v1433
    %v5130 = vunpack.c.h.b16 %v1433
    %v5131 = vunpack.c.l.b16 %v1434
    %v5132 = vunpack.c.h.b16 %v1434
    %v5133 = vunpack.c.l.b16 %v1435
    %v5134 = vunpack.c.h.b16 %v1435
    %v5135 = vunpack.c.l.b16 %v1436
    %v5136 = vunpack.c.h.b16 %v1436
    %v5137 = vunpack.c.l.b16 %v1437
    %v5138 = vunpack.c.h.b16 %v1437
    %v5139 = vunpack.c.l.b16 %v1438
    %v5140 = vunpack.c.h.b16 %v1438
    %v5141 = vunpack.c.l.b16 %v1439
    %v5142 = vunpack.c.h.b16 %v1439
    %v5143 = vunpack.c.l.b16 %v1440
    %v5144 = vunpack.c.h.b16 %v1440
    %v5145 = vunpack.c.l.b16 %v1441
    %v5146 = vunpack.c.h.b16 %v1441
    %v5147 = vunpack.c.l.b16 %v1442
    %v5148 = vunpack.c.h.b16 %v1442
    %v5149 = vunpack.c.l.b16 %v1443
    %v5150 = vunpack.c.h.b16 %v1443
    %v5151 = vunpack.c.l.b16 %v1444
    %v5152 = vunpack.c.h.b16 %v1444
    %v5153 = vunpack.c.l.b16 %v1445
    %v5154 = vunpack.c.h.b16 %v1445
    %v5155 = vunpack.c.l.b16 %v1446
    %v5156 = vunpack.c.h.b16 %v1446
    %v5157 = vunpack.c.l.b16 %v1447
    %v5158 = vunpack.c.h.b16 %v1447
    %v5159 = vunpack.c.l.b16 %v1448
    %v5160 = vunpack.c.h.b16 %v1448
    %v5161 = vunpack.c.l.b16 %v1449
    %v5162 = vunpack.c.h.b16 %v1449
    %v5163 = vunpack.c.l.b16 %v1450
    %v5164 = vunpack.c.h.b16 %v1450
    %v5165 = vunpack.c.l.b16 %v1451
    %v5166 = vunpack.c.h.b16 %v1451
    %v5167 = vunpack.c.l.b16 %v1452
    %v5168 = vunpack.c.h.b16 %v1452
    %v5169 = vunpack.c.l.b16 %v1453
    %v5170 = vunpack.c.h.b16 %v1453
    %v5171 = vunpack.c.l.b16 %v1454
    %v5172 = vunpack.c.h.b16 %v1454
    %v5173 = vunpack.c.l.b16 %v1455
    %v5174 = vunpack.c.h.b16 %v1455
    %v5175 = vunpack.c.l.b16 %v1456
    %v5176 = vunpack.c.h.b16 %v1456
    %v5177 = vunpack.c.l.b16 %v1457
    %v5178 = vunpack.c.h.b16 %v1457
    %v5179 = vunpack.c.l.b16 %v1458
    %v5180 = vunpack.c.h.b16 %v1458
    %v5181 = vunpack.c.l.b16 %v1459
    %v5182 = vunpack.c.h.b16 %v1459
    %v5183 = vunpack.c.l.b16 %v1460
    %v5184 = vunpack.c.h.b16 %v1460
    %v5185 = vunpack.c.l.b16 %v1461
    %v5186 = vunpack.c.h.b16 %v1461
    %v5187 = vunpack.c.l.b16 %v1462
    %v5188 = vunpack.c.h.b16 %v1462
    %v5189 = vunpack.c.l.b16 %v1463
    %v5190 = vunpack.c.h.b16 %v1463
    %v5191 = vunpack.c.l.b16 %v1464
    %v5192 = vunpack.c.h.b16 %v1464
    %v5193 = vunpack.c.l.b16 %v1465
    %v5194 = vunpack.c.h.b16 %v1465
    %v5195 = vunpack.c.l.b16 %v1466
    %v5196 = vunpack.c.h.b16 %v1466
    %v5197 = vunpack.c.l.b16 %v1467
    %v5198 = vunpack.c.h.b16 %v1467
    %v5199 = vunpack.c.l.b16 %v1468
    %v5200 = vunpack.c.h.b16 %v1468
    %v5201 = vunpack.c.l.b16 %v1469
    %v5202 = vunpack.c.h.b16 %v1469
    %v5203 = vunpack.c.l.b16 %v1470
    %v5204 = vunpack.c.h.b16 %v1470
    %v5205 = vunpack.c.l.b16 %v1471
    %v5206 = vunpack.c.h.b16 %v1471
    %v5207 = vunpack.c.l.b16 %v1472
    %v5208 = vunpack.c.h.b16 %v1472
    %v5209 = vunpack.c.l.b16 %v1473
    %v5210 = vunpack.c.h.b16 %v1473
    %v5211 = vunpack.c.l.b16 %v1474
    %v5212 = vunpack.c.h.b16 %v1474
    %v5213 = vunpack.c.l.b16 %v1475
    %v5214 = vunpack.c.h.b16 %v1475
    %v5215 = vunpack.c.l.b16 %v1476
    %v5216 = vunpack.c.h.b16 %v1476
    %v5217 = vunpack.c.l.b16 %v1477
    %v5218 = vunpack.c.h.b16 %v1477
    %v5219 = vunpack.c.l.b16 %v1478
    %v5220 = vunpack.c.h.b16 %v1478
    %v5221 = vunpack.c.l.b16 %v1479
    %v5222 = vunpack.c.h.b16 %v1479
    %v5223 = vunpack.c.l.b16 %v1480
    %v5224 = vunpack.c.h.b16 %v1480
    %v5225 = vunpack.c.l.b16 %v1481
    %v5226 = vunpack.c.h.b16 %v1481
    %v5227 = vunpack.c.l.b16 %v1482
    %v5228 = vunpack.c.h.b16 %v1482
    %v5229 = vunpack.c.l.b16 %v1483
    %v5230 = vunpack.c.h.b16 %v1483
    %v5231 = vunpack.c.l.b16 %v1484
    %v5232 = vunpack.c.h.b16 %v1484
    %v5233 = vunpack.c.l.b16 %v1485
    %v5234 = vunpack.c.h.b16 %v1485
    %v5235 = vunpack.c.l.b16 %v1486
    %v5236 = vunpack.c.h.b16 %v1486
    %v5237 = vunpack.c.l.b16 %v1487
    %v5238 = vunpack.c.h.b16 %v1487
    %v5239 = vunpack.c.l.b16 %v1488
    %v5240 = vunpack.c.h.b16 %v1488
    %v5241 = vunpack.c.l.b16 %v1489
    %v5242 = vunpack.c.h.b16 %v1489
    %v5243 = vunpack.c.l.b16 %v1490
    %v5244 = vunpack.c.h.b16 %v1490
    %v5245 = vunpack.c.l.b16 %v1491
    %v5246 = vunpack.c.h.b16 %v1491
    %v5247 = vunpack.c.l.b16 %v1492
    %v5248 = vunpack.c.h.b16 %v1492
    %v5249 = vunpack.c.l.b16 %v1493
    %v5250 = vunpack.c.h.b16 %v1493
    %v5251 = vunpack.c.l.b16 %v1494
    %v5252 = vunpack.c.h.b16 %v1494
    %v5253 = vunpack.c.l.b16 %v1495
    %v5254 = vunpack.c.h.b16 %v1495
    %v5255 = vunpack.c.l.b16 %v1496
    %v5256 = vunpack.c.h.b16 %v1496
    %v5257 = vunpack.c.l.b16 %v1497
    %v5258 = vunpack.c.h.b16 %v1497
    %v5259 = vunpack.c.l.b16 %v1498
    %v5260 = vunpack.c.h.b16 %v1498
    %v5261 = vunpack.c.l.b16 %v1499
    %v5262 = vunpack.c.h.b16 %v1499
    %v5263 = vunpack.c.l.b16 %v1500
    %v5264 = vunpack.c.h.b16 %v1500
    %v5265 = vunpack.c.l.b16 %v1501
    %v5266 = vunpack.c.h.b16 %v1501
    %v5267 = vunpack.c.l.b16 %v1502
    %v5268 = vunpack.c.h.b16 %v1502
    %v5269 = vunpack.c.l.b16 %v1503
    %v5270 = vunpack.c.h.b16 %v1503
    %v5271 = vunpack.c.l.b16 %v1504
    %v5272 = vunpack.c.h.b16 %v1504
    %v5273 = vunpack.c.l.b16 %v1505
    %v5274 = vunpack.c.h.b16 %v1505
    %v5275 = vunpack.c.l.b16 %v1506
    %v5276 = vunpack.c.h.b16 %v1506
    %v5277 = vunpack.c.l.b16 %v1507
    %v5278 = vunpack.c.h.b16 %v1507
    %v5279 = vunpack.c.l.b16 %v1508
    %v5280 = vunpack.c.h.b16 %v1508
    %v5281 = vunpack.c.l.b16 %v1509
    %v5282 = vunpack.c.h.b16 %v1509
    %v5283 = vunpack.c.l.b16 %v1510
    %v5284 = vunpack.c.h.b16 %v1510
    %v5285 = vunpack.c.l.b16 %v1511
    %v5286 = vunpack.c.h.b16 %v1511
    %v5287 = vunpack.c.l.b16 %v1512
    %v5288 = vunpack.c.h.b16 %v1512
    %v5289 = vunpack.c.l.b16 %v1513
    %v5290 = vunpack.c.h.b16 %v1513
    %v5291 = vunpack.c.l.b16 %v1514
    %v5292 = vunpack.c.h.b16 %v1514
    %v5293 = vunpack.c.l.b16 %v1515
    %v5294 = vunpack.c.h.b16 %v1515
    %v5295 = vunpack.c.l.b16 %v1516
    %v5296 = vunpack.c.h.b16 %v1516
    %v5297 = vunpack.c.l.b16 %v1517
    %v5298 = vunpack.c.h.b16 %v1517
    %v5299 = vunpack.c.l.b16 %v1518
    %v5300 = vunpack.c.h.b16 %v1518
    %v5301 = vunpack.c.l.b16 %v1519
    %v5302 = vunpack.c.h.b16 %v1519
    %v5303 = vunpack.c.l.b16 %v1520
    %v5304 = vunpack.c.h.b16 %v1520
    %v5305 = vunpack.c.l.b16 %v1521
    %v5306 = vunpack.c.h.b16 %v1521
    %v5307 = vunpack.c.l.b16 %v1522
    %v5308 = vunpack.c.h.b16 %v1522
    %v5309 = vunpack.c.l.b16 %v1523
    %v5310 = vunpack.c.h.b16 %v1523
    %v5311 = vunpack.c.l.b16 %v1524
    %v5312 = vunpack.c.h.b16 %v1524
    %v5313 = vunpack.c.l.b16 %v1525
    %v5314 = vunpack.c.h.b16 %v1525
    %v5315 = vunpack.c.l.b16 %v1526
    %v5316 = vunpack.c.h.b16 %v1526
    %v5317 = vunpack.c.l.b16 %v1527
    %v5318 = vunpack.c.h.b16 %v1527
    %v5319 = vunpack.c.l.b16 %v1528
    %v5320 = vunpack.c.h.b16 %v1528
    %v5321 = vunpack.c.l.b16 %v1529
    %v5322 = vunpack.c.h.b16 %v1529
    %v5323 = vunpack.c.l.b16 %v1530
    %v5324 = vunpack.c.h.b16 %v1530
    %v5325 = vunpack.c.l.b16 %v1531
    %v5326 = vunpack.c.h.b16 %v1531
    %v5327 = vunpack.c.l.b16 %v1532
    %v5328 = vunpack.c.h.b16 %v1532
    %v5329 = vunpack.c.l.b16 %v1533
    %v5330 = vunpack.c.h.b16 %v1533
    %v5331 = vunpack.c.l.b16 %v1534
    %v5332 = vunpack.c.h.b16 %v1534
    %v5333 = vunpack.c.l.b16 %v1535
    %v5334 = vunpack.c.h.b16 %v1535
    %v5335 = vunpack.c.l.b16 %v1536
    %v5336 = vunpack.c.h.b16 %v1536
    %v5337 = vunpack.c.l.b16 %v1537
    %v5338 = vunpack.c.h.b16 %v1537
    %v5339 = vunpack.c.l.b16 %v1538
    %v5340 = vunpack.c.h.b16 %v1538
    %v5341 = vunpack.c.l.b16 %v1539
    %v5342 = vunpack.c.h.b16 %v1539
    %v5343 = vunpack.c.l.b16 %v1540
    %v5344 = vunpack.c.h.b16 %v1540
    %v5345 = vunpack.c.l.b16 %v1541
    %v5346 = vunpack.c.h.b16 %v1541
    %v5347 = vunpack.c.l.b16 %v1542
    %v5348 = vunpack.c.h.b16 %v1542
    %v5349 = vunpack.c.l.b16 %v1543
    %v5350 = vunpack.c.h.b16 %v1543
    %v5351 = vunpack.c.l.b16 %v1544
    %v5352 = vunpack.c.h.b16 %v1544
    %v5353 = vunpack.c.l.b16 %v1545
    %v5354 = vunpack.c.h.b16 %v1545
    %v5355 = vunpack.c.l.b16 %v1546
    %v5356 = vunpack.c.h.b16 %v1546
    %v5357 = vunpack.c.l.b16 %v1547
    %v5358 = vunpack.c.h.b16 %v1547
    %v5359 = vunpack.c.l.b16 %v1548
    %v5360 = vunpack.c.h.b16 %v1548
    %v5361 = vunpack.c.l.b16 %v1549
    %v5362 = vunpack.c.h.b16 %v1549
    %v5363 = vunpack.c.l.b16 %v1550
    %v5364 = vunpack.c.h.b16 %v1550
    %v5365 = vunpack.c.l.b16 %v1551
    %v5366 = vunpack.c.h.b16 %v1551
    %v5367 = vunpack.c.l.b16 %v1552
    %v5368 = vunpack.c.h.b16 %v1552
    %v5369 = vunpack.c.l.b16 %v1553
    %v5370 = vunpack.c.h.b16 %v1553
    %v5371 = vunpack.c.l.b16 %v1554
    %v5372 = vunpack.c.h.b16 %v1554
    %v5373 = vunpack.c.l.b16 %v1555
    %v5374 = vunpack.c.h.b16 %v1555
    %v5375 = vunpack.c.l.b16 %v1556
    %v5376 = vunpack.c.h.b16 %v1556
    %v5377 = vunpack.c.l.b16 %v1557
    %v5378 = vunpack.c.h.b16 %v1557
    %v5379 = vunpack.c.l.b16 %v1558
    %v5380 = vunpack.c.h.b16 %v1558
    %v5381 = vunpack.c.l.b16 %v1559
    %v5382 = vunpack.c.h.b16 %v1559
    %v5383 = vunpack.c.l.b16 %v1560
    %v5384 = vunpack.c.h.b16 %v1560
    %v5385 = vunpack.c.l.b16 %v1561
    %v5386 = vunpack.c.h.b16 %v1561
    %v5387 = vunpack.c.l.b16 %v1562
    %v5388 = vunpack.c.h.b16 %v1562
    %v5389 = vunpack.c.l.b16 %v1563
    %v5390 = vunpack.c.h.b16 %v1563
    %v5391 = vunpack.c.l.b16 %v1564
    %v5392 = vunpack.c.h.b16 %v1564
    %v5393 = vunpack.c.l.b16 %v1565
    %v5394 = vunpack.c.h.b16 %v1565
    %v5395 = vunpack.c.l.b16 %v1566
    %v5396 = vunpack.c.h.b16 %v1566
    %v5397 = vunpack.c.l.b16 %v1567
    %v5398 = vunpack.c.h.b16 %v1567
    %v5399 = vunpack.c.l.b16 %v1568
    %v5400 = vunpack.c.h.b16 %v1568
    %v5401 = vunpack.c.l.b16 %v1569
    %v5402 = vunpack.c.h.b16 %v1569
    %v5403 = vunpack.c.l.b16 %v1570
    %v5404 = vunpack.c.h.b16 %v1570
    %v5405 = vunpack.c.l.b16 %v1571
    %v5406 = vunpack.c.h.b16 %v1571
    %v5407 = vunpack.c.l.b16 %v1572
    %v5408 = vunpack.c.h.b16 %v1572
    %v5409 = vunpack.c.l.b16 %v1573
    %v5410 = vunpack.c.h.b16 %v1573
    %v5411 = vunpack.c.l.b16 %v1574
    %v5412 = vunpack.c.h.b16 %v1574
    %v5413 = vunpack.c.l.b16 %v1575
    %v5414 = vunpack.c.h.b16 %v1575
    %v5415 = vunpack.c.l.b16 %v1576
    %v5416 = vunpack.c.h.b16 %v1576
    %v5417 = vunpack.c.l.b16 %v1577
    %v5418 = vunpack.c.h.b16 %v1577
    %v5419 = vunpack.c.l.b16 %v1578
    %v5420 = vunpack.c.h.b16 %v1578
    %v5421 = vunpack.c.l.b16 %v1579
    %v5422 = vunpack.c.h.b16 %v1579
    %v5423 = vunpack.c.l.b16 %v1580
    %v5424 = vunpack.c.h.b16 %v1580
    %v5425 = vunpack.c.l.b16 %v1581
    %v5426 = vunpack.c.h.b16 %v1581
    %v5427 = vunpack.c.l.b16 %v1582
    %v5428 = vunpack.c.h.b16 %v1582
    %v5429 = vunpack.c.l.b16 %v1583
    %v5430 = vunpack.c.h.b16 %v1583
    %v5431 = vunpack.c.l.b16 %v1584
    %v5432 = vunpack.c.h.b16 %v1584
    %v5433 = vunpack.c.l.b16 %v1585
    %v5434 = vunpack.c.h.b16 %v1585
    %v5435 = vunpack.c.l.b16 %v1586
    %v5436 = vunpack.c.h.b16 %v1586
    %v5437 = vunpack.c.l.b16 %v1587
    %v5438 = vunpack.c.h.b16 %v1587
    %v5439 = vunpack.c.l.b16 %v1588
    %v5440 = vunpack.c.h.b16 %v1588
    %v5441 = vunpack.c.l.b16 %v1589
    %v5442 = vunpack.c.h.b16 %v1589
    %v5443 = vunpack.c.l.b16 %v1590
    %v5444 = vunpack.c.h.b16 %v1590
    %v5445 = vunpack.c.l.b16 %v1591
    %v5446 = vunpack.c.h.b16 %v1591
    %v5447 = vunpack.c.l.b16 %v1592
    %v5448 = vunpack.c.h.b16 %v1592
    %v5449 = vunpack.c.l.b16 %v1593
    %v5450 = vunpack.c.h.b16 %v1593
    %v5451 = vunpack.c.l.b16 %v1594
    %v5452 = vunpack.c.h.b16 %v1594
    %v5453 = vunpack.c.l.b16 %v1595
    %v5454 = vunpack.c.h.b16 %v1595
    %v5455 = vunpack.c.l.b16 %v1596
    %v5456 = vunpack.c.h.b16 %v1596
    %v5457 = vunpack.c.l.b16 %v1597
    %v5458 = vunpack.c.h.b16 %v1597
    %v5459 = vunpack.c.l.b16 %v1598
    %v5460 = vunpack.c.h.b16 %v1598
    %v5461 = vunpack.c.l.b16 %v1599
    %v5462 = vunpack.c.h.b16 %v1599
    %v5463 = vunpack.c.l.b16 %v1600
    %v5464 = vunpack.c.h.b16 %v1600
    %v5465 = vunpack.c.l.b16 %v1601
    %v5466 = vunpack.c.h.b16 %v1601
    %v5467 = vunpack.c.l.b16 %v1602
    %v5468 = vunpack.c.h.b16 %v1602
    %v5469 = vunpack.c.l.b16 %v1603
    %v5470 = vunpack.c.h.b16 %v1603
    %v5471 = vunpack.c.l.b16 %v1604
    %v5472 = vunpack.c.h.b16 %v1604
    %v5473 = vunpack.c.l.b16 %v1605
    %v5474 = vunpack.c.h.b16 %v1605
    %v5475 = vunpack.c.l.b16 %v1606
    %v5476 = vunpack.c.h.b16 %v1606
    %v5477 = vunpack.c.l.b16 %v1607
    %v5478 = vunpack.c.h.b16 %v1607
    %v5479 = vunpack.c.l.b16 %v1608
    %v5480 = vunpack.c.h.b16 %v1608
    %v5481 = vunpack.c.l.b16 %v1609
    %v5482 = vunpack.c.h.b16 %v1609
    %v5483 = vunpack.c.l.b16 %v1610
    %v5484 = vunpack.c.h.b16 %v1610
    %v5485 = vunpack.c.l.b16 %v1611
    %v5486 = vunpack.c.h.b16 %v1611
    %v5487 = vunpack.c.l.b16 %v1612
    %v5488 = vunpack.c.h.b16 %v1612
    %v5489 = vunpack.c.l.b16 %v1613
    %v5490 = vunpack.c.h.b16 %v1613
    %v5491 = vunpack.c.l.b16 %v1614
    %v5492 = vunpack.c.h.b16 %v1614
    %v5493 = vunpack.c.l.b16 %v1615
    %v5494 = vunpack.c.h.b16 %v1615
    %v5495 = vunpack.c.l.b16 %v1616
    %v5496 = vunpack.c.h.b16 %v1616
    %v5497 = vunpack.c.l.b16 %v1617
    %v5498 = vunpack.c.h.b16 %v1617
    %v5499 = vunpack.c.l.b16 %v1618
    %v5500 = vunpack.c.h.b16 %v1618
    %v5501 = vunpack.c.l.b16 %v1619
    %v5502 = vunpack.c.h.b16 %v1619
    %v5503 = vunpack.c.l.b16 %v1620
    %v5504 = vunpack.c.h.b16 %v1620
    %v5505 = vunpack.c.l.b16 %v1621
    %v5506 = vunpack.c.h.b16 %v1621
    %v5507 = vunpack.c.l.b16 %v1622
    %v5508 = vunpack.c.h.b16 %v1622
    %v5509 = vunpack.c.l.b16 %v1623
    %v5510 = vunpack.c.h.b16 %v1623
    %v5511 = vunpack.c.l.b16 %v1624
    %v5512 = vunpack.c.h.b16 %v1624
    %v5513 = vunpack.c.l.b16 %v1625
    %v5514 = vunpack.c.h.b16 %v1625
    %v5515 = vunpack.c.l.b16 %v1626
    %v5516 = vunpack.c.h.b16 %v1626
    %v5517 = vunpack.c.l.b16 %v1627
    %v5518 = vunpack.c.h.b16 %v1627
    %v5519 = vunpack.c.l.b16 %v1628
    %v5520 = vunpack.c.h.b16 %v1628
    %v5521 = vunpack.c.l.b16 %v1629
    %v5522 = vunpack.c.h.b16 %v1629
    %v5523 = vunpack.c.l.b16 %v1630
    %v5524 = vunpack.c.h.b16 %v1630
    %v5525 = vunpack.c.l.b16 %v1631
    %v5526 = vunpack.c.h.b16 %v1631
    %v5527 = vunpack.c.l.b16 %v1632
    %v5528 = vunpack.c.h.b16 %v1632
    %v5529 = vunpack.c.l.b16 %v1633
    %v5530 = vunpack.c.h.b16 %v1633
    %v5531 = vunpack.c.l.b16 %v1634
    %v5532 = vunpack.c.h.b16 %v1634
    %v5533 = vunpack.c.l.b16 %v1635
    %v5534 = vunpack.c.h.b16 %v1635
    %v5535 = vunpack.c.l.b16 %v1636
    %v5536 = vunpack.c.h.b16 %v1636
    %v5537 = vunpack.c.l.b16 %v1637
    %v5538 = vunpack.c.h.b16 %v1637
    %v5539 = vunpack.c.l.b16 %v1638
    %v5540 = vunpack.c.h.b16 %v1638
    %v5541 = vunpack.c.l.b16 %v1639
    %v5542 = vunpack.c.h.b16 %v1639
    %v5543 = vunpack.c.l.b16 %v1640
    %v5544 = vunpack.c.h.b16 %v1640
    %v5545 = vunpack.c.l.b16 %v1641
    %v5546 = vunpack.c.h.b16 %v1641
    %v5547 = vunpack.c.l.b16 %v1642
    %v5548 = vunpack.c.h.b16 %v1642
    %v5549 = vunpack.c.l.b16 %v1643
    %v5550 = vunpack.c.h.b16 %v1643
    %v5551 = vunpack.c.l.b16 %v1644
    %v5552 = vunpack.c.h.b16 %v1644
    %v5553 = vunpack.c.l.b16 %v1645
    %v5554 = vunpack.c.h.b16 %v1645
    %v5555 = vunpack.c.l.b16 %v1646
    %v5556 = vunpack.c.h.b16 %v1646
    %v5557 = vunpack.c.l.b16 %v1647
    %v5558 = vunpack.c.h.b16 %v1647
    %v5559 = vunpack.c.l.b16 %v1648
    %v5560 = vunpack.c.h.b16 %v1648
    %v5561 = vunpack.c.l.b16 %v1649
    %v5562 = vunpack.c.h.b16 %v1649
    %v5563 = vunpack.c.l.b16 %v1650
    %v5564 = vunpack.c.h.b16 %v1650
    %v5565 = vunpack.c.l.b16 %v1651
    %v5566 = vunpack.c.h.b16 %v1651
    %v5567 = vunpack.c.l.b16 %v1652
    %v5568 = vunpack.c.h.b16 %v1652
    %v5569 = vunpack.c.l.b16 %v1653
    %v5570 = vunpack.c.h.b16 %v1653
    %v5571 = vunpack.c.l.b16 %v1654
    %v5572 = vunpack.c.h.b16 %v1654
    %v5573 = vunpack.c.l.b16 %v1655
    %v5574 = vunpack.c.h.b16 %v1655
    %v5575 = vunpack.c.l.b16 %v1656
    %v5576 = vunpack.c.h.b16 %v1656
    %v5577 = vunpack.c.l.b16 %v1657
    %v5578 = vunpack.c.h.b16 %v1657
    %v5579 = vunpack.c.l.b16 %v1658
    %v5580 = vunpack.c.h.b16 %v1658
    %v5581 = vunpack.c.l.b16 %v1659
    %v5582 = vunpack.c.h.b16 %v1659
    %v5583 = vunpack.c.l.b16 %v1660
    %v5584 = vunpack.c.h.b16 %v1660
    %v5585 = vunpack.c.l.b16 %v1661
    %v5586 = vunpack.c.h.b16 %v1661
    %v5587 = vunpack.c.l.b16 %v1662
    %v5588 = vunpack.c.h.b16 %v1662
    %v5589 = vunpack.c.l.b16 %v1663
    %v5590 = vunpack.c.h.b16 %v1663
    %v5591 = vunpack.c.l.b16 %v1664
    %v5592 = vunpack.c.h.b16 %v1664
    %v5593 = vunpack.c.l.b16 %v1665
    %v5594 = vunpack.c.h.b16 %v1665
    %v5595 = vunpack.c.l.b16 %v1666
    %v5596 = vunpack.c.h.b16 %v1666
    %v5597 = vunpack.c.l.b16 %v1667
    %v5598 = vunpack.c.h.b16 %v1667
    %v5599 = vunpack.c.l.b16 %v1668
    %v5600 = vunpack.c.h.b16 %v1668
    %v5601 = vunpack.c.l.b16 %v1669
    %v5602 = vunpack.c.h.b16 %v1669
    %v5603 = vunpack.c.l.b16 %v1670
    %v5604 = vunpack.c.h.b16 %v1670
    %v5605 = vunpack.c.l.b16 %v1671
    %v5606 = vunpack.c.h.b16 %v1671
    %v5607 = vunpack.c.l.b16 %v1672
    %v5608 = vunpack.c.h.b16 %v1672
    %v5609 = vunpack.c.l.b16 %v1673
    %v5610 = vunpack.c.h.b16 %v1673
    %v5611 = vunpack.c.l.b16 %v1674
    %v5612 = vunpack.c.h.b16 %v1674
    %v5613 = vunpack.c.l.b16 %v1675
    %v5614 = vunpack.c.h.b16 %v1675
    %v5615 = vunpack.c.l.b16 %v1676
    %v5616 = vunpack.c.h.b16 %v1676
    %v5617 = vunpack.c.l.b16 %v1677
    %v5618 = vunpack.c.h.b16 %v1677
    %v5619 = vunpack.c.l.b16 %v1678
    %v5620 = vunpack.c.h.b16 %v1678
    %v5621 = vunpack.c.l.b16 %v1679
    %v5622 = vunpack.c.h.b16 %v1679
    %v5623 = vunpack.c.l.b16 %v1680
    %v5624 = vunpack.c.h.b16 %v1680
    %v5625 = vunpack.c.l.b16 %v1681
    %v5626 = vunpack.c.h.b16 %v1681
    %v5627 = vunpack.c.l.b16 %v1682
    %v5628 = vunpack.c.h.b16 %v1682
    %v5629 = vunpack.c.l.b16 %v1683
    %v5630 = vunpack.c.h.b16 %v1683
    %v5631 = vunpack.c.l.b16 %v1684
    %v5632 = vunpack.c.h.b16 %v1684
    %v5633 = vunpack.c.l.b16 %v1685
    %v5634 = vunpack.c.h.b16 %v1685
    %v5635 = vunpack.c.l.b16 %v1686
    %v5636 = vunpack.c.h.b16 %v1686
    %v5637 = vunpack.c.l.b16 %v1687
    %v5638 = vunpack.c.h.b16 %v1687
    %v5639 = vunpack.c.l.b16 %v1688
    %v5640 = vunpack.c.h.b16 %v1688
    %v5641 = vunpack.c.l.b16 %v1689
    %v5642 = vunpack.c.h.b16 %v1689
    %v5643 = vunpack.c.l.b16 %v1690
    %v5644 = vunpack.c.h.b16 %v1690
    %v5645 = vunpack.c.l.b16 %v1691
    %v5646 = vunpack.c.h.b16 %v1691
    %v5647 = vunpack.c.l.b16 %v1692
    %v5648 = vunpack.c.h.b16 %v1692
    %v5649 = vunpack.c.l.b16 %v1693
    %v5650 = vunpack.c.h.b16 %v1693
    %v5651 = vunpack.c.l.b16 %v1694
    %v5652 = vunpack.c.h.b16 %v1694
    %v5653 = vunpack.c.l.b16 %v1695
    %v5654 = vunpack.c.h.b16 %v1695
    %v5655 = vunpack.c.l.b16 %v1696
    %v5656 = vunpack.c.h.b16 %v1696
    %v5657 = vunpack.c.l.b16 %v1697
    %v5658 = vunpack.c.h.b16 %v1697
    %v5659 = vunpack.c.l.b16 %v1698
    %v5660 = vunpack.c.h.b16 %v1698
    %v5661 = vunpack.c.l.b16 %v1699
    %v5662 = vunpack.c.h.b16 %v1699
    %v5663 = vunpack.c.l.b16 %v1700
    %v5664 = vunpack.c.h.b16 %v1700
    %v5665 = vunpack.c.l.b16 %v1701
    %v5666 = vunpack.c.h.b16 %v1701
    %v5667 = vunpack.c.l.b16 %v1702
    %v5668 = vunpack.c.h.b16 %v1702
    %v5669 = vunpack.c.l.b16 %v1703
    %v5670 = vunpack.c.h.b16 %v1703
    %v5671 = vunpack.c.l.b16 %v1704
    %v5672 = vunpack.c.h.b16 %v1704
    %v5673 = vunpack.c.l.b16 %v1705
    %v5674 = vunpack.c.h.b16 %v1705
    %v5675 = vunpack.c.l.b16 %v1706
    %v5676 = vunpack.c.h.b16 %v1706
    %v5677 = vunpack.c.l.b16 %v1707
    %v5678 = vunpack.c.h.b16 %v1707
    %v5679 = vunpack.c.l.b16 %v1708
    %v5680 = vunpack.c.h.b16 %v1708
    %v5681 = vunpack.c.l.b16 %v1709
    %v5682 = vunpack.c.h.b16 %v1709
    %v5683 = vunpack.c.l.b16 %v1710
    %v5684 = vunpack.c.h.b16 %v1710
    %v5685 = vunpack.c.l.b16 %v1711
    %v5686 = vunpack.c.h.b16 %v1711
    %v5687 = vunpack.c.l.b16 %v1712
    %v5688 = vunpack.c.h.b16 %v1712
    %v5689 = vunpack.c.l.b16 %v1713
    %v5690 = vunpack.c.h.b16 %v1713
    %v5691 = vunpack.c.l.b16 %v1714
    %v5692 = vunpack.c.h.b16 %v1714
    %v5693 = vunpack.c.l.b16 %v1715
    %v5694 = vunpack.c.h.b16 %v1715
    %v5695 = vunpack.c.l.b16 %v1716
    %v5696 = vunpack.c.h.b16 %v1716
    %v5697 = vunpack.c.l.b16 %v1717
    %v5698 = vunpack.c.h.b16 %v1717
    %v5699 = vunpack.c.l.b16 %v1718
    %v5700 = vunpack.c.h.b16 %v1718
    %v5701 = vunpack.c.l.b16 %v1719
    %v5702 = vunpack.c.h.b16 %v1719
    %v5703 = vunpack.c.l.b16 %v1720
    %v5704 = vunpack.c.h.b16 %v1720
    %v5705 = vunpack.c.l.b16 %v1721
    %v5706 = vunpack.c.h.b16 %v1721
    %v5707 = vunpack.c.l.b16 %v1722
    %v5708 = vunpack.c.h.b16 %v1722
    %v5709 = vunpack.c.l.b16 %v1723
    %v5710 = vunpack.c.h.b16 %v1723
    %v5711 = vunpack.c.l.b16 %v1724
    %v5712 = vunpack.c.h.b16 %v1724
    %v5713 = vunpack.c.l.b16 %v1725
    %v5714 = vunpack.c.h.b16 %v1725
    %v5715 = vunpack.c.l.b16 %v1726
    %v5716 = vunpack.c.h.b16 %v1726
    %v5717 = vunpack.c.l.b16 %v1727
    %v5718 = vunpack.c.h.b16 %v1727
    %v5719 = vunpack.c.l.b16 %v1728
    %v5720 = vunpack.c.h.b16 %v1728
    %v5721 = vunpack.c.l.b16 %v1729
    %v5722 = vunpack.c.h.b16 %v1729
    %v5723 = vunpack.c.l.b16 %v1730
    %v5724 = vunpack.c.h.b16 %v1730
    %v5725 = vunpack.c.l.b16 %v1731
    %v5726 = vunpack.c.h.b16 %v1731
    %v5727 = vunpack.c.l.b16 %v1732
    %v5728 = vunpack.c.h.b16 %v1732
    %v5729 = vunpack.c.l.b16 %v1733
    %v5730 = vunpack.c.h.b16 %v1733
    %v5731 = vunpack.c.l.b16 %v1734
    %v5732 = vunpack.c.h.b16 %v1734
    %v5733 = vunpack.c.l.b16 %v1735
    %v5734 = vunpack.c.h.b16 %v1735
    %v5735 = vunpack.c.l.b16 %v1736
    %v5736 = vunpack.c.h.b16 %v1736
    %v5737 = vunpack.c.l.b16 %v1737
    %v5738 = vunpack.c.h.b16 %v1737
    %v5739 = vunpack.c.l.b16 %v1738
    %v5740 = vunpack.c.h.b16 %v1738
    %v5741 = vunpack.c.l.b16 %v1739
    %v5742 = vunpack.c.h.b16 %v1739
    %v5743 = vunpack.c.l.b16 %v1740
    %v5744 = vunpack.c.h.b16 %v1740
    %v5745 = vunpack.c.l.b16 %v1741
    %v5746 = vunpack.c.h.b16 %v1741
    %v5747 = vunpack.c.l.b16 %v1742
    %v5748 = vunpack.c.h.b16 %v1742
    %v5749 = vunpack.c.l.b16 %v1743
    %v5750 = vunpack.c.h.b16 %v1743
    %v5751 = vunpack.c.l.b16 %v1744
    %v5752 = vunpack.c.h.b16 %v1744
    %v5753 = vunpack.c.l.b16 %v1745
    %v5754 = vunpack.c.h.b16 %v1745
    %v5755 = vunpack.c.l.b16 %v1746
    %v5756 = vunpack.c.h.b16 %v1746
    %v5757 = vunpack.c.l.b16 %v1747
    %v5758 = vunpack.c.h.b16 %v1747
    %v5759 = vunpack.c.l.b16 %v1748
    %v5760 = vunpack.c.h.b16 %v1748
    %v5761 = vunpack.c.l.b16 %v1749
    %v5762 = vunpack.c.h.b16 %v1749
    %v5763 = vunpack.c.l.b16 %v1750
    %v5764 = vunpack.c.h.b16 %v1750
    %v5765 = vunpack.c.l.b16 %v1751
    %v5766 = vunpack.c.h.b16 %v1751
    %v5767 = vunpack.c.l.b16 %v1752
    %v5768 = vunpack.c.h.b16 %v1752
    %v5769 = vunpack.c.l.b16 %v1753
    %v5770 = vunpack.c.h.b16 %v1753
    %v5771 = vunpack.c.l.b16 %v1754
    %v5772 = vunpack.c.h.b16 %v1754
    %v5773 = vunpack.c.l.b16 %v1755
    %v5774 = vunpack.c.h.b16 %v1755
    %v5775 = vunpack.c.l.b16 %v1756
    %v5776 = vunpack.c.h.b16 %v1756
    %v5777 = vunpack.c.l.b16 %v1757
    %v5778 = vunpack.c.h.b16 %v1757
    %v5779 = vunpack.c.l.b16 %v1758
    %v5780 = vunpack.c.h.b16 %v1758
    %v5781 = vunpack.c.l.b16 %v1759
    %v5782 = vunpack.c.h.b16 %v1759
    %v5783 = vunpack.c.l.b16 %v1760
    %v5784 = vunpack.c.h.b16 %v1760
    %v5785 = vunpack.c.l.b16 %v1761
    %v5786 = vunpack.c.h.b16 %v1761
    %v5787 = vunpack.c.l.b16 %v1762
    %v5788 = vunpack.c.h.b16 %v1762
    %v5789 = vunpack.c.l.b16 %v1763
    %v5790 = vunpack.c.h.b16 %v1763
    %v5791 = vunpack.c.l.b16 %v1764
    %v5792 = vunpack.c.h.b16 %v1764
    %v5793 = vunpack.c.l.b16 %v1765
    %v5794 = vunpack.c.h.b16 %v1765
    %v5795 = vunpack.c.l.b16 %v1766
    %v5796 = vunpack.c.h.b16 %v1766
    %v5797 = vunpack.c.l.b16 %v1767
    %v5798 = vunpack.c.h.b16 %v1767
    %v5799 = vunpack.c.l.b16 %v1768
    %v5800 = vunpack.c.h.b16 %v1768
    %v5801 = vunpack.c.l.b16 %v1769
    %v5802 = vunpack.c.h.b16 %v1769
    %v5803 = vunpack.c.l.b16 %v1770
    %v5804 = vunpack.c.h.b16 %v1770
    %v5805 = vunpack.c.l.b16 %v1771
    %v5806 = vunpack.c.h.b16 %v1771
    %v5807 = vunpack.c.l.b16 %v1772
    %v5808 = vunpack.c.h.b16 %v1772
    %v5809 = vunpack.c.l.b16 %v1773
    %v5810 = vunpack.c.h.b16 %v1773
    %v5811 = vunpack.c.l.b16 %v1774
    %v5812 = vunpack.c.h.b16 %v1774
    %v5813 = vunpack.c.l.b16 %v1775
    %v5814 = vunpack.c.h.b16 %v1775
    %v5815 = vunpack.c.l.b16 %v1776
    %v5816 = vunpack.c.h.b16 %v1776
    %v5817 = vunpack.c.l.b16 %v1777
    %v5818 = vunpack.c.h.b16 %v1777
    %v5819 = vunpack.c.l.b16 %v1778
    %v5820 = vunpack.c.h.b16 %v1778
    %v5821 = vunpack.c.l.b16 %v1779
    %v5822 = vunpack.c.h.b16 %v1779
    %v5823 = vunpack.c.l.b16 %v1780
    %v5824 = vunpack.c.h.b16 %v1780
    %v5825 = vunpack.c.l.b16 %v1781
    %v5826 = vunpack.c.h.b16 %v1781
    %v5827 = vunpack.c.l.b16 %v1782
    %v5828 = vunpack.c.h.b16 %v1782
    %v5829 = vunpack.c.l.b16 %v1783
    %v5830 = vunpack.c.h.b16 %v1783
    %v5831 = vunpack.c.l.b16 %v1784
    %v5832 = vunpack.c.h.b16 %v1784
    %v5833 = vunpack.c.l.b16 %v1785
    %v5834 = vunpack.c.h.b16 %v1785
    %v5835 = vunpack.c.l.b16 %v1786
    %v5836 = vunpack.c.h.b16 %v1786
    %v5837 = vunpack.c.l.b16 %v1787
    %v5838 = vunpack.c.h.b16 %v1787
    %v5839 = vunpack.c.l.b16 %v1788
    %v5840 = vunpack.c.h.b16 %v1788
    %v5841 = vunpack.c.l.b16 %v1789
    %v5842 = vunpack.c.h.b16 %v1789
    %v5843 = vunpack.c.l.b16 %v1790
    %v5844 = vunpack.c.h.b16 %v1790
    %v5845 = vunpack.c.l.b16 %v1791
    %v5846 = vunpack.c.h.b16 %v1791
    %v5847 = vunpack.c.l.b16 %v1792
    %v5848 = vunpack.c.h.b16 %v1792
    %v5849 = vunpack.c.l.b16 %v1793
    %v5850 = vunpack.c.h.b16 %v1793
    %v5851 = vunpack.c.l.b16 %v1794
    %v5852 = vunpack.c.h.b16 %v1794
    %v5853 = vunpack.c.l.b16 %v1795
    %v5854 = vunpack.c.h.b16 %v1795
    %v5855 = vunpack.c.l.b16 %v1796
    %v5856 = vunpack.c.h.b16 %v1796
    %v5857 = vunpack.c.l.b16 %v1797
    %v5858 = vunpack.c.h.b16 %v1797
    %v5859 = vunpack.c.l.b16 %v1798
    %v5860 = vunpack.c.h.b16 %v1798
    %v5861 = vunpack.c.l.b16 %v1799
    %v5862 = vunpack.c.h.b16 %v1799
    %v5863 = vunpack.c.l.b16 %v1800
    %v5864 = vunpack.c.h.b16 %v1800
    %v5865 = vunpack.c.l.b16 %v1801
    %v5866 = vunpack.c.h.b16 %v1801
    %v5867 = vunpack.c.l.b16 %v1802
    %v5868 = vunpack.c.h.b16 %v1802
    %v5869 = vunpack.c.l.b16 %v1803
    %v5870 = vunpack.c.h.b16 %v1803
    %v5871 = vunpack.c.l.b16 %v1804
    %v5872 = vunpack.c.h.b16 %v1804
    %v5873 = vunpack.c.l.b16 %v1805
    %v5874 = vunpack.c.h.b16 %v1805
    %v5875 = vunpack.c.l.b16 %v1806
    %v5876 = vunpack.c.h.b16 %v1806
    %v5877 = vunpack.c.l.b16 %v1807
    %v5878 = vunpack.c.h.b16 %v1807
    %v5879 = vunpack.c.l.b16 %v1808
    %v5880 = vunpack.c.h.b16 %v1808
    %v5881 = vunpack.c.l.b16 %v1809
    %v5882 = vunpack.c.h.b16 %v1809
    %v5883 = vunpack.c.l.b16 %v1810
    %v5884 = vunpack.c.h.b16 %v1810
    %v5885 = vunpack.c.l.b16 %v1811
    %v5886 = vunpack.c.h.b16 %v1811
    %v5887 = vunpack.c.l.b16 %v1812
    %v5888 = vunpack.c.h.b16 %v1812
    %v5889 = vunpack.c.l.b16 %v1813
    %v5890 = vunpack.c.h.b16 %v1813
    %v5891 = vunpack.c.l.b16 %v1814
    %v5892 = vunpack.c.h.b16 %v1814
    %v5893 = vunpack.c.l.b16 %v1815
    %v5894 = vunpack.c.h.b16 %v1815
    %v5895 = vunpack.c.l.b16 %v1816
    %v5896 = vunpack.c.h.b16 %v1816
    %v5897 = vunpack.c.l.b16 %v1817
    %v5898 = vunpack.c.h.b16 %v1817
    %v5899 = vunpack.c.l.b16 %v1818
    %v5900 = vunpack.c.h.b16 %v1818
    %v5901 = vunpack.c.l.b16 %v1819
    %v5902 = vunpack.c.h.b16 %v1819
    %v5903 = vunpack.c.l.b16 %v1820
    %v5904 = vunpack.c.h.b16 %v1820
    %v5905 = vunpack.c.l.b16 %v1821
    %v5906 = vunpack.c.h.b16 %v1821
    %v5907 = vunpack.c.l.b16 %v1822
    %v5908 = vunpack.c.h.b16 %v1822
    %v5909 = vunpack.c.l.b16 %v1823
    %v5910 = vunpack.c.h.b16 %v1823
    %v5911 = vunpack.c.l.b16 %v1824
    %v5912 = vunpack.c.h.b16 %v1824
    %v5913 = vunpack.c.l.b16 %v1825
    %v5914 = vunpack.c.h.b16 %v1825
    %v5915 = vunpack.c.l.b16 %v1826
    %v5916 = vunpack.c.h.b16 %v1826
    %v5917 = vunpack.c.l.b16 %v1827
    %v5918 = vunpack.c.h.b16 %v1827
    %v5919 = vunpack.c.l.b16 %v1828
    %v5920 = vunpack.c.h.b16 %v1828
    %v5921 = vunpack.c.l.b16 %v1829
    %v5922 = vunpack.c.h.b16 %v1829
    %v5923 = vunpack.c.l.b16 %v1830
    %v5924 = vunpack.c.h.b16 %v1830
    %v5925 = vunpack.c.l.b16 %v1831
    %v5926 = vunpack.c.h.b16 %v1831
    %v5927 = vunpack.c.l.b16 %v1832
    %v5928 = vunpack.c.h.b16 %v1832
    %v5929 = vunpack.c.l.b16 %v1833
    %v5930 = vunpack.c.h.b16 %v1833
    %v5931 = vunpack.c.l.b16 %v1834
    %v5932 = vunpack.c.h.b16 %v1834
    %v5933 = vunpack.c.l.b16 %v1835
    %v5934 = vunpack.c.h.b16 %v1835
    %v5935 = vunpack.c.l.b16 %v1836
    %v5936 = vunpack.c.h.b16 %v1836
    %v5937 = vunpack.c.l.b16 %v1837
    %v5938 = vunpack.c.h.b16 %v1837
    %v5939 = vunpack.c.l.b16 %v1838
    %v5940 = vunpack.c.h.b16 %v1838
    %v5941 = vunpack.c.l.b16 %v1839
    %v5942 = vunpack.c.h.b16 %v1839
    %v5943 = vunpack.c.l.b16 %v1840
    %v5944 = vunpack.c.h.b16 %v1840
    %v5945 = vunpack.c.l.b16 %v1841
    %v5946 = vunpack.c.h.b16 %v1841
    %v5947 = vunpack.c.l.b16 %v1842
    %v5948 = vunpack.c.h.b16 %v1842
    %v5949 = vunpack.c.l.b16 %v1843
    %v5950 = vunpack.c.h.b16 %v1843
    %v5951 = vunpack.c.l.b16 %v1844
    %v5952 = vunpack.c.h.b16 %v1844
    %v5953 = vunpack.c.l.b16 %v1845
    %v5954 = vunpack.c.h.b16 %v1845
    %v5955 = vunpack.c.l.b16 %v1846
    %v5956 = vunpack.c.h.b16 %v1846
    %v5957 = vunpack.c.l.b16 %v1847
    %v5958 = vunpack.c.h.b16 %v1847
    %v5959 = vunpack.c.l.b16 %v1848
    %v5960 = vunpack.c.h.b16 %v1848
    %v5961 = vunpack.c.l.b16 %v1849
    %v5962 = vunpack.c.h.b16 %v1849
    %v5963 = vunpack.c.l.b16 %v1850
    %v5964 = vunpack.c.h.b16 %v1850
    %v5965 = vunpack.c.l.b16 %v1851
    %v5966 = vunpack.c.h.b16 %v1851
    %v5967 = vunpack.c.l.b16 %v1852
    %v5968 = vunpack.c.h.b16 %v1852
    %v5969 = vunpack.c.l.b16 %v1853
    %v5970 = vunpack.c.h.b16 %v1853
    %v5971 = vunpack.c.l.b16 %v1854
    %v5972 = vunpack.c.h.b16 %v1854
    %v5973 = vunpack.c.l.b16 %v1855
    %v5974 = vunpack.c.h.b16 %v1855
    %v5975 = vunpack.c.l.b16 %v1856
    %v5976 = vunpack.c.h.b16 %v1856
    %v5977 = vunpack.c.l.b16 %v1857
    %v5978 = vunpack.c.h.b16 %v1857
    %v5979 = vunpack.c.l.b16 %v1858
    %v5980 = vunpack.c.h.b16 %v1858
    %v5981 = vunpack.c.l.b16 %v1859
    %v5982 = vunpack.c.h.b16 %v1859
    %v5983 = vunpack.c.l.b16 %v1860
    %v5984 = vunpack.c.h.b16 %v1860
    %v5985 = vunpack.c.l.b16 %v1861
    %v5986 = vunpack.c.h.b16 %v1861
    %v5987 = vunpack.c.l.b16 %v1862
    %v5988 = vunpack.c.h.b16 %v1862
    %v5989 = vunpack.c.l.b16 %v1863
    %v5990 = vunpack.c.h.b16 %v1863
    %v5991 = vunpack.c.l.b16 %v1864
    %v5992 = vunpack.c.h.b16 %v1864
    %v5993 = vunpack.c.l.b16 %v1865
    %v5994 = vunpack.c.h.b16 %v1865
    %v5995 = vunpack.c.l.b16 %v1866
    %v5996 = vunpack.c.h.b16 %v1866
    %v5997 = vunpack.c.l.b16 %v1867
    %v5998 = vunpack.c.h.b16 %v1867
    %v5999 = vunpack.c.l.b16 %v1868
    %v6000 = vunpack.c.h.b16 %v1868
    %v6001 = vunpack.c.l.b16 %v1869
    %v6002 = vunpack.c.h.b16 %v1869
    %v6003 = vunpack.c.l.b16 %v1870
    %v6004 = vunpack.c.h.b16 %v1870
    %v6005 = vunpack.c.l.b16 %v1871
    %v6006 = vunpack.c.h.b16 %v1871
    %v6007 = vunpack.c.l.b16 %v1872
    %v6008 = vunpack.c.h.b16 %v1872
    %v6009 = vunpack.c.l.b16 %v1873
    %v6010 = vunpack.c.h.b16 %v1873
    %v6011 = vunpack.c.l.b16 %v1874
    %v6012 = vunpack.c.h.b16 %v1874
    %v6013 = vunpack.c.l.b16 %v1875
    %v6014 = vunpack.c.h.b16 %v1875
    %v6015 = vunpack.c.l.b16 %v1876
    %v6016 = vunpack.c.h.b16 %v1876
    %v6017 = vunpack.c.l.b16 %v1877
    %v6018 = vunpack.c.h.b16 %v1877
    %v6019 = vunpack.c.l.b16 %v1878
    %v6020 = vunpack.c.h.b16 %v1878
    %v6021 = vunpack.c.l.b16 %v1879
    %v6022 = vunpack.c.h.b16 %v1879
    %v6023 = vunpack.c.l.b16 %v1880
    %v6024 = vunpack.c.h.b16 %v1880
    %v6025 = vunpack.c.l.b16 %v1881
    %v6026 = vunpack.c.h.b16 %v1881
    %v6027 = vunpack.c.l.b16 %v1882
    %v6028 = vunpack.c.h.b16 %v1882
    %v6029 = vunpack.c.l.b16 %v1883
    %v6030 = vunpack.c.h.b16 %v1883
    %v6031 = vunpack.c.l.b16 %v1884
    %v6032 = vunpack.c.h.b16 %v1884
    %v6033 = vunpack.c.l.b16 %v1885
    %v6034 = vunpack.c.h.b16 %v1885
    %v6035 = vunpack.c.l.b16 %v1886
    %v6036 = vunpack.c.h.b16 %v1886
    %v6037 = vunpack.c.l.b16 %v1887
    %v6038 = vunpack.c.h.b16 %v1887
    %v6039 = vunpack.c.l.b16 %v1888
    %v6040 = vunpack.c.h.b16 %v1888
    %v6041 = vunpack.c.l.b16 %v1889
    %v6042 = vunpack.c.h.b16 %v1889
    %v6043 = vunpack.c.l.b16 %v1890
    %v6044 = vunpack.c.h.b16 %v1890
    %v6045 = vunpack.c.l.b16 %v1891
    %v6046 = vunpack.c.h.b16 %v1891
    %v6047 = vunpack.c.l.b16 %v1892
    %v6048 = vunpack.c.h.b16 %v1892
    %v6049 = vunpack.c.l.b16 %v1893
    %v6050 = vunpack.c.h.b16 %v1893
    %v6051 = vunpack.c.l.b16 %v1894
    %v6052 = vunpack.c.h.b16 %v1894
    %v6053 = vunpack.c.l.b16 %v1895
    %v6054 = vunpack.c.h.b16 %v1895
    %v6055 = vunpack.c.l.b16 %v1896
    %v6056 = vunpack.c.h.b16 %v1896
    %v6057 = vunpack.c.l.b16 %v1897
    %v6058 = vunpack.c.h.b16 %v1897
    %v6059 = vunpack.c.l.b16 %v1898
    %v6060 = vunpack.c.h.b16 %v1898
    %v6061 = vunpack.c.l.b16 %v1899
    %v6062 = vunpack.c.h.b16 %v1899
    %v6063 = vunpack.c.l.b16 %v1900
    %v6064 = vunpack.c.h.b16 %v1900
    %v6065 = vunpack.c.l.b16 %v1901
    %v6066 = vunpack.c.h.b16 %v1901
    %v6067 = vunpack.c.l.b16 %v1902
    %v6068 = vunpack.c.h.b16 %v1902
    %v6069 = vunpack.c.l.b16 %v1903
    %v6070 = vunpack.c.h.b16 %v1903
    %v6071 = vunpack.c.l.b16 %v1904
    %v6072 = vunpack.c.h.b16 %v1904
    %v6073 = vunpack.c.l.b16 %v1905
    %v6074 = vunpack.c.h.b16 %v1905
    %v6075 = vunpack.c.l.b16 %v1906
    %v6076 = vunpack.c.h.b16 %v1906
    %v6077 = vunpack.c.l.b16 %v1907
    %v6078 = vunpack.c.h.b16 %v1907
    %v6079 = vunpack.c.l.b16 %v1908
    %v6080 = vunpack.c.h.b16 %v1908
    %v6081 = vunpack.c.l.b16 %v1909
    %v6082 = vunpack.c.h.b16 %v1909
    %v6083 = vunpack.c.l.b16 %v1910
    %v6084 = vunpack.c.h.b16 %v1910
    %v6085 = vunpack.c.l.b16 %v1911
    %v6086 = vunpack.c.h.b16 %v1911
    %v6087 = vunpack.c.l.b16 %v1912
    %v6088 = vunpack.c.h.b16 %v1912
    %v6089 = vunpack.c.l.b16 %v1913
    %v6090 = vunpack.c.h.b16 %v1913
    %v6091 = vunpack.c.l.b16 %v1914
    %v6092 = vunpack.c.h.b16 %v1914
    %v6093 = vunpack.c.l.b16 %v1915
    %v6094 = vunpack.c.h.b16 %v1915
    %v6095 = vunpack.c.l.b16 %v1916
    %v6096 = vunpack.c.h.b16 %v1916
    %v6097 = vunpack.c.l.b16 %v1917
    %v6098 = vunpack.c.h.b16 %v1917
    %v6099 = vunpack.c.l.b16 %v1918
    %v6100 = vunpack.c.h.b16 %v1918
    %v6101 = vunpack.c.l.b16 %v1919
    %v6102 = vunpack.c.h.b16 %v1919
    %v6103 = vunpack.c.l.b16 %v1920
    %v6104 = vunpack.c.h.b16 %v1920
    %v6105 = vunpack.c.l.b16 %v1921
    %v6106 = vunpack.c.h.b16 %v1921
    %v6107 = vunpack.c.l.b16 %v1922
    %v6108 = vunpack.c.h.b16 %v1922
    %v6109 = vunpack.c.l.b16 %v1923
    %v6110 = vunpack.c.h.b16 %v1923
    %v6111 = vunpack.c.l.b16 %v1924
    %v6112 = vunpack.c.h.b16 %v1924
    %v6113 = vunpack.c.l.b16 %v1925
    %v6114 = vunpack.c.h.b16 %v1925
    %v6115 = vunpack.c.l.b16 %v1926
    %v6116 = vunpack.c.h.b16 %v1926
    %v6117 = vunpack.c.l.b16 %v1927
    %v6118 = vunpack.c.h.b16 %v1927
    %v6119 = vunpack.c.l.b16 %v1928
    %v6120 = vunpack.c.h.b16 %v1928
    %v6121 = vunpack.c.l.b16 %v1929
    %v6122 = vunpack.c.h.b16 %v1929
    %v6123 = vunpack.c.l.b16 %v1930
    %v6124 = vunpack.c.h.b16 %v1930
    %v6125 = vunpack.c.l.b16 %v1931
    %v6126 = vunpack.c.h.b16 %v1931
    %v6127 = vunpack.c.l.b16 %v1932
    %v6128 = vunpack.c.h.b16 %v1932
    %v6129 = vunpack.c.l.b16 %v1933
    %v6130 = vunpack.c.h.b16 %v1933
    %v6131 = vunpack.c.l.b16 %v1934
    %v6132 = vunpack.c.h.b16 %v1934
    %v6133 = vunpack.c.l.b16 %v1935
    %v6134 = vunpack.c.h.b16 %v1935
    %v6135 = vunpack.c.l.b16 %v1936
    %v6136 = vunpack.c.h.b16 %v1936
    %v6137 = vunpack.c.l.b16 %v1937
    %v6138 = vunpack.c.h.b16 %v1937
    %v6139 = vunpack.c.l.b16 %v1938
    %v6140 = vunpack.c.h.b16 %v1938
    %v6141 = vunpack.c.l.b16 %v1939
    %v6142 = vunpack.c.h.b16 %v1939
    %v6143 = vunpack.c.l.b16 %v1940
    %v6144 = vunpack.c.h.b16 %v1940
    %v6145 = vunpack.c.l.b16 %v1941
    %v6146 = vunpack.c.h.b16 %v1941
    %v6147 = vunpack.c.l.b16 %v1942
    %v6148 = vunpack.c.h.b16 %v1942
    %v6149 = vunpack.c.l.b16 %v1943
    %v6150 = vunpack.c.h.b16 %v1943
    %v6151 = vunpack.c.l.b16 %v1944
    %v6152 = vunpack.c.h.b16 %v1944
    %v6153 = vunpack.c.l.b16 %v1945
    %v6154 = vunpack.c.h.b16 %v1945
    %v6155 = vunpack.c.l.b16 %v1946
    %v6156 = vunpack.c.h.b16 %v1946
    %v6157 = vunpack.c.l.b16 %v1947
    %v6158 = vunpack.c.h.b16 %v1947
    %v6159 = vunpack.c.l.b16 %v1948
    %v6160 = vunpack.c.h.b16 %v1948
    %v6161 = vunpack.c.l.b16 %v1949
    %v6162 = vunpack.c.h.b16 %v1949
    %v6163 = vunpack.c.l.b16 %v1950
    %v6164 = vunpack.c.h.b16 %v1950
    %v6165 = vunpack.c.l.b16 %v1951
    %v6166 = vunpack.c.h.b16 %v1951
    %v6167 = vunpack.c.l.b16 %v1952
    %v6168 = vunpack.c.h.b16 %v1952
    %v6169 = vunpack.c.l.b16 %v1953
    %v6170 = vunpack.c.h.b16 %v1953
    %v6171 = vunpack.c.l.b16 %v1954
    %v6172 = vunpack.c.h.b16 %v1954
    %v6173 = vunpack.c.l.b16 %v1955
    %v6174 = vunpack.c.h.b16 %v1955
    %v6175 = vunpack.c.l.b16 %v1956
    %v6176 = vunpack.c.h.b16 %v1956
    %v6177 = vunpack.c.l.b16 %v1957
    %v6178 = vunpack.c.h.b16 %v1957
    %v6179 = vunpack.c.l.b16 %v1958
    %v6180 = vunpack.c.h.b16 %v1958
    %v6181 = vunpack.c.l.b16 %v1959
    %v6182 = vunpack.c.h.b16 %v1959
    %v6183 = vunpack.c.l.b16 %v1960
    %v6184 = vunpack.c.h.b16 %v1960
    %v6185 = vunpack.c.l.b16 %v1961
    %v6186 = vunpack.c.h.b16 %v1961
    %v6187 = vunpack.c.l.b16 %v1962
    %v6188 = vunpack.c.h.b16 %v1962
    %v6189 = vunpack.c.l.b16 %v1963
    %v6190 = vunpack.c.h.b16 %v1963
    %v6191 = vunpack.c.l.b16 %v1964
    %v6192 = vunpack.c.h.b16 %v1964
    %v6193 = vunpack.c.l.b16 %v1965
    %v6194 = vunpack.c.h.b16 %v1965
    %v6195 = vunpack.c.l.b16 %v1966
    %v6196 = vunpack.c.h.b16 %v1966
    %v6197 = vunpack.c.l.b16 %v1967
    %v6198 = vunpack.c.h.b16 %v1967
    %v6199 = vunpack.c.l.b16 %v1968
    %v6200 = vunpack.c.h.b16 %v1968
    %v6201 = vunpack.c.l.b16 %v1969
    %v6202 = vunpack.c.h.b16 %v1969
    %v6203 = vunpack.c.l.b16 %v1970
    %v6204 = vunpack.c.h.b16 %v1970
    %v6205 = vunpack.c.l.b16 %v1971
    %v6206 = vunpack.c.h.b16 %v1971
    %v6207 = vunpack.c.l.b16 %v1972
    %v6208 = vunpack.c.h.b16 %v1972
    %v6209 = vunpack.c.l.b16 %v1973
    %v6210 = vunpack.c.h.b16 %v1973
    %v6211 = vunpack.c.l.b16 %v1974
    %v6212 = vunpack.c.h.b16 %v1974
    %v6213 = vunpack.c.l.b16 %v1975
    %v6214 = vunpack.c.h.b16 %v1975
    %v6215 = vunpack.c.l.b16 %v1976
    %v6216 = vunpack.c.h.b16 %v1976
    %v6217 = vunpack.c.l.b16 %v1977
    %v6218 = vunpack.c.h.b16 %v1977
    %v6219 = vunpack.c.l.b16 %v1978
    %v6220 = vunpack.c.h.b16 %v1978
    %v6221 = vunpack.c.l.b16 %v1979
    %v6222 = vunpack.c.h.b16 %v1979
    %v6223 = vunpack.c.l.b16 %v1980
    %v6224 = vunpack.c.h.b16 %v1980
    %v6225 = vunpack.c.l.b16 %v1981
    %v6226 = vunpack.c.h.b16 %v1981
    %v6227 = vunpack.c.l.b16 %v1982
    %v6228 = vunpack.c.h.b16 %v1982
    %v6229 = vunpack.c.l.b16 %v1983
    %v6230 = vunpack.c.h.b16 %v1983
    %v6231 = vunpack.c.l.b16 %v1984
    %v6232 = vunpack.c.h.b16 %v1984
    %v6233 = vunpack.c.l.b16 %v1985
    %v6234 = vunpack.c.h.b16 %v1985
    %v6235 = vunpack.c.l.b16 %v1986
    %v6236 = vunpack.c.h.b16 %v1986
    %v6237 = vunpack.c.l.b16 %v1987
    %v6238 = vunpack.c.h.b16 %v1987
    %v6239 = vunpack.c.l.b16 %v1988
    %v6240 = vunpack.c.h.b16 %v1988
    %v6241 = vunpack.c.l.b16 %v1989
    %v6242 = vunpack.c.h.b16 %v1989
    %v6243 = vunpack.c.l.b16 %v1990
    %v6244 = vunpack.c.h.b16 %v1990
    %v6245 = vunpack.c.l.b16 %v1991
    %v6246 = vunpack.c.h.b16 %v1991
    %v6247 = vunpack.c.l.b16 %v1992
    %v6248 = vunpack.c.h.b16 %v1992
    %v6249 = vunpack.c.l.b16 %v1993
    %v6250 = vunpack.c.h.b16 %v1993
    %v6251 = vunpack.c.l.b16 %v1994
    %v6252 = vunpack.c.h.b16 %v1994
    %v6253 = vunpack.c.l.b16 %v1995
    %v6254 = vunpack.c.h.b16 %v1995
    %v6255 = vunpack.c.l.b16 %v1996
    %v6256 = vunpack.c.h.b16 %v1996
    %v6257 = vunpack.c.l.b16 %v1997
    %v6258 = vunpack.c.h.b16 %v1997
    %v6259 = vunpack.c.l.b16 %v1998
    %v6260 = vunpack.c.h.b16 %v1998
    %v6261 = vunpack.c.l.b16 %v1999
    %v6262 = vunpack.c.h.b16 %v1999
    %v6263 = vunpack.c.l.b16 %v2000
    %v6264 = vunpack.c.h.b16 %v2000
    %v6265 = vunpack.c.l.b16 %v2001
    %v6266 = vunpack.c.h.b16 %v2001
    %v6267 = vunpack.c.l.b16 %v2002
    %v6268 = vunpack.c.h.b16 %v2002
    %v6269 = vunpack.c.l.b16 %v2003
    %v6270 = vunpack.c.h.b16 %v2003
    %v6271 = vunpack.c.l.b16 %v2004
    %v6272 = vunpack.c.h.b16 %v2004
    %v6273 = vunpack.c.l.b16 %v2005
    %v6274 = vunpack.c.h.b16 %v2005
    %v6275 = vunpack.c.l.b16 %v2006
    %v6276 = vunpack.c.h.b16 %v2006
    %v6277 = vunpack.c.l.b16 %v2007
    %v6278 = vunpack.c.h.b16 %v2007
    %v6279 = vunpack.c.l.b16 %v2008
    %v6280 = vunpack.c.h.b16 %v2008
    %v6281 = vunpack.c.l.b16 %v2009
    %v6282 = vunpack.c.h.b16 %v2009
    %v6283 = vunpack.c.l.b16 %v2010
    %v6284 = vunpack.c.h.b16 %v2010
    %v6285 = vunpack.c.l.b16 %v2011
    %v6286 = vunpack.c.h.b16 %v2011
    %v6287 = vunpack.c.l.b16 %v2012
    %v6288 = vunpack.c.h.b16 %v2012
    %v6289 = vunpack.c.l.b16 %v2013
    %v6290 = vunpack.c.h.b16 %v2013
    %v6291 = vunpack.c.l.b16 %v2014
    %v6292 = vunpack.c.h.b16 %v2014
    %v6293 = vunpack.c.l.b16 %v2015
    %v6294 = vunpack.c.h.b16 %v2015
    %v6295 = vunpack.c.l.b16 %v2016
    %v6296 = vunpack.c.h.b16 %v2016
    %v6297 = vunpack.c.l.b16 %v2017
    %v6298 = vunpack.c.h.b16 %v2017
    %v6299 = vunpack.c.l.b16 %v2018
    %v6300 = vunpack.c.h.b16 %v2018
    %v6301 = vunpack.c.l.b16 %v2019
    %v6302 = vunpack.c.h.b16 %v2019
    %v6303 = vunpack.c.l.b16 %v2020
    %v6304 = vunpack.c.h.b16 %v2020
    %v6305 = vunpack.c.l.b16 %v2021
    %v6306 = vunpack.c.h.b16 %v2021
    %v6307 = vunpack.c.l.b16 %v2022
    %v6308 = vunpack.c.h.b16 %v2022
    %v6309 = vunpack.c.l.b16 %v2023
    %v6310 = vunpack.c.h.b16 %v2023
    %v6311 = vunpack.c.l.b16 %v2024
    %v6312 = vunpack.c.h.b16 %v2024
    %v6313 = vunpack.c.l.b16 %v2025
    %v6314 = vunpack.c.h.b16 %v2025
    %v6315 = vunpack.c.l.b16 %v2026
    %v6316 = vunpack.c.h.b16 %v2026
    %v6317 = vunpack.c.l.b16 %v2027
    %v6318 = vunpack.c.h.b16 %v2027
    %v6319 = vunpack.c.l.b16 %v2028
    %v6320 = vunpack.c.h.b16 %v2028
    %v6321 = vunpack.c.l.b16 %v2029
    %v6322 = vunpack.c.h.b16 %v2029
    %v6323 = vunpack.c.l.b16 %v2030
    %v6324 = vunpack.c.h.b16 %v2030
    %v6325 = vunpack.c.l.b16 %v2031
    %v6326 = vunpack.c.h.b16 %v2031
    %v6327 = vunpack.c.l.b16 %v2032
    %v6328 = vunpack.c.h.b16 %v2032
    %v6329 = vunpack.c.l.b16 %v2033
    %v6330 = vunpack.c.h.b16 %v2033
    %v6331 = vunpack.c.l.b16 %v2034
    %v6332 = vunpack.c.h.b16 %v2034
    %v6333 = vunpack.c.l.b16 %v2035
    %v6334 = vunpack.c.h.b16 %v2035
    %v6335 = vunpack.c.l.b16 %v2036
    %v6336 = vunpack.c.h.b16 %v2036
    %v6337 = vunpack.c.l.b16 %v2037
    %v6338 = vunpack.c.h.b16 %v2037
    %v6339 = vunpack.c.l.b16 %v2038
    %v6340 = vunpack.c.h.b16 %v2038
    %v6341 = vunpack.c.l.b16 %v2039
    %v6342 = vunpack.c.h.b16 %v2039
    %v6343 = vunpack.c.l.b16 %v2040
    %v6344 = vunpack.c.h.b16 %v2040
    %v6345 = vunpack.c.l.b16 %v2041
    %v6346 = vunpack.c.h.b16 %v2041
    %v6347 = vunpack.c.l.b16 %v2042
    %v6348 = vunpack.c.h.b16 %v2042
    %v6349 = vunpack.c.l.b16 %v2043
    %v6350 = vunpack.c.h.b16 %v2043
    %v6351 = vunpack.c.l.b16 %v2044
    %v6352 = vunpack.c.h.b16 %v2044
    %v6353 = vunpack.c.l.b16 %v2045
    %v6354 = vunpack.c.h.b16 %v2045
    %v6355 = vunpack.c.l.b16 %v2046
    %v6356 = vunpack.c.h.b16 %v2046
    %v6357 = vunpack.c.l.b16 %v2047
    %v6358 = vunpack.c.h.b16 %v2047
    %v6359 = vunpack.c.l.b16 %v2048
    %v6360 = vunpack.c.h.b16 %v2048
    %v6361 = vunpack.c.l.b16 %v2049
    %v6362 = vunpack.c.h.b16 %v2049
    %v6363 = vunpack.c.l.b16 %v2050
    %v6364 = vunpack.c.h.b16 %v2050
    %v6365 = vunpack.c.l.b16 %v2051
    %v6366 = vunpack.c.h.b16 %v2051
    %v6367 = vunpack.c.l.b16 %v2052
    %v6368 = vunpack.c.h.b16 %v2052
    %v6369 = vunpack.c.l.b16 %v2053
    %v6370 = vunpack.c.h.b16 %v2053
    %v6371 = vunpack.c.l.b16 %v2054
    %v6372 = vunpack.c.h.b16 %v2054
    %v6373 = vunpack.c.l.b16 %v2055
    %v6374 = vunpack.c.h.b16 %v2055
    %v6375 = vunpack.c.l.b16 %v2056
    %v6376 = vunpack.c.h.b16 %v2056
    %v6377 = vunpack.c.l.b16 %v2057
    %v6378 = vunpack.c.h.b16 %v2057
    %v6379 = vunpack.c.l.b16 %v2058
    %v6380 = vunpack.c.h.b16 %v2058
    %v6381 = vunpack.c.l.b16 %v2059
    %v6382 = vunpack.c.h.b16 %v2059
    %v6383 = vunpack.c.l.b16 %v2060
    %v6384 = vunpack.c.h.b16 %v2060
    %v6385 = vunpack.c.l.b16 %v2061
    %v6386 = vunpack.c.h.b16 %v2061
    %v6387 = vunpack.c.l.b16 %v2062
    %v6388 = vunpack.c.h.b16 %v2062
    %v6389 = vunpack.c.l.b16 %v2063
    %v6390 = vunpack.c.h.b16 %v2063
    %v6391 = vunpack.c.l.b16 %v2064
    %v6392 = vunpack.c.h.b16 %v2064
    %v6393 = vunpack.c.l.b16 %v2065
    %v6394 = vunpack.c.h.b16 %v2065
    %v6395 = vunpack.c.l.b16 %v2066
    %v6396 = vunpack.c.h.b16 %v2066
    %v6397 = vunpack.c.l.b16 %v2067
    %v6398 = vunpack.c.h.b16 %v2067
    %v6399 = vunpack.c.l.b16 %v2068
    %v6400 = vunpack.c.h.b16 %v2068
    %v6401 = vunpack.c.l.b16 %v2069
    %v6402 = vunpack.c.h.b16 %v2069
    %v6403 = vunpack.c.l.b16 %v2070
    %v6404 = vunpack.c.h.b16 %v2070
    %v6405 = vunpack.c.l.b16 %v2071
    %v6406 = vunpack.c.h.b16 %v2071
    %v6407 = vunpack.c.l.b16 %v2072
    %v6408 = vunpack.c.h.b16 %v2072
    %v6409 = vunpack.c.l.b16 %v2073
    %v6410 = vunpack.c.h.b16 %v2073
    %v6411 = vunpack.c.l.b16 %v2074
    %v6412 = vunpack.c.h.b16 %v2074
    %v6413 = vunpack.c.l.b16 %v2075
    %v6414 = vunpack.c.h.b16 %v2075
    %v6415 = vunpack.c.l.b16 %v2076
    %v6416 = vunpack.c.h.b16 %v2076
    %v6417 = vunpack.c.l.b16 %v2077
    %v6418 = vunpack.c.h.b16 %v2077
    %v6419 = vunpack.c.l.b16 %v2078
    %v6420 = vunpack.c.h.b16 %v2078
    %v6421 = vunpack.c.l.b16 %v2079
    %v6422 = vunpack.c.h.b16 %v2079
    %v6423 = vunpack.c.l.b16 %v2080
    %v6424 = vunpack.c.h.b16 %v2080
    %v6425 = vunpack.c.l.b16 %v2081
    %v6426 = vunpack.c.h.b16 %v2081
    %v6427 = vunpack.c.l.b16 %v2082
    %v6428 = vunpack.c.h.b16 %v2082
    %v6429 = vunpack.c.l.b16 %v2083
    %v6430 = vunpack.c.h.b16 %v2083
    %v6431 = vunpack.c.l.b16 %v2084
    %v6432 = vunpack.c.h.b16 %v2084
    %v6433 = vunpack.c.l.b16 %v2085
    %v6434 = vunpack.c.h.b16 %v2085
    %v6435 = vunpack.c.l.b16 %v2086
    %v6436 = vunpack.c.h.b16 %v2086
    %v6437 = vunpack.c.l.b16 %v2087
    %v6438 = vunpack.c.h.b16 %v2087
    %v6439 = vunpack.c.l.b16 %v2088
    %v6440 = vunpack.c.h.b16 %v2088
    %v6441 = vunpack.c.l.b16 %v2089
    %v6442 = vunpack.c.h.b16 %v2089
    %v6443 = vunpack.c.l.b16 %v2090
    %v6444 = vunpack.c.h.b16 %v2090
    %v6445 = vunpack.c.l.b16 %v2091
    %v6446 = vunpack.c.h.b16 %v2091
    %v6447 = vunpack.c.l.b16 %v2092
    %v6448 = vunpack.c.h.b16 %v2092
    %v6449 = vunpack.c.l.b16 %v2093
    %v6450 = vunpack.c.h.b16 %v2093
    %v6451 = vunpack.c.l.b16 %v2094
    %v6452 = vunpack.c.h.b16 %v2094
    %v6453 = vunpack.c.l.b16 %v2095
    %v6454 = vunpack.c.h.b16 %v2095
    %v6455 = vunpack.c.l.b16 %v2096
    %v6456 = vunpack.c.h.b16 %v2096
    %v6457 = vunpack.c.l.b16 %v2097
    %v6458 = vunpack.c.h.b16 %v2097
    %v6459 = vunpack.c.l.b16 %v2098
    %v6460 = vunpack.c.h.b16 %v2098
    %v6461 = vunpack.c.l.b16 %v2099
    %v6462 = vunpack.c.h.b16 %v2099
    %v6463 = vunpack.c.l.b16 %v2100
    %v6464 = vunpack.c.h.b16 %v2100
    %v6465 = vunpack.c.l.b16 %v2101
    %v6466 = vunpack.c.h.b16 %v2101
    %v6467 = vunpack.c.l.b16 %v2102
    %v6468 = vunpack.c.h.b16 %v2102
    %v6469 = vunpack.c.l.b16 %v2103
    %v6470 = vunpack.c.h.b16 %v2103
    %v6471 = vunpack.c.l.b16 %v2104
    %v6472 = vunpack.c.h.b16 %v2104
    %v6473 = vunpack.c.l.b16 %v2105
    %v6474 = vunpack.c.h.b16 %v2105
    %v6475 = vunpack.c.l.b16 %v2106
    %v6476 = vunpack.c.h.b16 %v2106
    %v6477 = vunpack.c.l.b16 %v2107
    %v6478 = vunpack.c.h.b16 %v2107
    %v6479 = vunpack.c.l.b16 %v2108
    %v6480 = vunpack.c.h.b16 %v2108
    %v6481 = vunpack.c.l.b16 %v2109
    %v6482 = vunpack.c.h.b16 %v2109
    %v6483 = vunpack.c.l.b16 %v2110
    %v6484 = vunpack.c.h.b16 %v2110
    %v6485 = vunpack.c.l.b16 %v2111
    %v6486 = vunpack.c.h.b16 %v2111
    %v6487 = vunpack.c.l.b16 %v2112
    %v6488 = vunpack.c.h.b16 %v2112
    %v6489 = vunpack.c.l.b16 %v2113
    %v6490 = vunpack.c.h.b16 %v2113
    %v6491 = vunpack.c.l.b16 %v2114
    %v6492 = vunpack.c.h.b16 %v2114
    %v6493 = vunpack.c.l.b16 %v2115
    %v6494 = vunpack.c.h.b16 %v2115
    %v6495 = vunpack.c.l.b16 %v2116
    %v6496 = vunpack.c.h.b16 %v2116
    %v6497 = vunpack.c.l.b16 %v2117
    %v6498 = vunpack.c.h.b16 %v2117
    %v6499 = vunpack.c.l.b16 %v2118
    %v6500 = vunpack.c.h.b16 %v2118
    %v6501 = vunpack.c.l.b16 %v2119
    %v6502 = vunpack.c.h.b16 %v2119
    %v6503 = vunpack.c.l.b16 %v2120
    %v6504 = vunpack.c.h.b16 %v2120
    %v6505 = vunpack.c.l.b16 %v2121
    %v6506 = vunpack.c.h.b16 %v2121
    %v6507 = vunpack.c.l.b16 %v2122
    %v6508 = vunpack.c.h.b16 %v2122
    %v6509 = vunpack.c.l.b16 %v2123
    %v6510 = vunpack.c.h.b16 %v2123
    %v6511 = vunpack.c.l.b16 %v2124
    %v6512 = vunpack.c.h.b16 %v2124
    %v6513 = vunpack.c.l.b16 %v2125
    %v6514 = vunpack.c.h.b16 %v2125
    %v6515 = vunpack.c.l.b16 %v2126
    %v6516 = vunpack.c.h.b16 %v2126
    %v6517 = vunpack.c.l.b16 %v2127
    %v6518 = vunpack.c.h.b16 %v2127
    %v6519 = vunpack.c.l.b16 %v2128
    %v6520 = vunpack.c.h.b16 %v2128
    %v6521 = vunpack.c.l.b16 %v2129
    %v6522 = vunpack.c.h.b16 %v2129
    %v6523 = vunpack.c.l.b16 %v2130
    %v6524 = vunpack.c.h.b16 %v2130
    %v6525 = vunpack.c.l.b16 %v2131
    %v6526 = vunpack.c.h.b16 %v2131
    %v6527 = vunpack.c.l.b16 %v2132
    %v6528 = vunpack.c.h.b16 %v2132
    %v6529 = vunpack.c.l.b16 %v2133
    %v6530 = vunpack.c.h.b16 %v2133
    %v6531 = vunpack.c.l.b16 %v2134
    %v6532 = vunpack.c.h.b16 %v2134
    %v6533 = vunpack.c.l.b16 %v2135
    %v6534 = vunpack.c.h.b16 %v2135
    %v6535 = vunpack.c.l.b16 %v2136
    %v6536 = vunpack.c.h.b16 %v2136
    %v6537 = vunpack.c.l.b16 %v2137
    %v6538 = vunpack.c.h.b16 %v2137
    %v6539 = vunpack.c.l.b16 %v2138
    %v6540 = vunpack.c.h.b16 %v2138
    %v6541 = vunpack.c.l.b16 %v2139
    %v6542 = vunpack.c.h.b16 %v2139
    %v6543 = vunpack.c.l.b16 %v2140
    %v6544 = vunpack.c.h.b16 %v2140
    %v6545 = vunpack.c.l.b16 %v2141
    %v6546 = vunpack.c.h.b16 %v2141
    %v6547 = vunpack.c.l.b16 %v2142
    %v6548 = vunpack.c.h.b16 %v2142
    %v6549 = vunpack.c.l.b16 %v2143
    %v6550 = vunpack.c.h.b16 %v2143
    %v6551 = vunpack.c.l.b16 %v2144
    %v6552 = vunpack.c.h.b16 %v2144
    %v6553 = vunpack.c.l.b16 %v2145
    %v6554 = vunpack.c.h.b16 %v2145
    %v6555 = vunpack.c.l.b16 %v2146
    %v6556 = vunpack.c.h.b16 %v2146
    %v6557 = vunpack.c.l.b16 %v2147
    %v6558 = vunpack.c.h.b16 %v2147
    %v6559 = vunpack.c.l.b16 %v2148
    %v6560 = vunpack.c.h.b16 %v2148
    %v6561 = vunpack.c.l.b16 %v2149
    %v6562 = vunpack.c.h.b16 %v2149
    %v6563 = vunpack.c.l.b16 %v2150
    %v6564 = vunpack.c.h.b16 %v2150
    %v6565 = vunpack.c.l.b16 %v2151
    %v6566 = vunpack.c.h.b16 %v2151
    %v6567 = vunpack.c.l.b16 %v2152
    %v6568 = vunpack.c.h.b16 %v2152
    %v6569 = vunpack.c.l.b16 %v2153
    %v6570 = vunpack.c.h.b16 %v2153
    %v6571 = vunpack.c.l.b16 %v2154
    %v6572 = vunpack.c.h.b16 %v2154
    %v6573 = vunpack.c.l.b16 %v2155
    %v6574 = vunpack.c.h.b16 %v2155
    %v6575 = vunpack.c.l.b16 %v2156
    %v6576 = vunpack.c.h.b16 %v2156
    %v6577 = vunpack.c.l.b16 %v2157
    %v6578 = vunpack.c.h.b16 %v2157
    %v6579 = vunpack.c.l.b16 %v2158
    %v6580 = vunpack.c.h.b16 %v2158
    %v6581 = vunpack.c.l.b16 %v2159
    %v6582 = vunpack.c.h.b16 %v2159
    %v6583 = vunpack.c.l.b16 %v2160
    %v6584 = vunpack.c.h.b16 %v2160
    %v6585 = vunpack.c.l.b16 %v2161
    %v6586 = vunpack.c.h.b16 %v2161
    %v6587 = vunpack.c.l.b16 %v2162
    %v6588 = vunpack.c.h.b16 %v2162
    %v6589 = vunpack.c.l.b16 %v2163
    %v6590 = vunpack.c.h.b16 %v2163
    %v6591 = vunpack.c.l.b16 %v2164
    %v6592 = vunpack.c.h.b16 %v2164
    %v6593 = vunpack.c.l.b16 %v2165
    %v6594 = vunpack.c.h.b16 %v2165
    %v6595 = vunpack.c.l.b16 %v2166
    %v6596 = vunpack.c.h.b16 %v2166
    %v6597 = vunpack.c.l.b16 %v2167
    %v6598 = vunpack.c.h.b16 %v2167
    %v6599 = vunpack.c.l.b16 %v2168
    %v6600 = vunpack.c.h.b16 %v2168
    %v6601 = vunpack.c.l.b16 %v2169
    %v6602 = vunpack.c.h.b16 %v2169
    %v6603 = vunpack.c.l.b16 %v2170
    %v6604 = vunpack.c.h.b16 %v2170
    %v6605 = vunpack.c.l.b16 %v2171
    %v6606 = vunpack.c.h.b16 %v2171
    %v6607 = vunpack.c.l.b16 %v2172
    %v6608 = vunpack.c.h.b16 %v2172
    %v6609 = vunpack.c.l.b16 %v2173
    %v6610 = vunpack.c.h.b16 %v2173
    %v6611 = vunpack.c.l.b16 %v2174
    %v6612 = vunpack.c.h.b16 %v2174
    %v6613 = vunpack.c.l.b16 %v2175
    %v6614 = vunpack.c.h.b16 %v2175
    %v6615 = vunpack.c.l.b16 %v2176
    %v6616 = vunpack.c.h.b16 %v2176
    %v6617 = vunpack.c.l.b16 %v2177
    %v6618 = vunpack.c.h.b16 %v2177
    %v6619 = vunpack.c.l.b16 %v2178
    %v6620 = vunpack.c.h.b16 %v2178
    %v6621 = vunpack.c.l.b16 %v2179
    %v6622 = vunpack.c.h.b16 %v2179
    %v6623 = vunpack.c.l.b16 %v2180
    %v6624 = vunpack.c.h.b16 %v2180
    %v6625 = vunpack.c.l.b16 %v2181
    %v6626 = vunpack.c.h.b16 %v2181
    %v6627 = vunpack.c.l.b16 %v2182
    %v6628 = vunpack.c.h.b16 %v2182
    %v6629 = vunpack.c.l.b16 %v2183
    %v6630 = vunpack.c.h.b16 %v2183
    %v6631 = vunpack.c.l.b16 %v2184
    %v6632 = vunpack.c.h.b16 %v2184
    %v6633 = vunpack.c.l.b16 %v2185
    %v6634 = vunpack.c.h.b16 %v2185
    %v6635 = vunpack.c.l.b16 %v2186
    %v6636 = vunpack.c.h.b16 %v2186
    %v6637 = vunpack.c.l.b16 %v2187
    %v6638 = vunpack.c.h.b16 %v2187
    %v6639 = vunpack.c.l.b16 %v2188
    %v6640 = vunpack.c.h.b16 %v2188
    %v6641 = vunpack.c.l.b16 %v2189
    %v6642 = vunpack.c.h.b16 %v2189
    %v6643 = vunpack.c.l.b16 %v2190
    %v6644 = vunpack.c.h.b16 %v2190
    %v6645 = vunpack.c.l.b16 %v2191
    %v6646 = vunpack.c.h.b16 %v2191
    %v6647 = vunpack.c.l.b16 %v2192
    %v6648 = vunpack.c.h.b16 %v2192
    %v6649 = vunpack.c.l.b16 %v2193
    %v6650 = vunpack.c.h.b16 %v2193
    %v6651 = vunpack.c.l.b16 %v2194
    %v6652 = vunpack.c.h.b16 %v2194
    %v6653 = vunpack.c.l.b16 %v2195
    %v6654 = vunpack.c.h.b16 %v2195
    %v6655 = vunpack.c.l.b16 %v2196
    %v6656 = vunpack.c.h.b16 %v2196
    %v6657 = vunpack.c.l.b16 %v2197
    %v6658 = vunpack.c.h.b16 %v2197
    %v6659 = vunpack.c.l.b16 %v2198
    %v6660 = vunpack.c.h.b16 %v2198
    %v6661 = vunpack.c.l.b16 %v2199
    %v6662 = vunpack.c.h.b16 %v2199
    %v6663 = vunpack.c.l.b16 %v2200
    %v6664 = vunpack.c.h.b16 %v2200
    %v6665 = vunpack.c.l.b16 %v2201
    %v6666 = vunpack.c.h.b16 %v2201
    %v6667 = vunpack.c.l.b16 %v2202
    %v6668 = vunpack.c.h.b16 %v2202
    %v6669 = vunpack.c.l.b16 %v2203
    %v6670 = vunpack.c.h.b16 %v2203
    %v6671 = vunpack.c.l.b16 %v2204
    %v6672 = vunpack.c.h.b16 %v2204
    %v6673 = vunpack.c.l.b16 %v2205
    %v6674 = vunpack.c.h.b16 %v2205
    %v6675 = vunpack.c.l.b16 %v2206
    %v6676 = vunpack.c.h.b16 %v2206
    %v6677 = vunpack.c.l.b16 %v2207
    %v6678 = vunpack.c.h.b16 %v2207
    %v6679 = vunpack.c.l.b16 %v2208
    %v6680 = vunpack.c.h.b16 %v2208
    %v6681 = vunpack.c.l.b16 %v2209
    %v6682 = vunpack.c.h.b16 %v2209
    %v6683 = vunpack.c.l.b16 %v2210
    %v6684 = vunpack.c.h.b16 %v2210
    %v6685 = vunpack.c.l.b16 %v2211
    %v6686 = vunpack.c.h.b16 %v2211
    %v6687 = vunpack.c.l.b16 %v2212
    %v6688 = vunpack.c.h.b16 %v2212
    %v6689 = vunpack.c.l.b16 %v2213
    %v6690 = vunpack.c.h.b16 %v2213
    %v6691 = vunpack.c.l.b16 %v2214
    %v6692 = vunpack.c.h.b16 %v2214
    %v6693 = vunpack.c.l.b16 %v2215
    %v6694 = vunpack.c.h.b16 %v2215
    %v6695 = vunpack.c.l.b16 %v2216
    %v6696 = vunpack.c.h.b16 %v2216
    %v6697 = vunpack.c.l.b16 %v2217
    %v6698 = vunpack.c.h.b16 %v2217
    %v6699 = vunpack.c.l.b16 %v2218
    %v6700 = vunpack.c.h.b16 %v2218
    %v6701 = vunpack.c.l.b16 %v2219
    %v6702 = vunpack.c.h.b16 %v2219
    %v6703 = vunpack.c.l.b16 %v2220
    %v6704 = vunpack.c.h.b16 %v2220
    %v6705 = vunpack.c.l.b16 %v2221
    %v6706 = vunpack.c.h.b16 %v2221
    %v6707 = vunpack.c.l.b16 %v2222
    %v6708 = vunpack.c.h.b16 %v2222
    %v6709 = vunpack.c.l.b16 %v2223
    %v6710 = vunpack.c.h.b16 %v2223
    %v6711 = vunpack.c.l.b16 %v2224
    %v6712 = vunpack.c.h.b16 %v2224
    %v6713 = vunpack.c.l.b16 %v2225
    %v6714 = vunpack.c.h.b16 %v2225
    %v6715 = vunpack.c.l.b16 %v2226
    %v6716 = vunpack.c.h.b16 %v2226
    %v6717 = vunpack.c.l.b16 %v2227
    %v6718 = vunpack.c.h.b16 %v2227
    %v6719 = vunpack.c.l.b16 %v2228
    %v6720 = vunpack.c.h.b16 %v2228
    %v6721 = vunpack.c.l.b16 %v2229
    %v6722 = vunpack.c.h.b16 %v2229
    %v6723 = vunpack.c.l.b16 %v2230
    %v6724 = vunpack.c.h.b16 %v2230
    %v6725 = vunpack.c.l.b16 %v2231
    %v6726 = vunpack.c.h.b16 %v2231
    %v6727 = vunpack.c.l.b16 %v2232
    %v6728 = vunpack.c.h.b16 %v2232
    %v6729 = vunpack.c.l.b16 %v2233
    %v6730 = vunpack.c.h.b16 %v2233
    %v6731 = vunpack.c.l.b16 %v2234
    %v6732 = vunpack.c.h.b16 %v2234
    %v6733 = vunpack.c.l.b16 %v2235
    %v6734 = vunpack.c.h.b16 %v2235
    %v6735 = vunpack.c.l.b16 %v2236
    %v6736 = vunpack.c.h.b16 %v2236
    %v6737 = vunpack.c.l.b16 %v2237
    %v6738 = vunpack.c.h.b16 %v2237
    %v6739 = vunpack.c.l.b16 %v2238
    %v6740 = vunpack.c.h.b16 %v2238
    %v6741 = vunpack.c.l.b16 %v2239
    %v6742 = vunpack.c.h.b16 %v2239
    %v6743 = vunpack.c.l.b16 %v2240
    %v6744 = vunpack.c.h.b16 %v2240
    %v6745 = vunpack.c.l.b16 %v2241
    %v6746 = vunpack.c.h.b16 %v2241
    %v6747 = vunpack.c.l.b16 %v2242
    %v6748 = vunpack.c.h.b16 %v2242
    %v6749 = vunpack.c.l.b16 %v2243
    %v6750 = vunpack.c.h.b16 %v2243
    %v6751 = vunpack.c.l.b16 %v2244
    %v6752 = vunpack.c.h.b16 %v2244
    %v6753 = vunpack.c.l.b16 %v2245
    %v6754 = vunpack.c.h.b16 %v2245
    %v6755 = vunpack.c.l.b16 %v2246
    %v6756 = vunpack.c.h.b16 %v2246
    %v6757 = vunpack.c.l.b16 %v2247
    %v6758 = vunpack.c.h.b16 %v2247
    %v6759 = vunpack.c.l.b16 %v2248
    %v6760 = vunpack.c.h.b16 %v2248
    %v6761 = vunpack.c.l.b16 %v2249
    %v6762 = vunpack.c.h.b16 %v2249
    %v6763 = vunpack.c.l.b16 %v2250
    %v6764 = vunpack.c.h.b16 %v2250
    %v6765 = vunpack.c.l.b16 %v2251
    %v6766 = vunpack.c.h.b16 %v2251
    %v6767 = vunpack.c.l.b16 %v2252
    %v6768 = vunpack.c.h.b16 %v2252
    %v6769 = vunpack.c.l.b16 %v2253
    %v6770 = vunpack.c.h.b16 %v2253
    %v6771 = vunpack.c.l.b16 %v2254
    %v6772 = vunpack.c.h.b16 %v2254
    %v6773 = vunpack.c.l.b16 %v2255
    %v6774 = vunpack.c.h.b16 %v2255
    %v6775 = vunpack.c.l.b16 %v2256
    %v6776 = vunpack.c.h.b16 %v2256
    %v6777 = vunpack.c.l.b16 %v2257
    %v6778 = vunpack.c.h.b16 %v2257
    %v6779 = vunpack.c.l.b16 %v2258
    %v6780 = vunpack.c.h.b16 %v2258
    %v6781 = vunpack.c.l.b16 %v2259
    %v6782 = vunpack.c.h.b16 %v2259
    %v6783 = vunpack.c.l.b16 %v2260
    %v6784 = vunpack.c.h.b16 %v2260
    %v6785 = vunpack.c.l.b16 %v2261
    %v6786 = vunpack.c.h.b16 %v2261
    %v6787 = vunpack.c.l.b16 %v2262
    %v6788 = vunpack.c.h.b16 %v2262
    %v6789 = vunpack.c.l.b16 %v2263
    %v6790 = vunpack.c.h.b16 %v2263
    %v6791 = vunpack.c.l.b16 %v2264
    %v6792 = vunpack.c.h.b16 %v2264
    %v6793 = vunpack.c.l.b16 %v2265
    %v6794 = vunpack.c.h.b16 %v2265
    %v6795 = vunpack.c.l.b16 %v2266
    %v6796 = vunpack.c.h.b16 %v2266
    %v6797 = vunpack.c.l.b16 %v2267
    %v6798 = vunpack.c.h.b16 %v2267
    %v6799 = vunpack.c.l.b16 %v2268
    %v6800 = vunpack.c.h.b16 %v2268
    %v6801 = vunpack.c.l.b16 %v2269
    %v6802 = vunpack.c.h.b16 %v2269
    %v6803 = vunpack.c.l.b16 %v2270
    %v6804 = vunpack.c.h.b16 %v2270
    %v6805 = vunpack.c.l.b16 %v2271
    %v6806 = vunpack.c.h.b16 %v2271
    %v6807 = vunpack.c.l.b16 %v2272
    %v6808 = vunpack.c.h.b16 %v2272
    %v6809 = vunpack.c.l.b16 %v2273
    %v6810 = vunpack.c.h.b16 %v2273
    %v6811 = vunpack.c.l.b16 %v2274
    %v6812 = vunpack.c.h.b16 %v2274
    %v6813 = vunpack.c.l.b16 %v2275
    %v6814 = vunpack.c.h.b16 %v2275
    %v6815 = vunpack.c.l.b16 %v2276
    %v6816 = vunpack.c.h.b16 %v2276
    %v6817 = vunpack.c.l.b16 %v2277
    %v6818 = vunpack.c.h.b16 %v2277
    %v6819 = vunpack.c.l.b16 %v2278
    %v6820 = vunpack.c.h.b16 %v2278
    %v6821 = vunpack.c.l.b16 %v2279
    %v6822 = vunpack.c.h.b16 %v2279
    %v6823 = vunpack.c.l.b16 %v2280
    %v6824 = vunpack.c.h.b16 %v2280
    %v6825 = vunpack.c.l.b16 %v2281
    %v6826 = vunpack.c.h.b16 %v2281
    %v6827 = vunpack.c.l.b16 %v2282
    %v6828 = vunpack.c.h.b16 %v2282
    %v6829 = vunpack.c.l.b16 %v2283
    %v6830 = vunpack.c.h.b16 %v2283
    %v6831 = vunpack.c.l.b16 %v2284
    %v6832 = vunpack.c.h.b16 %v2284
    %v6833 = vunpack.c.l.b16 %v2285
    %v6834 = vunpack.c.h.b16 %v2285
    %v6835 = vunpack.c.l.b16 %v2286
    %v6836 = vunpack.c.h.b16 %v2286
    %v6837 = vunpack.c.l.b16 %v2287
    %v6838 = vunpack.c.h.b16 %v2287
    %v6839 = vunpack.c.l.b16 %v2288
    %v6840 = vunpack.c.h.b16 %v2288
    %v6841 = vunpack.c.l.b16 %v2289
    %v6842 = vunpack.c.h.b16 %v2289
    %v6843 = vunpack.c.l.b16 %v2290
    %v6844 = vunpack.c.h.b16 %v2290
    %v6845 = vunpack.c.l.b16 %v2291
    %v6846 = vunpack.c.h.b16 %v2291
    %v6847 = vunpack.c.l.b16 %v2292
    %v6848 = vunpack.c.h.b16 %v2292
    %v6849 = vunpack.c.l.b16 %v2293
    %v6850 = vunpack.c.h.b16 %v2293
    %v6851 = vunpack.c.l.b16 %v2294
    %v6852 = vunpack.c.h.b16 %v2294
    %v6853 = vunpack.c.l.b16 %v2295
    %v6854 = vunpack.c.h.b16 %v2295
    %v6855 = vunpack.c.l.b16 %v2296
    %v6856 = vunpack.c.h.b16 %v2296
    %v6857 = vunpack.c.l.b16 %v2297
    %v6858 = vunpack.c.h.b16 %v2297
    %v6859 = vunpack.c.l.b16 %v2298
    %v6860 = vunpack.c.h.b16 %v2298
    %v6861 = vunpack.c.l.b16 %v2299
    %v6862 = vunpack.c.h.b16 %v2299
    %v6863 = vunpack.c.l.b16 %v2300
    %v6864 = vunpack.c.h.b16 %v2300
    %v6865 = vunpack.c.l.b16 %v2301
    %v6866 = vunpack.c.h.b16 %v2301
    %v6867 = vunpack.c.l.b16 %v2302
    %v6868 = vunpack.c.h.b16 %v2302
    %v6869 = vunpack.c.l.b16 %v2303
    %v6870 = vunpack.c.h.b16 %v2303
    %v6871 = vunpack.c.l.b16 %v2304
    %v6872 = vunpack.c.h.b16 %v2304
    %v6873 = vunpack.c.l.b16 %v2305
    %v6874 = vunpack.c.h.b16 %v2305
    %v6875 = vunpack.c.l.b16 %v2306
    %v6876 = vunpack.c.h.b16 %v2306
    %v6877 = vunpack.c.l.b16 %v2307
    %v6878 = vunpack.c.h.b16 %v2307
    %v6879 = vunpack.c.l.b16 %v2308
    %v6880 = vunpack.c.h.b16 %v2308
    %v6881 = vunpack.c.l.b16 %v2309
    %v6882 = vunpack.c.h.b16 %v2309
    %v6883 = vunpack.c.l.b16 %v2310
    %v6884 = vunpack.c.h.b16 %v2310
    %v6885 = vunpack.c.l.b16 %v2311
    %v6886 = vunpack.c.h.b16 %v2311
    %v6887 = vunpack.c.l.b16 %v2312
    %v6888 = vunpack.c.h.b16 %v2312
    %v6889 = vunpack.c.l.b16 %v2313
    %v6890 = vunpack.c.h.b16 %v2313
    %v6891 = vunpack.c.l.b16 %v2314
    %v6892 = vunpack.c.h.b16 %v2314
    %v6893 = vunpack.c.l.b16 %v2315
    %v6894 = vunpack.c.h.b16 %v2315
    %v6895 = vunpack.c.l.b16 %v2316
    %v6896 = vunpack.c.h.b16 %v2316
    %v6897 = vunpack.c.l.b16 %v2317
    %v6898 = vunpack.c.h.b16 %v2317
    %v6899 = vunpack.c.l.b16 %v2318
    %v6900 = vunpack.c.h.b16 %v2318
    %v6901 = vunpack.c.l.b16 %v2319
    %v6902 = vunpack.c.h.b16 %v2319
    %v6903 = vunpack.c.l.b16 %v2320
    %v6904 = vunpack.c.h.b16 %v2320
    %v6905 = vunpack.c.l.b16 %v2321
    %v6906 = vunpack.c.h.b16 %v2321
    %v6907 = vunpack.c.l.b16 %v2322
    %v6908 = vunpack.c.h.b16 %v2322
    %v6909 = vunpack.c.l.b16 %v2323
    %v6910 = vunpack.c.h.b16 %v2323
    %v6911 = vunpack.c.l.b16 %v2324
    %v6912 = vunpack.c.h.b16 %v2324
    %v6913 = vunpack.c.l.b16 %v2325
    %v6914 = vunpack.c.h.b16 %v2325
    %v6915 = vunpack.c.l.b16 %v2326
    %v6916 = vunpack.c.h.b16 %v2326
    %v6917 = vunpack.c.l.b16 %v2327
    %v6918 = vunpack.c.h.b16 %v2327
    %v6919 = vunpack.c.l.b16 %v2328
    %v6920 = vunpack.c.h.b16 %v2328
    %v6921 = vunpack.c.l.b16 %v2329
    %v6922 = vunpack.c.h.b16 %v2329
    %v6923 = vunpack.c.l.b16 %v2330
    %v6924 = vunpack.c.h.b16 %v2330
    %v6925 = vunpack.c.l.b16 %v2331
    %v6926 = vunpack.c.h.b16 %v2331
    %v6927 = vunpack.c.l.b16 %v2332
    %v6928 = vunpack.c.h.b16 %v2332
    %v6929 = vunpack.c.l.b16 %v2333
    %v6930 = vunpack.c.h.b16 %v2333
    %v6931 = vunpack.c.l.b16 %v2334
    %v6932 = vunpack.c.h.b16 %v2334
    %v6933 = vunpack.c.l.b16 %v2335
    %v6934 = vunpack.c.h.b16 %v2335
    %v6935 = vunpack.c.l.b16 %v2336
    %v6936 = vunpack.c.h.b16 %v2336
    %v6937 = vunpack.c.l.b16 %v2337
    %v6938 = vunpack.c.h.b16 %v2337
    %v6939 = vunpack.c.l.b16 %v2338
    %v6940 = vunpack.c.h.b16 %v2338
    %v6941 = vunpack.c.l.b16 %v2339
    %v6942 = vunpack.c.h.b16 %v2339
    %v6943 = vunpack.c.l.b16 %v2340
    %v6944 = vunpack.c.h.b16 %v2340
    %v6945 = vunpack.c.l.b16 %v2341
    %v6946 = vunpack.c.h.b16 %v2341
    %v6947 = vunpack.c.l.b16 %v2342
    %v6948 = vunpack.c.h.b16 %v2342
    %v6949 = vunpack.c.l.b16 %v2343
    %v6950 = vunpack.c.h.b16 %v2343
    %v6951 = vunpack.c.l.b16 %v2344
    %v6952 = vunpack.c.h.b16 %v2344
    %v6953 = vunpack.c.l.b16 %v2345
    %v6954 = vunpack.c.h.b16 %v2345
    %v6955 = vunpack.c.l.b16 %v2346
    %v6956 = vunpack.c.h.b16 %v2346
    %v6957 = vunpack.c.l.b16 %v2347
    %v6958 = vunpack.c.h.b16 %v2347
    %v6959 = vunpack.c.l.b16 %v2348
    %v6960 = vunpack.c.h.b16 %v2348
    %v6961 = vunpack.c.l.b16 %v2349
    %v6962 = vunpack.c.h.b16 %v2349
    %v6963 = vunpack.c.l.b16 %v2350
    %v6964 = vunpack.c.h.b16 %v2350
    %v6965 = vunpack.c.l.b16 %v2351
    %v6966 = vunpack.c.h.b16 %v2351
    %v6967 = vunpack.c.l.b16 %v2352
    %v6968 = vunpack.c.h.b16 %v2352
    %v6969 = vunpack.c.l.b16 %v2353
    %v6970 = vunpack.c.h.b16 %v2353
    %v6971 = vunpack.c.l.b16 %v2354
    %v6972 = vunpack.c.h.b16 %v2354
    %v6973 = vunpack.c.l.b16 %v2355
    %v6974 = vunpack.c.h.b16 %v2355
    %v6975 = vunpack.c.l.b16 %v2356
    %v6976 = vunpack.c.h.b16 %v2356
    %v6977 = vunpack.c.l.b16 %v2357
    %v6978 = vunpack.c.h.b16 %v2357
    %v6979 = vunpack.c.l.b16 %v2358
    %v6980 = vunpack.c.h.b16 %v2358
    %v6981 = vunpack.c.l.b16 %v2359
    %v6982 = vunpack.c.h.b16 %v2359
    %v6983 = vunpack.c.l.b16 %v2360
    %v6984 = vunpack.c.h.b16 %v2360
    %v6985 = vunpack.c.l.b16 %v2361
    %v6986 = vunpack.c.h.b16 %v2361
    %v6987 = vunpack.c.l.b16 %v2362
    %v6988 = vunpack.c.h.b16 %v2362
    %v6989 = vunpack.c.l.b16 %v2363
    %v6990 = vunpack.c.h.b16 %v2363
    %v6991 = vunpack.c.l.b16 %v2364
    %v6992 = vunpack.c.h.b16 %v2364
    %v6993 = vunpack.c.l.b16 %v2365
    %v6994 = vunpack.c.h.b16 %v2365
    %v6995 = vunpack.c.l.b16 %v2366
    %v6996 = vunpack.c.h.b16 %v2366
    %v6997 = vunpack.c.l.b16 %v2367
    %v6998 = vunpack.c.h.b16 %v2367
    %v6999 = vunpack.c.l.b16 %v2368
    %v7000 = vunpack.c.h.b16 %v2368
    %v7001 = vunpack.c.l.b16 %v2369
    %v7002 = vunpack.c.h.b16 %v2369
    %v7003 = vunpack.c.l.b16 %v2370
    %v7004 = vunpack.c.h.b16 %v2370
    %v7005 = vunpack.c.l.b16 %v2371
    %v7006 = vunpack.c.h.b16 %v2371
    %v7007 = vunpack.c.l.b16 %v2372
    %v7008 = vunpack.c.h.b16 %v2372
    %v7009 = vunpack.c.l.b16 %v2373
    %v7010 = vunpack.c.h.b16 %v2373
    %v7011 = vunpack.c.l.b16 %v2374
    %v7012 = vunpack.c.h.b16 %v2374
    %v7013 = vunpack.c.l.b16 %v2375
    %v7014 = vunpack.c.h.b16 %v2375
    %v7015 = vunpack.c.l.b16 %v2376
    %v7016 = vunpack.c.h.b16 %v2376
    %v7017 = vunpack.c.l.b16 %v2377
    %v7018 = vunpack.c.h.b16 %v2377
    %v7019 = vunpack.c.l.b16 %v2378
    %v7020 = vunpack.c.h.b16 %v2378
    %v7021 = vunpack.c.l.b16 %v2379
    %v7022 = vunpack.c.h.b16 %v2379
    %v7023 = vunpack.c.l.b16 %v2380
    %v7024 = vunpack.c.h.b16 %v2380
    %v7025 = vunpack.c.l.b16 %v2381
    %v7026 = vunpack.c.h.b16 %v2381
    %v7027 = vunpack.c.l.b16 %v2382
    %v7028 = vunpack.c.h.b16 %v2382
    %v7029 = vunpack.c.l.b16 %v2383
    %v7030 = vunpack.c.h.b16 %v2383
    %v7031 = vunpack.c.l.b16 %v2384
    %v7032 = vunpack.c.h.b16 %v2384
    %v7033 = vunpack.c.l.b16 %v2385
    %v7034 = vunpack.c.h.b16 %v2385
    %v7035 = vunpack.c.l.b16 %v2386
    %v7036 = vunpack.c.h.b16 %v2386
    %v7037 = vunpack.c.l.b16 %v2387
    %v7038 = vunpack.c.h.b16 %v2387
    %v7039 = vunpack.c.l.b16 %v2388
    %v7040 = vunpack.c.h.b16 %v2388
    %v7041 = vunpack.c.l.b16 %v2389
    %v7042 = vunpack.c.h.b16 %v2389
    %v7043 = vunpack.c.l.b16 %v2390
    %v7044 = vunpack.c.h.b16 %v2390
    %v7045 = vunpack.c.l.b16 %v2391
    %v7046 = vunpack.c.h.b16 %v2391
    %v7047 = vunpack.c.l.b16 %v2392
    %v7048 = vunpack.c.h.b16 %v2392
    %v7049 = vunpack.c.l.b16 %v2393
    %v7050 = vunpack.c.h.b16 %v2393
    %v7051 = vunpack.c.l.b16 %v2394
    %v7052 = vunpack.c.h.b16 %v2394
    %v7053 = vunpack.c.l.b16 %v2395
    %v7054 = vunpack.c.h.b16 %v2395
    %v7055 = vunpack.c.l.b16 %v2396
    %v7056 = vunpack.c.h.b16 %v2396
    %v7057 = vunpack.c.l.b16 %v2397
    %v7058 = vunpack.c.h.b16 %v2397
    %v7059 = vunpack.c.l.b16 %v2398
    %v7060 = vunpack.c.h.b16 %v2398
    %v7061 = vunpack.c.l.b16 %v2399
    %v7062 = vunpack.c.h.b16 %v2399
    %v7063 = vunpack.c.l.b16 %v2400
    %v7064 = vunpack.c.h.b16 %v2400
    %v7065 = vunpack.c.l.b16 %v2401
    %v7066 = vunpack.c.h.b16 %v2401
    %v7067 = vunpack.c.l.b16 %v2402
    %v7068 = vunpack.c.h.b16 %v2402
    %v7069 = vunpack.c.l.b16 %v2403
    %v7070 = vunpack.c.h.b16 %v2403
    %v7071 = vunpack.c.l.b16 %v2404
    %v7072 = vunpack.c.h.b16 %v2404
    %v7073 = vunpack.c.l.b16 %v2405
    %v7074 = vunpack.c.h.b16 %v2405
    %v7075 = vunpack.c.l.b16 %v2406
    %v7076 = vunpack.c.h.b16 %v2406
    %v7077 = vunpack.c.l.b16 %v2407
    %v7078 = vunpack.c.h.b16 %v2407
    %v7079 = vunpack.c.l.b16 %v2408
    %v7080 = vunpack.c.h.b16 %v2408
    %v7081 = vunpack.c.l.b16 %v2409
    %v7082 = vunpack.c.h.b16 %v2409
    %v7083 = vunpack.c.l.b16 %v2410
    %v7084 = vunpack.c.h.b16 %v2410
    %v7085 = vunpack.c.l.b16 %v2411
    %v7086 = vunpack.c.h.b16 %v2411
    %v7087 = vunpack.c.l.b16 %v2412
    %v7088 = vunpack.c.h.b16 %v2412
    %v7089 = vunpack.c.l.b16 %v2413
    %v7090 = vunpack.c.h.b16 %v2413
    %v7091 = vunpack.c.l.b16 %v2414
    %v7092 = vunpack.c.h.b16 %v2414
    %v7093 = vunpack.c.l.b16 %v2415
    %v7094 = vunpack.c.h.b16 %v2415
    %v7095 = vunpack.c.l.b16 %v2416
    %v7096 = vunpack.c.h.b16 %v2416
    %v7097 = vunpack.c.l.b16 %v2417
    %v7098 = vunpack.c.h.b16 %v2417
    %v7099 = vunpack.c.l.b16 %v2418
    %v7100 = vunpack.c.h.b16 %v2418
    %v7101 = vunpack.c.l.b16 %v2419
    %v7102 = vunpack.c.h.b16 %v2419
    %v7103 = vunpack.c.l.b16 %v2420
    %v7104 = vunpack.c.h.b16 %v2420
    %v7105 = vunpack.c.l.b16 %v2421
    %v7106 = vunpack.c.h.b16 %v2421
    %v7107 = vunpack.c.l.b16 %v2422
    %v7108 = vunpack.c.h.b16 %v2422
    %v7109 = vunpack.c.l.b16 %v2423
    %v7110 = vunpack.c.h.b16 %v2423
    %v7111 = vunpack.c.l.b16 %v2424
    %v7112 = vunpack.c.h.b16 %v2424
    %v7113 = vunpack.c.l.b16 %v2425
    %v7114 = vunpack.c.h.b16 %v2425
    %v7115 = vunpack.c.l.b16 %v2426
    %v7116 = vunpack.c.h.b16 %v2426
    %v7117 = vunpack.c.l.b16 %v2427
    %v7118 = vunpack.c.h.b16 %v2427
    %v7119 = vunpack.c.l.b16 %v2428
    %v7120 = vunpack.c.h.b16 %v2428
    %v7121 = vunpack.c.l.b16 %v2429
    %v7122 = vunpack.c.h.b16 %v2429
    %v7123 = vunpack.c.l.b16 %v2430
    %v7124 = vunpack.c.h.b16 %v2430
    %v7125 = vunpack.c.l.b16 %v2431
    %v7126 = vunpack.c.h.b16 %v2431
    %v7127 = vunpack.c.l.b16 %v2432
    %v7128 = vunpack.c.h.b16 %v2432
    %v7129 = vunpack.c.l.b16 %v2433
    %v7130 = vunpack.c.h.b16 %v2433
    %v7131 = vunpack.c.l.b16 %v2434
    %v7132 = vunpack.c.h.b16 %v2434
    %v7133 = vunpack.c.l.b16 %v2435
    %v7134 = vunpack.c.h.b16 %v2435
    %v7135 = vunpack.c.l.b16 %v2436
    %v7136 = vunpack.c.h.b16 %v2436
    %v7137 = vunpack.c.l.b16 %v2437
    %v7138 = vunpack.c.h.b16 %v2437
    %v7139 = vunpack.c.l.b16 %v2438
    %v7140 = vunpack.c.h.b16 %v2438
    %v7141 = vunpack.c.l.b16 %v2439
    %v7142 = vunpack.c.h.b16 %v2439
    %v7143 = vunpack.c.l.b16 %v2440
    %v7144 = vunpack.c.h.b16 %v2440
    %v7145 = vunpack.c.l.b16 %v2441
    %v7146 = vunpack.c.h.b16 %v2441
    %v7147 = vunpack.c.l.b16 %v2442
    %v7148 = vunpack.c.h.b16 %v2442
    %v7149 = vunpack.c.l.b16 %v2443
    %v7150 = vunpack.c.h.b16 %v2443
    %v7151 = vunpack.c.l.b16 %v2444
    %v7152 = vunpack.c.h.b16 %v2444
    %v7153 = vunpack.c.l.b16 %v2445
    %v7154 = vunpack.c.h.b16 %v2445
    %v7155 = vunpack.c.l.b16 %v2446
    %v7156 = vunpack.c.h.b16 %v2446
    %v7157 = vunpack.c.l.b16 %v2447
    %v7158 = vunpack.c.h.b16 %v2447
    %v7159 = vunpack.c.l.b16 %v2448
    %v7160 = vunpack.c.h.b16 %v2448
    %v7161 = vunpack.c.l.b16 %v2449
    %v7162 = vunpack.c.h.b16 %v2449
    %v7163 = vunpack.c.l.b16 %v2450
    %v7164 = vunpack.c.h.b16 %v2450
    %v7165 = vunpack.c.l.b16 %v2451
    %v7166 = vunpack.c.h.b16 %v2451
    %v7167 = vunpack.c.l.b16 %v2452
    %v7168 = vunpack.c.h.b16 %v2452
    %v7169 = vunpack.c.l.b16 %v2453
    %v7170 = vunpack.c.h.b16 %v2453
    %v7171 = vunpack.c.l.b16 %v2454
    %v7172 = vunpack.c.h.b16 %v2454
    %v7173 = vunpack.c.l.b16 %v2455
    %v7174 = vunpack.c.h.b16 %v2455
    %v7175 = vunpack.c.l.b16 %v2456
    %v7176 = vunpack.c.h.b16 %v2456
    %v7177 = vunpack.c.l.b16 %v2457
    %v7178 = vunpack.c.h.b16 %v2457
    %v7179 = vunpack.c.l.b16 %v2458
    %v7180 = vunpack.c.h.b16 %v2458
    %v7181 = vunpack.c.l.b16 %v2459
    %v7182 = vunpack.c.h.b16 %v2459
    %v7183 = vunpack.c.l.b16 %v2460
    %v7184 = vunpack.c.h.b16 %v2460
    %v7185 = vunpack.c.l.b16 %v2461
    %v7186 = vunpack.c.h.b16 %v2461
    %v7187 = vunpack.c.l.b16 %v2462
    %v7188 = vunpack.c.h.b16 %v2462
    %v7189 = vunpack.c.l.b16 %v2463
    %v7190 = vunpack.c.h.b16 %v2463
    %v7191 = vunpack.c.l.b16 %v2464
    %v7192 = vunpack.c.h.b16 %v2464
    %v7193 = vunpack.c.l.b16 %v2465
    %v7194 = vunpack.c.h.b16 %v2465
    %v7195 = vunpack.c.l.b16 %v2466
    %v7196 = vunpack.c.h.b16 %v2466
    %v7197 = vunpack.c.l.b16 %v2467
    %v7198 = vunpack.c.h.b16 %v2467
    %v7199 = vunpack.c.l.b16 %v2468
    %v7200 = vunpack.c.h.b16 %v2468
    %v7201 = vunpack.c.l.b16 %v2469
    %v7202 = vunpack.c.h.b16 %v2469
    %v7203 = vunpack.c.l.b16 %v2470
    %v7204 = vunpack.c.h.b16 %v2470
    %v7205 = vunpack.c.l.b16 %v2471
    %v7206 = vunpack.c.h.b16 %v2471
    %v7207 = vunpack.c.l.b16 %v2472
    %v7208 = vunpack.c.h.b16 %v2472
    %v7209 = vunpack.c.l.b16 %v2473
    %v7210 = vunpack.c.h.b16 %v2473
    %v7211 = vunpack.c.l.b16 %v2474
    %v7212 = vunpack.c.h.b16 %v2474
    %v7213 = vunpack.c.l.b16 %v2475
    %v7214 = vunpack.c.h.b16 %v2475
    %v7215 = vunpack.c.l.b16 %v2476
    %v7216 = vunpack.c.h.b16 %v2476
    %v7217 = vunpack.c.l.b16 %v2477
    %v7218 = vunpack.c.h.b16 %v2477
    %v7219 = vunpack.c.l.b16 %v2478
    %v7220 = vunpack.c.h.b16 %v2478
    %v7221 = vunpack.c.l.b16 %v2479
    %v7222 = vunpack.c.h.b16 %v2479
    %v7223 = vunpack.c.l.b16 %v2480
    %v7224 = vunpack.c.h.b16 %v2480
    %v7225 = vunpack.c.l.b16 %v2481
    %v7226 = vunpack.c.h.b16 %v2481
    %v7227 = vunpack.c.l.b16 %v2482
    %v7228 = vunpack.c.h.b16 %v2482
    %v7229 = vunpack.c.l.b16 %v2483
    %v7230 = vunpack.c.h.b16 %v2483
    %v7231 = vunpack.c.l.b16 %v2484
    %v7232 = vunpack.c.h.b16 %v2484
    %v7233 = vunpack.c.l.b16 %v2485
    %v7234 = vunpack.c.h.b16 %v2485
    %v7235 = vunpack.c.l.b16 %v2486
    %v7236 = vunpack.c.h.b16 %v2486
    %v7237 = vunpack.c.l.b16 %v2487
    %v7238 = vunpack.c.h.b16 %v2487
    %v7239 = vunpack.c.l.b16 %v2488
    %v7240 = vunpack.c.h.b16 %v2488
    %v7241 = vunpack.c.l.b16 %v2489
    %v7242 = vunpack.c.h.b16 %v2489
    %v7243 = vunpack.c.l.b16 %v2490
    %v7244 = vunpack.c.h.b16 %v2490
    %v7245 = vunpack.c.l.b16 %v2491
    %v7246 = vunpack.c.h.b16 %v2491
    %v7247 = vunpack.c.l.b16 %v2492
    %v7248 = vunpack.c.h.b16 %v2492
    %v7249 = vunpack.c.l.b16 %v2493
    %v7250 = vunpack.c.h.b16 %v2493
    %v7251 = vunpack.c.l.b16 %v2494
    %v7252 = vunpack.c.h.b16 %v2494
    %v7253 = vunpack.c.l.b16 %v2495
    %v7254 = vunpack.c.h.b16 %v2495
    %v7255 = vunpack.c.l.b16 %v2496
    %v7256 = vunpack.c.h.b16 %v2496
    %v7257 = vunpack.c.l.b16 %v2497
    %v7258 = vunpack.c.h.b16 %v2497
    %v7259 = vunpack.c.l.b16 %v2498
    %v7260 = vunpack.c.h.b16 %v2498
    %v7261 = vunpack.c.l.b16 %v2499
    %v7262 = vunpack.c.h.b16 %v2499
    %v7263 = vunpack.c.l.b16 %v2500
    %v7264 = vunpack.c.h.b16 %v2500
    %v7265 = vunpack.c.l.b16 %v2501
    %v7266 = vunpack.c.h.b16 %v2501
    %v7267 = vunpack.c.l.b16 %v2502
    %v7268 = vunpack.c.h.b16 %v2502
    %v7269 = vunpack.c.l.b16 %v2503
    %v7270 = vunpack.c.h.b16 %v2503
    %v7271 = vunpack.c.l.b16 %v2504
    %v7272 = vunpack.c.h.b16 %v2504
    %v7273 = vunpack.c.l.b16 %v2505
    %v7274 = vunpack.c.h.b16 %v2505
    %v7275 = vunpack.c.l.b16 %v2506
    %v7276 = vunpack.c.h.b16 %v2506
    %v7277 = vunpack.c.l.b16 %v2507
    %v7278 = vunpack.c.h.b16 %v2507
    %v7279 = vunpack.c.l.b16 %v2508
    %v7280 = vunpack.c.h.b16 %v2508
    %v7281 = vunpack.c.l.b16 %v2509
    %v7282 = vunpack.c.h.b16 %v2509
    %v7283 = vunpack.c.l.b16 %v2510
    %v7284 = vunpack.c.h.b16 %v2510
    %v7285 = vunpack.c.l.b16 %v2511
    %v7286 = vunpack.c.h.b16 %v2511
    %v7287 = vunpack.c.l.b16 %v2512
    %v7288 = vunpack.c.h.b16 %v2512
    %v7289 = vunpack.c.l.b16 %v2513
    %v7290 = vunpack.c.h.b16 %v2513
    %v7291 = vunpack.c.l.b16 %v2514
    %v7292 = vunpack.c.h.b16 %v2514
    %v7293 = vunpack.c.l.b16 %v2515
    %v7294 = vunpack.c.h.b16 %v2515
    %v7295 = vunpack.c.l.b16 %v2516
    %v7296 = vunpack.c.h.b16 %v2516
    %v7297 = vunpack.c.l.b16 %v2517
    %v7298 = vunpack.c.h.b16 %v2517
    %v7299 = vunpack.c.l.b16 %v2518
    %v7300 = vunpack.c.h.b16 %v2518
    %v7301 = vunpack.c.l.b16 %v2519
    %v7302 = vunpack.c.h.b16 %v2519
    %v7303 = vunpack.c.l.b16 %v2520
    %v7304 = vunpack.c.h.b16 %v2520
    %v7305 = vunpack.c.l.b16 %v2521
    %v7306 = vunpack.c.h.b16 %v2521
    %v7307 = vunpack.c.l.b16 %v2522
    %v7308 = vunpack.c.h.b16 %v2522
    %v7309 = vunpack.c.l.b16 %v2523
    %v7310 = vunpack.c.h.b16 %v2523
    %v7311 = vunpack.c.l.b16 %v2524
    %v7312 = vunpack.c.h.b16 %v2524
    %v7313 = vunpack.c.l.b16 %v2525
    %v7314 = vunpack.c.h.b16 %v2525
    %v7315 = vunpack.c.l.b16 %v2526
    %v7316 = vunpack.c.h.b16 %v2526
    %v7317 = vunpack.c.l.b16 %v2527
    %v7318 = vunpack.c.h.b16 %v2527
    %v7319 = vunpack.c.l.b16 %v2528
    %v7320 = vunpack.c.h.b16 %v2528
    %v7321 = vunpack.c.l.b16 %v2529
    %v7322 = vunpack.c.h.b16 %v2529
    %v7323 = vunpack.c.l.b16 %v2530
    %v7324 = vunpack.c.h.b16 %v2530
    %v7325 = vunpack.c.l.b16 %v2531
    %v7326 = vunpack.c.h.b16 %v2531
    %v7327 = vunpack.c.l.b16 %v2532
    %v7328 = vunpack.c.h.b16 %v2532
    %v7329 = vunpack.c.l.b16 %v2533
    %v7330 = vunpack.c.h.b16 %v2533
    %v7331 = vunpack.c.l.b16 %v2534
    %v7332 = vunpack.c.h.b16 %v2534
    %v7333 = vunpack.c.l.b16 %v2535
    %v7334 = vunpack.c.h.b16 %v2535
    %v7335 = vunpack.c.l.b16 %v2536
    %v7336 = vunpack.c.h.b16 %v2536
    %v7337 = vunpack.c.l.b16 %v2537
    %v7338 = vunpack.c.h.b16 %v2537
    %v7339 = vunpack.c.l.b16 %v2538
    %v7340 = vunpack.c.h.b16 %v2538
    %v7341 = vunpack.c.l.b16 %v2539
    %v7342 = vunpack.c.h.b16 %v2539
    %v7343 = vunpack.c.l.b16 %v2540
    %v7344 = vunpack.c.h.b16 %v2540
    %v7345 = vunpack.c.l.b16 %v2541
    %v7346 = vunpack.c.h.b16 %v2541
    %v7347 = vunpack.c.l.b16 %v2542
    %v7348 = vunpack.c.h.b16 %v2542
    %v7349 = vunpack.c.l.b16 %v2543
    %v7350 = vunpack.c.h.b16 %v2543
    %v7351 = vunpack.c.l.b16 %v2544
    %v7352 = vunpack.c.h.b16 %v2544
    %v7353 = vunpack.c.l.b16 %v2545
    %v7354 = vunpack.c.h.b16 %v2545
    %v7355 = vunpack.c.l.b16 %v2546
    %v7356 = vunpack.c.h.b16 %v2546
    %v7357 = vunpack.c.l.b16 %v2547
    %v7358 = vunpack.c.h.b16 %v2547
    %v7359 = vunpack.c.l.b16 %v2548
    %v7360 = vunpack.c.h.b16 %v2548
    %v7361 = vunpack.c.l.b16 %v2549
    %v7362 = vunpack.c.h.b16 %v2549
    %v7363 = vunpack.c.l.b16 %v2550
    %v7364 = vunpack.c.h.b16 %v2550
    %v7365 = vunpack.c.l.b16 %v2551
    %v7366 = vunpack.c.h.b16 %v2551
    %v7367 = vunpack.c.l.b16 %v2552
    %v7368 = vunpack.c.h.b16 %v2552
    %v7369 = vunpack.c.l.b16 %v2553
    %v7370 = vunpack.c.h.b16 %v2553
    %v7371 = vunpack.c.l.b16 %v2554
    %v7372 = vunpack.c.h.b16 %v2554
    %v7373 = vunpack.c.l.b16 %v2555
    %v7374 = vunpack.c.h.b16 %v2555
    %v7375 = vunpack.c.l.b16 %v2556
    %v7376 = vunpack.c.h.b16 %v2556
    %v7377 = vunpack.c.l.b16 %v2557
    %v7378 = vunpack.c.h.b16 %v2557
    %v7379 = vunpack.c.l.b16 %v2558
    %v7380 = vunpack.c.h.b16 %v2558
    %v7381 = vunpack.c.l.b16 %v2559
    %v7382 = vunpack.c.h.b16 %v2559
    %v7383 = vunpack.c.l.b16 %v2560
    %v7384 = vunpack.c.h.b16 %v2560
    %v7385 = vunpack.c.l.b16 %v2561
    %v7386 = vunpack.c.h.b16 %v2561
    %v7387 = vunpack.c.l.b16 %v2562
    %v7388 = vunpack.c.h.b16 %v2562
    %v7389 = vunpack.c.l.b16 %v2563
    %v7390 = vunpack.c.h.b16 %v2563
    %v7391 = vunpack.c.l.b16 %v2564
    %v7392 = vunpack.c.h.b16 %v2564
    %v7393 = vunpack.c.l.b16 %v2565
    %v7394 = vunpack.c.h.b16 %v2565
    %v7395 = vunpack.c.l.b16 %v2566
    %v7396 = vunpack.c.h.b16 %v2566
    %v7397 = vunpack.c.l.b16 %v2567
    %v7398 = vunpack.c.h.b16 %v2567
    %v7399 = vunpack.c.l.b16 %v2568
    %v7400 = vunpack.c.h.b16 %v2568
    %v7401 = vunpack.c.l.b16 %v2569
    %v7402 = vunpack.c.h.b16 %v2569
    %v7403 = vunpack.c.l.b16 %v2570
    %v7404 = vunpack.c.h.b16 %v2570
    %v7405 = vunpack.c.l.b16 %v2571
    %v7406 = vunpack.c.h.b16 %v2571
    %v7407 = vunpack.c.l.b16 %v2572
    %v7408 = vunpack.c.h.b16 %v2572
    %v7409 = vunpack.c.l.b16 %v2573
    %v7410 = vunpack.c.h.b16 %v2573
    %v7411 = vunpack.c.l.b16 %v2574
    %v7412 = vunpack.c.h.b16 %v2574
    %v7413 = vunpack.c.l.b16 %v2575
    %v7414 = vunpack.c.h.b16 %v2575
    %v7415 = vunpack.c.l.b16 %v2576
    %v7416 = vunpack.c.h.b16 %v2576
    %v7417 = vunpack.c.l.b16 %v2577
    %v7418 = vunpack.c.h.b16 %v2577
    %v7419 = vunpack.c.l.b16 %v2578
    %v7420 = vunpack.c.h.b16 %v2578
    %v7421 = vunpack.c.l.b16 %v2579
    %v7422 = vunpack.c.h.b16 %v2579
    %v7423 = vunpack.c.l.b16 %v2580
    %v7424 = vunpack.c.h.b16 %v2580
    %v7425 = vunpack.c.l.b16 %v2581
    %v7426 = vunpack.c.h.b16 %v2581
    %v7427 = vunpack.c.l.b16 %v2582
    %v7428 = vunpack.c.h.b16 %v2582
    %v7429 = vunpack.c.l.b16 %v2583
    %v7430 = vunpack.c.h.b16 %v2583
    %v7431 = vunpack.c.l.b16 %v2584
    %v7432 = vunpack.c.h.b16 %v2584
    %v7433 = vunpack.c.l.b16 %v2585
    %v7434 = vunpack.c.h.b16 %v2585
    %v7435 = vunpack.c.l.b16 %v2586
    %v7436 = vunpack.c.h.b16 %v2586
    %v7437 = vunpack.c.l.b16 %v2587
    %v7438 = vunpack.c.h.b16 %v2587
    %v7439 = vunpack.c.l.b16 %v2588
    %v7440 = vunpack.c.h.b16 %v2588
    %v7441 = vunpack.c.l.b16 %v2589
    %v7442 = vunpack.c.h.b16 %v2589
    %v7443 = vunpack.c.l.b16 %v2590
    %v7444 = vunpack.c.h.b16 %v2590
    %v7445 = vunpack.c.l.b16 %v2591
    %v7446 = vunpack.c.h.b16 %v2591
    %v7447 = vunpack.c.l.b16 %v2592
    %v7448 = vunpack.c.h.b16 %v2592
    %v7449 = vunpack.c.l.b16 %v2593
    %v7450 = vunpack.c.h.b16 %v2593
    %v7451 = vunpack.c.l.b16 %v2594
    %v7452 = vunpack.c.h.b16 %v2594
    %v7453 = vunpack.c.l.b16 %v2595
    %v7454 = vunpack.c.h.b16 %v2595
    %v7455 = vunpack.c.l.b16 %v2596
    %v7456 = vunpack.c.h.b16 %v2596
    %v7457 = vpack.c.b16 %v4433, %v4385
    %v7458 = vpack.c.b16 %v4434, %v4386
    %v7459 = vpack.c.b16 %v4435, %v4387
    %v7460 = vpack.c.b16 %v4436, %v4388
    %v7461 = vpack.c.b16 %v4437, %v4389
    %v7462 = vpack.c.b16 %v4438, %v4390
    %v7463 = vpack.c.b16 %v4439, %v4391
    %v7464 = vpack.c.b16 %v4440, %v4392
    %v7465 = vpack.c.b16 %v4441, %v4393
    %v7466 = vpack.c.b16 %v4442, %v4394
    %v7467 = vpack.c.b16 %v4443, %v4395
    %v7468 = vpack.c.b16 %v4444, %v4396
    %v7469 = vpack.c.b16 %v4445, %v4397
    %v7470 = vpack.c.b16 %v4446, %v4398
    %v7471 = vpack.c.b16 %v4447, %v4399
    %v7472 = vpack.c.b16 %v4448, %v4400
    %v7473 = vpack.c.b16 %v4449, %v4401
    %v7474 = vpack.c.b16 %v4450, %v4402
    %v7475 = vpack.c.b16 %v4451, %v4403
    %v7476 = vpack.c.b16 %v4452, %v4404
    %v7477 = vpack.c.b16 %v4453, %v4405
    %v7478 = vpack.c.b16 %v4454, %v4406
    %v7479 = vpack.c.b16 %v4455, %v4407
    %v7480 = vpack.c.b16 %v4456, %v4408
    %v7481 = vpack.c.b16 %v4457, %v4409
    %v7482 = vpack.c.b16 %v4458, %v4410
    %v7483 = vpack.c.b16 %v4459, %v4411
    %v7484 = vpack.c.b16 %v4460, %v4412
    %v7485 = vpack.c.b16 %v4461, %v4413
    %v7486 = vpack.c.b16 %v4462, %v4414
    %v7487 = vpack.c.b16 %v4463, %v4415
    %v7488 = vpack.c.b16 %v4464, %v4416
    %v7489 = vpack.c.b16 %v4465, %v4417
    %v7490 = vpack.c.b16 %v4466, %v4418
    %v7491 = vpack.c.b16 %v4467, %v4419
    %v7492 = vpack.c.b16 %v4468, %v4420
    %v7493 = vpack.c.b16 %v4469, %v4421
    %v7494 = vpack.c.b16 %v4470, %v4422
    %v7495 = vpack.c.b16 %v4471, %v4423
    %v7496 = vpack.c.b16 %v4472, %v4424
    %v7497 = vpack.c.b16 %v4473, %v4425
    %v7498 = vpack.c.b16 %v4474, %v4426
    %v7499 = vpack.c.b16 %v4475, %v4427
    %v7500 = vpack.c.b16 %v4476, %v4428
    %v7501 = vpack.c.b16 %v4477, %v4429
    %v7502 = vpack.c.b16 %v4478, %v4430
    %v7503 = vpack.c.b16 %v4479, %v4431
    %v7504 = vpack.c.b16 %v4480, %v4432
    %v7505 = vpack.c.b16 %v4529, %v4481
    %v7506 = vpack.c.b16 %v4530, %v4482
    %v7507 = vpack.c.b16 %v4531, %v4483
    %v7508 = vpack.c.b16 %v4532, %v4484
    %v7509 = vpack.c.b16 %v4533, %v4485
    %v7510 = vpack.c.b16 %v4534, %v4486
    %v7511 = vpack.c.b16 %v4535, %v4487
    %v7512 = vpack.c.b16 %v4536, %v4488
    %v7513 = vpack.c.b16 %v4537, %v4489
    %v7514 = vpack.c.b16 %v4538, %v4490
    %v7515 = vpack.c.b16 %v4539, %v4491
    %v7516 = vpack.c.b16 %v4540, %v4492
    %v7517 = vpack.c.b16 %v4541, %v4493
    %v7518 = vpack.c.b16 %v4542, %v4494
    %v7519 = vpack.c.b16 %v4543, %v4495
    %v7520 = vpack.c.b16 %v4544, %v4496
    %v7521 = vpack.c.b16 %v4545, %v4497
    %v7522 = vpack.c.b16 %v4546, %v4498
    %v7523 = vpack.c.b16 %v4547, %v4499
    %v7524 = vpack.c.b16 %v4548, %v4500
    %v7525 = vpack.c.b16 %v4549, %v4501
    %v7526 = vpack.c.b16 %v4550, %v4502
    %v7527 = vpack.c.b16 %v4551, %v4503
    %v7528 = vpack.c.b16 %v4552, %v4504
    %v7529 = vpack.c.b16 %v4553, %v4505
    %v7530 = vpack.c.b16 %v4554, %v4506
    %v7531 = vpack.c.b16 %v4555, %v4507
    %v7532 = vpack.c.b16 %v4556, %v4508
    %v7533 = vpack.c.b16 %v4557, %v4509
    %v7534 = vpack.c.b16 %v4558, %v4510
    %v7535 = vpack.c.b16 %v4559, %v4511
    %v7536 = vpack.c.b16 %v4560, %v4512
    %v7537 = vpack.c.b16 %v4561, %v4513
    %v7538 = vpack.c.b16 %v4562, %v4514
    %v7539 = vpack.c.b16 %v4563, %v4515
    %v7540 = vpack.c.b16 %v4564, %v4516
    %v7541 = vpack.c.b16 %v4565, %v4517
    %v7542 = vpack.c.b16 %v4566, %v4518
    %v7543 = vpack.c.b16 %v4567, %v4519
    %v7544 = vpack.c.b16 %v4568, %v4520
    %v7545 = vpack.c.b16 %v4569, %v4521
    %v7546 = vpack.c.b16 %v4570, %v4522
    %v7547 = vpack.c.b16 %v4571, %v4523
    %v7548 = vpack.c.b16 %v4572, %v4524
    %v7549 = vpack.c.b16 %v4573, %v4525
    %v7550 = vpack.c.b16 %v4574, %v4526
    %v7551 = vpack.c.b16 %v4575, %v4527
    %v7552 = vpack.c.b16 %v4576, %v4528
    %v7553 = vpack.c.b16 %v4625, %v4577
    %v7554 = vpack.c.b16 %v4626, %v4578
    %v7555 = vpack.c.b16 %v4627, %v4579
    %v7556 = vpack.c.b16 %v4628, %v4580
    %v7557 = vpack.c.b16 %v4629, %v4581
    %v7558 = vpack.c.b16 %v4630, %v4582
    %v7559 = vpack.c.b16 %v4631, %v4583
    %v7560 = vpack.c.b16 %v4632, %v4584
    %v7561 = vpack.c.b16 %v4633, %v4585
    %v7562 = vpack.c.b16 %v4634, %v4586
    %v7563 = vpack.c.b16 %v4635, %v4587
    %v7564 = vpack.c.b16 %v4636, %v4588
    %v7565 = vpack.c.b16 %v4637, %v4589
    %v7566 = vpack.c.b16 %v4638, %v4590
    %v7567 = vpack.c.b16 %v4639, %v4591
    %v7568 = vpack.c.b16 %v4640, %v4592
    %v7569 = vpack.c.b16 %v4641, %v4593
    %v7570 = vpack.c.b16 %v4642, %v4594
    %v7571 = vpack.c.b16 %v4643, %v4595
    %v7572 = vpack.c.b16 %v4644, %v4596
    %v7573 = vpack.c.b16 %v4645, %v4597
    %v7574 = vpack.c.b16 %v4646, %v4598
    %v7575 = vpack.c.b16 %v4647, %v4599
    %v7576 = vpack.c.b16 %v4648, %v4600
    %v7577 = vpack.c.b16 %v4649, %v4601
    %v7578 = vpack.c.b16 %v4650, %v4602
    %v7579 = vpack.c.b16 %v4651, %v4603
    %v7580 = vpack.c.b16 %v4652, %v4604
    %v7581 = vpack.c.b16 %v4653, %v4605
    %v7582 = vpack.c.b16 %v4654, %v4606
    %v7583 = vpack.c.b16 %v4655, %v4607
    %v7584 = vpack.c.b16 %v4656, %v4608
    %v7585 = vpack.c.b16 %v4657, %v4609
    %v7586 = vpack.c.b16 %v4658, %v4610
    %v7587 = vpack.c.b16 %v4659, %v4611
    %v7588 = vpack.c.b16 %v4660, %v4612
    %v7589 = vpack.c.b16 %v4661, %v4613
    %v7590 = vpack.c.b16 %v4662, %v4614
    %v7591 = vpack.c.b16 %v4663, %v4615
    %v7592 = vpack.c.b16 %v4664, %v4616
    %v7593 = vpack.c.b16 %v4665, %v4617
    %v7594 = vpack.c.b16 %v4666, %v4618
    %v7595 = vpack.c.b16 %v4667, %v4619
    %v7596 = vpack.c.b16 %v4668, %v4620
    %v7597 = vpack.c.b16 %v4669, %v4621
    %v7598 = vpack.c.b16 %v4670, %v4622
    %v7599 = vpack.c.b16 %v4671, %v4623
    %v7600 = vpack.c.b16 %v4672, %v4624
    %v7601 = vpack.c.b16 %v4721, %v4673
    %v7602 = vpack.c.b16 %v4722, %v4674
    %v7603 = vpack.c.b16 %v4723, %v4675
    %v7604 = vpack.c.b16 %v4724, %v4676
    %v7605 = vpack.c.b16 %v4725, %v4677
    %v7606 = vpack.c.b16 %v4726, %v4678
    %v7607 = vpack.c.b16 %v4727, %v4679
    %v7608 = vpack.c.b16 %v4728, %v4680
    %v7609 = vpack.c.b16 %v4729, %v4681
    %v7610 = vpack.c.b16 %v4730, %v4682
    %v7611 = vpack.c.b16 %v4731, %v4683
    %v7612 = vpack.c.b16 %v4732, %v4684
    %v7613 = vpack.c.b16 %v4733, %v4685
    %v7614 = vpack.c.b16 %v4734, %v4686
    %v7615 = vpack.c.b16 %v4735, %v4687
    %v7616 = vpack.c.b16 %v4736, %v4688
    %v7617 = vpack.c.b16 %v4737, %v4689
    %v7618 = vpack.c.b16 %v4738, %v4690
    %v7619 = vpack.c.b16 %v4739, %v4691
    %v7620 = vpack.c.b16 %v4740, %v4692
    %v7621 = vpack.c.b16 %v4741, %v4693
    %v7622 = vpack.c.b16 %v4742, %v4694
    %v7623 = vpack.c.b16 %v4743, %v4695
    %v7624 = vpack.c.b16 %v4744, %v4696
    %v7625 = vpack.c.b16 %v4745, %v4697
    %v7626 = vpack.c.b16 %v4746, %v4698
    %v7627 = vpack.c.b16 %v4747, %v4699
    %v7628 = vpack.c.b16 %v4748, %v4700
    %v7629 = vpack.c.b16 %v4749, %v4701
    %v7630 = vpack.c.b16 %v4750, %v4702
    %v7631 = vpack.c.b16 %v4751, %v4703
    %v7632 = vpack.c.b16 %v4752, %v4704
    %v7633 = vpack.c.b16 %v4753, %v4705
    %v7634 = vpack.c.b16 %v4754, %v4706
    %v7635 = vpack.c.b16 %v4755, %v4707
    %v7636 = vpack.c.b16 %v4756, %v4708
    %v7637 = vpack.c.b16 %v4757, %v4709
    %v7638 = vpack.c.b16 %v4758, %v4710
    %v7639 = vpack.c.b16 %v4759, %v4711
    %v7640 = vpack.c.b16 %v4760, %v4712
    %v7641 = vpack.c.b16 %v4761, %v4713
    %v7642 = vpack.c.b16 %v4762, %v4714
    %v7643 = vpack.c.b16 %v4763, %v4715
    %v7644 = vpack.c.b16 %v4764, %v4716
    %v7645 = vpack.c.b16 %v4765, %v4717
    %v7646 = vpack.c.b16 %v4766, %v4718
    %v7647 = vpack.c.b16 %v4767, %v4719
    %v7648 = vpack.c.b16 %v4768, %v4720
    %v7649 = vpack.c.b16 %v4817, %v4769
    %v7650 = vpack.c.b16 %v4818, %v4770
    %v7651 = vpack.c.b16 %v4819, %v4771
    %v7652 = vpack.c.b16 %v4820, %v4772
    %v7653 = vpack.c.b16 %v4821, %v4773
    %v7654 = vpack.c.b16 %v4822, %v4774
    %v7655 = vpack.c.b16 %v4823, %v4775
    %v7656 = vpack.c.b16 %v4824, %v4776
    %v7657 = vpack.c.b16 %v4825, %v4777
    %v7658 = vpack.c.b16 %v4826, %v4778
    %v7659 = vpack.c.b16 %v4827, %v4779
    %v7660 = vpack.c.b16 %v4828, %v4780
    %v7661 = vpack.c.b16 %v4829, %v4781
    %v7662 = vpack.c.b16 %v4830, %v4782
    %v7663 = vpack.c.b16 %v4831, %v4783
    %v7664 = vpack.c.b16 %v4832, %v4784
    %v7665 = vpack.c.b16 %v4833, %v4785
    %v7666 = vpack.c.b16 %v4834, %v4786
    %v7667 = vpack.c.b16 %v4835, %v4787
    %v7668 = vpack.c.b16 %v4836, %v4788
    %v7669 = vpack.c.b16 %v4837, %v4789
    %v7670 = vpack.c.b16 %v4838, %v4790
    %v7671 = vpack.c.b16 %v4839, %v4791
    %v7672 = vpack.c.b16 %v4840, %v4792
    %v7673 = vpack.c.b16 %v4841, %v4793
    %v7674 = vpack.c.b16 %v4842, %v4794
    %v7675 = vpack.c.b16 %v4843, %v4795
    %v7676 = vpack.c.b16 %v4844, %v4796
    %v7677 = vpack.c.b16 %v4845, %v4797
    %v7678 = vpack.c.b16 %v4846, %v4798
    %v7679 = vpack.c.b16 %v4847, %v4799
    %v7680 = vpack.c.b16 %v4848, %v4800
    %v7681 = vpack.c.b16 %v4849, %v4801
    %v7682 = vpack.c.b16 %v4850, %v4802
    %v7683 = vpack.c.b16 %v4851, %v4803
    %v7684 = vpack.c.b16 %v4852, %v4804
    %v7685 = vpack.c.b16 %v4853, %v4805
    %v7686 = vpack.c.b16 %v4854, %v4806
    %v7687 = vpack.c.b16 %v4855, %v4807
    %v7688 = vpack.c.b16 %v4856, %v4808
    %v7689 = vpack.c.b16 %v4857, %v4809
    %v7690 = vpack.c.b16 %v4858, %v4810
    %v7691 = vpack.c.b16 %v4859, %v4811
    %v7692 = vpack.c.b16 %v4860, %v4812
    %v7693 = vpack.c.b16 %v4861, %v4813
    %v7694 = vpack.c.b16 %v4862, %v4814
    %v7695 = vpack.c.b16 %v4863, %v4815
    %v7696 = vpack.c.b16 %v4864, %v4816
    %v7697 = vpack.c.b16 %v4913, %v4865
    %v7698 = vpack.c.b16 %v4914, %v4866
    %v7699 = vpack.c.b16 %v4915, %v4867
    %v7700 = vpack.c.b16 %v4916, %v4868
    %v7701 = vpack.c.b16 %v4917, %v4869
    %v7702 = vpack.c.b16 %v4918, %v4870
    %v7703 = vpack.c.b16 %v4919, %v4871
    %v7704 = vpack.c.b16 %v4920, %v4872
    %v7705 = vpack.c.b16 %v4921, %v4873
    %v7706 = vpack.c.b16 %v4922, %v4874
    %v7707 = vpack.c.b16 %v4923, %v4875
    %v7708 = vpack.c.b16 %v4924, %v4876
    %v7709 = vpack.c.b16 %v4925, %v4877
    %v7710 = vpack.c.b16 %v4926, %v4878
    %v7711 = vpack.c.b16 %v4927, %v4879
    %v7712 = vpack.c.b16 %v4928, %v4880
    %v7713 = vpack.c.b16 %v4929, %v4881
    %v7714 = vpack.c.b16 %v4930, %v4882
    %v7715 = vpack.c.b16 %v4931, %v4883
    %v7716 = vpack.c.b16 %v4932, %v4884
    %v7717 = vpack.c.b16 %v4933, %v4885
    %v7718 = vpack.c.b16 %v4934, %v4886
    %v7719 = vpack.c.b16 %v4935, %v4887
    %v7720 = vpack.c.b16 %v4936, %v4888
    %v7721 = vpack.c.b16 %v4937, %v4889
    %v7722 = vpack.c.b16 %v4938, %v4890
    %v7723 = vpack.c.b16 %v4939, %v4891
    %v7724 = vpack.c.b16 %v4940, %v4892
    %v7725 = vpack.c.b16 %v4941, %v4893
    %v7726 = vpack.c.b16 %v4942, %v4894
    %v7727 = vpack.c.b16 %v4943, %v4895
    %v7728 = vpack.c.b16 %v4944, %v4896
    %v7729 = vpack.c.b16 %v4945, %v4897
    %v7730 = vpack.c.b16 %v4946, %v4898
    %v7731 = vpack.c.b16 %v4947, %v4899
    %v7732 = vpack.c.b16 %v4948, %v4900
    %v7733 = vpack.c.b16 %v4949, %v4901
    %v7734 = vpack.c.b16 %v4950, %v4902
    %v7735 = vpack.c.b16 %v4951, %v4903
    %v7736 = vpack.c.b16 %v4952, %v4904
    %v7737 = vpack.c.b16 %v4953, %v4905
    %v7738 = vpack.c.b16 %v4954, %v4906
    %v7739 = vpack.c.b16 %v4955, %v4907
    %v7740 = vpack.c.b16 %v4956, %v4908
    %v7741 = vpack.c.b16 %v4957, %v4909
    %v7742 = vpack.c.b16 %v4958, %v4910
    %v7743 = vpack.c.b16 %v4959, %v4911
    %v7744 = vpack.c.b16 %v4960, %v4912
    %v7745 = vpack.c.b16 %v5009, %v4961
    %v7746 = vpack.c.b16 %v5010, %v4962
    %v7747 = vpack.c.b16 %v5011, %v4963
    %v7748 = vpack.c.b16 %v5012, %v4964
    %v7749 = vpack.c.b16 %v5013, %v4965
    %v7750 = vpack.c.b16 %v5014, %v4966
    %v7751 = vpack.c.b16 %v5015, %v4967
    %v7752 = vpack.c.b16 %v5016, %v4968
    %v7753 = vpack.c.b16 %v5017, %v4969
    %v7754 = vpack.c.b16 %v5018, %v4970
    %v7755 = vpack.c.b16 %v5019, %v4971
    %v7756 = vpack.c.b16 %v5020, %v4972
    %v7757 = vpack.c.b16 %v5021, %v4973
    %v7758 = vpack.c.b16 %v5022, %v4974
    %v7759 = vpack.c.b16 %v5023, %v4975
    %v7760 = vpack.c.b16 %v5024, %v4976
    %v7761 = vpack.c.b16 %v5025, %v4977
    %v7762 = vpack.c.b16 %v5026, %v4978
    %v7763 = vpack.c.b16 %v5027, %v4979
    %v7764 = vpack.c.b16 %v5028, %v4980
    %v7765 = vpack.c.b16 %v5029, %v4981
    %v7766 = vpack.c.b16 %v5030, %v4982
    %v7767 = vpack.c.b16 %v5031, %v4983
    %v7768 = vpack.c.b16 %v5032, %v4984
    %v7769 = vpack.c.b16 %v5033, %v4985
    %v7770 = vpack.c.b16 %v5034, %v4986
    %v7771 = vpack.c.b16 %v5035, %v4987
    %v7772 = vpack.c.b16 %v5036, %v4988
    %v7773 = vpack.c.b16 %v5037, %v4989
    %v7774 = vpack.c.b16 %v5038, %v4990
    %v7775 = vpack.c.b16 %v5039, %v4991
    %v7776 = vpack.c.b16 %v5040, %v4992
    %v7777 = vpack.c.b16 %v5041, %v4993
    %v7778 = vpack.c.b16 %v5042, %v4994
    %v7779 = vpack.c.b16 %v5043, %v4995
    %v7780 = vpack.c.b16 %v5044, %v4996
    %v7781 = vpack.c.b16 %v5045, %v4997
    %v7782 = vpack.c.b16 %v5046, %v4998
    %v7783 = vpack.c.b16 %v5047, %v4999
    %v7784 = vpack.c.b16 %v5048, %v5000
    %v7785 = vpack.c.b16 %v5049, %v5001
    %v7786 = vpack.c.b16 %v5050, %v5002
    %v7787 = vpack.c.b16 %v5051, %v5003
    %v7788 = vpack.c.b16 %v5052, %v5004
    %v7789 = vpack.c.b16 %v5053, %v5005
    %v7790 = vpack.c.b16 %v5054, %v5006
    %v7791 = vpack.c.b16 %v5055, %v5007
    %v7792 = vpack.c.b16 %v5056, %v5008
    %v7793 = vpack.c.b16 %v5105, %v5057
    %v7794 = vpack.c.b16 %v5106, %v5058
    %v7795 = vpack.c.b16 %v5107, %v5059
    %v7796 = vpack.c.b16 %v5108, %v5060
    %v7797 = vpack.c.b16 %v5109, %v5061
    %v7798 = vpack.c.b16 %v5110, %v5062
    %v7799 = vpack.c.b16 %v5111, %v5063
    %v7800 = vpack.c.b16 %v5112, %v5064
    %v7801 = vpack.c.b16 %v5113, %v5065
    %v7802 = vpack.c.b16 %v5114, %v5066
    %v7803 = vpack.c.b16 %v5115, %v5067
    %v7804 = vpack.c.b16 %v5116, %v5068
    %v7805 = vpack.c.b16 %v5117, %v5069
    %v7806 = vpack.c.b16 %v5118, %v5070
    %v7807 = vpack.c.b16 %v5119, %v5071
    %v7808 = vpack.c.b16 %v5120, %v5072
    %v7809 = vpack.c.b16 %v5121, %v5073
    %v7810 = vpack.c.b16 %v5122, %v5074
    %v7811 = vpack.c.b16 %v5123, %v5075
    %v7812 = vpack.c.b16 %v5124, %v5076
    %v7813 = vpack.c.b16 %v5125, %v5077
    %v7814 = vpack.c.b16 %v5126, %v5078
    %v7815 = vpack.c.b16 %v5127, %v5079
    %v7816 = vpack.c.b16 %v5128, %v5080
    %v7817 = vpack.c.b16 %v5129, %v5081
    %v7818 = vpack.c.b16 %v5130, %v5082
    %v7819 = vpack.c.b16 %v5131, %v5083
    %v7820 = vpack.c.b16 %v5132, %v5084
    %v7821 = vpack.c.b16 %v5133, %v5085
    %v7822 = vpack.c.b16 %v5134, %v5086
    %v7823 = vpack.c.b16 %v5135, %v5087
    %v7824 = vpack.c.b16 %v5136, %v5088
    %v7825 = vpack.c.b16 %v5137, %v5089
    %v7826 = vpack.c.b16 %v5138, %v5090
    %v7827 = vpack.c.b16 %v5139, %v5091
    %v7828 = vpack.c.b16 %v5140, %v5092
    %v7829 = vpack.c.b16 %v5141, %v5093
    %v7830 = vpack.c.b16 %v5142, %v5094
    %v7831 = vpack.c.b16 %v5143, %v5095
    %v7832 = vpack.c.b16 %v5144, %v5096
    %v7833 = vpack.c.b16 %v5145, %v5097
    %v7834 = vpack.c.b16 %v5146, %v5098
    %v7835 = vpack.c.b16 %v5147, %v5099
    %v7836 = vpack.c.b16 %v5148, %v5100
    %v7837 = vpack.c.b16 %v5149, %v5101
    %v7838 = vpack.c.b16 %v5150, %v5102
    %v7839 = vpack.c.b16 %v5151, %v5103
    %v7840 = vpack.c.b16 %v5152, %v5104
    %v7841 = vpack.c.b16 %v5201, %v5153
    %v7842 = vpack.c.b16 %v5202, %v5154
    %v7843 = vpack.c.b16 %v5203, %v5155
    %v7844 = vpack.c.b16 %v5204, %v5156
    %v7845 = vpack.c.b16 %v5205, %v5157
    %v7846 = vpack.c.b16 %v5206, %v5158
    %v7847 = vpack.c.b16 %v5207, %v5159
    %v7848 = vpack.c.b16 %v5208, %v5160
    %v7849 = vpack.c.b16 %v5209, %v5161
    %v7850 = vpack.c.b16 %v5210, %v5162
    %v7851 = vpack.c.b16 %v5211, %v5163
    %v7852 = vpack.c.b16 %v5212, %v5164
    %v7853 = vpack.c.b16 %v5213, %v5165
    %v7854 = vpack.c.b16 %v5214, %v5166
    %v7855 = vpack.c.b16 %v5215, %v5167
    %v7856 = vpack.c.b16 %v5216, %v5168
    %v7857 = vpack.c.b16 %v5217, %v5169
    %v7858 = vpack.c.b16 %v5218, %v5170
    %v7859 = vpack.c.b16 %v5219, %v5171
    %v7860 = vpack.c.b16 %v5220, %v5172
    %v7861 = vpack.c.b16 %v5221, %v5173
    %v7862 = vpack.c.b16 %v5222, %v5174
    %v7863 = vpack.c.b16 %v5223, %v5175
    %v7864 = vpack.c.b16 %v5224, %v5176
    %v7865 = vpack.c.b16 %v5225, %v5177
    %v7866 = vpack.c.b16 %v5226, %v5178
    %v7867 = vpack.c.b16 %v5227, %v5179
    %v7868 = vpack.c.b16 %v5228, %v5180
    %v7869 = vpack.c.b16 %v5229, %v5181
    %v7870 = vpack.c.b16 %v5230, %v5182
    %v7871 = vpack.c.b16 %v5231, %v5183
    %v7872 = vpack.c.b16 %v5232, %v5184
    %v7873 = vpack.c.b16 %v5233, %v5185
    %v7874 = vpack.c.b16 %v5234, %v5186
    %v7875 = vpack.c.b16 %v5235, %v5187
    %v7876 = vpack.c.b16 %v5236, %v5188
    %v7877 = vpack.c.b16 %v5237, %v5189
    %v7878 = vpack.c.b16 %v5238, %v5190
    %v7879 = vpack.c.b16 %v5239, %v5191
    %v7880 = vpack.c.b16 %v5240, %v5192
    %v7881 = vpack.c.b16 %v5241, %v5193
    %v7882 = vpack.c.b16 %v5242, %v5194
    %v7883 = vpack.c.b16 %v5243, %v5195
    %v7884 = vpack.c.b16 %v5244, %v5196
    %v7885 = vpack.c.b16 %v5245, %v5197
    %v7886 = vpack.c.b16 %v5246, %v5198
    %v7887 = vpack.c.b16 %v5247, %v5199
    %v7888 = vpack.c.b16 %v5248, %v5200
    %v7889 = vpack.c.b16 %v5297, %v5249
    %v7890 = vpack.c.b16 %v5298, %v5250
    %v7891 = vpack.c.b16 %v5299, %v5251
    %v7892 = vpack.c.b16 %v5300, %v5252
    %v7893 = vpack.c.b16 %v5301, %v5253
    %v7894 = vpack.c.b16 %v5302, %v5254
    %v7895 = vpack.c.b16 %v5303, %v5255
    %v7896 = vpack.c.b16 %v5304, %v5256
    %v7897 = vpack.c.b16 %v5305, %v5257
    %v7898 = vpack.c.b16 %v5306, %v5258
    %v7899 = vpack.c.b16 %v5307, %v5259
    %v7900 = vpack.c.b16 %v5308, %v5260
    %v7901 = vpack.c.b16 %v5309, %v5261
    %v7902 = vpack.c.b16 %v5310, %v5262
    %v7903 = vpack.c.b16 %v5311, %v5263
    %v7904 = vpack.c.b16 %v5312, %v5264
    %v7905 = vpack.c.b16 %v5313, %v5265
    %v7906 = vpack.c.b16 %v5314, %v5266
    %v7907 = vpack.c.b16 %v5315, %v5267
    %v7908 = vpack.c.b16 %v5316, %v5268
    %v7909 = vpack.c.b16 %v5317, %v5269
    %v7910 = vpack.c.b16 %v5318, %v5270
    %v7911 = vpack.c.b16 %v5319, %v5271
    %v7912 = vpack.c.b16 %v5320, %v5272
    %v7913 = vpack.c.b16 %v5321, %v5273
    %v7914 = vpack.c.b16 %v5322, %v5274
    %v7915 = vpack.c.b16 %v5323, %v5275
    %v7916 = vpack.c.b16 %v5324, %v5276
    %v7917 = vpack.c.b16 %v5325, %v5277
    %v7918 = vpack.c.b16 %v5326, %v5278
    %v7919 = vpack.c.b16 %v5327, %v5279
    %v7920 = vpack.c.b16 %v5328, %v5280
    %v7921 = vpack.c.b16 %v5329, %v5281
    %v7922 = vpack.c.b16 %v5330, %v5282
    %v7923 = vpack.c.b16 %v5331, %v5283
    %v7924 = vpack.c.b16 %v5332, %v5284
    %v7925 = vpack.c.b16 %v5333, %v5285
    %v7926 = vpack.c.b16 %v5334, %v5286
    %v7927 = vpack.c.b16 %v5335, %v5287
    %v7928 = vpack.c.b16 %v5336, %v5288
    %v7929 = vpack.c.b16 %v5337, %v5289
    %v7930 = vpack.c.b16 %v5338, %v5290
    %v7931 = vpack.c.b16 %v5339, %v5291
    %v7932 = vpack.c.b16 %v5340, %v5292
    %v7933 = vpack.c.b16 %v5341, %v5293
    %v7934 = vpack.c.b16 %v5342, %v5294
    %v7935 = vpack.c.b16 %v5343, %v5295
    %v7936 = vpack.c.b16 %v5344, %v5296
    %v7937 = vpack.c.b16 %v5393, %v5345
    %v7938 = vpack.c.b16 %v5394, %v5346
    %v7939 = vpack.c.b16 %v5395, %v5347
    %v7940 = vpack.c.b16 %v5396, %v5348
    %v7941 = vpack.c.b16 %v5397, %v5349
    %v7942 = vpack.c.b16 %v5398, %v5350
    %v7943 = vpack.c.b16 %v5399, %v5351
    %v7944 = vpack.c.b16 %v5400, %v5352
    %v7945 = vpack.c.b16 %v5401, %v5353
    %v7946 = vpack.c.b16 %v5402, %v5354
    %v7947 = vpack.c.b16 %v5403, %v5355
    %v7948 = vpack.c.b16 %v5404, %v5356
    %v7949 = vpack.c.b16 %v5405, %v5357
    %v7950 = vpack.c.b16 %v5406, %v5358
    %v7951 = vpack.c.b16 %v5407, %v5359
    %v7952 = vpack.c.b16 %v5408, %v5360
    %v7953 = vpack.c.b16 %v5409, %v5361
    %v7954 = vpack.c.b16 %v5410, %v5362
    %v7955 = vpack.c.b16 %v5411, %v5363
    %v7956 = vpack.c.b16 %v5412, %v5364
    %v7957 = vpack.c.b16 %v5413, %v5365
    %v7958 = vpack.c.b16 %v5414, %v5366
    %v7959 = vpack.c.b16 %v5415, %v5367
    %v7960 = vpack.c.b16 %v5416, %v5368
    %v7961 = vpack.c.b16 %v5417, %v5369
    %v7962 = vpack.c.b16 %v5418, %v5370
    %v7963 = vpack.c.b16 %v5419, %v5371
    %v7964 = vpack.c.b16 %v5420, %v5372
    %v7965 = vpack.c.b16 %v5421, %v5373
    %v7966 = vpack.c.b16 %v5422, %v5374
    %v7967 = vpack.c.b16 %v5423, %v5375
    %v7968 = vpack.c.b16 %v5424, %v5376
    %v7969 = vpack.c.b16 %v5425, %v5377
    %v7970 = vpack.c.b16 %v5426, %v5378
    %v7971 = vpack.c.b16 %v5427, %v5379
    %v7972 = vpack.c.b16 %v5428, %v5380
    %v7973 = vpack.c.b16 %v5429, %v5381
    %v7974 = vpack.c.b16 %v5430, %v5382
    %v7975 = vpack.c.b16 %v5431, %v5383
    %v7976 = vpack.c.b16 %v5432, %v5384
    %v7977 = vpack.c.b16 %v5433, %v5385
    %v7978 = vpack.c.b16 %v5434, %v5386
    %v7979 = vpack.c.b16 %v5435, %v5387
    %v7980 = vpack.c.b16 %v5436, %v5388
    %v7981 = vpack.c.b16 %v5437, %v5389
    %v7982 = vpack.c.b16 %v5438, %v5390
    %v7983 = vpack.c.b16 %v5439, %v5391
    %v7984 = vpack.c.b16 %v5440, %v5392
    %v7985 = vpack.c.b16 %v5489, %v5441
    %v7986 = vpack.c.b16 %v5490, %v5442
    %v7987 = vpack.c.b16 %v5491, %v5443
    %v7988 = vpack.c.b16 %v5492, %v5444
    %v7989 = vpack.c.b16 %v5493, %v5445
    %v7990 = vpack.c.b16 %v5494, %v5446
    %v7991 = vpack.c.b16 %v5495, %v5447
    %v7992 = vpack.c.b16 %v5496, %v5448
    %v7993 = vpack.c.b16 %v5497, %v5449
    %v7994 = vpack.c.b16 %v5498, %v5450
    %v7995 = vpack.c.b16 %v5499, %v5451
    %v7996 = vpack.c.b16 %v5500, %v5452
    %v7997 = vpack.c.b16 %v5501, %v5453
    %v7998 = vpack.c.b16 %v5502, %v5454
    %v7999 = vpack.c.b16 %v5503, %v5455
    %v8000 = vpack.c.b16 %v5504, %v5456
    %v8001 = vpack.c.b16 %v5505, %v5457
    %v8002 = vpack.c.b16 %v5506, %v5458
    %v8003 = vpack.c.b16 %v5507, %v5459
    %v8004 = vpack.c.b16 %v5508, %v5460
    %v8005 = vpack.c.b16 %v5509, %v5461
    %v8006 = vpack.c.b16 %v5510, %v5462
    %v8007 = vpack.c.b16 %v5511, %v5463
    %v8008 = vpack.c.b16 %v5512, %v5464
    %v8009 = vpack.c.b16 %v5513, %v5465
    %v8010 = vpack.c.b16 %v5514, %v5466
    %v8011 = vpack.c.b16 %v5515, %v5467
    %v8012 = vpack.c.b16 %v5516, %v5468
    %v8013 = vpack.c.b16 %v5517, %v5469
    %v8014 = vpack.c.b16 %v5518, %v5470
    %v8015 = vpack.c.b16 %v5519, %v5471
    %v8016 = vpack.c.b16 %v5520, %v5472
    %v8017 = vpack.c.b16 %v5521, %v5473
    %v8018 = vpack.c.b16 %v5522, %v5474
    %v8019 = vpack.c.b16 %v5523, %v5475
    %v8020 = vpack.c.b16 %v5524, %v5476
    %v8021 = vpack.c.b16 %v5525, %v5477
    %v8022 = vpack.c.b16 %v5526, %v5478
    %v8023 = vpack.c.b16 %v5527, %v5479
    %v8024 = vpack.c.b16 %v5528, %v5480
    %v8025 = vpack.c.b16 %v5529, %v5481
    %v8026 = vpack.c.b16 %v5530, %v5482
    %v8027 = vpack.c.b16 %v5531, %v5483
    %v8028 = vpack.c.b16 %v5532, %v5484
    %v8029 = vpack.c.b16 %v5533, %v5485
    %v8030 = vpack.c.b16 %v5534, %v5486
    %v8031 = vpack.c.b16 %v5535, %v5487
    %v8032 = vpack.c.b16 %v5536, %v5488
    %v8033 = vpack.c.b16 %v5585, %v5537
    %v8034 = vpack.c.b16 %v5586, %v5538
    %v8035 = vpack.c.b16 %v5587, %v5539
    %v8036 = vpack.c.b16 %v5588, %v5540
    %v8037 = vpack.c.b16 %v5589, %v5541
    %v8038 = vpack.c.b16 %v5590, %v5542
    %v8039 = vpack.c.b16 %v5591, %v5543
    %v8040 = vpack.c.b16 %v5592, %v5544
    %v8041 = vpack.c.b16 %v5593, %v5545
    %v8042 = vpack.c.b16 %v5594, %v5546
    %v8043 = vpack.c.b16 %v5595, %v5547
    %v8044 = vpack.c.b16 %v5596, %v5548
    %v8045 = vpack.c.b16 %v5597, %v5549
    %v8046 = vpack.c.b16 %v5598, %v5550
    %v8047 = vpack.c.b16 %v5599, %v5551
    %v8048 = vpack.c.b16 %v5600, %v5552
    %v8049 = vpack.c.b16 %v5601, %v5553
    %v8050 = vpack.c.b16 %v5602, %v5554
    %v8051 = vpack.c.b16 %v5603, %v5555
    %v8052 = vpack.c.b16 %v5604, %v5556
    %v8053 = vpack.c.b16 %v5605, %v5557
    %v8054 = vpack.c.b16 %v5606, %v5558
    %v8055 = vpack.c.b16 %v5607, %v5559
    %v8056 = vpack.c.b16 %v5608, %v5560
    %v8057 = vpack.c.b16 %v5609, %v5561
    %v8058 = vpack.c.b16 %v5610, %v5562
    %v8059 = vpack.c.b16 %v5611, %v5563
    %v8060 = vpack.c.b16 %v5612, %v5564
    %v8061 = vpack.c.b16 %v5613, %v5565
    %v8062 = vpack.c.b16 %v5614, %v5566
    %v8063 = vpack.c.b16 %v5615, %v5567
    %v8064 = vpack.c.b16 %v5616, %v5568
    %v8065 = vpack.c.b16 %v5617, %v5569
    %v8066 = vpack.c.b16 %v5618, %v5570
    %v8067 = vpack.c.b16 %v5619, %v5571
    %v8068 = vpack.c.b16 %v5620, %v5572
    %v8069 = vpack.c.b16 %v5621, %v5573
    %v8070 = vpack.c.b16 %v5622, %v5574
    %v8071 = vpack.c.b16 %v5623, %v5575
    %v8072 = vpack.c.b16 %v5624, %v5576
    %v8073 = vpack.c.b16 %v5625, %v5577
    %v8074 = vpack.c.b16 %v5626, %v5578
    %v8075 = vpack.c.b16 %v5627, %v5579
    %v8076 = vpack.c.b16 %v5628, %v5580
    %v8077 = vpack.c.b16 %v5629, %v5581
    %v8078 = vpack.c.b16 %v5630, %v5582
    %v8079 = vpack.c.b16 %v5631, %v5583
    %v8080 = vpack.c.b16 %v5632, %v5584
    %v8081 = vpack.c.b16 %v5681, %v5633
    %v8082 = vpack.c.b16 %v5682, %v5634
    %v8083 = vpack.c.b16 %v5683, %v5635
    %v8084 = vpack.c.b16 %v5684, %v5636
    %v8085 = vpack.c.b16 %v5685, %v5637
    %v8086 = vpack.c.b16 %v5686, %v5638
    %v8087 = vpack.c.b16 %v5687, %v5639
    %v8088 = vpack.c.b16 %v5688, %v5640
    %v8089 = vpack.c.b16 %v5689, %v5641
    %v8090 = vpack.c.b16 %v5690, %v5642
    %v8091 = vpack.c.b16 %v5691, %v5643
    %v8092 = vpack.c.b16 %v5692, %v5644
    %v8093 = vpack.c.b16 %v5693, %v5645
    %v8094 = vpack.c.b16 %v5694, %v5646
    %v8095 = vpack.c.b16 %v5695, %v5647
    %v8096 = vpack.c.b16 %v5696, %v5648
    %v8097 = vpack.c.b16 %v5697, %v5649
    %v8098 = vpack.c.b16 %v5698, %v5650
    %v8099 = vpack.c.b16 %v5699, %v5651
    %v8100 = vpack.c.b16 %v5700, %v5652
    %v8101 = vpack.c.b16 %v5701, %v5653
    %v8102 = vpack.c.b16 %v5702, %v5654
    %v8103 = vpack.c.b16 %v5703, %v5655
    %v8104 = vpack.c.b16 %v5704, %v5656
    %v8105 = vpack.c.b16 %v5705, %v5657
    %v8106 = vpack.c.b16 %v5706, %v5658
    %v8107 = vpack.c.b16 %v5707, %v5659
    %v8108 = vpack.c.b16 %v5708, %v5660
    %v8109 = vpack.c.b16 %v5709, %v5661
    %v8110 = vpack.c.b16 %v5710, %v5662
    %v8111 = vpack.c.b16 %v5711, %v5663
    %v8112 = vpack.c.b16 %v5712, %v5664
    %v8113 = vpack.c.b16 %v5713, %v5665
    %v8114 = vpack.c.b16 %v5714, %v5666
    %v8115 = vpack.c.b16 %v5715, %v5667
    %v8116 = vpack.c.b16 %v5716, %v5668
    %v8117 = vpack.c.b16 %v5717, %v5669
    %v8118 = vpack.c.b16 %v5718, %v5670
    %v8119 = vpack.c.b16 %v5719, %v5671
    %v8120 = vpack.c.b16 %v5720, %v5672
    %v8121 = vpack.c.b16 %v5721, %v5673
    %v8122 = vpack.c.b16 %v5722, %v5674
    %v8123 = vpack.c.b16 %v5723, %v5675
    %v8124 = vpack.c.b16 %v5724, %v5676
    %v8125 = vpack.c.b16 %v5725, %v5677
    %v8126 = vpack.c.b16 %v5726, %v5678
    %v8127 = vpack.c.b16 %v5727, %v5679
    %v8128 = vpack.c.b16 %v5728, %v5680
    %v8129 = vpack.c.b16 %v5777, %v5729
    %v8130 = vpack.c.b16 %v5778, %v5730
    %v8131 = vpack.c.b16 %v5779, %v5731
    %v8132 = vpack.c.b16 %v5780, %v5732
    %v8133 = vpack.c.b16 %v5781, %v5733
    %v8134 = vpack.c.b16 %v5782, %v5734
    %v8135 = vpack.c.b16 %v5783, %v5735
    %v8136 = vpack.c.b16 %v5784, %v5736
    %v8137 = vpack.c.b16 %v5785, %v5737
    %v8138 = vpack.c.b16 %v5786, %v5738
    %v8139 = vpack.c.b16 %v5787, %v5739
    %v8140 = vpack.c.b16 %v5788, %v5740
    %v8141 = vpack.c.b16 %v5789, %v5741
    %v8142 = vpack.c.b16 %v5790, %v5742
    %v8143 = vpack.c.b16 %v5791, %v5743
    %v8144 = vpack.c.b16 %v5792, %v5744
    %v8145 = vpack.c.b16 %v5793, %v5745
    %v8146 = vpack.c.b16 %v5794, %v5746
    %v8147 = vpack.c.b16 %v5795, %v5747
    %v8148 = vpack.c.b16 %v5796, %v5748
    %v8149 = vpack.c.b16 %v5797, %v5749
    %v8150 = vpack.c.b16 %v5798, %v5750
    %v8151 = vpack.c.b16 %v5799, %v5751
    %v8152 = vpack.c.b16 %v5800, %v5752
    %v8153 = vpack.c.b16 %v5801, %v5753
    %v8154 = vpack.c.b16 %v5802, %v5754
    %v8155 = vpack.c.b16 %v5803, %v5755
    %v8156 = vpack.c.b16 %v5804, %v5756
    %v8157 = vpack.c.b16 %v5805, %v5757
    %v8158 = vpack.c.b16 %v5806, %v5758
    %v8159 = vpack.c.b16 %v5807, %v5759
    %v8160 = vpack.c.b16 %v5808, %v5760
    %v8161 = vpack.c.b16 %v5809, %v5761
    %v8162 = vpack.c.b16 %v5810, %v5762
    %v8163 = vpack.c.b16 %v5811, %v5763
    %v8164 = vpack.c.b16 %v5812, %v5764
    %v8165 = vpack.c.b16 %v5813, %v5765
    %v8166 = vpack.c.b16 %v5814, %v5766
    %v8167 = vpack.c.b16 %v5815, %v5767
    %v8168 = vpack.c.b16 %v5816, %v5768
    %v8169 = vpack.c.b16 %v5817, %v5769
    %v8170 = vpack.c.b16 %v5818, %v5770
    %v8171 = vpack.c.b16 %v5819, %v5771
    %v8172 = vpack.c.b16 %v5820, %v5772
    %v8173 = vpack.c.b16 %v5821, %v5773
    %v8174 = vpack.c.b16 %v5822, %v5774
    %v8175 = vpack.c.b16 %v5823, %v5775
    %v8176 = vpack.c.b16 %v5824, %v5776
    %v8177 = vpack.c.b16 %v5873, %v5825
    %v8178 = vpack.c.b16 %v5874, %v5826
    %v8179 = vpack.c.b16 %v5875, %v5827
    %v8180 = vpack.c.b16 %v5876, %v5828
    %v8181 = vpack.c.b16 %v5877, %v5829
    %v8182 = vpack.c.b16 %v5878, %v5830
    %v8183 = vpack.c.b16 %v5879, %v5831
    %v8184 = vpack.c.b16 %v5880, %v5832
    %v8185 = vpack.c.b16 %v5881, %v5833
    %v8186 = vpack.c.b16 %v5882, %v5834
    %v8187 = vpack.c.b16 %v5883, %v5835
    %v8188 = vpack.c.b16 %v5884, %v5836
    %v8189 = vpack.c.b16 %v5885, %v5837
    %v8190 = vpack.c.b16 %v5886, %v5838
    %v8191 = vpack.c.b16 %v5887, %v5839
    %v8192 = vpack.c.b16 %v5888, %v5840
    %v8193 = vpack.c.b16 %v5889, %v5841
    %v8194 = vpack.c.b16 %v5890, %v5842
    %v8195 = vpack.c.b16 %v5891, %v5843
    %v8196 = vpack.c.b16 %v5892, %v5844
    %v8197 = vpack.c.b16 %v5893, %v5845
    %v8198 = vpack.c.b16 %v5894, %v5846
    %v8199 = vpack.c.b16 %v5895, %v5847
    %v8200 = vpack.c.b16 %v5896, %v5848
    %v8201 = vpack.c.b16 %v5897, %v5849
    %v8202 = vpack.c.b16 %v5898, %v5850
    %v8203 = vpack.c.b16 %v5899, %v5851
    %v8204 = vpack.c.b16 %v5900, %v5852
    %v8205 = vpack.c.b16 %v5901, %v5853
    %v8206 = vpack.c.b16 %v5902, %v5854
    %v8207 = vpack.c.b16 %v5903, %v5855
    %v8208 = vpack.c.b16 %v5904, %v5856
    %v8209 = vpack.c.b16 %v5905, %v5857
    %v8210 = vpack.c.b16 %v5906, %v5858
    %v8211 = vpack.c.b16 %v5907, %v5859
    %v8212 = vpack.c.b16 %v5908, %v5860
    %v8213 = vpack.c.b16 %v5909, %v5861
    %v8214 = vpack.c.b16 %v5910, %v5862
    %v8215 = vpack.c.b16 %v5911, %v5863
    %v8216 = vpack.c.b16 %v5912, %v5864
    %v8217 = vpack.c.b16 %v5913, %v5865
    %v8218 = vpack.c.b16 %v5914, %v5866
    %v8219 = vpack.c.b16 %v5915, %v5867
    %v8220 = vpack.c.b16 %v5916, %v5868
    %v8221 = vpack.c.b16 %v5917, %v5869
    %v8222 = vpack.c.b16 %v5918, %v5870
    %v8223 = vpack.c.b16 %v5919, %v5871
    %v8224 = vpack.c.b16 %v5920, %v5872
    %v8225 = vpack.c.b16 %v5969, %v5921
    %v8226 = vpack.c.b16 %v5970, %v5922
    %v8227 = vpack.c.b16 %v5971, %v5923
    %v8228 = vpack.c.b16 %v5972, %v5924
    %v8229 = vpack.c.b16 %v5973, %v5925
    %v8230 = vpack.c.b16 %v5974, %v5926
    %v8231 = vpack.c.b16 %v5975, %v5927
    %v8232 = vpack.c.b16 %v5976, %v5928
    %v8233 = vpack.c.b16 %v5977, %v5929
    %v8234 = vpack.c.b16 %v5978, %v5930
    %v8235 = vpack.c.b16 %v5979, %v5931
    %v8236 = vpack.c.b16 %v5980, %v5932
    %v8237 = vpack.c.b16 %v5981, %v5933
    %v8238 = vpack.c.b16 %v5982, %v5934
    %v8239 = vpack.c.b16 %v5983, %v5935
    %v8240 = vpack.c.b16 %v5984, %v5936
    %v8241 = vpack.c.b16 %v5985, %v5937
    %v8242 = vpack.c.b16 %v5986, %v5938
    %v8243 = vpack.c.b16 %v5987, %v5939
    %v8244 = vpack.c.b16 %v5988, %v5940
    %v8245 = vpack.c.b16 %v5989, %v5941
    %v8246 = vpack.c.b16 %v5990, %v5942
    %v8247 = vpack.c.b16 %v5991, %v5943
    %v8248 = vpack.c.b16 %v5992, %v5944
    %v8249 = vpack.c.b16 %v5993, %v5945
    %v8250 = vpack.c.b16 %v5994, %v5946
    %v8251 = vpack.c.b16 %v5995, %v5947
    %v8252 = vpack.c.b16 %v5996, %v5948
    %v8253 = vpack.c.b16 %v5997, %v5949
    %v8254 = vpack.c.b16 %v5998, %v5950
    %v8255 = vpack.c.b16 %v5999, %v5951
    %v8256 = vpack.c.b16 %v6000, %v5952
    %v8257 = vpack.c.b16 %v6001, %v5953
    %v8258 = vpack.c.b16 %v6002, %v5954
    %v8259 = vpack.c.b16 %v6003, %v5955
    %v8260 = vpack.c.b16 %v6004, %v5956
    %v8261 = vpack.c.b16 %v6005, %v5957
    %v8262 = vpack.c.b16 %v6006, %v5958
    %v8263 = vpack.c.b16 %v6007, %v5959
    %v8264 = vpack.c.b16 %v6008, %v5960
    %v8265 = vpack.c.b16 %v6009, %v5961
    %v8266 = vpack.c.b16 %v6010, %v5962
    %v8267 = vpack.c.b16 %v6011, %v5963
    %v8268 = vpack.c.b16 %v6012, %v5964
    %v8269 = vpack.c.b16 %v6013, %v5965
    %v8270 = vpack.c.b16 %v6014, %v5966
    %v8271 = vpack.c.b16 %v6015, %v5967
    %v8272 = vpack.c.b16 %v6016, %v5968
    %v8273 = vpack.c.b16 %v6065, %v6017
    %v8274 = vpack.c.b16 %v6066, %v6018
    %v8275 = vpack.c.b16 %v6067, %v6019
    %v8276 = vpack.c.b16 %v6068, %v6020
    %v8277 = vpack.c.b16 %v6069, %v6021
    %v8278 = vpack.c.b16 %v6070, %v6022
    %v8279 = vpack.c.b16 %v6071, %v6023
    %v8280 = vpack.c.b16 %v6072, %v6024
    %v8281 = vpack.c.b16 %v6073, %v6025
    %v8282 = vpack.c.b16 %v6074, %v6026
    %v8283 = vpack.c.b16 %v6075, %v6027
    %v8284 = vpack.c.b16 %v6076, %v6028
    %v8285 = vpack.c.b16 %v6077, %v6029
    %v8286 = vpack.c.b16 %v6078, %v6030
    %v8287 = vpack.c.b16 %v6079, %v6031
    %v8288 = vpack.c.b16 %v6080, %v6032
    %v8289 = vpack.c.b16 %v6081, %v6033
    %v8290 = vpack.c.b16 %v6082, %v6034
    %v8291 = vpack.c.b16 %v6083, %v6035
    %v8292 = vpack.c.b16 %v6084, %v6036
    %v8293 = vpack.c.b16 %v6085, %v6037
    %v8294 = vpack.c.b16 %v6086, %v6038
    %v8295 = vpack.c.b16 %v6087, %v6039
    %v8296 = vpack.c.b16 %v6088, %v6040
    %v8297 = vpack.c.b16 %v6089, %v6041
    %v8298 = vpack.c.b16 %v6090, %v6042
    %v8299 = vpack.c.b16 %v6091, %v6043
    %v8300 = vpack.c.b16 %v6092, %v6044
    %v8301 = vpack.c.b16 %v6093, %v6045
    %v8302 = vpack.c.b16 %v6094, %v6046
    %v8303 = vpack.c.b16 %v6095, %v6047
    %v8304 = vpack.c.b16 %v6096, %v6048
    %v8305 = vpack.c.b16 %v6097, %v6049
    %v8306 = vpack.c.b16 %v6098, %v6050
    %v8307 = vpack.c.b16 %v6099, %v6051
    %v8308 = vpack.c.b16 %v6100, %v6052
    %v8309 = vpack.c.b16 %v6101, %v6053
    %v8310 = vpack.c.b16 %v6102, %v6054
    %v8311 = vpack.c.b16 %v6103, %v6055
    %v8312 = vpack.c.b16 %v6104, %v6056
    %v8313 = vpack.c.b16 %v6105, %v6057
    %v8314 = vpack.c.b16 %v6106, %v6058
    %v8315 = vpack.c.b16 %v6107, %v6059
    %v8316 = vpack.c.b16 %v6108, %v6060
    %v8317 = vpack.c.b16 %v6109, %v6061
    %v8318 = vpack.c.b16 %v6110, %v6062
    %v8319 = vpack.c.b16 %v6111, %v6063
    %v8320 = vpack.c.b16 %v6112, %v6064
    %v8321 = vpack.c.b16 %v6161, %v6113
    %v8322 = vpack.c.b16 %v6162, %v6114
    %v8323 = vpack.c.b16 %v6163, %v6115
    %v8324 = vpack.c.b16 %v6164, %v6116
    %v8325 = vpack.c.b16 %v6165, %v6117
    %v8326 = vpack.c.b16 %v6166, %v6118
    %v8327 = vpack.c.b16 %v6167, %v6119
    %v8328 = vpack.c.b16 %v6168, %v6120
    %v8329 = vpack.c.b16 %v6169, %v6121
    %v8330 = vpack.c.b16 %v6170, %v6122
    %v8331 = vpack.c.b16 %v6171, %v6123
    %v8332 = vpack.c.b16 %v6172, %v6124
    %v8333 = vpack.c.b16 %v6173, %v6125
    %v8334 = vpack.c.b16 %v6174, %v6126
    %v8335 = vpack.c.b16 %v6175, %v6127
    %v8336 = vpack.c.b16 %v6176, %v6128
    %v8337 = vpack.c.b16 %v6177, %v6129
    %v8338 = vpack.c.b16 %v6178, %v6130
    %v8339 = vpack.c.b16 %v6179, %v6131
    %v8340 = vpack.c.b16 %v6180, %v6132
    %v8341 = vpack.c.b16 %v6181, %v6133
    %v8342 = vpack.c.b16 %v6182, %v6134
    %v8343 = vpack.c.b16 %v6183, %v6135
    %v8344 = vpack.c.b16 %v6184, %v6136
    %v8345 = vpack.c.b16 %v6185, %v6137
    %v8346 = vpack.c.b16 %v6186, %v6138
    %v8347 = vpack.c.b16 %v6187, %v6139
    %v8348 = vpack.c.b16 %v6188, %v6140
    %v8349 = vpack.c.b16 %v6189, %v6141
    %v8350 = vpack.c.b16 %v6190, %v6142
    %v8351 = vpack.c.b16 %v6191, %v6143
    %v8352 = vpack.c.b16 %v6192, %v6144
    %v8353 = vpack.c.b16 %v6193, %v6145
    %v8354 = vpack.c.b16 %v6194, %v6146
    %v8355 = vpack.c.b16 %v6195, %v6147
    %v8356 = vpack.c.b16 %v6196, %v6148
    %v8357 = vpack.c.b16 %v6197, %v6149
    %v8358 = vpack.c.b16 %v6198, %v6150
    %v8359 = vpack.c.b16 %v6199, %v6151
    %v8360 = vpack.c.b16 %v6200, %v6152
    %v8361 = vpack.c.b16 %v6201, %v6153
    %v8362 = vpack.c.b16 %v6202, %v6154
    %v8363 = vpack.c.b16 %v6203, %v6155
    %v8364 = vpack.c.b16 %v6204, %v6156
    %v8365 = vpack.c.b16 %v6205, %v6157
    %v8366 = vpack.c.b16 %v6206, %v6158
    %v8367 = vpack.c.b16 %v6207, %v6159
    %v8368 = vpack.c.b16 %v6208, %v6160
    %v8369 = vpack.c.b16 %v6257, %v6209
    %v8370 = vpack.c.b16 %v6258, %v6210
    %v8371 = vpack.c.b16 %v6259, %v6211
    %v8372 = vpack.c.b16 %v6260, %v6212
    %v8373 = vpack.c.b16 %v6261, %v6213
    %v8374 = vpack.c.b16 %v6262, %v6214
    %v8375 = vpack.c.b16 %v6263, %v6215
    %v8376 = vpack.c.b16 %v6264, %v6216
    %v8377 = vpack.c.b16 %v6265, %v6217
    %v8378 = vpack.c.b16 %v6266, %v6218
    %v8379 = vpack.c.b16 %v6267, %v6219
    %v8380 = vpack.c.b16 %v6268, %v6220
    %v8381 = vpack.c.b16 %v6269, %v6221
    %v8382 = vpack.c.b16 %v6270, %v6222
    %v8383 = vpack.c.b16 %v6271, %v6223
    %v8384 = vpack.c.b16 %v6272, %v6224
    %v8385 = vpack.c.b16 %v6273, %v6225
    %v8386 = vpack.c.b16 %v6274, %v6226
    %v8387 = vpack.c.b16 %v6275, %v6227
    %v8388 = vpack.c.b16 %v6276, %v6228
    %v8389 = vpack.c.b16 %v6277, %v6229
    %v8390 = vpack.c.b16 %v6278, %v6230
    %v8391 = vpack.c.b16 %v6279, %v6231
    %v8392 = vpack.c.b16 %v6280, %v6232
    %v8393 = vpack.c.b16 %v6281, %v6233
    %v8394 = vpack.c.b16 %v6282, %v6234
    %v8395 = vpack.c.b16 %v6283, %v6235
    %v8396 = vpack.c.b16 %v6284, %v6236
    %v8397 = vpack.c.b16 %v6285, %v6237
    %v8398 = vpack.c.b16 %v6286, %v6238
    %v8399 = vpack.c.b16 %v6287, %v6239
    %v8400 = vpack.c.b16 %v6288, %v6240
    %v8401 = vpack.c.b16 %v6289, %v6241
    %v8402 = vpack.c.b16 %v6290, %v6242
    %v8403 = vpack.c.b16 %v6291, %v6243
    %v8404 = vpack.c.b16 %v6292, %v6244
    %v8405 = vpack.c.b16 %v6293, %v6245
    %v8406 = vpack.c.b16 %v6294, %v6246
    %v8407 = vpack.c.b16 %v6295, %v6247
    %v8408 = vpack.c.b16 %v6296, %v6248
    %v8409 = vpack.c.b16 %v6297, %v6249
    %v8410 = vpack.c.b16 %v6298, %v6250
    %v8411 = vpack.c.b16 %v6299, %v6251
    %v8412 = vpack.c.b16 %v6300, %v6252
    %v8413 = vpack.c.b16 %v6301, %v6253
    %v8414 = vpack.c.b16 %v6302, %v6254
    %v8415 = vpack.c.b16 %v6303, %v6255
    %v8416 = vpack.c.b16 %v6304, %v6256
    %v8417 = vpack.c.b16 %v6353, %v6305
    %v8418 = vpack.c.b16 %v6354, %v6306
    %v8419 = vpack.c.b16 %v6355, %v6307
    %v8420 = vpack.c.b16 %v6356, %v6308
    %v8421 = vpack.c.b16 %v6357, %v6309
    %v8422 = vpack.c.b16 %v6358, %v6310
    %v8423 = vpack.c.b16 %v6359, %v6311
    %v8424 = vpack.c.b16 %v6360, %v6312
    %v8425 = vpack.c.b16 %v6361, %v6313
    %v8426 = vpack.c.b16 %v6362, %v6314
    %v8427 = vpack.c.b16 %v6363, %v6315
    %v8428 = vpack.c.b16 %v6364, %v6316
    %v8429 = vpack.c.b16 %v6365, %v6317
    %v8430 = vpack.c.b16 %v6366, %v6318
    %v8431 = vpack.c.b16 %v6367, %v6319
    %v8432 = vpack.c.b16 %v6368, %v6320
    %v8433 = vpack.c.b16 %v6369, %v6321
    %v8434 = vpack.c.b16 %v6370, %v6322
    %v8435 = vpack.c.b16 %v6371, %v6323
    %v8436 = vpack.c.b16 %v6372, %v6324
    %v8437 = vpack.c.b16 %v6373, %v6325
    %v8438 = vpack.c.b16 %v6374, %v6326
    %v8439 = vpack.c.b16 %v6375, %v6327
    %v8440 = vpack.c.b16 %v6376, %v6328
    %v8441 = vpack.c.b16 %v6377, %v6329
    %v8442 = vpack.c.b16 %v6378, %v6330
    %v8443 = vpack.c.b16 %v6379, %v6331
    %v8444 = vpack.c.b16 %v6380, %v6332
    %v8445 = vpack.c.b16 %v6381, %v6333
    %v8446 = vpack.c.b16 %v6382, %v6334
    %v8447 = vpack.c.b16 %v6383, %v6335
    %v8448 = vpack.c.b16 %v6384, %v6336
    %v8449 = vpack.c.b16 %v6385, %v6337
    %v8450 = vpack.c.b16 %v6386, %v6338
    %v8451 = vpack.c.b16 %v6387, %v6339
    %v8452 = vpack.c.b16 %v6388, %v6340
    %v8453 = vpack.c.b16 %v6389, %v6341
    %v8454 = vpack.c.b16 %v6390, %v6342
    %v8455 = vpack.c.b16 %v6391, %v6343
    %v8456 = vpack.c.b16 %v6392, %v6344
    %v8457 = vpack.c.b16 %v6393, %v6345
    %v8458 = vpack.c.b16 %v6394, %v6346
    %v8459 = vpack.c.b16 %v6395, %v6347
    %v8460 = vpack.c.b16 %v6396, %v6348
    %v8461 = vpack.c.b16 %v6397, %v6349
    %v8462 = vpack.c.b16 %v6398, %v6350
    %v8463 = vpack.c.b16 %v6399, %v6351
    %v8464 = vpack.c.b16 %v6400, %v6352
    %v8465 = vpack.c.b16 %v6449, %v6401
    %v8466 = vpack.c.b16 %v6450, %v6402
    %v8467 = vpack.c.b16 %v6451, %v6403
    %v8468 = vpack.c.b16 %v6452, %v6404
    %v8469 = vpack.c.b16 %v6453, %v6405
    %v8470 = vpack.c.b16 %v6454, %v6406
    %v8471 = vpack.c.b16 %v6455, %v6407
    %v8472 = vpack.c.b16 %v6456, %v6408
    %v8473 = vpack.c.b16 %v6457, %v6409
    %v8474 = vpack.c.b16 %v6458, %v6410
    %v8475 = vpack.c.b16 %v6459, %v6411
    %v8476 = vpack.c.b16 %v6460, %v6412
    %v8477 = vpack.c.b16 %v6461, %v6413
    %v8478 = vpack.c.b16 %v6462, %v6414
    %v8479 = vpack.c.b16 %v6463, %v6415
    %v8480 = vpack.c.b16 %v6464, %v6416
    %v8481 = vpack.c.b16 %v6465, %v6417
    %v8482 = vpack.c.b16 %v6466, %v6418
    %v8483 = vpack.c.b16 %v6467, %v6419
    %v8484 = vpack.c.b16 %v6468, %v6420
    %v8485 = vpack.c.b16 %v6469, %v6421
    %v8486 = vpack.c.b16 %v6470, %v6422
    %v8487 = vpack.c.b16 %v6471, %v6423
    %v8488 = vpack.c.b16 %v6472, %v6424
    %v8489 = vpack.c.b16 %v6473, %v6425
    %v8490 = vpack.c.b16 %v6474, %v6426
    %v8491 = vpack.c.b16 %v6475, %v6427
    %v8492 = vpack.c.b16 %v6476, %v6428
    %v8493 = vpack.c.b16 %v6477, %v6429
    %v8494 = vpack.c.b16 %v6478, %v6430
    %v8495 = vpack.c.b16 %v6479, %v6431
    %v8496 = vpack.c.b16 %v6480, %v6432
    %v8497 = vpack.c.b16 %v6481, %v6433
    %v8498 = vpack.c.b16 %v6482, %v6434
    %v8499 = vpack.c.b16 %v6483, %v6435
    %v8500 = vpack.c.b16 %v6484, %v6436
    %v8501 = vpack.c.b16 %v6485, %v6437
    %v8502 = vpack.c.b16 %v6486, %v6438
    %v8503 = vpack.c.b16 %v6487, %v6439
    %v8504 = vpack.c.b16 %v6488, %v6440
    %v8505 = vpack.c.b16 %v6489, %v6441
    %v8506 = vpack.c.b16 %v6490, %v6442
    %v8507 = vpack.c.b16 %v6491, %v6443
    %v8508 = vpack.c.b16 %v6492, %v6444
    %v8509 = vpack.c.b16 %v6493, %v6445
    %v8510 = vpack.c.b16 %v6494, %v6446
    %v8511 = vpack.c.b16 %v6495, %v6447
    %v8512 = vpack.c.b16 %v6496, %v6448
    %v8513 = vpack.c.b16 %v6545, %v6497
    %v8514 = vpack.c.b16 %v6546, %v6498
    %v8515 = vpack.c.b16 %v6547, %v6499
    %v8516 = vpack.c.b16 %v6548, %v6500
    %v8517 = vpack.c.b16 %v6549, %v6501
    %v8518 = vpack.c.b16 %v6550, %v6502
    %v8519 = vpack.c.b16 %v6551, %v6503
    %v8520 = vpack.c.b16 %v6552, %v6504
    %v8521 = vpack.c.b16 %v6553, %v6505
    %v8522 = vpack.c.b16 %v6554, %v6506
    %v8523 = vpack.c.b16 %v6555, %v6507
    %v8524 = vpack.c.b16 %v6556, %v6508
    %v8525 = vpack.c.b16 %v6557, %v6509
    %v8526 = vpack.c.b16 %v6558, %v6510
    %v8527 = vpack.c.b16 %v6559, %v6511
    %v8528 = vpack.c.b16 %v6560, %v6512
    %v8529 = vpack.c.b16 %v6561, %v6513
    %v8530 = vpack.c.b16 %v6562, %v6514
    %v8531 = vpack.c.b16 %v6563, %v6515
    %v8532 = vpack.c.b16 %v6564, %v6516
    %v8533 = vpack.c.b16 %v6565, %v6517
    %v8534 = vpack.c.b16 %v6566, %v6518
    %v8535 = vpack.c.b16 %v6567, %v6519
    %v8536 = vpack.c.b16 %v6568, %v6520
    %v8537 = vpack.c.b16 %v6569, %v6521
    %v8538 = vpack.c.b16 %v6570, %v6522
    %v8539 = vpack.c.b16 %v6571, %v6523
    %v8540 = vpack.c.b16 %v6572, %v6524
    %v8541 = vpack.c.b16 %v6573, %v6525
    %v8542 = vpack.c.b16 %v6574, %v6526
    %v8543 = vpack.c.b16 %v6575, %v6527
    %v8544 = vpack.c.b16 %v6576, %v6528
    %v8545 = vpack.c.b16 %v6577, %v6529
    %v8546 = vpack.c.b16 %v6578, %v6530
    %v8547 = vpack.c.b16 %v6579, %v6531
    %v8548 = vpack.c.b16 %v6580, %v6532
    %v8549 = vpack.c.b16 %v6581, %v6533
    %v8550 = vpack.c.b16 %v6582, %v6534
    %v8551 = vpack.c.b16 %v6583, %v6535
    %v8552 = vpack.c.b16 %v6584, %v6536
    %v8553 = vpack.c.b16 %v6585, %v6537
    %v8554 = vpack.c.b16 %v6586, %v6538
    %v8555 = vpack.c.b16 %v6587, %v6539
    %v8556 = vpack.c.b16 %v6588, %v6540
    %v8557 = vpack.c.b16 %v6589, %v6541
    %v8558 = vpack.c.b16 %v6590, %v6542
    %v8559 = vpack.c.b16 %v6591, %v6543
    %v8560 = vpack.c.b16 %v6592, %v6544
    %v8561 = vpack.c.b16 %v6641, %v6593
    %v8562 = vpack.c.b16 %v6642, %v6594
    %v8563 = vpack.c.b16 %v6643, %v6595
    %v8564 = vpack.c.b16 %v6644, %v6596
    %v8565 = vpack.c.b16 %v6645, %v6597
    %v8566 = vpack.c.b16 %v6646, %v6598
    %v8567 = vpack.c.b16 %v6647, %v6599
    %v8568 = vpack.c.b16 %v6648, %v6600
    %v8569 = vpack.c.b16 %v6649, %v6601
    %v8570 = vpack.c.b16 %v6650, %v6602
    %v8571 = vpack.c.b16 %v6651, %v6603
    %v8572 = vpack.c.b16 %v6652, %v6604
    %v8573 = vpack.c.b16 %v6653, %v6605
    %v8574 = vpack.c.b16 %v6654, %v6606
    %v8575 = vpack.c.b16 %v6655, %v6607
    %v8576 = vpack.c.b16 %v6656, %v6608
    %v8577 = vpack.c.b16 %v6657, %v6609
    %v8578 = vpack.c.b16 %v6658, %v6610
    %v8579 = vpack.c.b16 %v6659, %v6611
    %v8580 = vpack.c.b16 %v6660, %v6612
    %v8581 = vpack.c.b16 %v6661, %v6613
    %v8582 = vpack.c.b16 %v6662, %v6614
    %v8583 = vpack.c.b16 %v6663, %v6615
    %v8584 = vpack.c.b16 %v6664, %v6616
    %v8585 = vpack.c.b16 %v6665, %v6617
    %v8586 = vpack.c.b16 %v6666, %v6618
    %v8587 = vpack.c.b16 %v6667, %v6619
    %v8588 = vpack.c.b16 %v6668, %v6620
    %v8589 = vpack.c.b16 %v6669, %v6621
    %v8590 = vpack.c.b16 %v6670, %v6622
    %v8591 = vpack.c.b16 %v6671, %v6623
    %v8592 = vpack.c.b16 %v6672, %v6624
    %v8593 = vpack.c.b16 %v6673, %v6625
    %v8594 = vpack.c.b16 %v6674, %v6626
    %v8595 = vpack.c.b16 %v6675, %v6627
    %v8596 = vpack.c.b16 %v6676, %v6628
    %v8597 = vpack.c.b16 %v6677, %v6629
    %v8598 = vpack.c.b16 %v6678, %v6630
    %v8599 = vpack.c.b16 %v6679, %v6631
    %v8600 = vpack.c.b16 %v6680, %v6632
    %v8601 = vpack.c.b16 %v6681, %v6633
    %v8602 = vpack.c.b16 %v6682, %v6634
    %v8603 = vpack.c.b16 %v6683, %v6635
    %v8604 = vpack.c.b16 %v6684, %v6636
    %v8605 = vpack.c.b16 %v6685, %v6637
    %v8606 = vpack.c.b16 %v6686, %v6638
    %v8607 = vpack.c.b16 %v6687, %v6639
    %v8608 = vpack.c.b16 %v6688, %v6640
    %v8609 = vpack.c.b16 %v6737, %v6689
    %v8610 = vpack.c.b16 %v6738, %v6690
    %v8611 = vpack.c.b16 %v6739, %v6691
    %v8612 = vpack.c.b16 %v6740, %v6692
    %v8613 = vpack.c.b16 %v6741, %v6693
    %v8614 = vpack.c.b16 %v6742, %v6694
    %v8615 = vpack.c.b16 %v6743, %v6695
    %v8616 = vpack.c.b16 %v6744, %v6696
    %v8617 = vpack.c.b16 %v6745, %v6697
    %v8618 = vpack.c.b16 %v6746, %v6698
    %v8619 = vpack.c.b16 %v6747, %v6699
    %v8620 = vpack.c.b16 %v6748, %v6700
    %v8621 = vpack.c.b16 %v6749, %v6701
    %v8622 = vpack.c.b16 %v6750, %v6702
    %v8623 = vpack.c.b16 %v6751, %v6703
    %v8624 = vpack.c.b16 %v6752, %v6704
    %v8625 = vpack.c.b16 %v6753, %v6705
    %v8626 = vpack.c.b16 %v6754, %v6706
    %v8627 = vpack.c.b16 %v6755, %v6707
    %v8628 = vpack.c.b16 %v6756, %v6708
    %v8629 = vpack.c.b16 %v6757, %v6709
    %v8630 = vpack.c.b16 %v6758, %v6710
    %v8631 = vpack.c.b16 %v6759, %v6711
    %v8632 = vpack.c.b16 %v6760, %v6712
    %v8633 = vpack.c.b16 %v6761, %v6713
    %v8634 = vpack.c.b16 %v6762, %v6714
    %v8635 = vpack.c.b16 %v6763, %v6715
    %v8636 = vpack.c.b16 %v6764, %v6716
    %v8637 = vpack.c.b16 %v6765, %v6717
    %v8638 = vpack.c.b16 %v6766, %v6718
    %v8639 = vpack.c.b16 %v6767, %v6719
    %v8640 = vpack.c.b16 %v6768, %v6720
    %v8641 = vpack.c.b16 %v6769, %v6721
    %v8642 = vpack.c.b16 %v6770, %v6722
    %v8643 = vpack.c.b16 %v6771, %v6723
    %v8644 = vpack.c.b16 %v6772, %v6724
    %v8645 = vpack.c.b16 %v6773, %v6725
    %v8646 = vpack.c.b16 %v6774, %v6726
    %v8647 = vpack.c.b16 %v6775, %v6727
    %v8648 = vpack.c.b16 %v6776, %v6728
    %v8649 = vpack.c.b16 %v6777, %v6729
    %v8650 = vpack.c.b16 %v6778, %v6730
    %v8651 = vpack.c.b16 %v6779, %v6731
    %v8652 = vpack.c.b16 %v6780, %v6732
    %v8653 = vpack.c.b16 %v6781, %v6733
    %v8654 = vpack.c.b16 %v6782, %v6734
    %v8655 = vpack.c.b16 %v6783, %v6735
    %v8656 = vpack.c.b16 %v6784, %v6736
    %v8657 = vpack.c.b16 %v6833, %v6785
    %v8658 = vpack.c.b16 %v6834, %v6786
    %v8659 = vpack.c.b16 %v6835, %v6787
    %v8660 = vpack.c.b16 %v6836, %v6788
    %v8661 = vpack.c.b16 %v6837, %v6789
    %v8662 = vpack.c.b16 %v6838, %v6790
    %v8663 = vpack.c.b16 %v6839, %v6791
    %v8664 = vpack.c.b16 %v6840, %v6792
    %v8665 = vpack.c.b16 %v6841, %v6793
    %v8666 = vpack.c.b16 %v6842, %v6794
    %v8667 = vpack.c.b16 %v6843, %v6795
    %v8668 = vpack.c.b16 %v6844, %v6796
    %v8669 = vpack.c.b16 %v6845, %v6797
    %v8670 = vpack.c.b16 %v6846, %v6798
    %v8671 = vpack.c.b16 %v6847, %v6799
    %v8672 = vpack.c.b16 %v6848, %v6800
    %v8673 = vpack.c.b16 %v6849, %v6801
    %v8674 = vpack.c.b16 %v6850, %v6802
    %v8675 = vpack.c.b16 %v6851, %v6803
    %v8676 = vpack.c.b16 %v6852, %v6804
    %v8677 = vpack.c.b16 %v6853, %v6805
    %v8678 = vpack.c.b16 %v6854, %v6806
    %v8679 = vpack.c.b16 %v6855, %v6807
    %v8680 = vpack.c.b16 %v6856, %v6808
    %v8681 = vpack.c.b16 %v6857, %v6809
    %v8682 = vpack.c.b16 %v6858, %v6810
    %v8683 = vpack.c.b16 %v6859, %v6811
    %v8684 = vpack.c.b16 %v6860, %v6812
    %v8685 = vpack.c.b16 %v6861, %v6813
    %v8686 = vpack.c.b16 %v6862, %v6814
    %v8687 = vpack.c.b16 %v6863, %v6815
    %v8688 = vpack.c.b16 %v6864, %v6816
    %v8689 = vpack.c.b16 %v6865, %v6817
    %v8690 = vpack.c.b16 %v6866, %v6818
    %v8691 = vpack.c.b16 %v6867, %v6819
    %v8692 = vpack.c.b16 %v6868, %v6820
    %v8693 = vpack.c.b16 %v6869, %v6821
    %v8694 = vpack.c.b16 %v6870, %v6822
    %v8695 = vpack.c.b16 %v6871, %v6823
    %v8696 = vpack.c.b16 %v6872, %v6824
    %v8697 = vpack.c.b16 %v6873, %v6825
    %v8698 = vpack.c.b16 %v6874, %v6826
    %v8699 = vpack.c.b16 %v6875, %v6827
    %v8700 = vpack.c.b16 %v6876, %v6828
    %v8701 = vpack.c.b16 %v6877, %v6829
    %v8702 = vpack.c.b16 %v6878, %v6830
    %v8703 = vpack.c.b16 %v6879, %v6831
    %v8704 = vpack.c.b16 %v6880, %v6832
    %v8705 = vpack.c.b16 %v6929, %v6881
    %v8706 = vpack.c.b16 %v6930, %v6882
    %v8707 = vpack.c.b16 %v6931, %v6883
    %v8708 = vpack.c.b16 %v6932, %v6884
    %v8709 = vpack.c.b16 %v6933, %v6885
    %v8710 = vpack.c.b16 %v6934, %v6886
    %v8711 = vpack.c.b16 %v6935, %v6887
    %v8712 = vpack.c.b16 %v6936, %v6888
    %v8713 = vpack.c.b16 %v6937, %v6889
    %v8714 = vpack.c.b16 %v6938, %v6890
    %v8715 = vpack.c.b16 %v6939, %v6891
    %v8716 = vpack.c.b16 %v6940, %v6892
    %v8717 = vpack.c.b16 %v6941, %v6893
    %v8718 = vpack.c.b16 %v6942, %v6894
    %v8719 = vpack.c.b16 %v6943, %v6895
    %v8720 = vpack.c.b16 %v6944, %v6896
    %v8721 = vpack.c.b16 %v6945, %v6897
    %v8722 = vpack.c.b16 %v6946, %v6898
    %v8723 = vpack.c.b16 %v6947, %v6899
    %v8724 = vpack.c.b16 %v6948, %v6900
    %v8725 = vpack.c.b16 %v6949, %v6901
    %v8726 = vpack.c.b16 %v6950, %v6902
    %v8727 = vpack.c.b16 %v6951, %v6903
    %v8728 = vpack.c.b16 %v6952, %v6904
    %v8729 = vpack.c.b16 %v6953, %v6905
    %v8730 = vpack.c.b16 %v6954, %v6906
    %v8731 = vpack.c.b16 %v6955, %v6907
    %v8732 = vpack.c.b16 %v6956, %v6908
    %v8733 = vpack.c.b16 %v6957, %v6909
    %v8734 = vpack.c.b16 %v6958, %v6910
    %v8735 = vpack.c.b16 %v6959, %v6911
    %v8736 = vpack.c.b16 %v6960, %v6912
    %v8737 = vpack.c.b16 %v6961, %v6913
    %v8738 = vpack.c.b16 %v6962, %v6914
    %v8739 = vpack.c.b16 %v6963, %v6915
    %v8740 = vpack.c.b16 %v6964, %v6916
    %v8741 = vpack.c.b16 %v6965, %v6917
    %v8742 = vpack.c.b16 %v6966, %v6918
    %v8743 = vpack.c.b16 %v6967, %v6919
    %v8744 = vpack.c.b16 %v6968, %v6920
    %v8745 = vpack.c.b16 %v6969, %v6921
    %v8746 = vpack.c.b16 %v6970, %v6922
    %v8747 = vpack.c.b16 %v6971, %v6923
    %v8748 = vpack.c.b16 %v6972, %v6924
    %v8749 = vpack.c.b16 %v6973, %v6925
    %v8750 = vpack.c.b16 %v6974, %v6926
    %v8751 = vpack.c.b16 %v6975, %v6927
    %v8752 = vpack.c.b16 %v6976, %v6928
    %v8753 = vpack.c.b16 %v7025, %v6977
    %v8754 = vpack.c.b16 %v7026, %v6978
    %v8755 = vpack.c.b16 %v7027, %v6979
    %v8756 = vpack.c.b16 %v7028, %v6980
    %v8757 = vpack.c.b16 %v7029, %v6981
    %v8758 = vpack.c.b16 %v7030, %v6982
    %v8759 = vpack.c.b16 %v7031, %v6983
    %v8760 = vpack.c.b16 %v7032, %v6984
    %v8761 = vpack.c.b16 %v7033, %v6985
    %v8762 = vpack.c.b16 %v7034, %v6986
    %v8763 = vpack.c.b16 %v7035, %v6987
    %v8764 = vpack.c.b16 %v7036, %v6988
    %v8765 = vpack.c.b16 %v7037, %v6989
    %v8766 = vpack.c.b16 %v7038, %v6990
    %v8767 = vpack.c.b16 %v7039, %v6991
    %v8768 = vpack.c.b16 %v7040, %v6992
    %v8769 = vpack.c.b16 %v7041, %v6993
    %v8770 = vpack.c.b16 %v7042, %v6994
    %v8771 = vpack.c.b16 %v7043, %v6995
    %v8772 = vpack.c.b16 %v7044, %v6996
    %v8773 = vpack.c.b16 %v7045, %v6997
    %v8774 = vpack.c.b16 %v7046, %v6998
    %v8775 = vpack.c.b16 %v7047, %v6999
    %v8776 = vpack.c.b16 %v7048, %v7000
    %v8777 = vpack.c.b16 %v7049, %v7001
    %v8778 = vpack.c.b16 %v7050, %v7002
    %v8779 = vpack.c.b16 %v7051, %v7003
    %v8780 = vpack.c.b16 %v7052, %v7004
    %v8781 = vpack.c.b16 %v7053, %v7005
    %v8782 = vpack.c.b16 %v7054, %v7006
    %v8783 = vpack.c.b16 %v7055, %v7007
    %v8784 = vpack.c.b16 %v7056, %v7008
    %v8785 = vpack.c.b16 %v7057, %v7009
    %v8786 = vpack.c.b16 %v7058, %v7010
    %v8787 = vpack.c.b16 %v7059, %v7011
    %v8788 = vpack.c.b16 %v7060, %v7012
    %v8789 = vpack.c.b16 %v7061, %v7013
    %v8790 = vpack.c.b16 %v7062, %v7014
    %v8791 = vpack.c.b16 %v7063, %v7015
    %v8792 = vpack.c.b16 %v7064, %v7016
    %v8793 = vpack.c.b16 %v7065, %v7017
    %v8794 = vpack.c.b16 %v7066, %v7018
    %v8795 = vpack.c.b16 %v7067, %v7019
    %v8796 = vpack.c.b16 %v7068, %v7020
    %v8797 = vpack.c.b16 %v7069, %v7021
    %v8798 = vpack.c.b16 %v7070, %v7022
    %v8799 = vpack.c.b16 %v7071, %v7023
    %v8800 = vpack.c.b16 %v7072, %v7024
    %v8801 = vpack.c.b16 %v7121, %v7073
    %v8802 = vpack.c.b16 %v7122, %v7074
    %v8803 = vpack.c.b16 %v7123, %v7075
    %v8804 = vpack.c.b16 %v7124, %v7076
    %v8805 = vpack.c.b16 %v7125, %v7077
    %v8806 = vpack.c.b16 %v7126, %v7078
    %v8807 = vpack.c.b16 %v7127, %v7079
    %v8808 = vpack.c.b16 %v7128, %v7080
    %v8809 = vpack.c.b16 %v7129, %v7081
    %v8810 = vpack.c.b16 %v7130, %v7082
    %v8811 = vpack.c.b16 %v7131, %v7083
    %v8812 = vpack.c.b16 %v7132, %v7084
    %v8813 = vpack.c.b16 %v7133, %v7085
    %v8814 = vpack.c.b16 %v7134, %v7086
    %v8815 = vpack.c.b16 %v7135, %v7087
    %v8816 = vpack.c.b16 %v7136, %v7088
    %v8817 = vpack.c.b16 %v7137, %v7089
    %v8818 = vpack.c.b16 %v7138, %v7090
    %v8819 = vpack.c.b16 %v7139, %v7091
    %v8820 = vpack.c.b16 %v7140, %v7092
    %v8821 = vpack.c.b16 %v7141, %v7093
    %v8822 = vpack.c.b16 %v7142, %v7094
    %v8823 = vpack.c.b16 %v7143, %v7095
    %v8824 = vpack.c.b16 %v7144, %v7096
    %v8825 = vpack.c.b16 %v7145, %v7097
    %v8826 = vpack.c.b16 %v7146, %v7098
    %v8827 = vpack.c.b16 %v7147, %v7099
    %v8828 = vpack.c.b16 %v7148, %v7100
    %v8829 = vpack.c.b16 %v7149, %v7101
    %v8830 = vpack.c.b16 %v7150, %v7102
    %v8831 = vpack.c.b16 %v7151, %v7103
    %v8832 = vpack.c.b16 %v7152, %v7104
    %v8833 = vpack.c.b16 %v7153, %v7105
    %v8834 = vpack.c.b16 %v7154, %v7106
    %v8835 = vpack.c.b16 %v7155, %v7107
    %v8836 = vpack.c.b16 %v7156, %v7108
    %v8837 = vpack.c.b16 %v7157, %v7109
    %v8838 = vpack.c.b16 %v7158, %v7110
    %v8839 = vpack.c.b16 %v7159, %v7111
    %v8840 = vpack.c.b16 %v7160, %v7112
    %v8841 = vpack.c.b16 %v7161, %v7113
    %v8842 = vpack.c.b16 %v7162, %v7114
    %v8843 = vpack.c.b16 %v7163, %v7115
    %v8844 = vpack.c.b16 %v7164, %v7116
    %v8845 = vpack.c.b16 %v7165, %v7117
    %v8846 = vpack.c.b16 %v7166, %v7118
    %v8847 = vpack.c.b16 %v7167, %v7119
    %v8848 = vpack.c.b16 %v7168, %v7120
    %v8849 = vpack.c.b16 %v7217, %v7169
    %v8850 = vpack.c.b16 %v7218, %v7170
    %v8851 = vpack.c.b16 %v7219, %v7171
    %v8852 = vpack.c.b16 %v7220, %v7172
    %v8853 = vpack.c.b16 %v7221, %v7173
    %v8854 = vpack.c.b16 %v7222, %v7174
    %v8855 = vpack.c.b16 %v7223, %v7175
    %v8856 = vpack.c.b16 %v7224, %v7176
    %v8857 = vpack.c.b16 %v7225, %v7177
    %v8858 = vpack.c.b16 %v7226, %v7178
    %v8859 = vpack.c.b16 %v7227, %v7179
    %v8860 = vpack.c.b16 %v7228, %v7180
    %v8861 = vpack.c.b16 %v7229, %v7181
    %v8862 = vpack.c.b16 %v7230, %v7182
    %v8863 = vpack.c.b16 %v7231, %v7183
    %v8864 = vpack.c.b16 %v7232, %v7184
    %v8865 = vpack.c.b16 %v7233, %v7185
    %v8866 = vpack.c.b16 %v7234, %v7186
    %v8867 = vpack.c.b16 %v7235, %v7187
    %v8868 = vpack.c.b16 %v7236, %v7188
    %v8869 = vpack.c.b16 %v7237, %v7189
    %v8870 = vpack.c.b16 %v7238, %v7190
    %v8871 = vpack.c.b16 %v7239, %v7191
    %v8872 = vpack.c.b16 %v7240, %v7192
    %v8873 = vpack.c.b16 %v7241, %v7193
    %v8874 = vpack.c.b16 %v7242, %v7194
    %v8875 = vpack.c.b16 %v7243, %v7195
    %v8876 = vpack.c.b16 %v7244, %v7196
    %v8877 = vpack.c.b16 %v7245, %v7197
    %v8878 = vpack.c.b16 %v7246, %v7198
    %v8879 = vpack.c.b16 %v7247, %v7199
    %v8880 = vpack.c.b16 %v7248, %v7200
    %v8881 = vpack.c.b16 %v7249, %v7201
    %v8882 = vpack.c.b16 %v7250, %v7202
    %v8883 = vpack.c.b16 %v7251, %v7203
    %v8884 = vpack.c.b16 %v7252, %v7204
    %v8885 = vpack.c.b16 %v7253, %v7205
    %v8886 = vpack.c.b16 %v7254, %v7206
    %v8887 = vpack.c.b16 %v7255, %v7207
    %v8888 = vpack.c.b16 %v7256, %v7208
    %v8889 = vpack.c.b16 %v7257, %v7209
    %v8890 = vpack.c.b16 %v7258, %v7210
    %v8891 = vpack.c.b16 %v7259, %v7211
    %v8892 = vpack.c.b16 %v7260, %v7212
    %v8893 = vpack.c.b16 %v7261, %v7213
    %v8894 = vpack.c.b16 %v7262, %v7214
    %v8895 = vpack.c.b16 %v7263, %v7215
    %v8896 = vpack.c.b16 %v7264, %v7216
    %v8897 = vpack.c.b16 %v7313, %v7265
    %v8898 = vpack.c.b16 %v7314, %v7266
    %v8899 = vpack.c.b16 %v7315, %v7267
    %v8900 = vpack.c.b16 %v7316, %v7268
    %v8901 = vpack.c.b16 %v7317, %v7269
    %v8902 = vpack.c.b16 %v7318, %v7270
    %v8903 = vpack.c.b16 %v7319, %v7271
    %v8904 = vpack.c.b16 %v7320, %v7272
    %v8905 = vpack.c.b16 %v7321, %v7273
    %v8906 = vpack.c.b16 %v7322, %v7274
    %v8907 = vpack.c.b16 %v7323, %v7275
    %v8908 = vpack.c.b16 %v7324, %v7276
    %v8909 = vpack.c.b16 %v7325, %v7277
    %v8910 = vpack.c.b16 %v7326, %v7278
    %v8911 = vpack.c.b16 %v7327, %v7279
    %v8912 = vpack.c.b16 %v7328, %v7280
    %v8913 = vpack.c.b16 %v7329, %v7281
    %v8914 = vpack.c.b16 %v7330, %v7282
    %v8915 = vpack.c.b16 %v7331, %v7283
    %v8916 = vpack.c.b16 %v7332, %v7284
    %v8917 = vpack.c.b16 %v7333, %v7285
    %v8918 = vpack.c.b16 %v7334, %v7286
    %v8919 = vpack.c.b16 %v7335, %v7287
    %v8920 = vpack.c.b16 %v7336, %v7288
    %v8921 = vpack.c.b16 %v7337, %v7289
    %v8922 = vpack.c.b16 %v7338, %v7290
    %v8923 = vpack.c.b16 %v7339, %v7291
    %v8924 = vpack.c.b16 %v7340, %v7292
    %v8925 = vpack.c.b16 %v7341, %v7293
    %v8926 = vpack.c.b16 %v7342, %v7294
    %v8927 = vpack.c.b16 %v7343, %v7295
    %v8928 = vpack.c.b16 %v7344, %v7296
    %v8929 = vpack.c.b16 %v7345, %v7297
    %v8930 = vpack.c.b16 %v7346, %v7298
    %v8931 = vpack.c.b16 %v7347, %v7299
    %v8932 = vpack.c.b16 %v7348, %v7300
    %v8933 = vpack.c.b16 %v7349, %v7301
    %v8934 = vpack.c.b16 %v7350, %v7302
    %v8935 = vpack.c.b16 %v7351, %v7303
    %v8936 = vpack.c.b16 %v7352, %v7304
    %v8937 = vpack.c.b16 %v7353, %v7305
    %v8938 = vpack.c.b16 %v7354, %v7306
    %v8939 = vpack.c.b16 %v7355, %v7307
    %v8940 = vpack.c.b16 %v7356, %v7308
    %v8941 = vpack.c.b16 %v7357, %v7309
    %v8942 = vpack.c.b16 %v7358, %v7310
    %v8943 = vpack.c.b16 %v7359, %v7311
    %v8944 = vpack.c.b16 %v7360, %v7312
    %v8945 = vpack.c.b16 %v7409, %v7361
    %v8946 = vpack.c.b16 %v7410, %v7362
    %v8947 = vpack.c.b16 %v7411, %v7363
    %v8948 = vpack.c.b16 %v7412, %v7364
    %v8949 = vpack.c.b16 %v7413, %v7365
    %v8950 = vpack.c.b16 %v7414, %v7366
    %v8951 = vpack.c.b16 %v7415, %v7367
    %v8952 = vpack.c.b16 %v7416, %v7368
    %v8953 = vpack.c.b16 %v7417, %v7369
    %v8954 = vpack.c.b16 %v7418, %v7370
    %v8955 = vpack.c.b16 %v7419, %v7371
    %v8956 = vpack.c.b16 %v7420, %v7372
    %v8957 = vpack.c.b16 %v7421, %v7373
    %v8958 = vpack.c.b16 %v7422, %v7374
    %v8959 = vpack.c.b16 %v7423, %v7375
    %v8960 = vpack.c.b16 %v7424, %v7376
    %v8961 = vpack.c.b16 %v7425, %v7377
    %v8962 = vpack.c.b16 %v7426, %v7378
    %v8963 = vpack.c.b16 %v7427, %v7379
    %v8964 = vpack.c.b16 %v7428, %v7380
    %v8965 = vpack.c.b16 %v7429, %v7381
    %v8966 = vpack.c.b16 %v7430, %v7382
    %v8967 = vpack.c.b16 %v7431, %v7383
    %v8968 = vpack.c.b16 %v7432, %v7384
    %v8969 = vpack.c.b16 %v7433, %v7385
    %v8970 = vpack.c.b16 %v7434, %v7386
    %v8971 = vpack.c.b16 %v7435, %v7387
    %v8972 = vpack.c.b16 %v7436, %v7388
    %v8973 = vpack.c.b16 %v7437, %v7389
    %v8974 = vpack.c.b16 %v7438, %v7390
    %v8975 = vpack.c.b16 %v7439, %v7391
    %v8976 = vpack.c.b16 %v7440, %v7392
    %v8977 = vpack.c.b16 %v7441, %v7393
    %v8978 = vpack.c.b16 %v7442, %v7394
    %v8979 = vpack.c.b16 %v7443, %v7395
    %v8980 = vpack.c.b16 %v7444, %v7396
    %v8981 = vpack.c.b16 %v7445, %v7397
    %v8982 = vpack.c.b16 %v7446, %v7398
    %v8983 = vpack.c.b16 %v7447, %v7399
    %v8984 = vpack.c.b16 %v7448, %v7400
    %v8985 = vpack.c.b16 %v7449, %v7401
    %v8986 = vpack.c.b16 %v7450, %v7402
    %v8987 = vpack.c.b16 %v7451, %v7403
    %v8988 = vpack.c.b16 %v7452, %v7404
    %v8989 = vpack.c.b16 %v7453, %v7405
    %v8990 = vpack.c.b16 %v7454, %v7406
    %v8991 = vpack.c.b16 %v7455, %v7407
    %v8992 = vpack.c.b16 %v7456, %v7408
    %10529 = vmatprep.subr.bf16.mxu0 %v7458
    %10530 = vmatpush1.bf16.msra.mxu0 %v7457
    %10531 = vmatprep.subr.bf16.mxu0 %v7506
    %10532 = vmatpush1.bf16.msra.mxu0 %v7505
    %10533 = vmatprep.subr.bf16.mxu0 %v7554
    %10534 = vmatpush1.bf16.msra.mxu0 %v7553
    %10535 = vmatprep.subr.bf16.mxu0 %v7602
    %10536 = vmatpush1.bf16.msra.mxu0 %v7601
    %10537 = vmatprep.subr.bf16.mxu0 %v7650
    %10538 = vmatpush1.bf16.msra.mxu0 %v7649
    %10539 = vmatprep.subr.bf16.mxu0 %v7698
    %10540 = vmatpush1.bf16.msra.mxu0 %v7697
    %10541 = vmatprep.subr.bf16.mxu0 %v7746
    %10542 = vmatpush1.bf16.msra.mxu0 %v7745
    %10543 = vmatprep.subr.bf16.mxu0 %v7794
    %10544 = vmatpush1.bf16.msra.mxu0 %v7793
    %10545 = vmatprep.subr.bf16.mxu0 %v7842
    %10546 = vmatpush1.bf16.msra.mxu0 %v7841
    %10547 = vmatprep.subr.bf16.mxu0 %v7890
    %10548 = vmatpush1.bf16.msra.mxu0 %v7889
    %10549 = vmatprep.subr.bf16.mxu0 %v7938
    %10550 = vmatpush1.bf16.msra.mxu0 %v7937
    %10551 = vmatprep.subr.bf16.mxu0 %v7986
    %10552 = vmatpush1.bf16.msra.mxu0 %v7985
    %10553 = vmatprep.subr.bf16.mxu0 %v8034
    %10554 = vmatpush1.bf16.msra.mxu0 %v8033
    %10555 = vmatprep.subr.bf16.mxu0 %v8082
    %10556 = vmatpush1.bf16.msra.mxu0 %v8081
    %10557 = vmatprep.subr.bf16.mxu0 %v8130
    %10558 = vmatpush1.bf16.msra.mxu0 %v8129
    %10559 = vmatprep.subr.bf16.mxu0 %v8178
    %10560 = vmatpush1.bf16.msra.mxu0 %v8177
    %10561 = vmatprep.mubr.bf16.mxu0 %v1058
    %10562 = vmatmul.mubr.bf16.gmra.mrb[0].mxu0 %v1057
    %v10563 = vpop.f32.mrb[0].mxu0
    %v10564 = vadd.f32 %v2612, %v10563
    %v10565 = vpop.f32.mrb[0].mxu0
    %v10566 = vadd.f32 %v2616, %v10565
    %v10567 = vpop.f32.mrb[0].mxu0
    %v10568 = vpop.f32.mrb[0].mxu0
    %10569 = vdwg.mxu0
    %10570 = vmatprep.subr.bf16.mxu0 %v8226
    %10571 = vmatpush1.bf16.msra.mxu0 %v8225
    %10572 = vmatprep.subr.bf16.mxu0 %v8274
    %10573 = vmatpush1.bf16.msra.mxu0 %v8273
    %10574 = vmatprep.subr.bf16.mxu0 %v8322
    %10575 = vmatpush1.bf16.msra.mxu0 %v8321
    %10576 = vmatprep.subr.bf16.mxu0 %v8370
    %10577 = vmatpush1.bf16.msra.mxu0 %v8369
    %10578 = vmatprep.subr.bf16.mxu0 %v8418
    %10579 = vmatpush1.bf16.msra.mxu0 %v8417
    %10580 = vmatprep.subr.bf16.mxu0 %v8466
    %10581 = vmatpush1.bf16.msra.mxu0 %v8465
    %10582 = vmatprep.subr.bf16.mxu0 %v8514
    %10583 = vmatpush1.bf16.msra.mxu0 %v8513
    %10584 = vmatprep.subr.bf16.mxu0 %v8562
    %10585 = vmatpush1.bf16.msra.mxu0 %v8561
    %10586 = vmatprep.subr.bf16.mxu0 %v8610
    %10587 = vmatpush1.bf16.msra.mxu0 %v8609
    %10588 = vmatprep.subr.bf16.mxu0 %v8658
    %10589 = vmatpush1.bf16.msra.mxu0 %v8657
    %10590 = vmatprep.subr.bf16.mxu0 %v8706
    %10591 = vmatpush1.bf16.msra.mxu0 %v8705
    %10592 = vmatprep.subr.bf16.mxu0 %v8754
    %10593 = vmatpush1.bf16.msra.mxu0 %v8753
    %10594 = vmatprep.subr.bf16.mxu0 %v8802
    %10595 = vmatpush1.bf16.msra.mxu0 %v8801
    %10596 = vmatprep.subr.bf16.mxu0 %v8850
    %10597 = vmatpush1.bf16.msra.mxu0 %v8849
    %10598 = vmatprep.subr.bf16.mxu0 %v8898
    %10599 = vmatpush1.bf16.msra.mxu0 %v8897
    %10600 = vmatprep.subr.bf16.mxu0 %v8946
    %10601 = vmatpush1.bf16.msra.mxu0 %v8945
    %10602 = vmatprep.mubr.bf16.mxu0 %v1060
    %10603 = vmatmul.mubr.bf16.gmra.mrb[0].mxu0 %v1059
    %v10604 = vpop.f32.mrb[0].mxu0
    %v10605 = vadd.f32 %v10564, %v10604
    %v10606 = vpop.f32.mrb[0].mxu0
    %v10607 = vadd.f32 %v10566, %v10606
    %v10608 = vpop.f32.mrb[0].mxu0
    %v10609 = vpop.f32.mrb[0].mxu0
    %10610 = vdwg.mxu0
    %10611 = vmatprep.subr.bf16.mxu0 %v7460
    %10612 = vmatpush1.bf16.msra.mxu0 %v7459
    %10613 = vmatprep.subr.bf16.mxu0 %v7508
    %10614 = vmatpush1.bf16.msra.mxu0 %v7507
    %10615 = vmatprep.subr.bf16.mxu0 %v7556
    %10616 = vmatpush1.bf16.msra.mxu0 %v7555
    %10617 = vmatprep.subr.bf16.mxu0 %v7604
    %10618 = vmatpush1.bf16.msra.mxu0 %v7603
    %10619 = vmatprep.subr.bf16.mxu0 %v7652
    %10620 = vmatpush1.bf16.msra.mxu0 %v7651
    %10621 = vmatprep.subr.bf16.mxu0 %v7700
    %10622 = vmatpush1.bf16.msra.mxu0 %v7699
    %10623 = vmatprep.subr.bf16.mxu0 %v7748
    %10624 = vmatpush1.bf16.msra.mxu0 %v7747
    %10625 = vmatprep.subr.bf16.mxu0 %v7796
    %10626 = vmatpush1.bf16.msra.mxu0 %v7795
    %10627 = vmatprep.subr.bf16.mxu0 %v7844
    %10628 = vmatpush1.bf16.msra.mxu0 %v7843
    %10629 = vmatprep.subr.bf16.mxu0 %v7892
    %10630 = vmatpush1.bf16.msra.mxu0 %v7891
    %10631 = vmatprep.subr.bf16.mxu0 %v7940
    %10632 = vmatpush1.bf16.msra.mxu0 %v7939
    %10633 = vmatprep.subr.bf16.mxu0 %v7988
    %10634 = vmatpush1.bf16.msra.mxu0 %v7987
    %10635 = vmatprep.subr.bf16.mxu0 %v8036
    %10636 = vmatpush1.bf16.msra.mxu0 %v8035
    %10637 = vmatprep.subr.bf16.mxu0 %v8084
    %10638 = vmatpush1.bf16.msra.mxu0 %v8083
    %10639 = vmatprep.subr.bf16.mxu0 %v8132
    %10640 = vmatpush1.bf16.msra.mxu0 %v8131
    %10641 = vmatprep.subr.bf16.mxu0 %v8180
    %10642 = vmatpush1.bf16.msra.mxu0 %v8179
    %10643 = vmatprep.mubr.bf16.mxu0 %v1058
    %10644 = vmatmul.mubr.bf16.gmra.mrb[0].mxu0 %v1057
    %v10645 = vpop.f32.mrb[0].mxu0
    %v10646 = vadd.f32 %v2620, %v10645
    %v10647 = vpop.f32.mrb[0].mxu0
    %v10648 = vadd.f32 %v2624, %v10647
    %v10649 = vpop.f32.mrb[0].mxu0
    %v10650 = vpop.f32.mrb[0].mxu0
    %10651 = vdwg.mxu0
    %10652 = vmatprep.subr.bf16.mxu0 %v8228
    %10653 = vmatpush1.bf16.msra.mxu0 %v8227
    %10654 = vmatprep.subr.bf16.mxu0 %v8276
    %10655 = vmatpush1.bf16.msra.mxu0 %v8275
    %10656 = vmatprep.subr.bf16.mxu0 %v8324
    %10657 = vmatpush1.bf16.msra.mxu0 %v8323
    %10658 = vmatprep.subr.bf16.mxu0 %v8372
    %10659 = vmatpush1.bf16.msra.mxu0 %v8371
    %10660 = vmatprep.subr.bf16.mxu0 %v8420
    %10661 = vmatpush1.bf16.msra.mxu0 %v8419
    %10662 = vmatprep.subr.bf16.mxu0 %v8468
    %10663 = vmatpush1.bf16.msra.mxu0 %v8467
    %10664 = vmatprep.subr.bf16.mxu0 %v8516
    %10665 = vmatpush1.bf16.msra.mxu0 %v8515
    %10666 = vmatprep.subr.bf16.mxu0 %v8564
    %10667 = vmatpush1.bf16.msra.mxu0 %v8563
    %10668 = vmatprep.subr.bf16.mxu0 %v8612
    %10669 = vmatpush1.bf16.msra.mxu0 %v8611
    %10670 = vmatprep.subr.bf16.mxu0 %v8660
    %10671 = vmatpush1.bf16.msra.mxu0 %v8659
    %10672 = vmatprep.subr.bf16.mxu0 %v8708
    %10673 = vmatpush1.bf16.msra.mxu0 %v8707
    %10674 = vmatprep.subr.bf16.mxu0 %v8756
    %10675 = vmatpush1.bf16.msra.mxu0 %v8755
    %10676 = vmatprep.subr.bf16.mxu0 %v8804
    %10677 = vmatpush1.bf16.msra.mxu0 %v8803
    %10678 = vmatprep.subr.bf16.mxu0 %v8852
    %10679 = vmatpush1.bf16.msra.mxu0 %v8851
    %10680 = vmatprep.subr.bf16.mxu0 %v8900
    %10681 = vmatpush1.bf16.msra.mxu0 %v8899
    %10682 = vmatprep.subr.bf16.mxu0 %v8948
    %10683 = vmatpush1.bf16.msra.mxu0 %v8947
    %10684 = vmatprep.mubr.bf16.mxu0 %v1060
    %10685 = vmatmul.mubr.bf16.gmra.mrb[0].mxu0 %v1059
    %v10686 = vpop.f32.mrb[0].mxu0
    %v10687 = vadd.f32 %v10646, %v10686
    %v10688 = vpop.f32.mrb[0].mxu0
    %v10689 = vadd.f32 %v10648, %v10688
    %v10690 = vpop.f32.mrb[0].mxu0
    %v10691 = vpop.f32.mrb[0].mxu0
    %10692 = vdwg.mxu0
    %10693 = vmatprep.subr.bf16.mxu0 %v7462
    %10694 = vmatpush1.bf16.msra.mxu0 %v7461
    %10695 = vmatprep.subr.bf16.mxu0 %v7510
    %10696 = vmatpush1.bf16.msra.mxu0 %v7509
    %10697 = vmatprep.subr.bf16.mxu0 %v7558
    %10698 = vmatpush1.bf16.msra.mxu0 %v7557
    %10699 = vmatprep.subr.bf16.mxu0 %v7606
    %10700 = vmatpush1.bf16.msra.mxu0 %v7605
    %10701 = vmatprep.subr.bf16.mxu0 %v7654
    %10702 = vmatpush1.bf16.msra.mxu0 %v7653
    %10703 = vmatprep.subr.bf16.mxu0 %v7702
    %10704 = vmatpush1.bf16.msra.mxu0 %v7701
    %10705 = vmatprep.subr.bf16.mxu0 %v7750
    %10706 = vmatpush1.bf16.msra.mxu0 %v7749
    %10707 = vmatprep.subr.bf16.mxu0 %v7798
    %10708 = vmatpush1.bf16.msra.mxu0 %v7797
    %10709 = vmatprep.subr.bf16.mxu0 %v7846
    %10710 = vmatpush1.bf16.msra.mxu0 %v7845
    %10711 = vmatprep.subr.bf16.mxu0 %v7894
    %10712 = vmatpush1.bf16.msra.mxu0 %v7893
    %10713 = vmatprep.subr.bf16.mxu0 %v7942
    %10714 = vmatpush1.bf16.msra.mxu0 %v7941
    %10715 = vmatprep.subr.bf16.mxu0 %v7990
    %10716 = vmatpush1.bf16.msra.mxu0 %v7989
    %10717 = vmatprep.subr.bf16.mxu0 %v8038
    %10718 = vmatpush1.bf16.msra.mxu0 %v8037
    %10719 = vmatprep.subr.bf16.mxu0 %v8086
    %10720 = vmatpush1.bf16.msra.mxu0 %v8085
    %10721 = vmatprep.subr.bf16.mxu0 %v8134
    %10722 = vmatpush1.bf16.msra.mxu0 %v8133
    %10723 = vmatprep.subr.bf16.mxu0 %v8182
    %10724 = vmatpush1.bf16.msra.mxu0 %v8181
    %10725 = vmatprep.mubr.bf16.mxu0 %v1058
    %10726 = vmatmul.mubr.bf16.gmra.mrb[0].mxu0 %v1057
    %v10727 = vpop.f32.mrb[0].mxu0
    %v10728 = vadd.f32 %v2628, %v10727
    %v10729 = vpop.f32.mrb[0].mxu0
    %v10730 = vadd.f32 %v2632, %v10729
    %v10731 = vpop.f32.mrb[0].mxu0
    %v10732 = vpop.f32.mrb[0].mxu0
    %10733 = vdwg.mxu0
    %10734 = vmatprep.subr.bf16.mxu0 %v8230
    %10735 = vmatpush1.bf16.msra.mxu0 %v8229
    %10736 = vmatprep.subr.bf16.mxu0 %v8278
    %10737 = vmatpush1.bf16.msra.mxu0 %v8277
    %10738 = vmatprep.subr.bf16.mxu0 %v8326
    %10739 = vmatpush1.bf16.msra.mxu0 %v8325
    %10740 = vmatprep.subr.bf16.mxu0 %v8374
    %10741 = vmatpush1.bf16.msra.mxu0 %v8373
    %10742 = vmatprep.subr.bf16.mxu0 %v8422
    %10743 = vmatpush1.bf16.msra.mxu0 %v8421
    %10744 = vmatprep.subr.bf16.mxu0 %v8470
    %10745 = vmatpush1.bf16.msra.mxu0 %v8469
    %10746 = vmatprep.subr.bf16.mxu0 %v8518
    %10747 = vmatpush1.bf16.msra.mxu0 %v8517
    %10748 = vmatprep.subr.bf16.mxu0 %v8566
    %10749 = vmatpush1.bf16.msra.mxu0 %v8565
    %10750 = vmatprep.subr.bf16.mxu0 %v8614
    %10751 = vmatpush1.bf16.msra.mxu0 %v8613
    %10752 = vmatprep.subr.bf16.mxu0 %v8662
    %10753 = vmatpush1.bf16.msra.mxu0 %v8661
    %10754 = vmatprep.subr.bf16.mxu0 %v8710
    %10755 = vmatpush1.bf16.msra.mxu0 %v8709
    %10756 = vmatprep.subr.bf16.mxu0 %v8758
    %10757 = vmatpush1.bf16.msra.mxu0 %v8757
    %10758 = vmatprep.subr.bf16.mxu0 %v8806
    %10759 = vmatpush1.bf16.msra.mxu0 %v8805
    %10760 = vmatprep.subr.bf16.mxu0 %v8854
    %10761 = vmatpush1.bf16.msra.mxu0 %v8853
    %10762 = vmatprep.subr.bf16.mxu0 %v8902
    %10763 = vmatpush1.bf16.msra.mxu0 %v8901
    %10764 = vmatprep.subr.bf16.mxu0 %v8950
    %10765 = vmatpush1.bf16.msra.mxu0 %v8949
    %10766 = vmatprep.mubr.bf16.mxu0 %v1060
    %10767 = vmatmul.mubr.bf16.gmra.mrb[0].mxu0 %v1059
    %v10768 = vpop.f32.mrb[0].mxu0
    %v10769 = vadd.f32 %v10728, %v10768
    %v10770 = vpop.f32.mrb[0].mxu0
    %v10771 = vadd.f32 %v10730, %v10770
    %v10772 = vpop.f32.mrb[0].mxu0
    %v10773 = vpop.f32.mrb[0].mxu0
    %10774 = vdwg.mxu0
    %10775 = vmatprep.subr.bf16.mxu0 %v7464
    %10776 = vmatpush1.bf16.msra.mxu0 %v7463
    %10777 = vmatprep.subr.bf16.mxu0 %v7512
    %10778 = vmatpush1.bf16.msra.mxu0 %v7511
    %10779 = vmatprep.subr.bf16.mxu0 %v7560
    %10780 = vmatpush1.bf16.msra.mxu0 %v7559
    %10781 = vmatprep.subr.bf16.mxu0 %v7608
    %10782 = vmatpush1.bf16.msra.mxu0 %v7607
    %10783 = vmatprep.subr.bf16.mxu0 %v7656
    %10784 = vmatpush1.bf16.msra.mxu0 %v7655
    %10785 = vmatprep.subr.bf16.mxu0 %v7704
    %10786 = vmatpush1.bf16.msra.mxu0 %v7703
    %10787 = vmatprep.subr.bf16.mxu0 %v7752
    %10788 = vmatpush1.bf16.msra.mxu0 %v7751
    %10789 = vmatprep.subr.bf16.mxu0 %v7800
    %10790 = vmatpush1.bf16.msra.mxu0 %v7799
    %10791 = vmatprep.subr.bf16.mxu0 %v7848
    %10792 = vmatpush1.bf16.msra.mxu0 %v7847
    %10793 = vmatprep.subr.bf16.mxu0 %v7896
    %10794 = vmatpush1.bf16.msra.mxu0 %v7895
    %10795 = vmatprep.subr.bf16.mxu0 %v7944
    %10796 = vmatpush1.bf16.msra.mxu0 %v7943
    %10797 = vmatprep.subr.bf16.mxu0 %v7992
    %10798 = vmatpush1.bf16.msra.mxu0 %v7991
    %10799 = vmatprep.subr.bf16.mxu0 %v8040
    %10800 = vmatpush1.bf16.msra.mxu0 %v8039
    %10801 = vmatprep.subr.bf16.mxu0 %v8088
    %10802 = vmatpush1.bf16.msra.mxu0 %v8087
    %10803 = vmatprep.subr.bf16.mxu0 %v8136
    %10804 = vmatpush1.bf16.msra.mxu0 %v8135
    %10805 = vmatprep.subr.bf16.mxu0 %v8184
    %10806 = vmatpush1.bf16.msra.mxu0 %v8183
    %10807 = vmatprep.mubr.bf16.mxu0 %v1058
    %10808 = vmatmul.mubr.bf16.gmra.mrb[0].mxu0 %v1057
    %v10809 = vpop.f32.mrb[0].mxu0
    %v10810 = vadd.f32 %v2636, %v10809
    %v10811 = vpop.f32.mrb[0].mxu0
    %v10812 = vadd.f32 %v2640, %v10811
    %v10813 = vpop.f32.mrb[0].mxu0
    %v10814 = vpop.f32.mrb[0].mxu0
    %10815 = vdwg.mxu0
    %10816 = vmatprep.subr.bf16.mxu0 %v8232
    %10817 = vmatpush1.bf16.msra.mxu0 %v8231
    %10818 = vmatprep.subr.bf16.mxu0 %v8280
    %10819 = vmatpush1.bf16.msra.mxu0 %v8279
    %10820 = vmatprep.subr.bf16.mxu0 %v8328
    %10821 = vmatpush1.bf16.msra.mxu0 %v8327
    %10822 = vmatprep.subr.bf16.mxu0 %v8376
    %10823 = vmatpush1.bf16.msra.mxu0 %v8375
    %10824 = vmatprep.subr.bf16.mxu0 %v8424
    %10825 = vmatpush1.bf16.msra.mxu0 %v8423
    %10826 = vmatprep.subr.bf16.mxu0 %v8472
    %10827 = vmatpush1.bf16.msra.mxu0 %v8471
    %10828 = vmatprep.subr.bf16.mxu0 %v8520
    %10829 = vmatpush1.bf16.msra.mxu0 %v8519
    %10830 = vmatprep.subr.bf16.mxu0 %v8568
    %10831 = vmatpush1.bf16.msra.mxu0 %v8567
    %10832 = vmatprep.subr.bf16.mxu0 %v8616
    %10833 = vmatpush1.bf16.msra.mxu0 %v8615
    %10834 = vmatprep.subr.bf16.mxu0 %v8664
    %10835 = vmatpush1.bf16.msra.mxu0 %v8663
    %10836 = vmatprep.subr.bf16.mxu0 %v8712
    %10837 = vmatpush1.bf16.msra.mxu0 %v8711
    %10838 = vmatprep.subr.bf16.mxu0 %v8760
    %10839 = vmatpush1.bf16.msra.mxu0 %v8759
    %10840 = vmatprep.subr.bf16.mxu0 %v8808
    %10841 = vmatpush1.bf16.msra.mxu0 %v8807
    %10842 = vmatprep.subr.bf16.mxu0 %v8856
    %10843 = vmatpush1.bf16.msra.mxu0 %v8855
    %10844 = vmatprep.subr.bf16.mxu0 %v8904
    %10845 = vmatpush1.bf16.msra.mxu0 %v8903
    %10846 = vmatprep.subr.bf16.mxu0 %v8952
    %10847 = vmatpush1.bf16.msra.mxu0 %v8951
    %10848 = vmatprep.mubr.bf16.mxu0 %v1060
    %10849 = vmatmul.mubr.bf16.gmra.mrb[0].mxu0 %v1059
    %v10850 = vpop.f32.mrb[0].mxu0
    %v10851 = vadd.f32 %v10810, %v10850
    %v10852 = vpop.f32.mrb[0].mxu0
    %v10853 = vadd.f32 %v10812, %v10852
    %v10854 = vpop.f32.mrb[0].mxu0
    %v10855 = vpop.f32.mrb[0].mxu0
    %10856 = vdwg.mxu0
    %10857 = vmatprep.subr.bf16.mxu0 %v7466
    %10858 = vmatpush1.bf16.msra.mxu0 %v7465
    %10859 = vmatprep.subr.bf16.mxu0 %v7514
    %10860 = vmatpush1.bf16.msra.mxu0 %v7513
    %10861 = vmatprep.subr.bf16.mxu0 %v7562
    %10862 = vmatpush1.bf16.msra.mxu0 %v7561
    %10863 = vmatprep.subr.bf16.mxu0 %v7610
    %10864 = vmatpush1.bf16.msra.mxu0 %v7609
    %10865 = vmatprep.subr.bf16.mxu0 %v7658
    %10866 = vmatpush1.bf16.msra.mxu0 %v7657
    %10867 = vmatprep.subr.bf16.mxu0 %v7706
    %10868 = vmatpush1.bf16.msra.mxu0 %v7705
    %10869 = vmatprep.subr.bf16.mxu0 %v7754
    %10870 = vmatpush1.bf16.msra.mxu0 %v7753
    %10871 = vmatprep.subr.bf16.mxu0 %v7802
    %10872 = vmatpush1.bf16.msra.mxu0 %v7801
    %10873 = vmatprep.subr.bf16.mxu0 %v7850
    %10874 = vmatpush1.bf16.msra.mxu0 %v7849
    %10875 = vmatprep.subr.bf16.mxu0 %v7898
    %10876 = vmatpush1.bf16.msra.mxu0 %v7897
    %10877 = vmatprep.subr.bf16.mxu0 %v7946
    %10878 = vmatpush1.bf16.msra.mxu0 %v7945
    %10879 = vmatprep.subr.bf16.mxu0 %v7994
    %10880 = vmatpush1.bf16.msra.mxu0 %v7993
    %10881 = vmatprep.subr.bf16.mxu0 %v8042
    %10882 = vmatpush1.bf16.msra.mxu0 %v8041
    %10883 = vmatprep.subr.bf16.mxu0 %v8090
    %10884 = vmatpush1.bf16.msra.mxu0 %v8089
    %10885 = vmatprep.subr.bf16.mxu0 %v8138
    %10886 = vmatpush1.bf16.msra.mxu0 %v8137
    %10887 = vmatprep.subr.bf16.mxu0 %v8186
    %10888 = vmatpush1.bf16.msra.mxu0 %v8185
    %10889 = vmatprep.mubr.bf16.mxu0 %v1058
    %10890 = vmatmul.mubr.bf16.gmra.mrb[0].mxu0 %v1057
    %v10891 = vpop.f32.mrb[0].mxu0
    %v10892 = vadd.f32 %v2644, %v10891
    %v10893 = vpop.f32.mrb[0].mxu0
    %v10894 = vadd.f32 %v2648, %v10893
    %v10895 = vpop.f32.mrb[0].mxu0
    %v10896 = vpop.f32.mrb[0].mxu0
    %10897 = vdwg.mxu0
    %10898 = vmatprep.subr.bf16.mxu0 %v8234
    %10899 = vmatpush1.bf16.msra.mxu0 %v8233
    %10900 = vmatprep.subr.bf16.mxu0 %v8282
    %10901 = vmatpush1.bf16.msra.mxu0 %v8281
    %10902 = vmatprep.subr.bf16.mxu0 %v8330
    %10903 = vmatpush1.bf16.msra.mxu0 %v8329
    %10904 = vmatprep.subr.bf16.mxu0 %v8378
    %10905 = vmatpush1.bf16.msra.mxu0 %v8377
    %10906 = vmatprep.subr.bf16.mxu0 %v8426
    %10907 = vmatpush1.bf16.msra.mxu0 %v8425
    %10908 = vmatprep.subr.bf16.mxu0 %v8474
    %10909 = vmatpush1.bf16.msra.mxu0 %v8473
    %10910 = vmatprep.subr.bf16.mxu0 %v8522
    %10911 = vmatpush1.bf16.msra.mxu0 %v8521
    %10912 = vmatprep.subr.bf16.mxu0 %v8570
    %10913 = vmatpush1.bf16.msra.mxu0 %v8569
    %10914 = vmatprep.subr.bf16.mxu0 %v8618
    %10915 = vmatpush1.bf16.msra.mxu0 %v8617
    %10916 = vmatprep.subr.bf16.mxu0 %v8666
    %10917 = vmatpush1.bf16.msra.mxu0 %v8665
    %10918 = vmatprep.subr.bf16.mxu0 %v8714
    %10919 = vmatpush1.bf16.msra.mxu0 %v8713
    %10920 = vmatprep.subr.bf16.mxu0 %v8762
    %10921 = vmatpush1.bf16.msra.mxu0 %v8761
    %10922 = vmatprep.subr.bf16.mxu0 %v8810
    %10923 = vmatpush1.bf16.msra.mxu0 %v8809
    %10924 = vmatprep.subr.bf16.mxu0 %v8858
    %10925 = vmatpush1.bf16.msra.mxu0 %v8857
    %10926 = vmatprep.subr.bf16.mxu0 %v8906
    %10927 = vmatpush1.bf16.msra.mxu0 %v8905
    %10928 = vmatprep.subr.bf16.mxu0 %v8954
    %10929 = vmatpush1.bf16.msra.mxu0 %v8953
    %10930 = vmatprep.mubr.bf16.mxu0 %v1060
    %10931 = vmatmul.mubr.bf16.gmra.mrb[0].mxu0 %v1059
    %v10932 = vpop.f32.mrb[0].mxu0
    %v10933 = vadd.f32 %v10892, %v10932
    %v10934 = vpop.f32.mrb[0].mxu0
    %v10935 = vadd.f32 %v10894, %v10934
    %v10936 = vpop.f32.mrb[0].mxu0
    %v10937 = vpop.f32.mrb[0].mxu0
    %10938 = vdwg.mxu0
    %10939 = vmatprep.subr.bf16.mxu0 %v7468
    %10940 = vmatpush1.bf16.msra.mxu0 %v7467
    %10941 = vmatprep.subr.bf16.mxu0 %v7516
    %10942 = vmatpush1.bf16.msra.mxu0 %v7515
    %10943 = vmatprep.subr.bf16.mxu0 %v7564
    %10944 = vmatpush1.bf16.msra.mxu0 %v7563
    %10945 = vmatprep.subr.bf16.mxu0 %v7612
    %10946 = vmatpush1.bf16.msra.mxu0 %v7611
    %10947 = vmatprep.subr.bf16.mxu0 %v7660
    %10948 = vmatpush1.bf16.msra.mxu0 %v7659
    %10949 = vmatprep.subr.bf16.mxu0 %v7708
    %10950 = vmatpush1.bf16.msra.mxu0 %v7707
    %10951 = vmatprep.subr.bf16.mxu0 %v7756
    %10952 = vmatpush1.bf16.msra.mxu0 %v7755
    %10953 = vmatprep.subr.bf16.mxu0 %v7804
    %10954 = vmatpush1.bf16.msra.mxu0 %v7803
    %10955 = vmatprep.subr.bf16.mxu0 %v7852
    %10956 = vmatpush1.bf16.msra.mxu0 %v7851
    %10957 = vmatprep.subr.bf16.mxu0 %v7900
    %10958 = vmatpush1.bf16.msra.mxu0 %v7899
    %10959 = vmatprep.subr.bf16.mxu0 %v7948
    %10960 = vmatpush1.bf16.msra.mxu0 %v7947
    %10961 = vmatprep.subr.bf16.mxu0 %v7996
    %10962 = vmatpush1.bf16.msra.mxu0 %v7995
    %10963 = vmatprep.subr.bf16.mxu0 %v8044
    %10964 = vmatpush1.bf16.msra.mxu0 %v8043
    %10965 = vmatprep.subr.bf16.mxu0 %v8092
    %10966 = vmatpush1.bf16.msra.mxu0 %v8091
    %10967 = vmatprep.subr.bf16.mxu0 %v8140
    %10968 = vmatpush1.bf16.msra.mxu0 %v8139
    %10969 = vmatprep.subr.bf16.mxu0 %v8188
    %10970 = vmatpush1.bf16.msra.mxu0 %v8187
    %10971 = vmatprep.mubr.bf16.mxu0 %v1058
    %10972 = vmatmul.mubr.bf16.gmra.mrb[0].mxu0 %v1057
    %v10973 = vpop.f32.mrb[0].mxu0
    %v10974 = vadd.f32 %v2652, %v10973
    %v10975 = vpop.f32.mrb[0].mxu0
    %v10976 = vadd.f32 %v2656, %v10975
    %v10977 = vpop.f32.mrb[0].mxu0
    %v10978 = vpop.f32.mrb[0].mxu0
    %10979 = vdwg.mxu0
    %10980 = vmatprep.subr.bf16.mxu0 %v8236
    %10981 = vmatpush1.bf16.msra.mxu0 %v8235
    %10982 = vmatprep.subr.bf16.mxu0 %v8284
    %10983 = vmatpush1.bf16.msra.mxu0 %v8283
    %10984 = vmatprep.subr.bf16.mxu0 %v8332
    %10985 = vmatpush1.bf16.msra.mxu0 %v8331
    %10986 = vmatprep.subr.bf16.mxu0 %v8380
    %10987 = vmatpush1.bf16.msra.mxu0 %v8379
    %10988 = vmatprep.subr.bf16.mxu0 %v8428
    %10989 = vmatpush1.bf16.msra.mxu0 %v8427
    %10990 = vmatprep.subr.bf16.mxu0 %v8476
    %10991 = vmatpush1.bf16.msra.mxu0 %v8475
    %10992 = vmatprep.subr.bf16.mxu0 %v8524
    %10993 = vmatpush1.bf16.msra.mxu0 %v8523
    %10994 = vmatprep.subr.bf16.mxu0 %v8572
    %10995 = vmatpush1.bf16.msra.mxu0 %v8571
    %10996 = vmatprep.subr.bf16.mxu0 %v8620
    %10997 = vmatpush1.bf16.msra.mxu0 %v8619
    %10998 = vmatprep.subr.bf16.mxu0 %v8668
    %10999 = vmatpush1.bf16.msra.mxu0 %v8667
    %11000 = vmatprep.subr.bf16.mxu0 %v8716
    %11001 = vmatpush1.bf16.msra.mxu0 %v8715
    %11002 = vmatprep.subr.bf16.mxu0 %v8764
    %11003 = vmatpush1.bf16.msra.mxu0 %v8763
    %11004 = vmatprep.subr.bf16.mxu0 %v8812
    %11005 = vmatpush1.bf16.msra.mxu0 %v8811
    %11006 = vmatprep.subr.bf16.mxu0 %v8860
    %11007 = vmatpush1.bf16.msra.mxu0 %v8859
    %11008 = vmatprep.subr.bf16.mxu0 %v8908
    %11009 = vmatpush1.bf16.msra.mxu0 %v8907
    %11010 = vmatprep.subr.bf16.mxu0 %v8956
    %11011 = vmatpush1.bf16.msra.mxu0 %v8955
    %11012 = vmatprep.mubr.bf16.mxu0 %v1060
    %11013 = vmatmul.mubr.bf16.gmra.mrb[0].mxu0 %v1059
    %v11014 = vpop.f32.mrb[0].mxu0
    %v11015 = vadd.f32 %v10974, %v11014
    %v11016 = vpop.f32.mrb[0].mxu0
    %v11017 = vadd.f32 %v10976, %v11016
    %v11018 = vpop.f32.mrb[0].mxu0
    %v11019 = vpop.f32.mrb[0].mxu0
    %11020 = vdwg.mxu0
    %11021 = vmatprep.subr.bf16.mxu0 %v7470
    %11022 = vmatpush1.bf16.msra.mxu0 %v7469
    %11023 = vmatprep.subr.bf16.mxu0 %v7518
    %11024 = vmatpush1.bf16.msra.mxu0 %v7517
    %11025 = vmatprep.subr.bf16.mxu0 %v7566
    %11026 = vmatpush1.bf16.msra.mxu0 %v7565
    %11027 = vmatprep.subr.bf16.mxu0 %v7614
    %11028 = vmatpush1.bf16.msra.mxu0 %v7613
    %11029 = vmatprep.subr.bf16.mxu0 %v7662
    %11030 = vmatpush1.bf16.msra.mxu0 %v7661
    %11031 = vmatprep.subr.bf16.mxu0 %v7710
    %11032 = vmatpush1.bf16.msra.mxu0 %v7709
    %11033 = vmatprep.subr.bf16.mxu0 %v7758
    %11034 = vmatpush1.bf16.msra.mxu0 %v7757
    %11035 = vmatprep.subr.bf16.mxu0 %v7806
    %11036 = vmatpush1.bf16.msra.mxu0 %v7805
    %11037 = vmatprep.subr.bf16.mxu0 %v7854
    %11038 = vmatpush1.bf16.msra.mxu0 %v7853
    %11039 = vmatprep.subr.bf16.mxu0 %v7902
    %11040 = vmatpush1.bf16.msra.mxu0 %v7901
    %11041 = vmatprep.subr.bf16.mxu0 %v7950
    %11042 = vmatpush1.bf16.msra.mxu0 %v7949
    %11043 = vmatprep.subr.bf16.mxu0 %v7998
    %11044 = vmatpush1.bf16.msra.mxu0 %v7997
    %11045 = vmatprep.subr.bf16.mxu0 %v8046
    %11046 = vmatpush1.bf16.msra.mxu0 %v8045
    %11047 = vmatprep.subr.bf16.mxu0 %v8094
    %11048 = vmatpush1.bf16.msra.mxu0 %v8093
    %11049 = vmatprep.subr.bf16.mxu0 %v8142
    %11050 = vmatpush1.bf16.msra.mxu0 %v8141
    %11051 = vmatprep.subr.bf16.mxu0 %v8190
    %11052 = vmatpush1.bf16.msra.mxu0 %v8189
    %11053 = vmatprep.mubr.bf16.mxu0 %v1058
    %11054 = vmatmul.mubr.bf16.gmra.mrb[0].mxu0 %v1057
    %v11055 = vpop.f32.mrb[0].mxu0
    %v11056 = vadd.f32 %v2660, %v11055
    %v11057 = vpop.f32.mrb[0].mxu0
    %v11058 = vadd.f32 %v2664, %v11057
    %v11059 = vpop.f32.mrb[0].mxu0
    %v11060 = vpop.f32.mrb[0].mxu0
    %11061 = vdwg.mxu0
    %11062 = vmatprep.subr.bf16.mxu0 %v8238
    %11063 = vmatpush1.bf16.msra.mxu0 %v8237
    %11064 = vmatprep.subr.bf16.mxu0 %v8286
    %11065 = vmatpush1.bf16.msra.mxu0 %v8285
    %11066 = vmatprep.subr.bf16.mxu0 %v8334
    %11067 = vmatpush1.bf16.msra.mxu0 %v8333
    %11068 = vmatprep.subr.bf16.mxu0 %v8382
    %11069 = vmatpush1.bf16.msra.mxu0 %v8381
    %11070 = vmatprep.subr.bf16.mxu0 %v8430
    %11071 = vmatpush1.bf16.msra.mxu0 %v8429
    %11072 = vmatprep.subr.bf16.mxu0 %v8478
    %11073 = vmatpush1.bf16.msra.mxu0 %v8477
    %11074 = vmatprep.subr.bf16.mxu0 %v8526
    %11075 = vmatpush1.bf16.msra.mxu0 %v8525
    %11076 = vmatprep.subr.bf16.mxu0 %v8574
    %11077 = vmatpush1.bf16.msra.mxu0 %v8573
    %11078 = vmatprep.subr.bf16.mxu0 %v8622
    %11079 = vmatpush1.bf16.msra.mxu0 %v8621
    %11080 = vmatprep.subr.bf16.mxu0 %v8670
    %11081 = vmatpush1.bf16.msra.mxu0 %v8669
    %11082 = vmatprep.subr.bf16.mxu0 %v8718
    %11083 = vmatpush1.bf16.msra.mxu0 %v8717
    %11084 = vmatprep.subr.bf16.mxu0 %v8766
    %11085 = vmatpush1.bf16.msra.mxu0 %v8765
    %11086 = vmatprep.subr.bf16.mxu0 %v8814
    %11087 = vmatpush1.bf16.msra.mxu0 %v8813
    %11088 = vmatprep.subr.bf16.mxu0 %v8862
    %11089 = vmatpush1.bf16.msra.mxu0 %v8861
    %11090 = vmatprep.subr.bf16.mxu0 %v8910
    %11091 = vmatpush1.bf16.msra.mxu0 %v8909
    %11092 = vmatprep.subr.bf16.mxu0 %v8958
    %11093 = vmatpush1.bf16.msra.mxu0 %v8957
    %11094 = vmatprep.mubr.bf16.mxu0 %v1060
    %11095 = vmatmul.mubr.bf16.gmra.mrb[0].mxu0 %v1059
    %v11096 = vpop.f32.mrb[0].mxu0
    %v11097 = vadd.f32 %v11056, %v11096
    %v11098 = vpop.f32.mrb[0].mxu0
    %v11099 = vadd.f32 %v11058, %v11098
    %v11100 = vpop.f32.mrb[0].mxu0
    %v11101 = vpop.f32.mrb[0].mxu0
    %11102 = vdwg.mxu0
    %11103 = vmatprep.subr.bf16.mxu0 %v7472
    %11104 = vmatpush1.bf16.msra.mxu0 %v7471
    %11105 = vmatprep.subr.bf16.mxu0 %v7520
    %11106 = vmatpush1.bf16.msra.mxu0 %v7519
    %11107 = vmatprep.subr.bf16.mxu0 %v7568
    %11108 = vmatpush1.bf16.msra.mxu0 %v7567
    %11109 = vmatprep.subr.bf16.mxu0 %v7616
    %11110 = vmatpush1.bf16.msra.mxu0 %v7615
    %11111 = vmatprep.subr.bf16.mxu0 %v7664
    %11112 = vmatpush1.bf16.msra.mxu0 %v7663
    %11113 = vmatprep.subr.bf16.mxu0 %v7712
    %11114 = vmatpush1.bf16.msra.mxu0 %v7711
    %11115 = vmatprep.subr.bf16.mxu0 %v7760
    %11116 = vmatpush1.bf16.msra.mxu0 %v7759
    %11117 = vmatprep.subr.bf16.mxu0 %v7808
    %11118 = vmatpush1.bf16.msra.mxu0 %v7807
    %11119 = vmatprep.subr.bf16.mxu0 %v7856
    %11120 = vmatpush1.bf16.msra.mxu0 %v7855
    %11121 = vmatprep.subr.bf16.mxu0 %v7904
    %11122 = vmatpush1.bf16.msra.mxu0 %v7903
    %11123 = vmatprep.subr.bf16.mxu0 %v7952
    %11124 = vmatpush1.bf16.msra.mxu0 %v7951
    %11125 = vmatprep.subr.bf16.mxu0 %v8000
    %11126 = vmatpush1.bf16.msra.mxu0 %v7999
    %11127 = vmatprep.subr.bf16.mxu0 %v8048
    %11128 = vmatpush1.bf16.msra.mxu0 %v8047
    %11129 = vmatprep.subr.bf16.mxu0 %v8096
    %11130 = vmatpush1.bf16.msra.mxu0 %v8095
    %11131 = vmatprep.subr.bf16.mxu0 %v8144
    %11132 = vmatpush1.bf16.msra.mxu0 %v8143
    %11133 = vmatprep.subr.bf16.mxu0 %v8192
    %11134 = vmatpush1.bf16.msra.mxu0 %v8191
    %11135 = vmatprep.mubr.bf16.mxu0 %v1058
    %11136 = vmatmul.mubr.bf16.gmra.mrb[0].mxu0 %v1057
    %v11137 = vpop.f32.mrb[0].mxu0
    %v11138 = vadd.f32 %v2668, %v11137
    %v11139 = vpop.f32.mrb[0].mxu0
    %v11140 = vadd.f32 %v2672, %v11139
    %v11141 = vpop.f32.mrb[0].mxu0
    %v11142 = vpop.f32.mrb[0].mxu0
    %11143 = vdwg.mxu0
    %11144 = vmatprep.subr.bf16.mxu0 %v8240
    %11145 = vmatpush1.bf16.msra.mxu0 %v8239
    %11146 = vmatprep.subr.bf16.mxu0 %v8288
    %11147 = vmatpush1.bf16.msra.mxu0 %v8287
    %11148 = vmatprep.subr.bf16.mxu0 %v8336
    %11149 = vmatpush1.bf16.msra.mxu0 %v8335
    %11150 = vmatprep.subr.bf16.mxu0 %v8384
    %11151 = vmatpush1.bf16.msra.mxu0 %v8383
    %11152 = vmatprep.subr.bf16.mxu0 %v8432
    %11153 = vmatpush1.bf16.msra.mxu0 %v8431
    %11154 = vmatprep.subr.bf16.mxu0 %v8480
    %11155 = vmatpush1.bf16.msra.mxu0 %v8479
    %11156 = vmatprep.subr.bf16.mxu0 %v8528
    %11157 = vmatpush1.bf16.msra.mxu0 %v8527
    %11158 = vmatprep.subr.bf16.mxu0 %v8576
    %11159 = vmatpush1.bf16.msra.mxu0 %v8575
    %11160 = vmatprep.subr.bf16.mxu0 %v8624
    %11161 = vmatpush1.bf16.msra.mxu0 %v8623
    %11162 = vmatprep.subr.bf16.mxu0 %v8672
    %11163 = vmatpush1.bf16.msra.mxu0 %v8671
    %11164 = vmatprep.subr.bf16.mxu0 %v8720
    %11165 = vmatpush1.bf16.msra.mxu0 %v8719
    %11166 = vmatprep.subr.bf16.mxu0 %v8768
    %11167 = vmatpush1.bf16.msra.mxu0 %v8767
    %11168 = vmatprep.subr.bf16.mxu0 %v8816
    %11169 = vmatpush1.bf16.msra.mxu0 %v8815
    %11170 = vmatprep.subr.bf16.mxu0 %v8864
    %11171 = vmatpush1.bf16.msra.mxu0 %v8863
    %11172 = vmatprep.subr.bf16.mxu0 %v8912
    %11173 = vmatpush1.bf16.msra.mxu0 %v8911
    %11174 = vmatprep.subr.bf16.mxu0 %v8960
    %11175 = vmatpush1.bf16.msra.mxu0 %v8959
    %11176 = vmatprep.mubr.bf16.mxu0 %v1060
    %11177 = vmatmul.mubr.bf16.gmra.mrb[0].mxu0 %v1059
    %v11178 = vpop.f32.mrb[0].mxu0
    %v11179 = vadd.f32 %v11138, %v11178
    %v11180 = vpop.f32.mrb[0].mxu0
    %v11181 = vadd.f32 %v11140, %v11180
    %v11182 = vpop.f32.mrb[0].mxu0
    %v11183 = vpop.f32.mrb[0].mxu0
    %11184 = vdwg.mxu0
    %11185 = vmatprep.subr.bf16.mxu0 %v7474
    %11186 = vmatpush1.bf16.msra.mxu0 %v7473
    %11187 = vmatprep.subr.bf16.mxu0 %v7522
    %11188 = vmatpush1.bf16.msra.mxu0 %v7521
    %11189 = vmatprep.subr.bf16.mxu0 %v7570
    %11190 = vmatpush1.bf16.msra.mxu0 %v7569
    %11191 = vmatprep.subr.bf16.mxu0 %v7618
    %11192 = vmatpush1.bf16.msra.mxu0 %v7617
    %11193 = vmatprep.subr.bf16.mxu0 %v7666
    %11194 = vmatpush1.bf16.msra.mxu0 %v7665
    %11195 = vmatprep.subr.bf16.mxu0 %v7714
    %11196 = vmatpush1.bf16.msra.mxu0 %v7713
    %11197 = vmatprep.subr.bf16.mxu0 %v7762
    %11198 = vmatpush1.bf16.msra.mxu0 %v7761
    %11199 = vmatprep.subr.bf16.mxu0 %v7810
    %11200 = vmatpush1.bf16.msra.mxu0 %v7809
    %11201 = vmatprep.subr.bf16.mxu0 %v7858
    %11202 = vmatpush1.bf16.msra.mxu0 %v7857
    %11203 = vmatprep.subr.bf16.mxu0 %v7906
    %11204 = vmatpush1.bf16.msra.mxu0 %v7905
    %11205 = vmatprep.subr.bf16.mxu0 %v7954
    %11206 = vmatpush1.bf16.msra.mxu0 %v7953
    %11207 = vmatprep.subr.bf16.mxu0 %v8002
    %11208 = vmatpush1.bf16.msra.mxu0 %v8001
    %11209 = vmatprep.subr.bf16.mxu0 %v8050
    %11210 = vmatpush1.bf16.msra.mxu0 %v8049
    %11211 = vmatprep.subr.bf16.mxu0 %v8098
    %11212 = vmatpush1.bf16.msra.mxu0 %v8097
    %11213 = vmatprep.subr.bf16.mxu0 %v8146
    %11214 = vmatpush1.bf16.msra.mxu0 %v8145
    %11215 = vmatprep.subr.bf16.mxu0 %v8194
    %11216 = vmatpush1.bf16.msra.mxu0 %v8193
    %11217 = vmatprep.mubr.bf16.mxu0 %v1058
    %11218 = vmatmul.mubr.bf16.gmra.mrb[0].mxu0 %v1057
    %v11219 = vpop.f32.mrb[0].mxu0
    %v11220 = vadd.f32 %v2676, %v11219
    %v11221 = vpop.f32.mrb[0].mxu0
    %v11222 = vadd.f32 %v2680, %v11221
    %v11223 = vpop.f32.mrb[0].mxu0
    %v11224 = vpop.f32.mrb[0].mxu0
    %11225 = vdwg.mxu0
    %11226 = vmatprep.subr.bf16.mxu0 %v8242
    %11227 = vmatpush1.bf16.msra.mxu0 %v8241
    %11228 = vmatprep.subr.bf16.mxu0 %v8290
    %11229 = vmatpush1.bf16.msra.mxu0 %v8289
    %11230 = vmatprep.subr.bf16.mxu0 %v8338
    %11231 = vmatpush1.bf16.msra.mxu0 %v8337
    %11232 = vmatprep.subr.bf16.mxu0 %v8386
    %11233 = vmatpush1.bf16.msra.mxu0 %v8385
    %11234 = vmatprep.subr.bf16.mxu0 %v8434
    %11235 = vmatpush1.bf16.msra.mxu0 %v8433
    %11236 = vmatprep.subr.bf16.mxu0 %v8482
    %11237 = vmatpush1.bf16.msra.mxu0 %v8481
    %11238 = vmatprep.subr.bf16.mxu0 %v8530
    %11239 = vmatpush1.bf16.msra.mxu0 %v8529
    %11240 = vmatprep.subr.bf16.mxu0 %v8578
    %11241 = vmatpush1.bf16.msra.mxu0 %v8577
    %11242 = vmatprep.subr.bf16.mxu0 %v8626
    %11243 = vmatpush1.bf16.msra.mxu0 %v8625
    %11244 = vmatprep.subr.bf16.mxu0 %v8674
    %11245 = vmatpush1.bf16.msra.mxu0 %v8673
    %11246 = vmatprep.subr.bf16.mxu0 %v8722
    %11247 = vmatpush1.bf16.msra.mxu0 %v8721
    %11248 = vmatprep.subr.bf16.mxu0 %v8770
    %11249 = vmatpush1.bf16.msra.mxu0 %v8769
    %11250 = vmatprep.subr.bf16.mxu0 %v8818
    %11251 = vmatpush1.bf16.msra.mxu0 %v8817
    %11252 = vmatprep.subr.bf16.mxu0 %v8866
    %11253 = vmatpush1.bf16.msra.mxu0 %v8865
    %11254 = vmatprep.subr.bf16.mxu0 %v8914
    %11255 = vmatpush1.bf16.msra.mxu0 %v8913
    %11256 = vmatprep.subr.bf16.mxu0 %v8962
    %11257 = vmatpush1.bf16.msra.mxu0 %v8961
    %11258 = vmatprep.mubr.bf16.mxu0 %v1060
    %11259 = vmatmul.mubr.bf16.gmra.mrb[0].mxu0 %v1059
    %v11260 = vpop.f32.mrb[0].mxu0
    %v11261 = vadd.f32 %v11220, %v11260
    %v11262 = vpop.f32.mrb[0].mxu0
    %v11263 = vadd.f32 %v11222, %v11262
    %v11264 = vpop.f32.mrb[0].mxu0
    %v11265 = vpop.f32.mrb[0].mxu0
    %11266 = vdwg.mxu0
    %11267 = vmatprep.subr.bf16.mxu0 %v7476
    %11268 = vmatpush1.bf16.msra.mxu0 %v7475
    %11269 = vmatprep.subr.bf16.mxu0 %v7524
    %11270 = vmatpush1.bf16.msra.mxu0 %v7523
    %11271 = vmatprep.subr.bf16.mxu0 %v7572
    %11272 = vmatpush1.bf16.msra.mxu0 %v7571
    %11273 = vmatprep.subr.bf16.mxu0 %v7620
    %11274 = vmatpush1.bf16.msra.mxu0 %v7619
    %11275 = vmatprep.subr.bf16.mxu0 %v7668
    %11276 = vmatpush1.bf16.msra.mxu0 %v7667
    %11277 = vmatprep.subr.bf16.mxu0 %v7716
    %11278 = vmatpush1.bf16.msra.mxu0 %v7715
    %11279 = vmatprep.subr.bf16.mxu0 %v7764
    %11280 = vmatpush1.bf16.msra.mxu0 %v7763
    %11281 = vmatprep.subr.bf16.mxu0 %v7812
    %11282 = vmatpush1.bf16.msra.mxu0 %v7811
    %11283 = vmatprep.subr.bf16.mxu0 %v7860
    %11284 = vmatpush1.bf16.msra.mxu0 %v7859
    %11285 = vmatprep.subr.bf16.mxu0 %v7908
    %11286 = vmatpush1.bf16.msra.mxu0 %v7907
    %11287 = vmatprep.subr.bf16.mxu0 %v7956
    %11288 = vmatpush1.bf16.msra.mxu0 %v7955
    %11289 = vmatprep.subr.bf16.mxu0 %v8004
    %11290 = vmatpush1.bf16.msra.mxu0 %v8003
    %11291 = vmatprep.subr.bf16.mxu0 %v8052
    %11292 = vmatpush1.bf16.msra.mxu0 %v8051
    %11293 = vmatprep.subr.bf16.mxu0 %v8100
    %11294 = vmatpush1.bf16.msra.mxu0 %v8099
    %11295 = vmatprep.subr.bf16.mxu0 %v8148
    %11296 = vmatpush1.bf16.msra.mxu0 %v8147
    %11297 = vmatprep.subr.bf16.mxu0 %v8196
    %11298 = vmatpush1.bf16.msra.mxu0 %v8195
    %11299 = vmatprep.mubr.bf16.mxu0 %v1058
    %11300 = vmatmul.mubr.bf16.gmra.mrb[0].mxu0 %v1057
    %v11301 = vpop.f32.mrb[0].mxu0
    %v11302 = vadd.f32 %v2684, %v11301
    %v11303 = vpop.f32.mrb[0].mxu0
    %v11304 = vadd.f32 %v2688, %v11303
    %v11305 = vpop.f32.mrb[0].mxu0
    %v11306 = vpop.f32.mrb[0].mxu0
    %11307 = vdwg.mxu0
    %11308 = vmatprep.subr.bf16.mxu0 %v8244
    %11309 = vmatpush1.bf16.msra.mxu0 %v8243
    %11310 = vmatprep.subr.bf16.mxu0 %v8292
    %11311 = vmatpush1.bf16.msra.mxu0 %v8291
    %11312 = vmatprep.subr.bf16.mxu0 %v8340
    %11313 = vmatpush1.bf16.msra.mxu0 %v8339
    %11314 = vmatprep.subr.bf16.mxu0 %v8388
    %11315 = vmatpush1.bf16.msra.mxu0 %v8387
    %11316 = vmatprep.subr.bf16.mxu0 %v8436
    %11317 = vmatpush1.bf16.msra.mxu0 %v8435
    %11318 = vmatprep.subr.bf16.mxu0 %v8484
    %11319 = vmatpush1.bf16.msra.mxu0 %v8483
    %11320 = vmatprep.subr.bf16.mxu0 %v8532
    %11321 = vmatpush1.bf16.msra.mxu0 %v8531
    %11322 = vmatprep.subr.bf16.mxu0 %v8580
    %11323 = vmatpush1.bf16.msra.mxu0 %v8579
    %11324 = vmatprep.subr.bf16.mxu0 %v8628
    %11325 = vmatpush1.bf16.msra.mxu0 %v8627
    %11326 = vmatprep.subr.bf16.mxu0 %v8676
    %11327 = vmatpush1.bf16.msra.mxu0 %v8675
    %11328 = vmatprep.subr.bf16.mxu0 %v8724
    %11329 = vmatpush1.bf16.msra.mxu0 %v8723
    %11330 = vmatprep.subr.bf16.mxu0 %v8772
    %11331 = vmatpush1.bf16.msra.mxu0 %v8771
    %11332 = vmatprep.subr.bf16.mxu0 %v8820
    %11333 = vmatpush1.bf16.msra.mxu0 %v8819
    %11334 = vmatprep.subr.bf16.mxu0 %v8868
    %11335 = vmatpush1.bf16.msra.mxu0 %v8867
    %11336 = vmatprep.subr.bf16.mxu0 %v8916
    %11337 = vmatpush1.bf16.msra.mxu0 %v8915
    %11338 = vmatprep.subr.bf16.mxu0 %v8964
    %11339 = vmatpush1.bf16.msra.mxu0 %v8963
    %11340 = vmatprep.mubr.bf16.mxu0 %v1060
    %11341 = vmatmul.mubr.bf16.gmra.mrb[0].mxu0 %v1059
    %v11342 = vpop.f32.mrb[0].mxu0
    %v11343 = vadd.f32 %v11302, %v11342
    %v11344 = vpop.f32.mrb[0].mxu0
    %v11345 = vadd.f32 %v11304, %v11344
    %v11346 = vpop.f32.mrb[0].mxu0
    %v11347 = vpop.f32.mrb[0].mxu0
    %11348 = vdwg.mxu0
    %11349 = vmatprep.subr.bf16.mxu0 %v7478
    %11350 = vmatpush1.bf16.msra.mxu0 %v7477
    %11351 = vmatprep.subr.bf16.mxu0 %v7526
    %11352 = vmatpush1.bf16.msra.mxu0 %v7525
    %11353 = vmatprep.subr.bf16.mxu0 %v7574
    %11354 = vmatpush1.bf16.msra.mxu0 %v7573
    %11355 = vmatprep.subr.bf16.mxu0 %v7622
    %11356 = vmatpush1.bf16.msra.mxu0 %v7621
    %11357 = vmatprep.subr.bf16.mxu0 %v7670
    %11358 = vmatpush1.bf16.msra.mxu0 %v7669
    %11359 = vmatprep.subr.bf16.mxu0 %v7718
    %11360 = vmatpush1.bf16.msra.mxu0 %v7717
    %11361 = vmatprep.subr.bf16.mxu0 %v7766
    %11362 = vmatpush1.bf16.msra.mxu0 %v7765
    %11363 = vmatprep.subr.bf16.mxu0 %v7814
    %11364 = vmatpush1.bf16.msra.mxu0 %v7813
    %11365 = vmatprep.subr.bf16.mxu0 %v7862
    %11366 = vmatpush1.bf16.msra.mxu0 %v7861
    %11367 = vmatprep.subr.bf16.mxu0 %v7910
    %11368 = vmatpush1.bf16.msra.mxu0 %v7909
    %11369 = vmatprep.subr.bf16.mxu0 %v7958
    %11370 = vmatpush1.bf16.msra.mxu0 %v7957
    %11371 = vmatprep.subr.bf16.mxu0 %v8006
    %11372 = vmatpush1.bf16.msra.mxu0 %v8005
    %11373 = vmatprep.subr.bf16.mxu0 %v8054
    %11374 = vmatpush1.bf16.msra.mxu0 %v8053
    %11375 = vmatprep.subr.bf16.mxu0 %v8102
    %11376 = vmatpush1.bf16.msra.mxu0 %v8101
    %11377 = vmatprep.subr.bf16.mxu0 %v8150
    %11378 = vmatpush1.bf16.msra.mxu0 %v8149
    %11379 = vmatprep.subr.bf16.mxu0 %v8198
    %11380 = vmatpush1.bf16.msra.mxu0 %v8197
    %11381 = vmatprep.mubr.bf16.mxu0 %v1058
    %11382 = vmatmul.mubr.bf16.gmra.mrb[0].mxu0 %v1057
    %v11383 = vpop.f32.mrb[0].mxu0
    %v11384 = vadd.f32 %v2692, %v11383
    %v11385 = vpop.f32.mrb[0].mxu0
    %v11386 = vadd.f32 %v2696, %v11385
    %v11387 = vpop.f32.mrb[0].mxu0
    %v11388 = vpop.f32.mrb[0].mxu0
    %11389 = vdwg.mxu0
    %11390 = vmatprep.subr.bf16.mxu0 %v8246
    %11391 = vmatpush1.bf16.msra.mxu0 %v8245
    %11392 = vmatprep.subr.bf16.mxu0 %v8294
    %11393 = vmatpush1.bf16.msra.mxu0 %v8293
    %11394 = vmatprep.subr.bf16.mxu0 %v8342
    %11395 = vmatpush1.bf16.msra.mxu0 %v8341
    %11396 = vmatprep.subr.bf16.mxu0 %v8390
    %11397 = vmatpush1.bf16.msra.mxu0 %v8389
    %11398 = vmatprep.subr.bf16.mxu0 %v8438
    %11399 = vmatpush1.bf16.msra.mxu0 %v8437
    %11400 = vmatprep.subr.bf16.mxu0 %v8486
    %11401 = vmatpush1.bf16.msra.mxu0 %v8485
    %11402 = vmatprep.subr.bf16.mxu0 %v8534
    %11403 = vmatpush1.bf16.msra.mxu0 %v8533
    %11404 = vmatprep.subr.bf16.mxu0 %v8582
    %11405 = vmatpush1.bf16.msra.mxu0 %v8581
    %11406 = vmatprep.subr.bf16.mxu0 %v8630
    %11407 = vmatpush1.bf16.msra.mxu0 %v8629
    %11408 = vmatprep.subr.bf16.mxu0 %v8678
    %11409 = vmatpush1.bf16.msra.mxu0 %v8677
    %11410 = vmatprep.subr.bf16.mxu0 %v8726
    %11411 = vmatpush1.bf16.msra.mxu0 %v8725
    %11412 = vmatprep.subr.bf16.mxu0 %v8774
    %11413 = vmatpush1.bf16.msra.mxu0 %v8773
    %11414 = vmatprep.subr.bf16.mxu0 %v8822
    %11415 = vmatpush1.bf16.msra.mxu0 %v8821
    %11416 = vmatprep.subr.bf16.mxu0 %v8870
    %11417 = vmatpush1.bf16.msra.mxu0 %v8869
    %11418 = vmatprep.subr.bf16.mxu0 %v8918
    %11419 = vmatpush1.bf16.msra.mxu0 %v8917
    %11420 = vmatprep.subr.bf16.mxu0 %v8966
    %11421 = vmatpush1.bf16.msra.mxu0 %v8965
    %11422 = vmatprep.mubr.bf16.mxu0 %v1060
    %11423 = vmatmul.mubr.bf16.gmra.mrb[0].mxu0 %v1059
    %v11424 = vpop.f32.mrb[0].mxu0
    %v11425 = vadd.f32 %v11384, %v11424
    %v11426 = vpop.f32.mrb[0].mxu0
    %v11427 = vadd.f32 %v11386, %v11426
    %v11428 = vpop.f32.mrb[0].mxu0
    %v11429 = vpop.f32.mrb[0].mxu0
    %11430 = vdwg.mxu0
    %11431 = vmatprep.subr.bf16.mxu0 %v7480
    %11432 = vmatpush1.bf16.msra.mxu0 %v7479
    %11433 = vmatprep.subr.bf16.mxu0 %v7528
    %11434 = vmatpush1.bf16.msra.mxu0 %v7527
    %11435 = vmatprep.subr.bf16.mxu0 %v7576
    %11436 = vmatpush1.bf16.msra.mxu0 %v7575
    %11437 = vmatprep.subr.bf16.mxu0 %v7624
    %11438 = vmatpush1.bf16.msra.mxu0 %v7623
    %11439 = vmatprep.subr.bf16.mxu0 %v7672
    %11440 = vmatpush1.bf16.msra.mxu0 %v7671
    %11441 = vmatprep.subr.bf16.mxu0 %v7720
    %11442 = vmatpush1.bf16.msra.mxu0 %v7719
    %11443 = vmatprep.subr.bf16.mxu0 %v7768
    %11444 = vmatpush1.bf16.msra.mxu0 %v7767
    %11445 = vmatprep.subr.bf16.mxu0 %v7816
    %11446 = vmatpush1.bf16.msra.mxu0 %v7815
    %11447 = vmatprep.subr.bf16.mxu0 %v7864
    %11448 = vmatpush1.bf16.msra.mxu0 %v7863
    %11449 = vmatprep.subr.bf16.mxu0 %v7912
    %11450 = vmatpush1.bf16.msra.mxu0 %v7911
    %11451 = vmatprep.subr.bf16.mxu0 %v7960
    %11452 = vmatpush1.bf16.msra.mxu0 %v7959
    %11453 = vmatprep.subr.bf16.mxu0 %v8008
    %11454 = vmatpush1.bf16.msra.mxu0 %v8007
    %11455 = vmatprep.subr.bf16.mxu0 %v8056
    %11456 = vmatpush1.bf16.msra.mxu0 %v8055
    %11457 = vmatprep.subr.bf16.mxu0 %v8104
    %11458 = vmatpush1.bf16.msra.mxu0 %v8103
    %11459 = vmatprep.subr.bf16.mxu0 %v8152
    %11460 = vmatpush1.bf16.msra.mxu0 %v8151
    %11461 = vmatprep.subr.bf16.mxu0 %v8200
    %11462 = vmatpush1.bf16.msra.mxu0 %v8199
    %11463 = vmatprep.mubr.bf16.mxu0 %v1058
    %11464 = vmatmul.mubr.bf16.gmra.mrb[0].mxu0 %v1057
    %v11465 = vpop.f32.mrb[0].mxu0
    %v11466 = vadd.f32 %v2700, %v11465
    %v11467 = vpop.f32.mrb[0].mxu0
    %v11468 = vadd.f32 %v2704, %v11467
    %v11469 = vpop.f32.mrb[0].mxu0
    %v11470 = vpop.f32.mrb[0].mxu0
    %11471 = vdwg.mxu0
    %11472 = vmatprep.subr.bf16.mxu0 %v8248
    %11473 = vmatpush1.bf16.msra.mxu0 %v8247
    %11474 = vmatprep.subr.bf16.mxu0 %v8296
    %11475 = vmatpush1.bf16.msra.mxu0 %v8295
    %11476 = vmatprep.subr.bf16.mxu0 %v8344
    %11477 = vmatpush1.bf16.msra.mxu0 %v8343
    %11478 = vmatprep.subr.bf16.mxu0 %v8392
    %11479 = vmatpush1.bf16.msra.mxu0 %v8391
    %11480 = vmatprep.subr.bf16.mxu0 %v8440
    %11481 = vmatpush1.bf16.msra.mxu0 %v8439
    %11482 = vmatprep.subr.bf16.mxu0 %v8488
    %11483 = vmatpush1.bf16.msra.mxu0 %v8487
    %11484 = vmatprep.subr.bf16.mxu0 %v8536
    %11485 = vmatpush1.bf16.msra.mxu0 %v8535
    %11486 = vmatprep.subr.bf16.mxu0 %v8584
    %11487 = vmatpush1.bf16.msra.mxu0 %v8583
    %11488 = vmatprep.subr.bf16.mxu0 %v8632
    %11489 = vmatpush1.bf16.msra.mxu0 %v8631
    %11490 = vmatprep.subr.bf16.mxu0 %v8680
    %11491 = vmatpush1.bf16.msra.mxu0 %v8679
    %11492 = vmatprep.subr.bf16.mxu0 %v8728
    %11493 = vmatpush1.bf16.msra.mxu0 %v8727
    %11494 = vmatprep.subr.bf16.mxu0 %v8776
    %11495 = vmatpush1.bf16.msra.mxu0 %v8775
    %11496 = vmatprep.subr.bf16.mxu0 %v8824
    %11497 = vmatpush1.bf16.msra.mxu0 %v8823
    %11498 = vmatprep.subr.bf16.mxu0 %v8872
    %11499 = vmatpush1.bf16.msra.mxu0 %v8871
    %11500 = vmatprep.subr.bf16.mxu0 %v8920
    %11501 = vmatpush1.bf16.msra.mxu0 %v8919
    %11502 = vmatprep.subr.bf16.mxu0 %v8968
    %11503 = vmatpush1.bf16.msra.mxu0 %v8967
    %11504 = vmatprep.mubr.bf16.mxu0 %v1060
    %11505 = vmatmul.mubr.bf16.gmra.mrb[0].mxu0 %v1059
    %v11506 = vpop.f32.mrb[0].mxu0
    %v11507 = vadd.f32 %v11466, %v11506
    %v11508 = vpop.f32.mrb[0].mxu0
    %v11509 = vadd.f32 %v11468, %v11508
    %v11510 = vpop.f32.mrb[0].mxu0
    %v11511 = vpop.f32.mrb[0].mxu0
    %11512 = vdwg.mxu0
    %11513 = vmatprep.subr.bf16.mxu0 %v7482
    %11514 = vmatpush1.bf16.msra.mxu0 %v7481
    %11515 = vmatprep.subr.bf16.mxu0 %v7530
    %11516 = vmatpush1.bf16.msra.mxu0 %v7529
    %11517 = vmatprep.subr.bf16.mxu0 %v7578
    %11518 = vmatpush1.bf16.msra.mxu0 %v7577
    %11519 = vmatprep.subr.bf16.mxu0 %v7626
    %11520 = vmatpush1.bf16.msra.mxu0 %v7625
    %11521 = vmatprep.subr.bf16.mxu0 %v7674
    %11522 = vmatpush1.bf16.msra.mxu0 %v7673
    %11523 = vmatprep.subr.bf16.mxu0 %v7722
    %11524 = vmatpush1.bf16.msra.mxu0 %v7721
    %11525 = vmatprep.subr.bf16.mxu0 %v7770
    %11526 = vmatpush1.bf16.msra.mxu0 %v7769
    %11527 = vmatprep.subr.bf16.mxu0 %v7818
    %11528 = vmatpush1.bf16.msra.mxu0 %v7817
    %11529 = vmatprep.subr.bf16.mxu0 %v7866
    %11530 = vmatpush1.bf16.msra.mxu0 %v7865
    %11531 = vmatprep.subr.bf16.mxu0 %v7914
    %11532 = vmatpush1.bf16.msra.mxu0 %v7913
    %11533 = vmatprep.subr.bf16.mxu0 %v7962
    %11534 = vmatpush1.bf16.msra.mxu0 %v7961
    %11535 = vmatprep.subr.bf16.mxu0 %v8010
    %11536 = vmatpush1.bf16.msra.mxu0 %v8009
    %11537 = vmatprep.subr.bf16.mxu0 %v8058
    %11538 = vmatpush1.bf16.msra.mxu0 %v8057
    %11539 = vmatprep.subr.bf16.mxu0 %v8106
    %11540 = vmatpush1.bf16.msra.mxu0 %v8105
    %11541 = vmatprep.subr.bf16.mxu0 %v8154
    %11542 = vmatpush1.bf16.msra.mxu0 %v8153
    %11543 = vmatprep.subr.bf16.mxu0 %v8202
    %11544 = vmatpush1.bf16.msra.mxu0 %v8201
    %11545 = vmatprep.mubr.bf16.mxu0 %v1058
    %11546 = vmatmul.mubr.bf16.gmra.mrb[0].mxu0 %v1057
    %v11547 = vpop.f32.mrb[0].mxu0
    %v11548 = vadd.f32 %v2708, %v11547
    %v11549 = vpop.f32.mrb[0].mxu0
    %v11550 = vadd.f32 %v2712, %v11549
    %v11551 = vpop.f32.mrb[0].mxu0
    %v11552 = vpop.f32.mrb[0].mxu0
    %11553 = vdwg.mxu0
    %11554 = vmatprep.subr.bf16.mxu0 %v8250
    %11555 = vmatpush1.bf16.msra.mxu0 %v8249
    %11556 = vmatprep.subr.bf16.mxu0 %v8298
    %11557 = vmatpush1.bf16.msra.mxu0 %v8297
    %11558 = vmatprep.subr.bf16.mxu0 %v8346
    %11559 = vmatpush1.bf16.msra.mxu0 %v8345
    %11560 = vmatprep.subr.bf16.mxu0 %v8394
    %11561 = vmatpush1.bf16.msra.mxu0 %v8393
    %11562 = vmatprep.subr.bf16.mxu0 %v8442
    %11563 = vmatpush1.bf16.msra.mxu0 %v8441
    %11564 = vmatprep.subr.bf16.mxu0 %v8490
    %11565 = vmatpush1.bf16.msra.mxu0 %v8489
    %11566 = vmatprep.subr.bf16.mxu0 %v8538
    %11567 = vmatpush1.bf16.msra.mxu0 %v8537
    %11568 = vmatprep.subr.bf16.mxu0 %v8586
    %11569 = vmatpush1.bf16.msra.mxu0 %v8585
    %11570 = vmatprep.subr.bf16.mxu0 %v8634
    %11571 = vmatpush1.bf16.msra.mxu0 %v8633
    %11572 = vmatprep.subr.bf16.mxu0 %v8682
    %11573 = vmatpush1.bf16.msra.mxu0 %v8681
    %11574 = vmatprep.subr.bf16.mxu0 %v8730
    %11575 = vmatpush1.bf16.msra.mxu0 %v8729
    %11576 = vmatprep.subr.bf16.mxu0 %v8778
    %11577 = vmatpush1.bf16.msra.mxu0 %v8777
    %11578 = vmatprep.subr.bf16.mxu0 %v8826
    %11579 = vmatpush1.bf16.msra.mxu0 %v8825
    %11580 = vmatprep.subr.bf16.mxu0 %v8874
    %11581 = vmatpush1.bf16.msra.mxu0 %v8873
    %11582 = vmatprep.subr.bf16.mxu0 %v8922
    %11583 = vmatpush1.bf16.msra.mxu0 %v8921
    %11584 = vmatprep.subr.bf16.mxu0 %v8970
    %11585 = vmatpush1.bf16.msra.mxu0 %v8969
    %11586 = vmatprep.mubr.bf16.mxu0 %v1060
    %11587 = vmatmul.mubr.bf16.gmra.mrb[0].mxu0 %v1059
    %v11588 = vpop.f32.mrb[0].mxu0
    %v11589 = vadd.f32 %v11548, %v11588
    %v11590 = vpop.f32.mrb[0].mxu0
    %v11591 = vadd.f32 %v11550, %v11590
    %v11592 = vpop.f32.mrb[0].mxu0
    %v11593 = vpop.f32.mrb[0].mxu0
    %11594 = vdwg.mxu0
    %11595 = vmatprep.subr.bf16.mxu0 %v7484
    %11596 = vmatpush1.bf16.msra.mxu0 %v7483
    %11597 = vmatprep.subr.bf16.mxu0 %v7532
    %11598 = vmatpush1.bf16.msra.mxu0 %v7531
    %11599 = vmatprep.subr.bf16.mxu0 %v7580
    %11600 = vmatpush1.bf16.msra.mxu0 %v7579
    %11601 = vmatprep.subr.bf16.mxu0 %v7628
    %11602 = vmatpush1.bf16.msra.mxu0 %v7627
    %11603 = vmatprep.subr.bf16.mxu0 %v7676
    %11604 = vmatpush1.bf16.msra.mxu0 %v7675
    %11605 = vmatprep.subr.bf16.mxu0 %v7724
    %11606 = vmatpush1.bf16.msra.mxu0 %v7723
    %11607 = vmatprep.subr.bf16.mxu0 %v7772
    %11608 = vmatpush1.bf16.msra.mxu0 %v7771
    %11609 = vmatprep.subr.bf16.mxu0 %v7820
    %11610 = vmatpush1.bf16.msra.mxu0 %v7819
    %11611 = vmatprep.subr.bf16.mxu0 %v7868
    %11612 = vmatpush1.bf16.msra.mxu0 %v7867
    %11613 = vmatprep.subr.bf16.mxu0 %v7916
    %11614 = vmatpush1.bf16.msra.mxu0 %v7915
    %11615 = vmatprep.subr.bf16.mxu0 %v7964
    %11616 = vmatpush1.bf16.msra.mxu0 %v7963
    %11617 = vmatprep.subr.bf16.mxu0 %v8012
    %11618 = vmatpush1.bf16.msra.mxu0 %v8011
    %11619 = vmatprep.subr.bf16.mxu0 %v8060
    %11620 = vmatpush1.bf16.msra.mxu0 %v8059
    %11621 = vmatprep.subr.bf16.mxu0 %v8108
    %11622 = vmatpush1.bf16.msra.mxu0 %v8107
    %11623 = vmatprep.subr.bf16.mxu0 %v8156
    %11624 = vmatpush1.bf16.msra.mxu0 %v8155
    %11625 = vmatprep.subr.bf16.mxu0 %v8204
    %11626 = vmatpush1.bf16.msra.mxu0 %v8203
    %11627 = vmatprep.mubr.bf16.mxu0 %v1058
    %11628 = vmatmul.mubr.bf16.gmra.mrb[0].mxu0 %v1057
    %v11629 = vpop.f32.mrb[0].mxu0
    %v11630 = vadd.f32 %v2716, %v11629
    %v11631 = vpop.f32.mrb[0].mxu0
    %v11632 = vadd.f32 %v2720, %v11631
    %v11633 = vpop.f32.mrb[0].mxu0
    %v11634 = vpop.f32.mrb[0].mxu0
    %11635 = vdwg.mxu0
    %11636 = vmatprep.subr.bf16.mxu0 %v8252
    %11637 = vmatpush1.bf16.msra.mxu0 %v8251
    %11638 = vmatprep.subr.bf16.mxu0 %v8300
    %11639 = vmatpush1.bf16.msra.mxu0 %v8299
    %11640 = vmatprep.subr.bf16.mxu0 %v8348
    %11641 = vmatpush1.bf16.msra.mxu0 %v8347
    %11642 = vmatprep.subr.bf16.mxu0 %v8396
    %11643 = vmatpush1.bf16.msra.mxu0 %v8395
    %11644 = vmatprep.subr.bf16.mxu0 %v8444
    %11645 = vmatpush1.bf16.msra.mxu0 %v8443
    %11646 = vmatprep.subr.bf16.mxu0 %v8492
    %11647 = vmatpush1.bf16.msra.mxu0 %v8491
    %11648 = vmatprep.subr.bf16.mxu0 %v8540
    %11649 = vmatpush1.bf16.msra.mxu0 %v8539
    %11650 = vmatprep.subr.bf16.mxu0 %v8588
    %11651 = vmatpush1.bf16.msra.mxu0 %v8587
    %11652 = vmatprep.subr.bf16.mxu0 %v8636
    %11653 = vmatpush1.bf16.msra.mxu0 %v8635
    %11654 = vmatprep.subr.bf16.mxu0 %v8684
    %11655 = vmatpush1.bf16.msra.mxu0 %v8683
    %11656 = vmatprep.subr.bf16.mxu0 %v8732
    %11657 = vmatpush1.bf16.msra.mxu0 %v8731
    %11658 = vmatprep.subr.bf16.mxu0 %v8780
    %11659 = vmatpush1.bf16.msra.mxu0 %v8779
    %11660 = vmatprep.subr.bf16.mxu0 %v8828
    %11661 = vmatpush1.bf16.msra.mxu0 %v8827
    %11662 = vmatprep.subr.bf16.mxu0 %v8876
    %11663 = vmatpush1.bf16.msra.mxu0 %v8875
    %11664 = vmatprep.subr.bf16.mxu0 %v8924
    %11665 = vmatpush1.bf16.msra.mxu0 %v8923
    %11666 = vmatprep.subr.bf16.mxu0 %v8972
    %11667 = vmatpush1.bf16.msra.mxu0 %v8971
    %11668 = vmatprep.mubr.bf16.mxu0 %v1060
    %11669 = vmatmul.mubr.bf16.gmra.mrb[0].mxu0 %v1059
    %v11670 = vpop.f32.mrb[0].mxu0
    %v11671 = vadd.f32 %v11630, %v11670
    %v11672 = vpop.f32.mrb[0].mxu0
    %v11673 = vadd.f32 %v11632, %v11672
    %v11674 = vpop.f32.mrb[0].mxu0
    %v11675 = vpop.f32.mrb[0].mxu0
    %11676 = vdwg.mxu0
    %11677 = vmatprep.subr.bf16.mxu0 %v7486
    %11678 = vmatpush1.bf16.msra.mxu0 %v7485
    %11679 = vmatprep.subr.bf16.mxu0 %v7534
    %11680 = vmatpush1.bf16.msra.mxu0 %v7533
    %11681 = vmatprep.subr.bf16.mxu0 %v7582
    %11682 = vmatpush1.bf16.msra.mxu0 %v7581
    %11683 = vmatprep.subr.bf16.mxu0 %v7630
    %11684 = vmatpush1.bf16.msra.mxu0 %v7629
    %11685 = vmatprep.subr.bf16.mxu0 %v7678
    %11686 = vmatpush1.bf16.msra.mxu0 %v7677
    %11687 = vmatprep.subr.bf16.mxu0 %v7726
    %11688 = vmatpush1.bf16.msra.mxu0 %v7725
    %11689 = vmatprep.subr.bf16.mxu0 %v7774
    %11690 = vmatpush1.bf16.msra.mxu0 %v7773
    %11691 = vmatprep.subr.bf16.mxu0 %v7822
    %11692 = vmatpush1.bf16.msra.mxu0 %v7821
    %11693 = vmatprep.subr.bf16.mxu0 %v7870
    %11694 = vmatpush1.bf16.msra.mxu0 %v7869
    %11695 = vmatprep.subr.bf16.mxu0 %v7918
    %11696 = vmatpush1.bf16.msra.mxu0 %v7917
    %11697 = vmatprep.subr.bf16.mxu0 %v7966
    %11698 = vmatpush1.bf16.msra.mxu0 %v7965
    %11699 = vmatprep.subr.bf16.mxu0 %v8014
    %11700 = vmatpush1.bf16.msra.mxu0 %v8013
    %11701 = vmatprep.subr.bf16.mxu0 %v8062
    %11702 = vmatpush1.bf16.msra.mxu0 %v8061
    %11703 = vmatprep.subr.bf16.mxu0 %v8110
    %11704 = vmatpush1.bf16.msra.mxu0 %v8109
    %11705 = vmatprep.subr.bf16.mxu0 %v8158
    %11706 = vmatpush1.bf16.msra.mxu0 %v8157
    %11707 = vmatprep.subr.bf16.mxu0 %v8206
    %11708 = vmatpush1.bf16.msra.mxu0 %v8205
    %11709 = vmatprep.mubr.bf16.mxu0 %v1058
    %11710 = vmatmul.mubr.bf16.gmra.mrb[0].mxu0 %v1057
    %v11711 = vpop.f32.mrb[0].mxu0
    %v11712 = vadd.f32 %v2724, %v11711
    %v11713 = vpop.f32.mrb[0].mxu0
    %v11714 = vadd.f32 %v2728, %v11713
    %v11715 = vpop.f32.mrb[0].mxu0
    %v11716 = vpop.f32.mrb[0].mxu0
    %11717 = vdwg.mxu0
    %11718 = vmatprep.subr.bf16.mxu0 %v8254
    %11719 = vmatpush1.bf16.msra.mxu0 %v8253
    %11720 = vmatprep.subr.bf16.mxu0 %v8302
    %11721 = vmatpush1.bf16.msra.mxu0 %v8301
    %11722 = vmatprep.subr.bf16.mxu0 %v8350
    %11723 = vmatpush1.bf16.msra.mxu0 %v8349
    %11724 = vmatprep.subr.bf16.mxu0 %v8398
    %11725 = vmatpush1.bf16.msra.mxu0 %v8397
    %11726 = vmatprep.subr.bf16.mxu0 %v8446
    %11727 = vmatpush1.bf16.msra.mxu0 %v8445
    %11728 = vmatprep.subr.bf16.mxu0 %v8494
    %11729 = vmatpush1.bf16.msra.mxu0 %v8493
    %11730 = vmatprep.subr.bf16.mxu0 %v8542
    %11731 = vmatpush1.bf16.msra.mxu0 %v8541
    %11732 = vmatprep.subr.bf16.mxu0 %v8590
    %11733 = vmatpush1.bf16.msra.mxu0 %v8589
    %11734 = vmatprep.subr.bf16.mxu0 %v8638
    %11735 = vmatpush1.bf16.msra.mxu0 %v8637
    %11736 = vmatprep.subr.bf16.mxu0 %v8686
    %11737 = vmatpush1.bf16.msra.mxu0 %v8685
    %11738 = vmatprep.subr.bf16.mxu0 %v8734
    %11739 = vmatpush1.bf16.msra.mxu0 %v8733
    %11740 = vmatprep.subr.bf16.mxu0 %v8782
    %11741 = vmatpush1.bf16.msra.mxu0 %v8781
    %11742 = vmatprep.subr.bf16.mxu0 %v8830
    %11743 = vmatpush1.bf16.msra.mxu0 %v8829
    %11744 = vmatprep.subr.bf16.mxu0 %v8878
    %11745 = vmatpush1.bf16.msra.mxu0 %v8877
    %11746 = vmatprep.subr.bf16.mxu0 %v8926
    %11747 = vmatpush1.bf16.msra.mxu0 %v8925
    %11748 = vmatprep.subr.bf16.mxu0 %v8974
    %11749 = vmatpush1.bf16.msra.mxu0 %v8973
    %11750 = vmatprep.mubr.bf16.mxu0 %v1060
    %11751 = vmatmul.mubr.bf16.gmra.mrb[0].mxu0 %v1059
    %v11752 = vpop.f32.mrb[0].mxu0
    %v11753 = vadd.f32 %v11712, %v11752
    %v11754 = vpop.f32.mrb[0].mxu0
    %v11755 = vadd.f32 %v11714, %v11754
    %v11756 = vpop.f32.mrb[0].mxu0
    %v11757 = vpop.f32.mrb[0].mxu0
    %11758 = vdwg.mxu0
    %11759 = vmatprep.subr.bf16.mxu0 %v7488
    %11760 = vmatpush1.bf16.msra.mxu0 %v7487
    %11761 = vmatprep.subr.bf16.mxu0 %v7536
    %11762 = vmatpush1.bf16.msra.mxu0 %v7535
    %11763 = vmatprep.subr.bf16.mxu0 %v7584
    %11764 = vmatpush1.bf16.msra.mxu0 %v7583
    %11765 = vmatprep.subr.bf16.mxu0 %v7632
    %11766 = vmatpush1.bf16.msra.mxu0 %v7631
    %11767 = vmatprep.subr.bf16.mxu0 %v7680
    %11768 = vmatpush1.bf16.msra.mxu0 %v7679
    %11769 = vmatprep.subr.bf16.mxu0 %v7728
    %11770 = vmatpush1.bf16.msra.mxu0 %v7727
    %11771 = vmatprep.subr.bf16.mxu0 %v7776
    %11772 = vmatpush1.bf16.msra.mxu0 %v7775
    %11773 = vmatprep.subr.bf16.mxu0 %v7824
    %11774 = vmatpush1.bf16.msra.mxu0 %v7823
    %11775 = vmatprep.subr.bf16.mxu0 %v7872
    %11776 = vmatpush1.bf16.msra.mxu0 %v7871
    %11777 = vmatprep.subr.bf16.mxu0 %v7920
    %11778 = vmatpush1.bf16.msra.mxu0 %v7919
    %11779 = vmatprep.subr.bf16.mxu0 %v7968
    %11780 = vmatpush1.bf16.msra.mxu0 %v7967
    %11781 = vmatprep.subr.bf16.mxu0 %v8016
    %11782 = vmatpush1.bf16.msra.mxu0 %v8015
    %11783 = vmatprep.subr.bf16.mxu0 %v8064
    %11784 = vmatpush1.bf16.msra.mxu0 %v8063
    %11785 = vmatprep.subr.bf16.mxu0 %v8112
    %11786 = vmatpush1.bf16.msra.mxu0 %v8111
    %11787 = vmatprep.subr.bf16.mxu0 %v8160
    %11788 = vmatpush1.bf16.msra.mxu0 %v8159
    %11789 = vmatprep.subr.bf16.mxu0 %v8208
    %11790 = vmatpush1.bf16.msra.mxu0 %v8207
    %11791 = vmatprep.mubr.bf16.mxu0 %v1058
    %11792 = vmatmul.mubr.bf16.gmra.mrb[0].mxu0 %v1057
    %v11793 = vpop.f32.mrb[0].mxu0
    %v11794 = vadd.f32 %v2732, %v11793
    %v11795 = vpop.f32.mrb[0].mxu0
    %v11796 = vadd.f32 %v2736, %v11795
    %v11797 = vpop.f32.mrb[0].mxu0
    %v11798 = vpop.f32.mrb[0].mxu0
    %11799 = vdwg.mxu0
    %11800 = vmatprep.subr.bf16.mxu0 %v8256
    %11801 = vmatpush1.bf16.msra.mxu0 %v8255
    %11802 = vmatprep.subr.bf16.mxu0 %v8304
    %11803 = vmatpush1.bf16.msra.mxu0 %v8303
    %11804 = vmatprep.subr.bf16.mxu0 %v8352
    %11805 = vmatpush1.bf16.msra.mxu0 %v8351
    %11806 = vmatprep.subr.bf16.mxu0 %v8400
    %11807 = vmatpush1.bf16.msra.mxu0 %v8399
    %11808 = vmatprep.subr.bf16.mxu0 %v8448
    %11809 = vmatpush1.bf16.msra.mxu0 %v8447
    %11810 = vmatprep.subr.bf16.mxu0 %v8496
    %11811 = vmatpush1.bf16.msra.mxu0 %v8495
    %11812 = vmatprep.subr.bf16.mxu0 %v8544
    %11813 = vmatpush1.bf16.msra.mxu0 %v8543
    %11814 = vmatprep.subr.bf16.mxu0 %v8592
    %11815 = vmatpush1.bf16.msra.mxu0 %v8591
    %11816 = vmatprep.subr.bf16.mxu0 %v8640
    %11817 = vmatpush1.bf16.msra.mxu0 %v8639
    %11818 = vmatprep.subr.bf16.mxu0 %v8688
    %11819 = vmatpush1.bf16.msra.mxu0 %v8687
    %11820 = vmatprep.subr.bf16.mxu0 %v8736
    %11821 = vmatpush1.bf16.msra.mxu0 %v8735
    %11822 = vmatprep.subr.bf16.mxu0 %v8784
    %11823 = vmatpush1.bf16.msra.mxu0 %v8783
    %11824 = vmatprep.subr.bf16.mxu0 %v8832
    %11825 = vmatpush1.bf16.msra.mxu0 %v8831
    %11826 = vmatprep.subr.bf16.mxu0 %v8880
    %11827 = vmatpush1.bf16.msra.mxu0 %v8879
    %11828 = vmatprep.subr.bf16.mxu0 %v8928
    %11829 = vmatpush1.bf16.msra.mxu0 %v8927
    %11830 = vmatprep.subr.bf16.mxu0 %v8976
    %11831 = vmatpush1.bf16.msra.mxu0 %v8975
    %11832 = vmatprep.mubr.bf16.mxu0 %v1060
    %11833 = vmatmul.mubr.bf16.gmra.mrb[0].mxu0 %v1059
    %v11834 = vpop.f32.mrb[0].mxu0
    %v11835 = vadd.f32 %v11794, %v11834
    %v11836 = vpop.f32.mrb[0].mxu0
    %v11837 = vadd.f32 %v11796, %v11836
    %v11838 = vpop.f32.mrb[0].mxu0
    %v11839 = vpop.f32.mrb[0].mxu0
    %11840 = vdwg.mxu0
    %11841 = vmatprep.subr.bf16.mxu0 %v7490
    %11842 = vmatpush1.bf16.msra.mxu0 %v7489
    %11843 = vmatprep.subr.bf16.mxu0 %v7538
    %11844 = vmatpush1.bf16.msra.mxu0 %v7537
    %11845 = vmatprep.subr.bf16.mxu0 %v7586
    %11846 = vmatpush1.bf16.msra.mxu0 %v7585
    %11847 = vmatprep.subr.bf16.mxu0 %v7634
    %11848 = vmatpush1.bf16.msra.mxu0 %v7633
    %11849 = vmatprep.subr.bf16.mxu0 %v7682
    %11850 = vmatpush1.bf16.msra.mxu0 %v7681
    %11851 = vmatprep.subr.bf16.mxu0 %v7730
    %11852 = vmatpush1.bf16.msra.mxu0 %v7729
    %11853 = vmatprep.subr.bf16.mxu0 %v7778
    %11854 = vmatpush1.bf16.msra.mxu0 %v7777
    %11855 = vmatprep.subr.bf16.mxu0 %v7826
    %11856 = vmatpush1.bf16.msra.mxu0 %v7825
    %11857 = vmatprep.subr.bf16.mxu0 %v7874
    %11858 = vmatpush1.bf16.msra.mxu0 %v7873
    %11859 = vmatprep.subr.bf16.mxu0 %v7922
    %11860 = vmatpush1.bf16.msra.mxu0 %v7921
    %11861 = vmatprep.subr.bf16.mxu0 %v7970
    %11862 = vmatpush1.bf16.msra.mxu0 %v7969
    %11863 = vmatprep.subr.bf16.mxu0 %v8018
    %11864 = vmatpush1.bf16.msra.mxu0 %v8017
    %11865 = vmatprep.subr.bf16.mxu0 %v8066
    %11866 = vmatpush1.bf16.msra.mxu0 %v8065
    %11867 = vmatprep.subr.bf16.mxu0 %v8114
    %11868 = vmatpush1.bf16.msra.mxu0 %v8113
    %11869 = vmatprep.subr.bf16.mxu0 %v8162
    %11870 = vmatpush1.bf16.msra.mxu0 %v8161
    %11871 = vmatprep.subr.bf16.mxu0 %v8210
    %11872 = vmatpush1.bf16.msra.mxu0 %v8209
    %11873 = vmatprep.mubr.bf16.mxu0 %v1058
    %11874 = vmatmul.mubr.bf16.gmra.mrb[0].mxu0 %v1057
    %v11875 = vpop.f32.mrb[0].mxu0
    %v11876 = vadd.f32 %v2740, %v11875
    %v11877 = vpop.f32.mrb[0].mxu0
    %v11878 = vadd.f32 %v2744, %v11877
    %v11879 = vpop.f32.mrb[0].mxu0
    %v11880 = vpop.f32.mrb[0].mxu0
    %11881 = vdwg.mxu0
    %11882 = vmatprep.subr.bf16.mxu0 %v8258
    %11883 = vmatpush1.bf16.msra.mxu0 %v8257
    %11884 = vmatprep.subr.bf16.mxu0 %v8306
    %11885 = vmatpush1.bf16.msra.mxu0 %v8305
    %11886 = vmatprep.subr.bf16.mxu0 %v8354
    %11887 = vmatpush1.bf16.msra.mxu0 %v8353
    %11888 = vmatprep.subr.bf16.mxu0 %v8402
    %11889 = vmatpush1.bf16.msra.mxu0 %v8401
    %11890 = vmatprep.subr.bf16.mxu0 %v8450
    %11891 = vmatpush1.bf16.msra.mxu0 %v8449
    %11892 = vmatprep.subr.bf16.mxu0 %v8498
    %11893 = vmatpush1.bf16.msra.mxu0 %v8497
    %11894 = vmatprep.subr.bf16.mxu0 %v8546
    %11895 = vmatpush1.bf16.msra.mxu0 %v8545
    %11896 = vmatprep.subr.bf16.mxu0 %v8594
    %11897 = vmatpush1.bf16.msra.mxu0 %v8593
    %11898 = vmatprep.subr.bf16.mxu0 %v8642
    %11899 = vmatpush1.bf16.msra.mxu0 %v8641
    %11900 = vmatprep.subr.bf16.mxu0 %v8690
    %11901 = vmatpush1.bf16.msra.mxu0 %v8689
    %11902 = vmatprep.subr.bf16.mxu0 %v8738
    %11903 = vmatpush1.bf16.msra.mxu0 %v8737
    %11904 = vmatprep.subr.bf16.mxu0 %v8786
    %11905 = vmatpush1.bf16.msra.mxu0 %v8785
    %11906 = vmatprep.subr.bf16.mxu0 %v8834
    %11907 = vmatpush1.bf16.msra.mxu0 %v8833
    %11908 = vmatprep.subr.bf16.mxu0 %v8882
    %11909 = vmatpush1.bf16.msra.mxu0 %v8881
    %11910 = vmatprep.subr.bf16.mxu0 %v8930
    %11911 = vmatpush1.bf16.msra.mxu0 %v8929
    %11912 = vmatprep.subr.bf16.mxu0 %v8978
    %11913 = vmatpush1.bf16.msra.mxu0 %v8977
    %11914 = vmatprep.mubr.bf16.mxu0 %v1060
    %11915 = vmatmul.mubr.bf16.gmra.mrb[0].mxu0 %v1059
    %v11916 = vpop.f32.mrb[0].mxu0
    %v11917 = vadd.f32 %v11876, %v11916
    %v11918 = vpop.f32.mrb[0].mxu0
    %v11919 = vadd.f32 %v11878, %v11918
    %v11920 = vpop.f32.mrb[0].mxu0
    %v11921 = vpop.f32.mrb[0].mxu0
    %11922 = vdwg.mxu0
    %11923 = vmatprep.subr.bf16.mxu0 %v7492
    %11924 = vmatpush1.bf16.msra.mxu0 %v7491
    %11925 = vmatprep.subr.bf16.mxu0 %v7540
    %11926 = vmatpush1.bf16.msra.mxu0 %v7539
    %11927 = vmatprep.subr.bf16.mxu0 %v7588
    %11928 = vmatpush1.bf16.msra.mxu0 %v7587
    %11929 = vmatprep.subr.bf16.mxu0 %v7636
    %11930 = vmatpush1.bf16.msra.mxu0 %v7635
    %11931 = vmatprep.subr.bf16.mxu0 %v7684
    %11932 = vmatpush1.bf16.msra.mxu0 %v7683
    %11933 = vmatprep.subr.bf16.mxu0 %v7732
    %11934 = vmatpush1.bf16.msra.mxu0 %v7731
    %11935 = vmatprep.subr.bf16.mxu0 %v7780
    %11936 = vmatpush1.bf16.msra.mxu0 %v7779
    %11937 = vmatprep.subr.bf16.mxu0 %v7828
    %11938 = vmatpush1.bf16.msra.mxu0 %v7827
    %11939 = vmatprep.subr.bf16.mxu0 %v7876
    %11940 = vmatpush1.bf16.msra.mxu0 %v7875
    %11941 = vmatprep.subr.bf16.mxu0 %v7924
    %11942 = vmatpush1.bf16.msra.mxu0 %v7923
    %11943 = vmatprep.subr.bf16.mxu0 %v7972
    %11944 = vmatpush1.bf16.msra.mxu0 %v7971
    %11945 = vmatprep.subr.bf16.mxu0 %v8020
    %11946 = vmatpush1.bf16.msra.mxu0 %v8019
    %11947 = vmatprep.subr.bf16.mxu0 %v8068
    %11948 = vmatpush1.bf16.msra.mxu0 %v8067
    %11949 = vmatprep.subr.bf16.mxu0 %v8116
    %11950 = vmatpush1.bf16.msra.mxu0 %v8115
    %11951 = vmatprep.subr.bf16.mxu0 %v8164
    %11952 = vmatpush1.bf16.msra.mxu0 %v8163
    %11953 = vmatprep.subr.bf16.mxu0 %v8212
    %11954 = vmatpush1.bf16.msra.mxu0 %v8211
    %11955 = vmatprep.mubr.bf16.mxu0 %v1058
    %11956 = vmatmul.mubr.bf16.gmra.mrb[0].mxu0 %v1057
    %v11957 = vpop.f32.mrb[0].mxu0
    %v11958 = vadd.f32 %v2748, %v11957
    %v11959 = vpop.f32.mrb[0].mxu0
    %v11960 = vadd.f32 %v2752, %v11959
    %v11961 = vpop.f32.mrb[0].mxu0
    %v11962 = vpop.f32.mrb[0].mxu0
    %11963 = vdwg.mxu0
    %11964 = vmatprep.subr.bf16.mxu0 %v8260
    %11965 = vmatpush1.bf16.msra.mxu0 %v8259
    %11966 = vmatprep.subr.bf16.mxu0 %v8308
    %11967 = vmatpush1.bf16.msra.mxu0 %v8307
    %11968 = vmatprep.subr.bf16.mxu0 %v8356
    %11969 = vmatpush1.bf16.msra.mxu0 %v8355
    %11970 = vmatprep.subr.bf16.mxu0 %v8404
    %11971 = vmatpush1.bf16.msra.mxu0 %v8403
    %11972 = vmatprep.subr.bf16.mxu0 %v8452
    %11973 = vmatpush1.bf16.msra.mxu0 %v8451
    %11974 = vmatprep.subr.bf16.mxu0 %v8500
    %11975 = vmatpush1.bf16.msra.mxu0 %v8499
    %11976 = vmatprep.subr.bf16.mxu0 %v8548
    %11977 = vmatpush1.bf16.msra.mxu0 %v8547
    %11978 = vmatprep.subr.bf16.mxu0 %v8596
    %11979 = vmatpush1.bf16.msra.mxu0 %v8595
    %11980 = vmatprep.subr.bf16.mxu0 %v8644
    %11981 = vmatpush1.bf16.msra.mxu0 %v8643
    %11982 = vmatprep.subr.bf16.mxu0 %v8692
    %11983 = vmatpush1.bf16.msra.mxu0 %v8691
    %11984 = vmatprep.subr.bf16.mxu0 %v8740
    %11985 = vmatpush1.bf16.msra.mxu0 %v8739
    %11986 = vmatprep.subr.bf16.mxu0 %v8788
    %11987 = vmatpush1.bf16.msra.mxu0 %v8787
    %11988 = vmatprep.subr.bf16.mxu0 %v8836
    %11989 = vmatpush1.bf16.msra.mxu0 %v8835
    %11990 = vmatprep.subr.bf16.mxu0 %v8884
    %11991 = vmatpush1.bf16.msra.mxu0 %v8883
    %11992 = vmatprep.subr.bf16.mxu0 %v8932
    %11993 = vmatpush1.bf16.msra.mxu0 %v8931
    %11994 = vmatprep.subr.bf16.mxu0 %v8980
    %11995 = vmatpush1.bf16.msra.mxu0 %v8979
    %11996 = vmatprep.mubr.bf16.mxu0 %v1060
    %11997 = vmatmul.mubr.bf16.gmra.mrb[0].mxu0 %v1059
    %v11998 = vpop.f32.mrb[0].mxu0
    %v11999 = vadd.f32 %v11958, %v11998
    %v12000 = vpop.f32.mrb[0].mxu0
    %v12001 = vadd.f32 %v11960, %v12000
    %v12002 = vpop.f32.mrb[0].mxu0
    %v12003 = vpop.f32.mrb[0].mxu0
    %12004 = vdwg.mxu0
    %12005 = vmatprep.subr.bf16.mxu0 %v7494
    %12006 = vmatpush1.bf16.msra.mxu0 %v7493
    %12007 = vmatprep.subr.bf16.mxu0 %v7542
    %12008 = vmatpush1.bf16.msra.mxu0 %v7541
    %12009 = vmatprep.subr.bf16.mxu0 %v7590
    %12010 = vmatpush1.bf16.msra.mxu0 %v7589
    %12011 = vmatprep.subr.bf16.mxu0 %v7638
    %12012 = vmatpush1.bf16.msra.mxu0 %v7637
    %12013 = vmatprep.subr.bf16.mxu0 %v7686
    %12014 = vmatpush1.bf16.msra.mxu0 %v7685
    %12015 = vmatprep.subr.bf16.mxu0 %v7734
    %12016 = vmatpush1.bf16.msra.mxu0 %v7733
    %12017 = vmatprep.subr.bf16.mxu0 %v7782
    %12018 = vmatpush1.bf16.msra.mxu0 %v7781
    %12019 = vmatprep.subr.bf16.mxu0 %v7830
    %12020 = vmatpush1.bf16.msra.mxu0 %v7829
    %12021 = vmatprep.subr.bf16.mxu0 %v7878
    %12022 = vmatpush1.bf16.msra.mxu0 %v7877
    %12023 = vmatprep.subr.bf16.mxu0 %v7926
    %12024 = vmatpush1.bf16.msra.mxu0 %v7925
    %12025 = vmatprep.subr.bf16.mxu0 %v7974
    %12026 = vmatpush1.bf16.msra.mxu0 %v7973
    %12027 = vmatprep.subr.bf16.mxu0 %v8022
    %12028 = vmatpush1.bf16.msra.mxu0 %v8021
    %12029 = vmatprep.subr.bf16.mxu0 %v8070
    %12030 = vmatpush1.bf16.msra.mxu0 %v8069
    %12031 = vmatprep.subr.bf16.mxu0 %v8118
    %12032 = vmatpush1.bf16.msra.mxu0 %v8117
    %12033 = vmatprep.subr.bf16.mxu0 %v8166
    %12034 = vmatpush1.bf16.msra.mxu0 %v8165
    %12035 = vmatprep.subr.bf16.mxu0 %v8214
    %12036 = vmatpush1.bf16.msra.mxu0 %v8213
    %12037 = vmatprep.mubr.bf16.mxu0 %v1058
    %12038 = vmatmul.mubr.bf16.gmra.mrb[0].mxu0 %v1057
    %v12039 = vpop.f32.mrb[0].mxu0
    %v12040 = vadd.f32 %v2756, %v12039
    %v12041 = vpop.f32.mrb[0].mxu0
    %v12042 = vadd.f32 %v2760, %v12041
    %v12043 = vpop.f32.mrb[0].mxu0
    %v12044 = vpop.f32.mrb[0].mxu0
    %12045 = vdwg.mxu0
    %12046 = vmatprep.subr.bf16.mxu0 %v8262
    %12047 = vmatpush1.bf16.msra.mxu0 %v8261
    %12048 = vmatprep.subr.bf16.mxu0 %v8310
    %12049 = vmatpush1.bf16.msra.mxu0 %v8309
    %12050 = vmatprep.subr.bf16.mxu0 %v8358
    %12051 = vmatpush1.bf16.msra.mxu0 %v8357
    %12052 = vmatprep.subr.bf16.mxu0 %v8406
    %12053 = vmatpush1.bf16.msra.mxu0 %v8405
    %12054 = vmatprep.subr.bf16.mxu0 %v8454
    %12055 = vmatpush1.bf16.msra.mxu0 %v8453
    %12056 = vmatprep.subr.bf16.mxu0 %v8502
    %12057 = vmatpush1.bf16.msra.mxu0 %v8501
    %12058 = vmatprep.subr.bf16.mxu0 %v8550
    %12059 = vmatpush1.bf16.msra.mxu0 %v8549
    %12060 = vmatprep.subr.bf16.mxu0 %v8598
    %12061 = vmatpush1.bf16.msra.mxu0 %v8597
    %12062 = vmatprep.subr.bf16.mxu0 %v8646
    %12063 = vmatpush1.bf16.msra.mxu0 %v8645
    %12064 = vmatprep.subr.bf16.mxu0 %v8694
    %12065 = vmatpush1.bf16.msra.mxu0 %v8693
    %12066 = vmatprep.subr.bf16.mxu0 %v8742
    %12067 = vmatpush1.bf16.msra.mxu0 %v8741
    %12068 = vmatprep.subr.bf16.mxu0 %v8790
    %12069 = vmatpush1.bf16.msra.mxu0 %v8789
    %12070 = vmatprep.subr.bf16.mxu0 %v8838
    %12071 = vmatpush1.bf16.msra.mxu0 %v8837
    %12072 = vmatprep.subr.bf16.mxu0 %v8886
    %12073 = vmatpush1.bf16.msra.mxu0 %v8885
    %12074 = vmatprep.subr.bf16.mxu0 %v8934
    %12075 = vmatpush1.bf16.msra.mxu0 %v8933
    %12076 = vmatprep.subr.bf16.mxu0 %v8982
    %12077 = vmatpush1.bf16.msra.mxu0 %v8981
    %12078 = vmatprep.mubr.bf16.mxu0 %v1060
    %12079 = vmatmul.mubr.bf16.gmra.mrb[0].mxu0 %v1059
    %v12080 = vpop.f32.mrb[0].mxu0
    %v12081 = vadd.f32 %v12040, %v12080
    %v12082 = vpop.f32.mrb[0].mxu0
    %v12083 = vadd.f32 %v12042, %v12082
    %v12084 = vpop.f32.mrb[0].mxu0
    %v12085 = vpop.f32.mrb[0].mxu0
    %12086 = vdwg.mxu0
    %12087 = vmatprep.subr.bf16.mxu0 %v7496
    %12088 = vmatpush1.bf16.msra.mxu0 %v7495
    %12089 = vmatprep.subr.bf16.mxu0 %v7544
    %12090 = vmatpush1.bf16.msra.mxu0 %v7543
    %12091 = vmatprep.subr.bf16.mxu0 %v7592
    %12092 = vmatpush1.bf16.msra.mxu0 %v7591
    %12093 = vmatprep.subr.bf16.mxu0 %v7640
    %12094 = vmatpush1.bf16.msra.mxu0 %v7639
    %12095 = vmatprep.subr.bf16.mxu0 %v7688
    %12096 = vmatpush1.bf16.msra.mxu0 %v7687
    %12097 = vmatprep.subr.bf16.mxu0 %v7736
    %12098 = vmatpush1.bf16.msra.mxu0 %v7735
    %12099 = vmatprep.subr.bf16.mxu0 %v7784
    %12100 = vmatpush1.bf16.msra.mxu0 %v7783
    %12101 = vmatprep.subr.bf16.mxu0 %v7832
    %12102 = vmatpush1.bf16.msra.mxu0 %v7831
    %12103 = vmatprep.subr.bf16.mxu0 %v7880
    %12104 = vmatpush1.bf16.msra.mxu0 %v7879
    %12105 = vmatprep.subr.bf16.mxu0 %v7928
    %12106 = vmatpush1.bf16.msra.mxu0 %v7927
    %12107 = vmatprep.subr.bf16.mxu0 %v7976
    %12108 = vmatpush1.bf16.msra.mxu0 %v7975
    %12109 = vmatprep.subr.bf16.mxu0 %v8024
    %12110 = vmatpush1.bf16.msra.mxu0 %v8023
    %12111 = vmatprep.subr.bf16.mxu0 %v8072
    %12112 = vmatpush1.bf16.msra.mxu0 %v8071
    %12113 = vmatprep.subr.bf16.mxu0 %v8120
    %12114 = vmatpush1.bf16.msra.mxu0 %v8119
    %12115 = vmatprep.subr.bf16.mxu0 %v8168
    %12116 = vmatpush1.bf16.msra.mxu0 %v8167
    %12117 = vmatprep.subr.bf16.mxu0 %v8216
    %12118 = vmatpush1.bf16.msra.mxu0 %v8215
    %12119 = vmatprep.mubr.bf16.mxu0 %v1058
    %12120 = vmatmul.mubr.bf16.gmra.mrb[0].mxu0 %v1057
    %v12121 = vpop.f32.mrb[0].mxu0
    %v12122 = vadd.f32 %v2764, %v12121
    %v12123 = vpop.f32.mrb[0].mxu0
    %v12124 = vadd.f32 %v2768, %v12123
    %v12125 = vpop.f32.mrb[0].mxu0
    %v12126 = vpop.f32.mrb[0].mxu0
    %12127 = vdwg.mxu0
    %12128 = vmatprep.subr.bf16.mxu0 %v8264
    %12129 = vmatpush1.bf16.msra.mxu0 %v8263
    %12130 = vmatprep.subr.bf16.mxu0 %v8312
    %12131 = vmatpush1.bf16.msra.mxu0 %v8311
    %12132 = vmatprep.subr.bf16.mxu0 %v8360
    %12133 = vmatpush1.bf16.msra.mxu0 %v8359
    %12134 = vmatprep.subr.bf16.mxu0 %v8408
    %12135 = vmatpush1.bf16.msra.mxu0 %v8407
    %12136 = vmatprep.subr.bf16.mxu0 %v8456
    %12137 = vmatpush1.bf16.msra.mxu0 %v8455
    %12138 = vmatprep.subr.bf16.mxu0 %v8504
    %12139 = vmatpush1.bf16.msra.mxu0 %v8503
    %12140 = vmatprep.subr.bf16.mxu0 %v8552
    %12141 = vmatpush1.bf16.msra.mxu0 %v8551
    %12142 = vmatprep.subr.bf16.mxu0 %v8600
    %12143 = vmatpush1.bf16.msra.mxu0 %v8599
    %12144 = vmatprep.subr.bf16.mxu0 %v8648
    %12145 = vmatpush1.bf16.msra.mxu0 %v8647
    %12146 = vmatprep.subr.bf16.mxu0 %v8696
    %12147 = vmatpush1.bf16.msra.mxu0 %v8695
    %12148 = vmatprep.subr.bf16.mxu0 %v8744
    %12149 = vmatpush1.bf16.msra.mxu0 %v8743
    %12150 = vmatprep.subr.bf16.mxu0 %v8792
    %12151 = vmatpush1.bf16.msra.mxu0 %v8791
    %12152 = vmatprep.subr.bf16.mxu0 %v8840
    %12153 = vmatpush1.bf16.msra.mxu0 %v8839
    %12154 = vmatprep.subr.bf16.mxu0 %v8888
    %12155 = vmatpush1.bf16.msra.mxu0 %v8887
    %12156 = vmatprep.subr.bf16.mxu0 %v8936
    %12157 = vmatpush1.bf16.msra.mxu0 %v8935
    %12158 = vmatprep.subr.bf16.mxu0 %v8984
    %12159 = vmatpush1.bf16.msra.mxu0 %v8983
    %12160 = vmatprep.mubr.bf16.mxu0 %v1060
    %12161 = vmatmul.mubr.bf16.gmra.mrb[0].mxu0 %v1059
    %v12162 = vpop.f32.mrb[0].mxu0
    %v12163 = vadd.f32 %v12122, %v12162
    %v12164 = vpop.f32.mrb[0].mxu0
    %v12165 = vadd.f32 %v12124, %v12164
    %v12166 = vpop.f32.mrb[0].mxu0
    %v12167 = vpop.f32.mrb[0].mxu0
    %12168 = vdwg.mxu0
    %12169 = vmatprep.subr.bf16.mxu0 %v7498
    %12170 = vmatpush1.bf16.msra.mxu0 %v7497
    %12171 = vmatprep.subr.bf16.mxu0 %v7546
    %12172 = vmatpush1.bf16.msra.mxu0 %v7545
    %12173 = vmatprep.subr.bf16.mxu0 %v7594
    %12174 = vmatpush1.bf16.msra.mxu0 %v7593
    %12175 = vmatprep.subr.bf16.mxu0 %v7642
    %12176 = vmatpush1.bf16.msra.mxu0 %v7641
    %12177 = vmatprep.subr.bf16.mxu0 %v7690
    %12178 = vmatpush1.bf16.msra.mxu0 %v7689
    %12179 = vmatprep.subr.bf16.mxu0 %v7738
    %12180 = vmatpush1.bf16.msra.mxu0 %v7737
    %12181 = vmatprep.subr.bf16.mxu0 %v7786
    %12182 = vmatpush1.bf16.msra.mxu0 %v7785
    %12183 = vmatprep.subr.bf16.mxu0 %v7834
    %12184 = vmatpush1.bf16.msra.mxu0 %v7833
    %12185 = vmatprep.subr.bf16.mxu0 %v7882
    %12186 = vmatpush1.bf16.msra.mxu0 %v7881
    %12187 = vmatprep.subr.bf16.mxu0 %v7930
    %12188 = vmatpush1.bf16.msra.mxu0 %v7929
    %12189 = vmatprep.subr.bf16.mxu0 %v7978
    %12190 = vmatpush1.bf16.msra.mxu0 %v7977
    %12191 = vmatprep.subr.bf16.mxu0 %v8026
    %12192 = vmatpush1.bf16.msra.mxu0 %v8025
    %12193 = vmatprep.subr.bf16.mxu0 %v8074
    %12194 = vmatpush1.bf16.msra.mxu0 %v8073
    %12195 = vmatprep.subr.bf16.mxu0 %v8122
    %12196 = vmatpush1.bf16.msra.mxu0 %v8121
    %12197 = vmatprep.subr.bf16.mxu0 %v8170
    %12198 = vmatpush1.bf16.msra.mxu0 %v8169
    %12199 = vmatprep.subr.bf16.mxu0 %v8218
    %12200 = vmatpush1.bf16.msra.mxu0 %v8217
    %12201 = vmatprep.mubr.bf16.mxu0 %v1058
    %12202 = vmatmul.mubr.bf16.gmra.mrb[0].mxu0 %v1057
    %v12203 = vpop.f32.mrb[0].mxu0
    %v12204 = vadd.f32 %v2772, %v12203
    %v12205 = vpop.f32.mrb[0].mxu0
    %v12206 = vadd.f32 %v2776, %v12205
    %v12207 = vpop.f32.mrb[0].mxu0
    %v12208 = vpop.f32.mrb[0].mxu0
    %12209 = vdwg.mxu0
    %12210 = vmatprep.subr.bf16.mxu0 %v8266
    %12211 = vmatpush1.bf16.msra.mxu0 %v8265
    %12212 = vmatprep.subr.bf16.mxu0 %v8314
    %12213 = vmatpush1.bf16.msra.mxu0 %v8313
    %12214 = vmatprep.subr.bf16.mxu0 %v8362
    %12215 = vmatpush1.bf16.msra.mxu0 %v8361
    %12216 = vmatprep.subr.bf16.mxu0 %v8410
    %12217 = vmatpush1.bf16.msra.mxu0 %v8409
    %12218 = vmatprep.subr.bf16.mxu0 %v8458
    %12219 = vmatpush1.bf16.msra.mxu0 %v8457
    %12220 = vmatprep.subr.bf16.mxu0 %v8506
    %12221 = vmatpush1.bf16.msra.mxu0 %v8505
    %12222 = vmatprep.subr.bf16.mxu0 %v8554
    %12223 = vmatpush1.bf16.msra.mxu0 %v8553
    %12224 = vmatprep.subr.bf16.mxu0 %v8602
    %12225 = vmatpush1.bf16.msra.mxu0 %v8601
    %12226 = vmatprep.subr.bf16.mxu0 %v8650
    %12227 = vmatpush1.bf16.msra.mxu0 %v8649
    %12228 = vmatprep.subr.bf16.mxu0 %v8698
    %12229 = vmatpush1.bf16.msra.mxu0 %v8697
    %12230 = vmatprep.subr.bf16.mxu0 %v8746
    %12231 = vmatpush1.bf16.msra.mxu0 %v8745
    %12232 = vmatprep.subr.bf16.mxu0 %v8794
    %12233 = vmatpush1.bf16.msra.mxu0 %v8793
    %12234 = vmatprep.subr.bf16.mxu0 %v8842
    %12235 = vmatpush1.bf16.msra.mxu0 %v8841
    %12236 = vmatprep.subr.bf16.mxu0 %v8890
    %12237 = vmatpush1.bf16.msra.mxu0 %v8889
    %12238 = vmatprep.subr.bf16.mxu0 %v8938
    %12239 = vmatpush1.bf16.msra.mxu0 %v8937
    %12240 = vmatprep.subr.bf16.mxu0 %v8986
    %12241 = vmatpush1.bf16.msra.mxu0 %v8985
    %12242 = vmatprep.mubr.bf16.mxu0 %v1060
    %12243 = vmatmul.mubr.bf16.gmra.mrb[0].mxu0 %v1059
    %v12244 = vpop.f32.mrb[0].mxu0
    %v12245 = vadd.f32 %v12204, %v12244
    %v12246 = vpop.f32.mrb[0].mxu0
    %v12247 = vadd.f32 %v12206, %v12246
    %v12248 = vpop.f32.mrb[0].mxu0
    %v12249 = vpop.f32.mrb[0].mxu0
    %12250 = vdwg.mxu0
    %12251 = vmatprep.subr.bf16.mxu0 %v7500
    %12252 = vmatpush1.bf16.msra.mxu0 %v7499
    %12253 = vmatprep.subr.bf16.mxu0 %v7548
    %12254 = vmatpush1.bf16.msra.mxu0 %v7547
    %12255 = vmatprep.subr.bf16.mxu0 %v7596
    %12256 = vmatpush1.bf16.msra.mxu0 %v7595
    %12257 = vmatprep.subr.bf16.mxu0 %v7644
    %12258 = vmatpush1.bf16.msra.mxu0 %v7643
    %12259 = vmatprep.subr.bf16.mxu0 %v7692
    %12260 = vmatpush1.bf16.msra.mxu0 %v7691
    %12261 = vmatprep.subr.bf16.mxu0 %v7740
    %12262 = vmatpush1.bf16.msra.mxu0 %v7739
    %12263 = vmatprep.subr.bf16.mxu0 %v7788
    %12264 = vmatpush1.bf16.msra.mxu0 %v7787
    %12265 = vmatprep.subr.bf16.mxu0 %v7836
    %12266 = vmatpush1.bf16.msra.mxu0 %v7835
    %12267 = vmatprep.subr.bf16.mxu0 %v7884
    %12268 = vmatpush1.bf16.msra.mxu0 %v7883
    %12269 = vmatprep.subr.bf16.mxu0 %v7932
    %12270 = vmatpush1.bf16.msra.mxu0 %v7931
    %12271 = vmatprep.subr.bf16.mxu0 %v7980
    %12272 = vmatpush1.bf16.msra.mxu0 %v7979
    %12273 = vmatprep.subr.bf16.mxu0 %v8028
    %12274 = vmatpush1.bf16.msra.mxu0 %v8027
    %12275 = vmatprep.subr.bf16.mxu0 %v8076
    %12276 = vmatpush1.bf16.msra.mxu0 %v8075
    %12277 = vmatprep.subr.bf16.mxu0 %v8124
    %12278 = vmatpush1.bf16.msra.mxu0 %v8123
    %12279 = vmatprep.subr.bf16.mxu0 %v8172
    %12280 = vmatpush1.bf16.msra.mxu0 %v8171
    %12281 = vmatprep.subr.bf16.mxu0 %v8220
    %12282 = vmatpush1.bf16.msra.mxu0 %v8219
    %12283 = vmatprep.mubr.bf16.mxu0 %v1058
    %12284 = vmatmul.mubr.bf16.gmra.mrb[0].mxu0 %v1057
    %v12285 = vpop.f32.mrb[0].mxu0
    %v12286 = vadd.f32 %v2780, %v12285
    %v12287 = vpop.f32.mrb[0].mxu0
    %v12288 = vadd.f32 %v2784, %v12287
    %v12289 = vpop.f32.mrb[0].mxu0
    %v12290 = vpop.f32.mrb[0].mxu0
    %12291 = vdwg.mxu0
    %12292 = vmatprep.subr.bf16.mxu0 %v8268
    %12293 = vmatpush1.bf16.msra.mxu0 %v8267
    %12294 = vmatprep.subr.bf16.mxu0 %v8316
    %12295 = vmatpush1.bf16.msra.mxu0 %v8315
    %12296 = vmatprep.subr.bf16.mxu0 %v8364
    %12297 = vmatpush1.bf16.msra.mxu0 %v8363
    %12298 = vmatprep.subr.bf16.mxu0 %v8412
    %12299 = vmatpush1.bf16.msra.mxu0 %v8411
    %12300 = vmatprep.subr.bf16.mxu0 %v8460
    %12301 = vmatpush1.bf16.msra.mxu0 %v8459
    %12302 = vmatprep.subr.bf16.mxu0 %v8508
    %12303 = vmatpush1.bf16.msra.mxu0 %v8507
    %12304 = vmatprep.subr.bf16.mxu0 %v8556
    %12305 = vmatpush1.bf16.msra.mxu0 %v8555
    %12306 = vmatprep.subr.bf16.mxu0 %v8604
    %12307 = vmatpush1.bf16.msra.mxu0 %v8603
    %12308 = vmatprep.subr.bf16.mxu0 %v8652
    %12309 = vmatpush1.bf16.msra.mxu0 %v8651
    %12310 = vmatprep.subr.bf16.mxu0 %v8700
    %12311 = vmatpush1.bf16.msra.mxu0 %v8699
    %12312 = vmatprep.subr.bf16.mxu0 %v8748
    %12313 = vmatpush1.bf16.msra.mxu0 %v8747
    %12314 = vmatprep.subr.bf16.mxu0 %v8796
    %12315 = vmatpush1.bf16.msra.mxu0 %v8795
    %12316 = vmatprep.subr.bf16.mxu0 %v8844
    %12317 = vmatpush1.bf16.msra.mxu0 %v8843
    %12318 = vmatprep.subr.bf16.mxu0 %v8892
    %12319 = vmatpush1.bf16.msra.mxu0 %v8891
    %12320 = vmatprep.subr.bf16.mxu0 %v8940
    %12321 = vmatpush1.bf16.msra.mxu0 %v8939
    %12322 = vmatprep.subr.bf16.mxu0 %v8988
    %12323 = vmatpush1.bf16.msra.mxu0 %v8987
    %12324 = vmatprep.mubr.bf16.mxu0 %v1060
    %12325 = vmatmul.mubr.bf16.gmra.mrb[0].mxu0 %v1059
    %v12326 = vpop.f32.mrb[0].mxu0
    %v12327 = vadd.f32 %v12286, %v12326
    %v12328 = vpop.f32.mrb[0].mxu0
    %v12329 = vadd.f32 %v12288, %v12328
    %v12330 = vpop.f32.mrb[0].mxu0
    %v12331 = vpop.f32.mrb[0].mxu0
    %12332 = vdwg.mxu0
    %12333 = vmatprep.subr.bf16.mxu0 %v7502
    %12334 = vmatpush1.bf16.msra.mxu0 %v7501
    %12335 = vmatprep.subr.bf16.mxu0 %v7550
    %12336 = vmatpush1.bf16.msra.mxu0 %v7549
    %12337 = vmatprep.subr.bf16.mxu0 %v7598
    %12338 = vmatpush1.bf16.msra.mxu0 %v7597
    %12339 = vmatprep.subr.bf16.mxu0 %v7646
    %12340 = vmatpush1.bf16.msra.mxu0 %v7645
    %12341 = vmatprep.subr.bf16.mxu0 %v7694
    %12342 = vmatpush1.bf16.msra.mxu0 %v7693
    %12343 = vmatprep.subr.bf16.mxu0 %v7742
    %12344 = vmatpush1.bf16.msra.mxu0 %v7741
    %12345 = vmatprep.subr.bf16.mxu0 %v7790
    %12346 = vmatpush1.bf16.msra.mxu0 %v7789
    %12347 = vmatprep.subr.bf16.mxu0 %v7838
    %12348 = vmatpush1.bf16.msra.mxu0 %v7837
    %12349 = vmatprep.subr.bf16.mxu0 %v7886
    %12350 = vmatpush1.bf16.msra.mxu0 %v7885
    %12351 = vmatprep.subr.bf16.mxu0 %v7934
    %12352 = vmatpush1.bf16.msra.mxu0 %v7933
    %12353 = vmatprep.subr.bf16.mxu0 %v7982
    %12354 = vmatpush1.bf16.msra.mxu0 %v7981
    %12355 = vmatprep.subr.bf16.mxu0 %v8030
    %12356 = vmatpush1.bf16.msra.mxu0 %v8029
    %12357 = vmatprep.subr.bf16.mxu0 %v8078
    %12358 = vmatpush1.bf16.msra.mxu0 %v8077
    %12359 = vmatprep.subr.bf16.mxu0 %v8126
    %12360 = vmatpush1.bf16.msra.mxu0 %v8125
    %12361 = vmatprep.subr.bf16.mxu0 %v8174
    %12362 = vmatpush1.bf16.msra.mxu0 %v8173
    %12363 = vmatprep.subr.bf16.mxu0 %v8222
    %12364 = vmatpush1.bf16.msra.mxu0 %v8221
    %12365 = vmatprep.mubr.bf16.mxu0 %v1058
    %12366 = vmatmul.mubr.bf16.gmra.mrb[0].mxu0 %v1057
    %v12367 = vpop.f32.mrb[0].mxu0
    %v12368 = vadd.f32 %v2788, %v12367
    %v12369 = vpop.f32.mrb[0].mxu0
    %v12370 = vadd.f32 %v2792, %v12369
    %v12371 = vpop.f32.mrb[0].mxu0
    %v12372 = vpop.f32.mrb[0].mxu0
    %12373 = vdwg.mxu0
    %12374 = vmatprep.subr.bf16.mxu0 %v8270
    %12375 = vmatpush1.bf16.msra.mxu0 %v8269
    %12376 = vmatprep.subr.bf16.mxu0 %v8318
    %12377 = vmatpush1.bf16.msra.mxu0 %v8317
    %12378 = vmatprep.subr.bf16.mxu0 %v8366
    %12379 = vmatpush1.bf16.msra.mxu0 %v8365
    %12380 = vmatprep.subr.bf16.mxu0 %v8414
    %12381 = vmatpush1.bf16.msra.mxu0 %v8413
    %12382 = vmatprep.subr.bf16.mxu0 %v8462
    %12383 = vmatpush1.bf16.msra.mxu0 %v8461
    %12384 = vmatprep.subr.bf16.mxu0 %v8510
    %12385 = vmatpush1.bf16.msra.mxu0 %v8509
    %12386 = vmatprep.subr.bf16.mxu0 %v8558
    %12387 = vmatpush1.bf16.msra.mxu0 %v8557
    %12388 = vmatprep.subr.bf16.mxu0 %v8606
    %12389 = vmatpush1.bf16.msra.mxu0 %v8605
    %12390 = vmatprep.subr.bf16.mxu0 %v8654
    %12391 = vmatpush1.bf16.msra.mxu0 %v8653
    %12392 = vmatprep.subr.bf16.mxu0 %v8702
    %12393 = vmatpush1.bf16.msra.mxu0 %v8701
    %12394 = vmatprep.subr.bf16.mxu0 %v8750
    %12395 = vmatpush1.bf16.msra.mxu0 %v8749
    %12396 = vmatprep.subr.bf16.mxu0 %v8798
    %12397 = vmatpush1.bf16.msra.mxu0 %v8797
    %12398 = vmatprep.subr.bf16.mxu0 %v8846
    %12399 = vmatpush1.bf16.msra.mxu0 %v8845
    %12400 = vmatprep.subr.bf16.mxu0 %v8894
    %12401 = vmatpush1.bf16.msra.mxu0 %v8893
    %12402 = vmatprep.subr.bf16.mxu0 %v8942
    %12403 = vmatpush1.bf16.msra.mxu0 %v8941
    %12404 = vmatprep.subr.bf16.mxu0 %v8990
    %12405 = vmatpush1.bf16.msra.mxu0 %v8989
    %12406 = vmatprep.mubr.bf16.mxu0 %v1060
    %12407 = vmatmul.mubr.bf16.gmra.mrb[0].mxu0 %v1059
    %v12408 = vpop.f32.mrb[0].mxu0
    %v12409 = vadd.f32 %v12368, %v12408
    %v12410 = vpop.f32.mrb[0].mxu0
    %v12411 = vadd.f32 %v12370, %v12410
    %v12412 = vpop.f32.mrb[0].mxu0
    %v12413 = vpop.f32.mrb[0].mxu0
    %12414 = vdwg.mxu0
    %12415 = vmatprep.subr.bf16.mxu0 %v7504
    %12416 = vmatpush1.bf16.msra.mxu0 %v7503
    %12417 = vmatprep.subr.bf16.mxu0 %v7552
    %12418 = vmatpush1.bf16.msra.mxu0 %v7551
    %12419 = vmatprep.subr.bf16.mxu0 %v7600
    %12420 = vmatpush1.bf16.msra.mxu0 %v7599
    %12421 = vmatprep.subr.bf16.mxu0 %v7648
    %12422 = vmatpush1.bf16.msra.mxu0 %v7647
    %12423 = vmatprep.subr.bf16.mxu0 %v7696
    %12424 = vmatpush1.bf16.msra.mxu0 %v7695
    %12425 = vmatprep.subr.bf16.mxu0 %v7744
    %12426 = vmatpush1.bf16.msra.mxu0 %v7743
    %12427 = vmatprep.subr.bf16.mxu0 %v7792
    %12428 = vmatpush1.bf16.msra.mxu0 %v7791
    %12429 = vmatprep.subr.bf16.mxu0 %v7840
    %12430 = vmatpush1.bf16.msra.mxu0 %v7839
    %12431 = vmatprep.subr.bf16.mxu0 %v7888
    %12432 = vmatpush1.bf16.msra.mxu0 %v7887
    %12433 = vmatprep.subr.bf16.mxu0 %v7936
    %12434 = vmatpush1.bf16.msra.mxu0 %v7935
    %12435 = vmatprep.subr.bf16.mxu0 %v7984
    %12436 = vmatpush1.bf16.msra.mxu0 %v7983
    %12437 = vmatprep.subr.bf16.mxu0 %v8032
    %12438 = vmatpush1.bf16.msra.mxu0 %v8031
    %12439 = vmatprep.subr.bf16.mxu0 %v8080
    %12440 = vmatpush1.bf16.msra.mxu0 %v8079
    %12441 = vmatprep.subr.bf16.mxu0 %v8128
    %12442 = vmatpush1.bf16.msra.mxu0 %v8127
    %12443 = vmatprep.subr.bf16.mxu0 %v8176
    %12444 = vmatpush1.bf16.msra.mxu0 %v8175
    %12445 = vmatprep.subr.bf16.mxu0 %v8224
    %12446 = vmatpush1.bf16.msra.mxu0 %v8223
    %12447 = vmatprep.mubr.bf16.mxu0 %v1058
    %12448 = vmatmul.mubr.bf16.gmra.mrb[0].mxu0 %v1057
    %v12449 = vpop.f32.mrb[0].mxu0
    %v12450 = vadd.f32 %v2796, %v12449
    %v12451 = vpop.f32.mrb[0].mxu0
    %v12452 = vadd.f32 %v2800, %v12451
    %v12453 = vpop.f32.mrb[0].mxu0
    %v12454 = vpop.f32.mrb[0].mxu0
    %12455 = vdwg.mxu0
    %12456 = vmatprep.subr.bf16.mxu0 %v8272
    %12457 = vmatpush1.bf16.msra.mxu0 %v8271
    %12458 = vmatprep.subr.bf16.mxu0 %v8320
    %12459 = vmatpush1.bf16.msra.mxu0 %v8319
    %12460 = vmatprep.subr.bf16.mxu0 %v8368
    %12461 = vmatpush1.bf16.msra.mxu0 %v8367
    %12462 = vmatprep.subr.bf16.mxu0 %v8416
    %12463 = vmatpush1.bf16.msra.mxu0 %v8415
    %12464 = vmatprep.subr.bf16.mxu0 %v8464
    %12465 = vmatpush1.bf16.msra.mxu0 %v8463
    %12466 = vmatprep.subr.bf16.mxu0 %v8512
    %12467 = vmatpush1.bf16.msra.mxu0 %v8511
    %12468 = vmatprep.subr.bf16.mxu0 %v8560
    %12469 = vmatpush1.bf16.msra.mxu0 %v8559
    %12470 = vmatprep.subr.bf16.mxu0 %v8608
    %12471 = vmatpush1.bf16.msra.mxu0 %v8607
    %12472 = vmatprep.subr.bf16.mxu0 %v8656
    %12473 = vmatpush1.bf16.msra.mxu0 %v8655
    %12474 = vmatprep.subr.bf16.mxu0 %v8704
    %12475 = vmatpush1.bf16.msra.mxu0 %v8703
    %12476 = vmatprep.subr.bf16.mxu0 %v8752
    %12477 = vmatpush1.bf16.msra.mxu0 %v8751
    %12478 = vmatprep.subr.bf16.mxu0 %v8800
    %12479 = vmatpush1.bf16.msra.mxu0 %v8799
    %12480 = vmatprep.subr.bf16.mxu0 %v8848
    %12481 = vmatpush1.bf16.msra.mxu0 %v8847
    %12482 = vmatprep.subr.bf16.mxu0 %v8896
    %12483 = vmatpush1.bf16.msra.mxu0 %v8895
    %12484 = vmatprep.subr.bf16.mxu0 %v8944
    %12485 = vmatpush1.bf16.msra.mxu0 %v8943
    %12486 = vmatprep.subr.bf16.mxu0 %v8992
    %12487 = vmatpush1.bf16.msra.mxu0 %v8991
    %12488 = vmatprep.mubr.bf16.mxu0 %v1060
    %12489 = vmatmul.mubr.bf16.gmra.mrb[0].mxu0 %v1059
    %v12490 = vpop.f32.mrb[0].mxu0
    %v12491 = vadd.f32 %v12450, %v12490
    %v12492 = vpop.f32.mrb[0].mxu0
    %v12493 = vadd.f32 %v12452, %v12492
    %v12494 = vpop.f32.mrb[0].mxu0
    %v12495 = vpop.f32.mrb[0].mxu0
    %12496 = vdwg.mxu0
    %12497 = vst [vmem:[#allocation11] sm:$0xff] %v10605
    %12498 = vst [vmem:[#allocation11 + $0x8] sm:$0xff] %v10607
    %12499 = vst [vmem:[#allocation11 + $0x10] sm:$0xff] %v10687
    %12500 = vst [vmem:[#allocation11 + $0x18] sm:$0xff] %v10689
    %12501 = vst [vmem:[#allocation11 + $0x20] sm:$0xff] %v10769
    %12502 = vst [vmem:[#allocation11 + $0x28] sm:$0xff] %v10771
    %12503 = vst [vmem:[#allocation11 + $0x30] sm:$0xff] %v10851
    %12504 = vst [vmem:[#allocation11 + $0x38] sm:$0xff] %v10853
    %12505 = vst [vmem:[#allocation11 + $0x40] sm:$0xff] %v10933
    %12506 = vst [vmem:[#allocation11 + $0x48] sm:$0xff] %v10935
    %12507 = vst [vmem:[#allocation11 + $0x50] sm:$0xff] %v11015
    %12508 = vst [vmem:[#allocation11 + $0x58] sm:$0xff] %v11017
    %12509 = vst [vmem:[#allocation11 + $0x60] sm:$0xff] %v11097
    %12510 = vst [vmem:[#allocation11 + $0x68] sm:$0xff] %v11099
    %12511 = vst [vmem:[#allocation11 + $0x70] sm:$0xff] %v11179
    %12512 = vst [vmem:[#allocation11 + $0x78] sm:$0xff] %v11181
    %12513 = vst [vmem:[#allocation11 + $0x80] sm:$0xff] %v11261
    %12514 = vst [vmem:[#allocation11 + $0x88] sm:$0xff] %v11263
    %12515 = vst [vmem:[#allocation11 + $0x90] sm:$0xff] %v11343
    %12516 = vst [vmem:[#allocation11 + $0x98] sm:$0xff] %v11345
    %12517 = vst [vmem:[#allocation11 + $0xa0] sm:$0xff] %v11425
    %12518 = vst [vmem:[#allocation11 + $0xa8] sm:$0xff] %v11427
    %12519 = vst [vmem:[#allocation11 + $0xb0] sm:$0xff] %v11507
    %12520 = vst [vmem:[#allocation11 + $0xb8] sm:$0xff] %v11509
    %12521 = vst [vmem:[#allocation11 + $0xc0] sm:$0xff] %v11589
    %12522 = vst [vmem:[#allocation11 + $0xc8] sm:$0xff] %v11591
    %12523 = vst [vmem:[#allocation11 + $0xd0] sm:$0xff] %v11671
    %12524 = vst [vmem:[#allocation11 + $0xd8] sm:$0xff] %v11673
    %12525 = vst [vmem:[#allocation11 + $0xe0] sm:$0xff] %v11753
    %12526 = vst [vmem:[#allocation11 + $0xe8] sm:$0xff] %v11755
    %12527 = vst [vmem:[#allocation11 + $0xf0] sm:$0xff] %v11835
    %12528 = vst [vmem:[#allocation11 + $0xf8] sm:$0xff] %v11837
    %12529 = vst [vmem:[#allocation11 + $0x100] sm:$0xff] %v11917
    %12530 = vst [vmem:[#allocation11 + $0x108] sm:$0xff] %v11919
    %12531 = vst [vmem:[#allocation11 + $0x110] sm:$0xff] %v11999
    %12532 = vst [vmem:[#allocation11 + $0x118] sm:$0xff] %v12001
    %12533 = vst [vmem:[#allocation11 + $0x120] sm:$0xff] %v12081
    %12534 = vst [vmem:[#allocation11 + $0x128] sm:$0xff] %v12083
    %12535 = vst [vmem:[#allocation11 + $0x130] sm:$0xff] %v12163
    %12536 = vst [vmem:[#allocation11 + $0x138] sm:$0xff] %v12165
    %12537 = vst [vmem:[#allocation11 + $0x140] sm:$0xff] %v12245
    %12538 = vst [vmem:[#allocation11 + $0x148] sm:$0xff] %v12247
    %12539 = vst [vmem:[#allocation11 + $0x150] sm:$0xff] %v12327
    %12540 = vst [vmem:[#allocation11 + $0x158] sm:$0xff] %v12329
    %12541 = vst [vmem:[#allocation11 + $0x160] sm:$0xff] %v12409
    %12542 = vst [vmem:[#allocation11 + $0x168] sm:$0xff] %v12411
    %12543 = vst [vmem:[#allocation11 + $0x170] sm:$0xff] %v12491
    %12544 = vst [vmem:[#allocation11 + $0x178] sm:$0xff] %v12493
    // Predicated region
    $region42: #{tpu_custom_call.1} parent=1 // pred_check
      _
    $region43: #{tpu_custom_call.1} parent=1 // pred_check_branch
      %12546 = sbr.rel (0) target = $region45
    $region44: #{tpu_custom_call.1} parent=1 // pred_region
      %s12548 = ssub.s32 6144, 6144
      %12549 = vsyncadd [#allocation4], %s12548
      %s12551 = sshll.u32 [#allocation11], 4
      %s12552 = int_to_ptr.vmem [resolvable:$true] %s12551
      %12554 = dma.vmem_to_hbm [thread:$0]  %s12552, 6144, %s5, [#allocation4]
    $region45: #{tpu_custom_call.1} parent=1 // pred_fallthru
      _
    // Predicated region
    $region46: #{tpu_custom_call.1} parent=1 // pred_check
      _
    $region47: #{tpu_custom_call.1} parent=1 // pred_check_branch
      %12556 = sbr.rel (0) target = $region49
    $region48: #{tpu_custom_call.1} parent=1 // pred_region
      %12557 = dma.done [#allocation4], 6144
    $region49: #{tpu_custom_call.1} parent=1 // pred_fallthru
      _
    %12558 = vsyncpa [#allocation3], 1
    %12559 = vsyncpa [#allocation6], 1
    %12560 = vsyncpa [#allocation9], 1
    %12561 = vsyncpa [#allocation4], 1

</llo_original>
